<compile_context>
chip_gen: v7x
topology: tpu7x:2x2x1
jax: 0.10.0
libtpu: 0.0.40
codegen_flags: <defaults>
</compile_context>

<pallas_src>
import functools
import math

import jax
import jax.numpy as jnp
from jax import lax
from jax.experimental import pallas as pl
from jax.experimental.pallas import tpu as pltpu

# ----------------------------- model hyperparams -----------------------------
N_DECODERS = 2
D_MODEL    = 32
VOCAB_SIZE = 50
H_DIM      = 64
SEQ_LEN    = 8
N_HEADS    = 4
D_HEAD     = D_MODEL // N_HEADS
LN_EPS     = 1e-6
BATCH      = 2

_WEIGHT_ORDER = ("wq", "bq", "wk", "bk", "wv", "bv", "wo", "bo",
                 "w1", "b1", "w2", "b2", "ln_g", "ln_b")


# ------------------------- in-kernel helper functions -------------------------
def _mha_heads(xh, kvh, mask_is_zero, wqh, bqh, wkh, bkh, wvh, bvh, woh, bo):
    """Multi-head attention with heads batched along a leading axis.

    xh, kvh       : (H, S, D)  query / key-value inputs broadcast over heads
    mask_is_zero  : (S, S) boolean, True where masked out
    wqh/wkh/wvh   : (H, D, dh);  bqh/bkh/bvh : (H, 1, dh)  (Wq/bq pre-scaled by 1/sqrt(dh))
    woh           : (H, dh, D);  bo : (1, D)
    returns       : (S, D)
    """
    q = jnp.einsum("hsd,hde->hse", xh,  wqh, preferred_element_type=jnp.float32) + bqh
    k = jnp.einsum("hsd,hde->hse", kvh, wkh, preferred_element_type=jnp.float32) + bkh
    v = jnp.einsum("hsd,hde->hse", kvh, wvh, preferred_element_type=jnp.float32) + bvh

    s = jnp.einsum("hqe,hke->hqk", q, k, preferred_element_type=jnp.float32)   # (H,S,S)
    s = jnp.where(mask_is_zero[None], -1e9, s)
    s = s - jnp.max(s, axis=-1, keepdims=True)
    e = jnp.exp(s)
    p = e * pl.reciprocal(jnp.sum(e, axis=-1, keepdims=True), approx=True)

    ctx  = jnp.einsum("hqk,hke->hqe", p,   v,   preferred_element_type=jnp.float32)  # (H,S,dh)
    outh = jnp.einsum("hqe,hef->hqf", ctx, woh, preferred_element_type=jnp.float32)  # (H,S,D)
    return jnp.sum(outh, axis=0) + bo                                                # (S,D)


def _add_norm(x, y, gamma, beta):
    v   = x + y
    mu  = jnp.mean(v, axis=-1, keepdims=True)
    var = jnp.maximum(jnp.mean(v * v, axis=-1, keepdims=True) - mu * mu, 0.0)
    return gamma * (v - mu) * lax.rsqrt(var + LN_EPS) + beta


def _ffn(x, w1, b1, w2, b2):
    h = jnp.dot(x, w1, preferred_element_type=jnp.float32) + b1
    h = jnp.maximum(h, 0.0)
    return jnp.dot(h, w2, preferred_element_type=jnp.float32) + b2


# ------------------------------ fused Pallas kernel ---------------------------
def _decoder_kernel(x_ref, z_ref, mask_ref,
                    wq_ref, bq_ref, wk_ref, bk_ref, wv_ref, bv_ref,
                    wo_ref, bo_ref, w1_ref, b1_ref, w2_ref, b2_ref,
                    g_ref, beta_ref, o_ref, *, n_layers, n_heads):
    x = x_ref[0]                         # (S, D) for this batch element
    z = z_ref[0]                         # (S, D) encoder output
    mask_is_zero = mask_ref[0] == 0.0    # (S, S), computed once, reused 4x
    S, D = x.shape

    # z is constant across layers -> broadcast over heads once, hoisted out of loop.
    zh = jnp.broadcast_to(z[None], (n_heads, S, D))

    for l in range(n_layers):            # static unrolled loop over layers
        wqh, bqh = wq_ref[l], bq_ref[l]
        wkh, bkh = wk_ref[l], bk_ref[l]
        wvh, bvh = wv_ref[l], bv_ref[l]
        woh, bo  = wo_ref[l], bo_ref[l]
        w1,  b1  = w1_ref[l], b1_ref[l]
        w2,  b2  = w2_ref[l], b2_ref[l]
        g,  beta = g_ref[l],  beta_ref[l]

        # self-attention + add&norm
        xh = jnp.broadcast_to(x[None], (n_heads, S, D))
        a  = _mha_heads(xh, xh, mask_is_zero, wqh, bqh, wkh, bkh, wvh, bvh, woh, bo)
        x  = _add_norm(x, a, g, beta)

        # cross-attention (same Attention weights) + add&norm (same LayerNorm)
        xh = jnp.broadcast_to(x[None], (n_heads, S, D))
        a  = _mha_heads(xh, zh, mask_is_zero, wqh, bqh, wkh, bkh, wvh, bvh, woh, bo)
        x  = _add_norm(x, a, g, beta)

        # position-wise FFN + add&norm
        f = _ffn(x, w1, b1, w2, b2)
        x = _add_norm(x, f, g, beta)

    o_ref[0] = x.astype(o_ref.dtype)


def decoder_stack(x, z, mask, stacked):
    B, S, D = x.shape
    kernel  = functools.partial(_decoder_kernel, n_layers=N_DECODERS, n_heads=N_HEADS)
    weights = [stacked[k] for k in _WEIGHT_ORDER]

    act_spec  = pl.BlockSpec((1, S, D), lambda b: (b, 0, 0))
    mask_spec = pl.BlockSpec((1, S, S), lambda b: (b, 0, 0))

    def const_spec(a):   # whole array, same block every grid step -> loaded once
        zeros = (0,) * a.ndim
        return pl.BlockSpec(a.shape, lambda b: zeros)

    return pl.pallas_call(
        kernel,
        out_shape=jax.ShapeDtypeStruct((B, S, D), x.dtype),
        grid=(B,),
        in_specs=[act_spec, act_spec, mask_spec] + [const_spec(w) for w in weights],
        out_specs=act_spec,
        compiler_params=pltpu.CompilerParams(dimension_semantics=("parallel",)),
    )(x, z, mask, *weights)


# ------------------------------ params & glue ---------------------------------
def init_params(key):
    def dense(k, fan_in, fan_out):
        kw, kb = jax.random.split(k)
        w = jax.random.normal(kw, (fan_in, fan_out), jnp.float32) * 0.02
        b = jax.random.normal(kb, (1, fan_out), jnp.float32) * 0.02
        return w, b

    keys = jax.random.split(key, 2 + N_DECODERS)
    params = {
        "embed": jax.random.normal(keys[0], (VOCAB_SIZE, D_MODEL), jnp.float32) * 0.02,
        "layers": [],
    }
    for i in range(N_DECODERS):
        lk = jax.random.split(keys[2 + i], 8)
        wq, bq = dense(lk[0], D_MODEL, D_MODEL)
        wk, bk = dense(lk[1], D_MODEL, D_MODEL)
        wv, bv = dense(lk[2], D_MODEL, D_MODEL)
        wo, bo = dense(lk[3], D_MODEL, D_MODEL)
        w1, b1 = dense(lk[4], D_MODEL, H_DIM)
        w2, b2 = dense(lk[5], H_DIM, D_MODEL)
        params["layers"].append({
            "attn": (wq, bq, wk, bk, wv, bv, wo, bo),      # ONE Attention per block
            "ffn": (w1, b1, w2, b2),
            "ln_g": jnp.ones((1, D_MODEL), jnp.float32),   # ONE LayerNorm per block
            "ln_b": jnp.zeros((1, D_MODEL), jnp.float32),
        })
    return params


def _split_heads_in(w):    # (D, D) -> (H, D, dh): output columns split per head
    return w.reshape(D_MODEL, N_HEADS, D_HEAD).transpose(1, 0, 2)


def _split_heads_bias(b):  # (1, D) -> (H, 1, dh)
    return b.reshape(1, N_HEADS, D_HEAD).transpose(1, 0, 2)


def _split_heads_out(w):   # (D, D) -> (H, dh, D): input rows split per head
    return w.reshape(N_HEADS, D_HEAD, D_MODEL)


def stack_layer_params(params):
    """Stack per-layer weights along a leading layer axis, split attention weights
    per head, and fold 1/sqrt(dh) into Wq/bq. Constant-folded under jit."""
    scale = 1.0 / math.sqrt(D_HEAD)
    per = {k: [] for k in _WEIGHT_ORDER}
    for lp in params["layers"]:
        wq, bq, wk, bk, wv, bv, wo, bo = lp["attn"]
        w1, b1, w2, b2 = lp["ffn"]
        per["wq"].append(_split_heads_in(wq) * scale)
        per["bq"].append(_split_heads_bias(bq) * scale)
        per["wk"].append(_split_heads_in(wk))
        per["bk"].append(_split_heads_bias(bk))
        per["wv"].append(_split_heads_in(wv))
        per["bv"].append(_split_heads_bias(bv))
        per["wo"].append(_split_heads_out(wo))
        per["bo"].append(bo)
        per["w1"].append(w1)
        per["b1"].append(b1)
        per["w2"].append(w2)
        per["b2"].append(b2)
        per["ln_g"].append(lp["ln_g"])
        per["ln_b"].append(lp["ln_b"])
    return {k: jnp.stack(v) for k, v in per.items()}


def sinusoidal_pe(seq_len, d_model):
    pos = jnp.arange(seq_len, dtype=jnp.float32)[:, None]
    i = jnp.arange(0, d_model, 2, dtype=jnp.float32)
    div = jnp.exp(-(math.log(10000.0)) * i / d_model)
    pe = jnp.zeros((seq_len, d_model), jnp.float32)
    pe = pe.at[:, 0::2].set(jnp.sin(pos * div))
    pe = pe.at[:, 1::2].set(jnp.cos(pos * div))
    return pe


def decoder_forward(tokens, z, mask, params):
    # Embedding lookup + positional encoding: plain-JAX glue (one fused gather+add).
    # TODO(synk): the vocab gather stays outside the Pallas kernel (no tiled hot path).
    x = params["embed"][tokens] * math.sqrt(D_MODEL)           # (B, S, D)
    x = x + sinusoidal_pe(tokens.shape[1], D_MODEL)[None]
    stacked = stack_layer_params(params)                       # constant-folded under jit
    return decoder_stack(x, z, mask, stacked)                  # ONE fused pallas_call


# ---------------------------------- main --------------------------------------
if __name__ == "__main__":
    key = jax.random.PRNGKey(0)
    k_par, k_tok, k_z = jax.random.split(key, 3)

    params = init_params(k_par)
    tokens = jax.random.randint(k_tok, (BATCH, SEQ_LEN), 0, VOCAB_SIZE)      # (B, S)
    z      = jax.random.normal(k_z, (BATCH, SEQ_LEN, D_MODEL), jnp.float32)  # encoder output
    mask   = jnp.broadcast_to(jnp.tril(jnp.ones((SEQ_LEN, SEQ_LEN), jnp.float32)),
                              (BATCH, SEQ_LEN, SEQ_LEN))                     # causal mask

    fwd = jax.jit(functools.partial(decoder_forward, params=params))
    out = fwd(tokens, z, mask)
    jax.block_until_ready(out)

    assert out.shape == (BATCH, SEQ_LEN, D_MODEL)
    assert bool(jnp.all(jnp.isfinite(out)))
    print("KERNEL_OK")
</pallas_src>

<mosaic_0001>
module attributes {stable_mosaic.version = 11 : i64} {
  func.func @_decoder_kernel(%arg0: i32, %arg1: memref<1x8x32xf32, #tpu.memory_space<vmem>>, %arg2: memref<1x8x32xf32, #tpu.memory_space<vmem>>, %arg3: memref<1x8x8xf32, #tpu.memory_space<vmem>>, %arg4: memref<2x4x32x8xf32, #tpu.memory_space<vmem>>, %arg5: memref<2x4x1x8xf32, #tpu.memory_space<vmem>>, %arg6: memref<2x4x32x8xf32, #tpu.memory_space<vmem>>, %arg7: memref<2x4x1x8xf32, #tpu.memory_space<vmem>>, %arg8: memref<2x4x32x8xf32, #tpu.memory_space<vmem>>, %arg9: memref<2x4x1x8xf32, #tpu.memory_space<vmem>>, %arg10: memref<2x4x8x32xf32, #tpu.memory_space<vmem>>, %arg11: memref<2x1x32xf32, #tpu.memory_space<vmem>>, %arg12: memref<2x32x64xf32, #tpu.memory_space<vmem>>, %arg13: memref<2x1x64xf32, #tpu.memory_space<vmem>>, %arg14: memref<2x64x32xf32, #tpu.memory_space<vmem>>, %arg15: memref<2x1x32xf32, #tpu.memory_space<vmem>>, %arg16: memref<2x1x32xf32, #tpu.memory_space<vmem>>, %arg17: memref<2x1x32xf32, #tpu.memory_space<vmem>>, %arg18: memref<1x8x32xf32, #tpu.memory_space<vmem>>) attributes {dimension_semantics = [#tpu.dimension_semantics<parallel>], iteration_bounds = array<i64: 2>, scalar_prefetch = 0 : i64, scratch_operands = 0 : i64, tpu.core_type = #tpu.core_type<tc>, window_params = [{transform_indices = @transform_0, window_bounds = array<i64: 1, 8, 32>}, {transform_indices = @transform_1, window_bounds = array<i64: 1, 8, 32>}, {transform_indices = @transform_2, window_bounds = array<i64: 1, 8, 8>}, {pipeline_mode = #tpu.pipeline_mode<synchronous>, transform_indices = @transform_3, window_bounds = array<i64: 2, 4, 32, 8>}, {pipeline_mode = #tpu.pipeline_mode<synchronous>, transform_indices = @transform_4, window_bounds = array<i64: 2, 4, 1, 8>}, {pipeline_mode = #tpu.pipeline_mode<synchronous>, transform_indices = @transform_5, window_bounds = array<i64: 2, 4, 32, 8>}, {pipeline_mode = #tpu.pipeline_mode<synchronous>, transform_indices = @transform_6, window_bounds = array<i64: 2, 4, 1, 8>}, {pipeline_mode = #tpu.pipeline_mode<synchronous>, transform_indices = @transform_7, window_bounds = array<i64: 2, 4, 32, 8>}, {pipeline_mode = #tpu.pipeline_mode<synchronous>, transform_indices = @transform_8, window_bounds = array<i64: 2, 4, 1, 8>}, {pipeline_mode = #tpu.pipeline_mode<synchronous>, transform_indices = @transform_9, window_bounds = array<i64: 2, 4, 8, 32>}, {pipeline_mode = #tpu.pipeline_mode<synchronous>, transform_indices = @transform_10, window_bounds = array<i64: 2, 1, 32>}, {pipeline_mode = #tpu.pipeline_mode<synchronous>, transform_indices = @transform_11, window_bounds = array<i64: 2, 32, 64>}, {pipeline_mode = #tpu.pipeline_mode<synchronous>, transform_indices = @transform_12, window_bounds = array<i64: 2, 1, 64>}, {pipeline_mode = #tpu.pipeline_mode<synchronous>, transform_indices = @transform_13, window_bounds = array<i64: 2, 64, 32>}, {pipeline_mode = #tpu.pipeline_mode<synchronous>, transform_indices = @transform_14, window_bounds = array<i64: 2, 1, 32>}, {pipeline_mode = #tpu.pipeline_mode<synchronous>, transform_indices = @transform_15, window_bounds = array<i64: 2, 1, 32>}, {pipeline_mode = #tpu.pipeline_mode<synchronous>, transform_indices = @transform_16, window_bounds = array<i64: 2, 1, 32>}, {transform_indices = @transform_17, window_bounds = array<i64: 1, 8, 32>}]} {
    %c0 = arith.constant 0 : index
    %c0_0 = arith.constant 0 : index
    %c0_1 = arith.constant 0 : index
    %0 = vector.load %arg1[%c0, %c0_0, %c0_1] : memref<1x8x32xf32, #tpu.memory_space<vmem>>, vector<1x8x32xf32>
    %1 = vector.shape_cast %0 : vector<1x8x32xf32> to vector<8x32xf32>
    %c0_2 = arith.constant 0 : index
    %c0_3 = arith.constant 0 : index
    %c0_4 = arith.constant 0 : index
    %2 = vector.load %arg2[%c0_2, %c0_3, %c0_4] : memref<1x8x32xf32, #tpu.memory_space<vmem>>, vector<1x8x32xf32>
    %3 = vector.shape_cast %2 : vector<1x8x32xf32> to vector<8x32xf32>
    %c0_5 = arith.constant 0 : index
    %c0_6 = arith.constant 0 : index
    %c0_7 = arith.constant 0 : index
    %4 = vector.load %arg3[%c0_5, %c0_6, %c0_7] : memref<1x8x8xf32, #tpu.memory_space<vmem>>, vector<1x8x8xf32>
    %5 = vector.shape_cast %4 : vector<1x8x8xf32> to vector<8x8xf32>
    %cst = arith.constant 0.000000e+00 : f32
    %6 = vector.broadcast %cst : f32 to vector<8x8xf32>
    %7 = arith.cmpf oeq, %5, %6 : vector<8x8xf32>
    %8 = vector.shape_cast %3 : vector<8x32xf32> to vector<1x8x32xf32>
    %9 = vector.shape_cast %8 : vector<1x8x32xf32> to vector<1x8x32xf32>
    %10 = vector.broadcast %9 : vector<1x8x32xf32> to vector<4x8x32xf32>
    %c0_8 = arith.constant 0 : index
    %c0_9 = arith.constant 0 : index
    %c0_10 = arith.constant 0 : index
    %c0_11 = arith.constant 0 : index
    %11 = vector.load %arg4[%c0_8, %c0_9, %c0_10, %c0_11] : memref<2x4x32x8xf32, #tpu.memory_space<vmem>>, vector<1x4x32x8xf32>
    %12 = vector.shape_cast %11 : vector<1x4x32x8xf32> to vector<4x32x8xf32>
    %c0_12 = arith.constant 0 : index
    %c0_13 = arith.constant 0 : index
    %c0_14 = arith.constant 0 : index
    %c0_15 = arith.constant 0 : index
    %13 = vector.load %arg5[%c0_12, %c0_13, %c0_14, %c0_15] : memref<2x4x1x8xf32, #tpu.memory_space<vmem>>, vector<1x4x1x8xf32>
    %14 = vector.shape_cast %13 : vector<1x4x1x8xf32> to vector<4x1x8xf32>
    %c0_16 = arith.constant 0 : index
    %c0_17 = arith.constant 0 : index
    %c0_18 = arith.constant 0 : index
    %c0_19 = arith.constant 0 : index
    %15 = vector.load %arg6[%c0_16, %c0_17, %c0_18, %c0_19] : memref<2x4x32x8xf32, #tpu.memory_space<vmem>>, vector<1x4x32x8xf32>
    %16 = vector.shape_cast %15 : vector<1x4x32x8xf32> to vector<4x32x8xf32>
    %c0_20 = arith.constant 0 : index
    %c0_21 = arith.constant 0 : index
    %c0_22 = arith.constant 0 : index
    %c0_23 = arith.constant 0 : index
    %17 = vector.load %arg7[%c0_20, %c0_21, %c0_22, %c0_23] : memref<2x4x1x8xf32, #tpu.memory_space<vmem>>, vector<1x4x1x8xf32>
    %18 = vector.shape_cast %17 : vector<1x4x1x8xf32> to vector<4x1x8xf32>
    %c0_24 = arith.constant 0 : index
    %c0_25 = arith.constant 0 : index
    %c0_26 = arith.constant 0 : index
    %c0_27 = arith.constant 0 : index
    %19 = vector.load %arg8[%c0_24, %c0_25, %c0_26, %c0_27] : memref<2x4x32x8xf32, #tpu.memory_space<vmem>>, vector<1x4x32x8xf32>
    %20 = vector.shape_cast %19 : vector<1x4x32x8xf32> to vector<4x32x8xf32>
    %c0_28 = arith.constant 0 : index
    %c0_29 = arith.constant 0 : index
    %c0_30 = arith.constant 0 : index
    %c0_31 = arith.constant 0 : index
    %21 = vector.load %arg9[%c0_28, %c0_29, %c0_30, %c0_31] : memref<2x4x1x8xf32, #tpu.memory_space<vmem>>, vector<1x4x1x8xf32>
    %22 = vector.shape_cast %21 : vector<1x4x1x8xf32> to vector<4x1x8xf32>
    %c0_32 = arith.constant 0 : index
    %c0_33 = arith.constant 0 : index
    %c0_34 = arith.constant 0 : index
    %c0_35 = arith.constant 0 : index
    %23 = vector.load %arg10[%c0_32, %c0_33, %c0_34, %c0_35] : memref<2x4x8x32xf32, #tpu.memory_space<vmem>>, vector<1x4x8x32xf32>
    %24 = vector.shape_cast %23 : vector<1x4x8x32xf32> to vector<4x8x32xf32>
    %c0_36 = arith.constant 0 : index
    %c0_37 = arith.constant 0 : index
    %c0_38 = arith.constant 0 : index
    %25 = vector.load %arg11[%c0_36, %c0_37, %c0_38] : memref<2x1x32xf32, #tpu.memory_space<vmem>>, vector<1x1x32xf32>
    %26 = vector.shape_cast %25 : vector<1x1x32xf32> to vector<1x32xf32>
    %c0_39 = arith.constant 0 : index
    %c0_40 = arith.constant 0 : index
    %c0_41 = arith.constant 0 : index
    %27 = vector.load %arg12[%c0_39, %c0_40, %c0_41] : memref<2x32x64xf32, #tpu.memory_space<vmem>>, vector<1x32x64xf32>
    %28 = vector.shape_cast %27 : vector<1x32x64xf32> to vector<32x64xf32>
    %c0_42 = arith.constant 0 : index
    %c0_43 = arith.constant 0 : index
    %c0_44 = arith.constant 0 : index
    %29 = vector.load %arg13[%c0_42, %c0_43, %c0_44] : memref<2x1x64xf32, #tpu.memory_space<vmem>>, vector<1x1x64xf32>
    %30 = vector.shape_cast %29 : vector<1x1x64xf32> to vector<1x64xf32>
    %c0_45 = arith.constant 0 : index
    %c0_46 = arith.constant 0 : index
    %c0_47 = arith.constant 0 : index
    %31 = vector.load %arg14[%c0_45, %c0_46, %c0_47] : memref<2x64x32xf32, #tpu.memory_space<vmem>>, vector<1x64x32xf32>
    %32 = vector.shape_cast %31 : vector<1x64x32xf32> to vector<64x32xf32>
    %c0_48 = arith.constant 0 : index
    %c0_49 = arith.constant 0 : index
    %c0_50 = arith.constant 0 : index
    %33 = vector.load %arg15[%c0_48, %c0_49, %c0_50] : memref<2x1x32xf32, #tpu.memory_space<vmem>>, vector<1x1x32xf32>
    %34 = vector.shape_cast %33 : vector<1x1x32xf32> to vector<1x32xf32>
    %c0_51 = arith.constant 0 : index
    %c0_52 = arith.constant 0 : index
    %c0_53 = arith.constant 0 : index
    %35 = vector.load %arg16[%c0_51, %c0_52, %c0_53] : memref<2x1x32xf32, #tpu.memory_space<vmem>>, vector<1x1x32xf32>
    %36 = vector.shape_cast %35 : vector<1x1x32xf32> to vector<1x32xf32>
    %c0_54 = arith.constant 0 : index
    %c0_55 = arith.constant 0 : index
    %c0_56 = arith.constant 0 : index
    %37 = vector.load %arg17[%c0_54, %c0_55, %c0_56] : memref<2x1x32xf32, #tpu.memory_space<vmem>>, vector<1x1x32xf32>
    %38 = vector.shape_cast %37 : vector<1x1x32xf32> to vector<1x32xf32>
    %39 = vector.shape_cast %1 : vector<8x32xf32> to vector<1x8x32xf32>
    %40 = vector.shape_cast %39 : vector<1x8x32xf32> to vector<1x8x32xf32>
    %41 = vector.broadcast %40 : vector<1x8x32xf32> to vector<4x8x32xf32>
    "tpu.trace_start"() <{level = 10 : i32, message = "hsd,hde->hse"}> : () -> ()
    %cst_57 = arith.constant dense<0.000000e+00> : vector<4x8x8xf32>
    %42 = tpu.matmul %41, %12, %cst_57 {dimension_numbers = #tpu.dot_dimension_numbers<[2], [1], [1], [2], [0, 0, 0, 1, 1, 2], [0], [0]>} : vector<4x8x32xf32>, vector<4x32x8xf32>, vector<4x8x8xf32> -> vector<4x8x8xf32>
    "tpu.trace_stop"() : () -> ()
    %43 = vector.broadcast %14 : vector<4x1x8xf32> to vector<4x8x8xf32>
    %44 = arith.addf %42, %43 : vector<4x8x8xf32>
    "tpu.trace_start"() <{level = 10 : i32, message = "hsd,hde->hse"}> : () -> ()
    %cst_58 = arith.constant dense<0.000000e+00> : vector<4x8x8xf32>
    %45 = tpu.matmul %41, %16, %cst_58 {dimension_numbers = #tpu.dot_dimension_numbers<[2], [1], [1], [2], [0, 0, 0, 1, 1, 2], [0], [0]>} : vector<4x8x32xf32>, vector<4x32x8xf32>, vector<4x8x8xf32> -> vector<4x8x8xf32>
    "tpu.trace_stop"() : () -> ()
    %46 = vector.broadcast %18 : vector<4x1x8xf32> to vector<4x8x8xf32>
    %47 = arith.addf %45, %46 : vector<4x8x8xf32>
    "tpu.trace_start"() <{level = 10 : i32, message = "hsd,hde->hse"}> : () -> ()
    %cst_59 = arith.constant dense<0.000000e+00> : vector<4x8x8xf32>
    %48 = tpu.matmul %41, %20, %cst_59 {dimension_numbers = #tpu.dot_dimension_numbers<[2], [1], [1], [2], [0, 0, 0, 1, 1, 2], [0], [0]>} : vector<4x8x32xf32>, vector<4x32x8xf32>, vector<4x8x8xf32> -> vector<4x8x8xf32>
    "tpu.trace_stop"() : () -> ()
    %49 = vector.broadcast %22 : vector<4x1x8xf32> to vector<4x8x8xf32>
    %50 = arith.addf %48, %49 : vector<4x8x8xf32>
    "tpu.trace_start"() <{level = 10 : i32, message = "hqe,hke->hqk"}> : () -> ()
    %cst_60 = arith.constant dense<0.000000e+00> : vector<4x8x8xf32>
    %51 = tpu.matmul %44, %47, %cst_60 {dimension_numbers = #tpu.dot_dimension_numbers<[2], [2], [1], [1], [0, 0, 0, 1, 1, 1], [0], [0]>} : vector<4x8x8xf32>, vector<4x8x8xf32>, vector<4x8x8xf32> -> vector<4x8x8xf32>
    "tpu.trace_stop"() : () -> ()
    %52 = vector.shape_cast %7 : vector<8x8xi1> to vector<1x8x8xi1>
    %cst_61 = arith.constant -1.000000e+09 : f32
    %53 = vector.shape_cast %52 : vector<1x8x8xi1> to vector<1x8x8xi1>
    %54 = vector.broadcast %53 : vector<1x8x8xi1> to vector<4x8x8xi1>
    %55 = vector.broadcast %cst_61 : f32 to vector<4x8x8xf32>
    %56 = arith.select %54, %55, %51 : vector<4x8x8xi1>, vector<4x8x8xf32>
    %cst_62 = arith.constant dense<0xFF800000> : vector<4x8xf32>
    %57 = vector.multi_reduction <maximumf>, %56, %cst_62 [2] : vector<4x8x8xf32> to vector<4x8xf32>
    %58 = vector.shape_cast %57 : vector<4x8xf32> to vector<4x8x1xf32>
    %59 = vector.broadcast %58 : vector<4x8x1xf32> to vector<4x8x8xf32>
    %60 = arith.subf %56, %59 : vector<4x8x8xf32>
    %61 = math.exp %60 : vector<4x8x8xf32>
    %cst_63 = arith.constant dense<0.000000e+00> : vector<4x8xf32>
    %62 = vector.multi_reduction <add>, %61, %cst_63 [2] : vector<4x8x8xf32> to vector<4x8xf32>
    %63 = vector.shape_cast %62 : vector<4x8xf32> to vector<4x8x1xf32>
    %64 = tpu.reciprocal %63 {approx = true} : vector<4x8x1xf32> -> vector<4x8x1xf32>
    %65 = vector.broadcast %64 : vector<4x8x1xf32> to vector<4x8x8xf32>
    %66 = arith.mulf %61, %65 : vector<4x8x8xf32>
    "tpu.trace_start"() <{level = 10 : i32, message = "hqk,hke->hqe"}> : () -> ()
    %cst_64 = arith.constant dense<0.000000e+00> : vector<4x8x8xf32>
    %67 = tpu.matmul %66, %50, %cst_64 {dimension_numbers = #tpu.dot_dimension_numbers<[2], [1], [1], [2], [0, 0, 0, 1, 1, 2], [0], [0]>} : vector<4x8x8xf32>, vector<4x8x8xf32>, vector<4x8x8xf32> -> vector<4x8x8xf32>
    "tpu.trace_stop"() : () -> ()
    "tpu.trace_start"() <{level = 10 : i32, message = "hqe,hef->hqf"}> : () -> ()
    %cst_65 = arith.constant dense<0.000000e+00> : vector<4x8x32xf32>
    %68 = tpu.matmul %67, %24, %cst_65 {dimension_numbers = #tpu.dot_dimension_numbers<[2], [1], [1], [2], [0, 0, 0, 1, 1, 2], [0], [0]>} : vector<4x8x8xf32>, vector<4x8x32xf32>, vector<4x8x32xf32> -> vector<4x8x32xf32>
    "tpu.trace_stop"() : () -> ()
    %cst_66 = arith.constant dense<0.000000e+00> : vector<8x32xf32>
    %69 = vector.multi_reduction <add>, %68, %cst_66 [0] : vector<4x8x32xf32> to vector<8x32xf32>
    %70 = vector.broadcast %26 : vector<1x32xf32> to vector<8x32xf32>
    %71 = arith.addf %69, %70 : vector<8x32xf32>
    %72 = arith.addf %1, %71 : vector<8x32xf32>
    %cst_67 = arith.constant dense<0.000000e+00> : vector<8xf32>
    %73 = vector.multi_reduction <add>, %72, %cst_67 [1] : vector<8x32xf32> to vector<8xf32>
    %74 = vector.shape_cast %73 : vector<8xf32> to vector<8x1xf32>
    %cst_68 = arith.constant 3.200000e+01 : f32
    %75 = vector.broadcast %cst_68 : f32 to vector<8x1xf32>
    %76 = arith.divf %74, %75 : vector<8x1xf32>
    %77 = arith.mulf %72, %72 : vector<8x32xf32>
    %cst_69 = arith.constant dense<0.000000e+00> : vector<8xf32>
    %78 = vector.multi_reduction <add>, %77, %cst_69 [1] : vector<8x32xf32> to vector<8xf32>
    %79 = vector.shape_cast %78 : vector<8xf32> to vector<8x1xf32>
    %cst_70 = arith.constant 3.200000e+01 : f32
    %80 = vector.broadcast %cst_70 : f32 to vector<8x1xf32>
    %81 = arith.divf %79, %80 : vector<8x1xf32>
    %82 = arith.mulf %76, %76 : vector<8x1xf32>
    %83 = arith.subf %81, %82 : vector<8x1xf32>
    %cst_71 = arith.constant 0.000000e+00 : f32
    %84 = vector.broadcast %cst_71 : f32 to vector<8x1xf32>
    %85 = arith.maximumf %83, %84 : vector<8x1xf32>
    %86 = vector.broadcast %76 : vector<8x1xf32> to vector<8x32xf32>
    %87 = arith.subf %72, %86 : vector<8x32xf32>
    %88 = vector.broadcast %36 : vector<1x32xf32> to vector<8x32xf32>
    %89 = arith.mulf %88, %87 : vector<8x32xf32>
    %cst_72 = arith.constant 9.99999997E-7 : f32
    %90 = vector.broadcast %cst_72 : f32 to vector<8x1xf32>
    %91 = arith.addf %85, %90 : vector<8x1xf32>
    %92 = math.rsqrt %91 : vector<8x1xf32>
    %93 = vector.broadcast %92 : vector<8x1xf32> to vector<8x32xf32>
    %94 = arith.mulf %89, %93 : vector<8x32xf32>
    %95 = vector.broadcast %38 : vector<1x32xf32> to vector<8x32xf32>
    %96 = arith.addf %94, %95 : vector<8x32xf32>
    %97 = vector.shape_cast %96 : vector<8x32xf32> to vector<1x8x32xf32>
    %98 = vector.shape_cast %97 : vector<1x8x32xf32> to vector<1x8x32xf32>
    %99 = vector.broadcast %98 : vector<1x8x32xf32> to vector<4x8x32xf32>
    "tpu.trace_start"() <{level = 10 : i32, message = "hsd,hde->hse"}> : () -> ()
    %cst_73 = arith.constant dense<0.000000e+00> : vector<4x8x8xf32>
    %100 = tpu.matmul %99, %12, %cst_73 {dimension_numbers = #tpu.dot_dimension_numbers<[2], [1], [1], [2], [0, 0, 0, 1, 1, 2], [0], [0]>} : vector<4x8x32xf32>, vector<4x32x8xf32>, vector<4x8x8xf32> -> vector<4x8x8xf32>
    "tpu.trace_stop"() : () -> ()
    %101 = vector.broadcast %14 : vector<4x1x8xf32> to vector<4x8x8xf32>
    %102 = arith.addf %100, %101 : vector<4x8x8xf32>
    "tpu.trace_start"() <{level = 10 : i32, message = "hsd,hde->hse"}> : () -> ()
    %cst_74 = arith.constant dense<0.000000e+00> : vector<4x8x8xf32>
    %103 = tpu.matmul %10, %16, %cst_74 {dimension_numbers = #tpu.dot_dimension_numbers<[2], [1], [1], [2], [0, 0, 0, 1, 1, 2], [0], [0]>} : vector<4x8x32xf32>, vector<4x32x8xf32>, vector<4x8x8xf32> -> vector<4x8x8xf32>
    "tpu.trace_stop"() : () -> ()
    %104 = vector.broadcast %18 : vector<4x1x8xf32> to vector<4x8x8xf32>
    %105 = arith.addf %103, %104 : vector<4x8x8xf32>
    "tpu.trace_start"() <{level = 10 : i32, message = "hsd,hde->hse"}> : () -> ()
    %cst_75 = arith.constant dense<0.000000e+00> : vector<4x8x8xf32>
    %106 = tpu.matmul %10, %20, %cst_75 {dimension_numbers = #tpu.dot_dimension_numbers<[2], [1], [1], [2], [0, 0, 0, 1, 1, 2], [0], [0]>} : vector<4x8x32xf32>, vector<4x32x8xf32>, vector<4x8x8xf32> -> vector<4x8x8xf32>
    "tpu.trace_stop"() : () -> ()
    %107 = vector.broadcast %22 : vector<4x1x8xf32> to vector<4x8x8xf32>
    %108 = arith.addf %106, %107 : vector<4x8x8xf32>
    "tpu.trace_start"() <{level = 10 : i32, message = "hqe,hke->hqk"}> : () -> ()
    %cst_76 = arith.constant dense<0.000000e+00> : vector<4x8x8xf32>
    %109 = tpu.matmul %102, %105, %cst_76 {dimension_numbers = #tpu.dot_dimension_numbers<[2], [2], [1], [1], [0, 0, 0, 1, 1, 1], [0], [0]>} : vector<4x8x8xf32>, vector<4x8x8xf32>, vector<4x8x8xf32> -> vector<4x8x8xf32>
    "tpu.trace_stop"() : () -> ()
    %110 = vector.shape_cast %7 : vector<8x8xi1> to vector<1x8x8xi1>
    %cst_77 = arith.constant -1.000000e+09 : f32
    %111 = vector.shape_cast %110 : vector<1x8x8xi1> to vector<1x8x8xi1>
    %112 = vector.broadcast %111 : vector<1x8x8xi1> to vector<4x8x8xi1>
    %113 = vector.broadcast %cst_77 : f32 to vector<4x8x8xf32>
    %114 = arith.select %112, %113, %109 : vector<4x8x8xi1>, vector<4x8x8xf32>
    %cst_78 = arith.constant dense<0xFF800000> : vector<4x8xf32>
    %115 = vector.multi_reduction <maximumf>, %114, %cst_78 [2] : vector<4x8x8xf32> to vector<4x8xf32>
    %116 = vector.shape_cast %115 : vector<4x8xf32> to vector<4x8x1xf32>
    %117 = vector.broadcast %116 : vector<4x8x1xf32> to vector<4x8x8xf32>
    %118 = arith.subf %114, %117 : vector<4x8x8xf32>
    %119 = math.exp %118 : vector<4x8x8xf32>
    %cst_79 = arith.constant dense<0.000000e+00> : vector<4x8xf32>
    %120 = vector.multi_reduction <add>, %119, %cst_79 [2] : vector<4x8x8xf32> to vector<4x8xf32>
    %121 = vector.shape_cast %120 : vector<4x8xf32> to vector<4x8x1xf32>
    %122 = tpu.reciprocal %121 {approx = true} : vector<4x8x1xf32> -> vector<4x8x1xf32>
    %123 = vector.broadcast %122 : vector<4x8x1xf32> to vector<4x8x8xf32>
    %124 = arith.mulf %119, %123 : vector<4x8x8xf32>
    "tpu.trace_start"() <{level = 10 : i32, message = "hqk,hke->hqe"}> : () -> ()
    %cst_80 = arith.constant dense<0.000000e+00> : vector<4x8x8xf32>
    %125 = tpu.matmul %124, %108, %cst_80 {dimension_numbers = #tpu.dot_dimension_numbers<[2], [1], [1], [2], [0, 0, 0, 1, 1, 2], [0], [0]>} : vector<4x8x8xf32>, vector<4x8x8xf32>, vector<4x8x8xf32> -> vector<4x8x8xf32>
    "tpu.trace_stop"() : () -> ()
    "tpu.trace_start"() <{level = 10 : i32, message = "hqe,hef->hqf"}> : () -> ()
    %cst_81 = arith.constant dense<0.000000e+00> : vector<4x8x32xf32>
    %126 = tpu.matmul %125, %24, %cst_81 {dimension_numbers = #tpu.dot_dimension_numbers<[2], [1], [1], [2], [0, 0, 0, 1, 1, 2], [0], [0]>} : vector<4x8x8xf32>, vector<4x8x32xf32>, vector<4x8x32xf32> -> vector<4x8x32xf32>
    "tpu.trace_stop"() : () -> ()
    %cst_82 = arith.constant dense<0.000000e+00> : vector<8x32xf32>
    %127 = vector.multi_reduction <add>, %126, %cst_82 [0] : vector<4x8x32xf32> to vector<8x32xf32>
    %128 = vector.broadcast %26 : vector<1x32xf32> to vector<8x32xf32>
    %129 = arith.addf %127, %128 : vector<8x32xf32>
    %130 = arith.addf %96, %129 : vector<8x32xf32>
    %cst_83 = arith.constant dense<0.000000e+00> : vector<8xf32>
    %131 = vector.multi_reduction <add>, %130, %cst_83 [1] : vector<8x32xf32> to vector<8xf32>
    %132 = vector.shape_cast %131 : vector<8xf32> to vector<8x1xf32>
    %cst_84 = arith.constant 3.200000e+01 : f32
    %133 = vector.broadcast %cst_84 : f32 to vector<8x1xf32>
    %134 = arith.divf %132, %133 : vector<8x1xf32>
    %135 = arith.mulf %130, %130 : vector<8x32xf32>
    %cst_85 = arith.constant dense<0.000000e+00> : vector<8xf32>
    %136 = vector.multi_reduction <add>, %135, %cst_85 [1] : vector<8x32xf32> to vector<8xf32>
    %137 = vector.shape_cast %136 : vector<8xf32> to vector<8x1xf32>
    %cst_86 = arith.constant 3.200000e+01 : f32
    %138 = vector.broadcast %cst_86 : f32 to vector<8x1xf32>
    %139 = arith.divf %137, %138 : vector<8x1xf32>
    %140 = arith.mulf %134, %134 : vector<8x1xf32>
    %141 = arith.subf %139, %140 : vector<8x1xf32>
    %cst_87 = arith.constant 0.000000e+00 : f32
    %142 = vector.broadcast %cst_87 : f32 to vector<8x1xf32>
    %143 = arith.maximumf %141, %142 : vector<8x1xf32>
    %144 = vector.broadcast %134 : vector<8x1xf32> to vector<8x32xf32>
    %145 = arith.subf %130, %144 : vector<8x32xf32>
    %146 = vector.broadcast %36 : vector<1x32xf32> to vector<8x32xf32>
    %147 = arith.mulf %146, %145 : vector<8x32xf32>
    %cst_88 = arith.constant 9.99999997E-7 : f32
    %148 = vector.broadcast %cst_88 : f32 to vector<8x1xf32>
    %149 = arith.addf %143, %148 : vector<8x1xf32>
    %150 = math.rsqrt %149 : vector<8x1xf32>
    %151 = vector.broadcast %150 : vector<8x1xf32> to vector<8x32xf32>
    %152 = arith.mulf %147, %151 : vector<8x32xf32>
    %153 = vector.broadcast %38 : vector<1x32xf32> to vector<8x32xf32>
    %154 = arith.addf %152, %153 : vector<8x32xf32>
    %cst_89 = arith.constant dense<0.000000e+00> : vector<8x64xf32>
    %155 = tpu.matmul %154, %28, %cst_89 {dimension_numbers = #tpu.dot_dimension_numbers<[1], [0], [0], [1], [0, 0, 1, 1], [], []>} : vector<8x32xf32>, vector<32x64xf32>, vector<8x64xf32> -> vector<8x64xf32>
    %156 = vector.broadcast %30 : vector<1x64xf32> to vector<8x64xf32>
    %157 = arith.addf %155, %156 : vector<8x64xf32>
    %cst_90 = arith.constant 0.000000e+00 : f32
    %158 = vector.broadcast %cst_90 : f32 to vector<8x64xf32>
    %159 = arith.maximumf %157, %158 : vector<8x64xf32>
    %cst_91 = arith.constant dense<0.000000e+00> : vector<8x32xf32>
    %160 = tpu.matmul %159, %32, %cst_91 {dimension_numbers = #tpu.dot_dimension_numbers<[1], [0], [0], [1], [0, 0, 1, 1], [], []>} : vector<8x64xf32>, vector<64x32xf32>, vector<8x32xf32> -> vector<8x32xf32>
    %161 = vector.broadcast %34 : vector<1x32xf32> to vector<8x32xf32>
    %162 = arith.addf %160, %161 : vector<8x32xf32>
    %163 = arith.addf %154, %162 : vector<8x32xf32>
    %cst_92 = arith.constant dense<0.000000e+00> : vector<8xf32>
    %164 = vector.multi_reduction <add>, %163, %cst_92 [1] : vector<8x32xf32> to vector<8xf32>
    %165 = vector.shape_cast %164 : vector<8xf32> to vector<8x1xf32>
    %cst_93 = arith.constant 3.200000e+01 : f32
    %166 = vector.broadcast %cst_93 : f32 to vector<8x1xf32>
    %167 = arith.divf %165, %166 : vector<8x1xf32>
    %168 = arith.mulf %163, %163 : vector<8x32xf32>
    %cst_94 = arith.constant dense<0.000000e+00> : vector<8xf32>
    %169 = vector.multi_reduction <add>, %168, %cst_94 [1] : vector<8x32xf32> to vector<8xf32>
    %170 = vector.shape_cast %169 : vector<8xf32> to vector<8x1xf32>
    %cst_95 = arith.constant 3.200000e+01 : f32
    %171 = vector.broadcast %cst_95 : f32 to vector<8x1xf32>
    %172 = arith.divf %170, %171 : vector<8x1xf32>
    %173 = arith.mulf %167, %167 : vector<8x1xf32>
    %174 = arith.subf %172, %173 : vector<8x1xf32>
    %cst_96 = arith.constant 0.000000e+00 : f32
    %175 = vector.broadcast %cst_96 : f32 to vector<8x1xf32>
    %176 = arith.maximumf %174, %175 : vector<8x1xf32>
    %177 = vector.broadcast %167 : vector<8x1xf32> to vector<8x32xf32>
    %178 = arith.subf %163, %177 : vector<8x32xf32>
    %179 = vector.broadcast %36 : vector<1x32xf32> to vector<8x32xf32>
    %180 = arith.mulf %179, %178 : vector<8x32xf32>
    %cst_97 = arith.constant 9.99999997E-7 : f32
    %181 = vector.broadcast %cst_97 : f32 to vector<8x1xf32>
    %182 = arith.addf %176, %181 : vector<8x1xf32>
    %183 = math.rsqrt %182 : vector<8x1xf32>
    %184 = vector.broadcast %183 : vector<8x1xf32> to vector<8x32xf32>
    %185 = arith.mulf %180, %184 : vector<8x32xf32>
    %186 = vector.broadcast %38 : vector<1x32xf32> to vector<8x32xf32>
    %187 = arith.addf %185, %186 : vector<8x32xf32>
    %c1 = arith.constant 1 : index
    %c0_98 = arith.constant 0 : index
    %c0_99 = arith.constant 0 : index
    %c0_100 = arith.constant 0 : index
    %188 = vector.load %arg4[%c1, %c0_98, %c0_99, %c0_100] : memref<2x4x32x8xf32, #tpu.memory_space<vmem>>, vector<1x4x32x8xf32>
    %189 = vector.shape_cast %188 : vector<1x4x32x8xf32> to vector<4x32x8xf32>
    %c1_101 = arith.constant 1 : index
    %c0_102 = arith.constant 0 : index
    %c0_103 = arith.constant 0 : index
    %c0_104 = arith.constant 0 : index
    %190 = vector.load %arg5[%c1_101, %c0_102, %c0_103, %c0_104] : memref<2x4x1x8xf32, #tpu.memory_space<vmem>>, vector<1x4x1x8xf32>
    %191 = vector.shape_cast %190 : vector<1x4x1x8xf32> to vector<4x1x8xf32>
    %c1_105 = arith.constant 1 : index
    %c0_106 = arith.constant 0 : index
    %c0_107 = arith.constant 0 : index
    %c0_108 = arith.constant 0 : index
    %192 = vector.load %arg6[%c1_105, %c0_106, %c0_107, %c0_108] : memref<2x4x32x8xf32, #tpu.memory_space<vmem>>, vector<1x4x32x8xf32>
    %193 = vector.shape_cast %192 : vector<1x4x32x8xf32> to vector<4x32x8xf32>
    %c1_109 = arith.constant 1 : index
    %c0_110 = arith.constant 0 : index
    %c0_111 = arith.constant 0 : index
    %c0_112 = arith.constant 0 : index
    %194 = vector.load %arg7[%c1_109, %c0_110, %c0_111, %c0_112] : memref<2x4x1x8xf32, #tpu.memory_space<vmem>>, vector<1x4x1x8xf32>
    %195 = vector.shape_cast %194 : vector<1x4x1x8xf32> to vector<4x1x8xf32>
    %c1_113 = arith.constant 1 : index
    %c0_114 = arith.constant 0 : index
    %c0_115 = arith.constant 0 : index
    %c0_116 = arith.constant 0 : index
    %196 = vector.load %arg8[%c1_113, %c0_114, %c0_115, %c0_116] : memref<2x4x32x8xf32, #tpu.memory_space<vmem>>, vector<1x4x32x8xf32>
    %197 = vector.shape_cast %196 : vector<1x4x32x8xf32> to vector<4x32x8xf32>
    %c1_117 = arith.constant 1 : index
    %c0_118 = arith.constant 0 : index
    %c0_119 = arith.constant 0 : index
    %c0_120 = arith.constant 0 : index
    %198 = vector.load %arg9[%c1_117, %c0_118, %c0_119, %c0_120] : memref<2x4x1x8xf32, #tpu.memory_space<vmem>>, vector<1x4x1x8xf32>
    %199 = vector.shape_cast %198 : vector<1x4x1x8xf32> to vector<4x1x8xf32>
    %c1_121 = arith.constant 1 : index
    %c0_122 = arith.constant 0 : index
    %c0_123 = arith.constant 0 : index
    %c0_124 = arith.constant 0 : index
    %200 = vector.load %arg10[%c1_121, %c0_122, %c0_123, %c0_124] : memref<2x4x8x32xf32, #tpu.memory_space<vmem>>, vector<1x4x8x32xf32>
    %201 = vector.shape_cast %200 : vector<1x4x8x32xf32> to vector<4x8x32xf32>
    %c1_125 = arith.constant 1 : index
    %c0_126 = arith.constant 0 : index
    %c0_127 = arith.constant 0 : index
    %202 = vector.load %arg11[%c1_125, %c0_126, %c0_127] : memref<2x1x32xf32, #tpu.memory_space<vmem>>, vector<1x1x32xf32>
    %203 = vector.shape_cast %202 : vector<1x1x32xf32> to vector<1x32xf32>
    %c1_128 = arith.constant 1 : index
    %c0_129 = arith.constant 0 : index
    %c0_130 = arith.constant 0 : index
    %204 = vector.load %arg12[%c1_128, %c0_129, %c0_130] : memref<2x32x64xf32, #tpu.memory_space<vmem>>, vector<1x32x64xf32>
    %205 = vector.shape_cast %204 : vector<1x32x64xf32> to vector<32x64xf32>
    %c1_131 = arith.constant 1 : index
    %c0_132 = arith.constant 0 : index
    %c0_133 = arith.constant 0 : index
    %206 = vector.load %arg13[%c1_131, %c0_132, %c0_133] : memref<2x1x64xf32, #tpu.memory_space<vmem>>, vector<1x1x64xf32>
    %207 = vector.shape_cast %206 : vector<1x1x64xf32> to vector<1x64xf32>
    %c1_134 = arith.constant 1 : index
    %c0_135 = arith.constant 0 : index
    %c0_136 = arith.constant 0 : index
    %208 = vector.load %arg14[%c1_134, %c0_135, %c0_136] : memref<2x64x32xf32, #tpu.memory_space<vmem>>, vector<1x64x32xf32>
    %209 = vector.shape_cast %208 : vector<1x64x32xf32> to vector<64x32xf32>
    %c1_137 = arith.constant 1 : index
    %c0_138 = arith.constant 0 : index
    %c0_139 = arith.constant 0 : index
    %210 = vector.load %arg15[%c1_137, %c0_138, %c0_139] : memref<2x1x32xf32, #tpu.memory_space<vmem>>, vector<1x1x32xf32>
    %211 = vector.shape_cast %210 : vector<1x1x32xf32> to vector<1x32xf32>
    %c1_140 = arith.constant 1 : index
    %c0_141 = arith.constant 0 : index
    %c0_142 = arith.constant 0 : index
    %212 = vector.load %arg16[%c1_140, %c0_141, %c0_142] : memref<2x1x32xf32, #tpu.memory_space<vmem>>, vector<1x1x32xf32>
    %213 = vector.shape_cast %212 : vector<1x1x32xf32> to vector<1x32xf32>
    %c1_143 = arith.constant 1 : index
    %c0_144 = arith.constant 0 : index
    %c0_145 = arith.constant 0 : index
    %214 = vector.load %arg17[%c1_143, %c0_144, %c0_145] : memref<2x1x32xf32, #tpu.memory_space<vmem>>, vector<1x1x32xf32>
    %215 = vector.shape_cast %214 : vector<1x1x32xf32> to vector<1x32xf32>
    %216 = vector.shape_cast %187 : vector<8x32xf32> to vector<1x8x32xf32>
    %217 = vector.shape_cast %216 : vector<1x8x32xf32> to vector<1x8x32xf32>
    %218 = vector.broadcast %217 : vector<1x8x32xf32> to vector<4x8x32xf32>
    "tpu.trace_start"() <{level = 10 : i32, message = "hsd,hde->hse"}> : () -> ()
    %cst_146 = arith.constant dense<0.000000e+00> : vector<4x8x8xf32>
    %219 = tpu.matmul %218, %189, %cst_146 {dimension_numbers = #tpu.dot_dimension_numbers<[2], [1], [1], [2], [0, 0, 0, 1, 1, 2], [0], [0]>} : vector<4x8x32xf32>, vector<4x32x8xf32>, vector<4x8x8xf32> -> vector<4x8x8xf32>
    "tpu.trace_stop"() : () -> ()
    %220 = vector.broadcast %191 : vector<4x1x8xf32> to vector<4x8x8xf32>
    %221 = arith.addf %219, %220 : vector<4x8x8xf32>
    "tpu.trace_start"() <{level = 10 : i32, message = "hsd,hde->hse"}> : () -> ()
    %cst_147 = arith.constant dense<0.000000e+00> : vector<4x8x8xf32>
    %222 = tpu.matmul %218, %193, %cst_147 {dimension_numbers = #tpu.dot_dimension_numbers<[2], [1], [1], [2], [0, 0, 0, 1, 1, 2], [0], [0]>} : vector<4x8x32xf32>, vector<4x32x8xf32>, vector<4x8x8xf32> -> vector<4x8x8xf32>
    "tpu.trace_stop"() : () -> ()
    %223 = vector.broadcast %195 : vector<4x1x8xf32> to vector<4x8x8xf32>
    %224 = arith.addf %222, %223 : vector<4x8x8xf32>
    "tpu.trace_start"() <{level = 10 : i32, message = "hsd,hde->hse"}> : () -> ()
    %cst_148 = arith.constant dense<0.000000e+00> : vector<4x8x8xf32>
    %225 = tpu.matmul %218, %197, %cst_148 {dimension_numbers = #tpu.dot_dimension_numbers<[2], [1], [1], [2], [0, 0, 0, 1, 1, 2], [0], [0]>} : vector<4x8x32xf32>, vector<4x32x8xf32>, vector<4x8x8xf32> -> vector<4x8x8xf32>
    "tpu.trace_stop"() : () -> ()
    %226 = vector.broadcast %199 : vector<4x1x8xf32> to vector<4x8x8xf32>
    %227 = arith.addf %225, %226 : vector<4x8x8xf32>
    "tpu.trace_start"() <{level = 10 : i32, message = "hqe,hke->hqk"}> : () -> ()
    %cst_149 = arith.constant dense<0.000000e+00> : vector<4x8x8xf32>
    %228 = tpu.matmul %221, %224, %cst_149 {dimension_numbers = #tpu.dot_dimension_numbers<[2], [2], [1], [1], [0, 0, 0, 1, 1, 1], [0], [0]>} : vector<4x8x8xf32>, vector<4x8x8xf32>, vector<4x8x8xf32> -> vector<4x8x8xf32>
    "tpu.trace_stop"() : () -> ()
    %229 = vector.shape_cast %7 : vector<8x8xi1> to vector<1x8x8xi1>
    %cst_150 = arith.constant -1.000000e+09 : f32
    %230 = vector.shape_cast %229 : vector<1x8x8xi1> to vector<1x8x8xi1>
    %231 = vector.broadcast %230 : vector<1x8x8xi1> to vector<4x8x8xi1>
    %232 = vector.broadcast %cst_150 : f32 to vector<4x8x8xf32>
    %233 = arith.select %231, %232, %228 : vector<4x8x8xi1>, vector<4x8x8xf32>
    %cst_151 = arith.constant dense<0xFF800000> : vector<4x8xf32>
    %234 = vector.multi_reduction <maximumf>, %233, %cst_151 [2] : vector<4x8x8xf32> to vector<4x8xf32>
    %235 = vector.shape_cast %234 : vector<4x8xf32> to vector<4x8x1xf32>
    %236 = vector.broadcast %235 : vector<4x8x1xf32> to vector<4x8x8xf32>
    %237 = arith.subf %233, %236 : vector<4x8x8xf32>
    %238 = math.exp %237 : vector<4x8x8xf32>
    %cst_152 = arith.constant dense<0.000000e+00> : vector<4x8xf32>
    %239 = vector.multi_reduction <add>, %238, %cst_152 [2] : vector<4x8x8xf32> to vector<4x8xf32>
    %240 = vector.shape_cast %239 : vector<4x8xf32> to vector<4x8x1xf32>
    %241 = tpu.reciprocal %240 {approx = true} : vector<4x8x1xf32> -> vector<4x8x1xf32>
    %242 = vector.broadcast %241 : vector<4x8x1xf32> to vector<4x8x8xf32>
    %243 = arith.mulf %238, %242 : vector<4x8x8xf32>
    "tpu.trace_start"() <{level = 10 : i32, message = "hqk,hke->hqe"}> : () -> ()
    %cst_153 = arith.constant dense<0.000000e+00> : vector<4x8x8xf32>
    %244 = tpu.matmul %243, %227, %cst_153 {dimension_numbers = #tpu.dot_dimension_numbers<[2], [1], [1], [2], [0, 0, 0, 1, 1, 2], [0], [0]>} : vector<4x8x8xf32>, vector<4x8x8xf32>, vector<4x8x8xf32> -> vector<4x8x8xf32>
    "tpu.trace_stop"() : () -> ()
    "tpu.trace_start"() <{level = 10 : i32, message = "hqe,hef->hqf"}> : () -> ()
    %cst_154 = arith.constant dense<0.000000e+00> : vector<4x8x32xf32>
    %245 = tpu.matmul %244, %201, %cst_154 {dimension_numbers = #tpu.dot_dimension_numbers<[2], [1], [1], [2], [0, 0, 0, 1, 1, 2], [0], [0]>} : vector<4x8x8xf32>, vector<4x8x32xf32>, vector<4x8x32xf32> -> vector<4x8x32xf32>
    "tpu.trace_stop"() : () -> ()
    %cst_155 = arith.constant dense<0.000000e+00> : vector<8x32xf32>
    %246 = vector.multi_reduction <add>, %245, %cst_155 [0] : vector<4x8x32xf32> to vector<8x32xf32>
    %247 = vector.broadcast %203 : vector<1x32xf32> to vector<8x32xf32>
    %248 = arith.addf %246, %247 : vector<8x32xf32>
    %249 = arith.addf %187, %248 : vector<8x32xf32>
    %cst_156 = arith.constant dense<0.000000e+00> : vector<8xf32>
    %250 = vector.multi_reduction <add>, %249, %cst_156 [1] : vector<8x32xf32> to vector<8xf32>
    %251 = vector.shape_cast %250 : vector<8xf32> to vector<8x1xf32>
    %cst_157 = arith.constant 3.200000e+01 : f32
    %252 = vector.broadcast %cst_157 : f32 to vector<8x1xf32>
    %253 = arith.divf %251, %252 : vector<8x1xf32>
    %254 = arith.mulf %249, %249 : vector<8x32xf32>
    %cst_158 = arith.constant dense<0.000000e+00> : vector<8xf32>
    %255 = vector.multi_reduction <add>, %254, %cst_158 [1] : vector<8x32xf32> to vector<8xf32>
    %256 = vector.shape_cast %255 : vector<8xf32> to vector<8x1xf32>
    %cst_159 = arith.constant 3.200000e+01 : f32
    %257 = vector.broadcast %cst_159 : f32 to vector<8x1xf32>
    %258 = arith.divf %256, %257 : vector<8x1xf32>
    %259 = arith.mulf %253, %253 : vector<8x1xf32>
    %260 = arith.subf %258, %259 : vector<8x1xf32>
    %cst_160 = arith.constant 0.000000e+00 : f32
    %261 = vector.broadcast %cst_160 : f32 to vector<8x1xf32>
    %262 = arith.maximumf %260, %261 : vector<8x1xf32>
    %263 = vector.broadcast %253 : vector<8x1xf32> to vector<8x32xf32>
    %264 = arith.subf %249, %263 : vector<8x32xf32>
    %265 = vector.broadcast %213 : vector<1x32xf32> to vector<8x32xf32>
    %266 = arith.mulf %265, %264 : vector<8x32xf32>
    %cst_161 = arith.constant 9.99999997E-7 : f32
    %267 = vector.broadcast %cst_161 : f32 to vector<8x1xf32>
    %268 = arith.addf %262, %267 : vector<8x1xf32>
    %269 = math.rsqrt %268 : vector<8x1xf32>
    %270 = vector.broadcast %269 : vector<8x1xf32> to vector<8x32xf32>
    %271 = arith.mulf %266, %270 : vector<8x32xf32>
    %272 = vector.broadcast %215 : vector<1x32xf32> to vector<8x32xf32>
    %273 = arith.addf %271, %272 : vector<8x32xf32>
    %274 = vector.shape_cast %273 : vector<8x32xf32> to vector<1x8x32xf32>
    %275 = vector.shape_cast %274 : vector<1x8x32xf32> to vector<1x8x32xf32>
    %276 = vector.broadcast %275 : vector<1x8x32xf32> to vector<4x8x32xf32>
    "tpu.trace_start"() <{level = 10 : i32, message = "hsd,hde->hse"}> : () -> ()
    %cst_162 = arith.constant dense<0.000000e+00> : vector<4x8x8xf32>
    %277 = tpu.matmul %276, %189, %cst_162 {dimension_numbers = #tpu.dot_dimension_numbers<[2], [1], [1], [2], [0, 0, 0, 1, 1, 2], [0], [0]>} : vector<4x8x32xf32>, vector<4x32x8xf32>, vector<4x8x8xf32> -> vector<4x8x8xf32>
    "tpu.trace_stop"() : () -> ()
    %278 = vector.broadcast %191 : vector<4x1x8xf32> to vector<4x8x8xf32>
    %279 = arith.addf %277, %278 : vector<4x8x8xf32>
    "tpu.trace_start"() <{level = 10 : i32, message = "hsd,hde->hse"}> : () -> ()
    %cst_163 = arith.constant dense<0.000000e+00> : vector<4x8x8xf32>
    %280 = tpu.matmul %10, %193, %cst_163 {dimension_numbers = #tpu.dot_dimension_numbers<[2], [1], [1], [2], [0, 0, 0, 1, 1, 2], [0], [0]>} : vector<4x8x32xf32>, vector<4x32x8xf32>, vector<4x8x8xf32> -> vector<4x8x8xf32>
    "tpu.trace_stop"() : () -> ()
    %281 = vector.broadcast %195 : vector<4x1x8xf32> to vector<4x8x8xf32>
    %282 = arith.addf %280, %281 : vector<4x8x8xf32>
    "tpu.trace_start"() <{level = 10 : i32, message = "hsd,hde->hse"}> : () -> ()
    %cst_164 = arith.constant dense<0.000000e+00> : vector<4x8x8xf32>
    %283 = tpu.matmul %10, %197, %cst_164 {dimension_numbers = #tpu.dot_dimension_numbers<[2], [1], [1], [2], [0, 0, 0, 1, 1, 2], [0], [0]>} : vector<4x8x32xf32>, vector<4x32x8xf32>, vector<4x8x8xf32> -> vector<4x8x8xf32>
    "tpu.trace_stop"() : () -> ()
    %284 = vector.broadcast %199 : vector<4x1x8xf32> to vector<4x8x8xf32>
    %285 = arith.addf %283, %284 : vector<4x8x8xf32>
    "tpu.trace_start"() <{level = 10 : i32, message = "hqe,hke->hqk"}> : () -> ()
    %cst_165 = arith.constant dense<0.000000e+00> : vector<4x8x8xf32>
    %286 = tpu.matmul %279, %282, %cst_165 {dimension_numbers = #tpu.dot_dimension_numbers<[2], [2], [1], [1], [0, 0, 0, 1, 1, 1], [0], [0]>} : vector<4x8x8xf32>, vector<4x8x8xf32>, vector<4x8x8xf32> -> vector<4x8x8xf32>
    "tpu.trace_stop"() : () -> ()
    %287 = vector.shape_cast %7 : vector<8x8xi1> to vector<1x8x8xi1>
    %cst_166 = arith.constant -1.000000e+09 : f32
    %288 = vector.shape_cast %287 : vector<1x8x8xi1> to vector<1x8x8xi1>
    %289 = vector.broadcast %288 : vector<1x8x8xi1> to vector<4x8x8xi1>
    %290 = vector.broadcast %cst_166 : f32 to vector<4x8x8xf32>
    %291 = arith.select %289, %290, %286 : vector<4x8x8xi1>, vector<4x8x8xf32>
    %cst_167 = arith.constant dense<0xFF800000> : vector<4x8xf32>
    %292 = vector.multi_reduction <maximumf>, %291, %cst_167 [2] : vector<4x8x8xf32> to vector<4x8xf32>
    %293 = vector.shape_cast %292 : vector<4x8xf32> to vector<4x8x1xf32>
    %294 = vector.broadcast %293 : vector<4x8x1xf32> to vector<4x8x8xf32>
    %295 = arith.subf %291, %294 : vector<4x8x8xf32>
    %296 = math.exp %295 : vector<4x8x8xf32>
    %cst_168 = arith.constant dense<0.000000e+00> : vector<4x8xf32>
    %297 = vector.multi_reduction <add>, %296, %cst_168 [2] : vector<4x8x8xf32> to vector<4x8xf32>
    %298 = vector.shape_cast %297 : vector<4x8xf32> to vector<4x8x1xf32>
    %299 = tpu.reciprocal %298 {approx = true} : vector<4x8x1xf32> -> vector<4x8x1xf32>
    %300 = vector.broadcast %299 : vector<4x8x1xf32> to vector<4x8x8xf32>
    %301 = arith.mulf %296, %300 : vector<4x8x8xf32>
    "tpu.trace_start"() <{level = 10 : i32, message = "hqk,hke->hqe"}> : () -> ()
    %cst_169 = arith.constant dense<0.000000e+00> : vector<4x8x8xf32>
    %302 = tpu.matmul %301, %285, %cst_169 {dimension_numbers = #tpu.dot_dimension_numbers<[2], [1], [1], [2], [0, 0, 0, 1, 1, 2], [0], [0]>} : vector<4x8x8xf32>, vector<4x8x8xf32>, vector<4x8x8xf32> -> vector<4x8x8xf32>
    "tpu.trace_stop"() : () -> ()
    "tpu.trace_start"() <{level = 10 : i32, message = "hqe,hef->hqf"}> : () -> ()
    %cst_170 = arith.constant dense<0.000000e+00> : vector<4x8x32xf32>
    %303 = tpu.matmul %302, %201, %cst_170 {dimension_numbers = #tpu.dot_dimension_numbers<[2], [1], [1], [2], [0, 0, 0, 1, 1, 2], [0], [0]>} : vector<4x8x8xf32>, vector<4x8x32xf32>, vector<4x8x32xf32> -> vector<4x8x32xf32>
    "tpu.trace_stop"() : () -> ()
    %cst_171 = arith.constant dense<0.000000e+00> : vector<8x32xf32>
    %304 = vector.multi_reduction <add>, %303, %cst_171 [0] : vector<4x8x32xf32> to vector<8x32xf32>
    %305 = vector.broadcast %203 : vector<1x32xf32> to vector<8x32xf32>
    %306 = arith.addf %304, %305 : vector<8x32xf32>
    %307 = arith.addf %273, %306 : vector<8x32xf32>
    %cst_172 = arith.constant dense<0.000000e+00> : vector<8xf32>
    %308 = vector.multi_reduction <add>, %307, %cst_172 [1] : vector<8x32xf32> to vector<8xf32>
    %309 = vector.shape_cast %308 : vector<8xf32> to vector<8x1xf32>
    %cst_173 = arith.constant 3.200000e+01 : f32
    %310 = vector.broadcast %cst_173 : f32 to vector<8x1xf32>
    %311 = arith.divf %309, %310 : vector<8x1xf32>
    %312 = arith.mulf %307, %307 : vector<8x32xf32>
    %cst_174 = arith.constant dense<0.000000e+00> : vector<8xf32>
    %313 = vector.multi_reduction <add>, %312, %cst_174 [1] : vector<8x32xf32> to vector<8xf32>
    %314 = vector.shape_cast %313 : vector<8xf32> to vector<8x1xf32>
    %cst_175 = arith.constant 3.200000e+01 : f32
    %315 = vector.broadcast %cst_175 : f32 to vector<8x1xf32>
    %316 = arith.divf %314, %315 : vector<8x1xf32>
    %317 = arith.mulf %311, %311 : vector<8x1xf32>
    %318 = arith.subf %316, %317 : vector<8x1xf32>
    %cst_176 = arith.constant 0.000000e+00 : f32
    %319 = vector.broadcast %cst_176 : f32 to vector<8x1xf32>
    %320 = arith.maximumf %318, %319 : vector<8x1xf32>
    %321 = vector.broadcast %311 : vector<8x1xf32> to vector<8x32xf32>
    %322 = arith.subf %307, %321 : vector<8x32xf32>
    %323 = vector.broadcast %213 : vector<1x32xf32> to vector<8x32xf32>
    %324 = arith.mulf %323, %322 : vector<8x32xf32>
    %cst_177 = arith.constant 9.99999997E-7 : f32
    %325 = vector.broadcast %cst_177 : f32 to vector<8x1xf32>
    %326 = arith.addf %320, %325 : vector<8x1xf32>
    %327 = math.rsqrt %326 : vector<8x1xf32>
    %328 = vector.broadcast %327 : vector<8x1xf32> to vector<8x32xf32>
    %329 = arith.mulf %324, %328 : vector<8x32xf32>
    %330 = vector.broadcast %215 : vector<1x32xf32> to vector<8x32xf32>
    %331 = arith.addf %329, %330 : vector<8x32xf32>
    %cst_178 = arith.constant dense<0.000000e+00> : vector<8x64xf32>
    %332 = tpu.matmul %331, %205, %cst_178 {dimension_numbers = #tpu.dot_dimension_numbers<[1], [0], [0], [1], [0, 0, 1, 1], [], []>} : vector<8x32xf32>, vector<32x64xf32>, vector<8x64xf32> -> vector<8x64xf32>
    %333 = vector.broadcast %207 : vector<1x64xf32> to vector<8x64xf32>
    %334 = arith.addf %332, %333 : vector<8x64xf32>
    %cst_179 = arith.constant 0.000000e+00 : f32
    %335 = vector.broadcast %cst_179 : f32 to vector<8x64xf32>
    %336 = arith.maximumf %334, %335 : vector<8x64xf32>
    %cst_180 = arith.constant dense<0.000000e+00> : vector<8x32xf32>
    %337 = tpu.matmul %336, %209, %cst_180 {dimension_numbers = #tpu.dot_dimension_numbers<[1], [0], [0], [1], [0, 0, 1, 1], [], []>} : vector<8x64xf32>, vector<64x32xf32>, vector<8x32xf32> -> vector<8x32xf32>
    %338 = vector.broadcast %211 : vector<1x32xf32> to vector<8x32xf32>
    %339 = arith.addf %337, %338 : vector<8x32xf32>
    %340 = arith.addf %331, %339 : vector<8x32xf32>
    %cst_181 = arith.constant dense<0.000000e+00> : vector<8xf32>
    %341 = vector.multi_reduction <add>, %340, %cst_181 [1] : vector<8x32xf32> to vector<8xf32>
    %342 = vector.shape_cast %341 : vector<8xf32> to vector<8x1xf32>
    %cst_182 = arith.constant 3.200000e+01 : f32
    %343 = vector.broadcast %cst_182 : f32 to vector<8x1xf32>
    %344 = arith.divf %342, %343 : vector<8x1xf32>
    %345 = arith.mulf %340, %340 : vector<8x32xf32>
    %cst_183 = arith.constant dense<0.000000e+00> : vector<8xf32>
    %346 = vector.multi_reduction <add>, %345, %cst_183 [1] : vector<8x32xf32> to vector<8xf32>
    %347 = vector.shape_cast %346 : vector<8xf32> to vector<8x1xf32>
    %cst_184 = arith.constant 3.200000e+01 : f32
    %348 = vector.broadcast %cst_184 : f32 to vector<8x1xf32>
    %349 = arith.divf %347, %348 : vector<8x1xf32>
    %350 = arith.mulf %344, %344 : vector<8x1xf32>
    %351 = arith.subf %349, %350 : vector<8x1xf32>
    %cst_185 = arith.constant 0.000000e+00 : f32
    %352 = vector.broadcast %cst_185 : f32 to vector<8x1xf32>
    %353 = arith.maximumf %351, %352 : vector<8x1xf32>
    %354 = vector.broadcast %344 : vector<8x1xf32> to vector<8x32xf32>
    %355 = arith.subf %340, %354 : vector<8x32xf32>
    %356 = vector.broadcast %213 : vector<1x32xf32> to vector<8x32xf32>
    %357 = arith.mulf %356, %355 : vector<8x32xf32>
    %cst_186 = arith.constant 9.99999997E-7 : f32
    %358 = vector.broadcast %cst_186 : f32 to vector<8x1xf32>
    %359 = arith.addf %353, %358 : vector<8x1xf32>
    %360 = math.rsqrt %359 : vector<8x1xf32>
    %361 = vector.broadcast %360 : vector<8x1xf32> to vector<8x32xf32>
    %362 = arith.mulf %357, %361 : vector<8x32xf32>
    %363 = vector.broadcast %215 : vector<1x32xf32> to vector<8x32xf32>
    %364 = arith.addf %362, %363 : vector<8x32xf32>
    %c0_187 = arith.constant 0 : index
    %c0_188 = arith.constant 0 : index
    %c0_189 = arith.constant 0 : index
    %365 = vector.load %arg18[%c0_187, %c0_188, %c0_189] : memref<1x8x32xf32, #tpu.memory_space<vmem>>, vector<1x8x32xf32>
    %366 = vector.shape_cast %365 : vector<1x8x32xf32> to vector<8x32xf32>
    %367 = vector.shape_cast %364 : vector<8x32xf32> to vector<1x8x32xf32>
    tpu.vector_store %arg18[%c0_187, %c0_188, %c0_189], %367 {strides = array<i32>} : memref<1x8x32xf32, #tpu.memory_space<vmem>>, vector<1x8x32xf32>,
    return
  }
  func.func @transform_0(%arg0: i32) -> (i32, i32, i32) {
    %c0_i32 = arith.constant 0 : i32
    %c0_i32_0 = arith.constant 0 : i32
    %c0_i32_1 = arith.constant 0 : i32
    return %arg0, %c0_i32, %c0_i32_0 : i32, i32, i32
  }
  func.func @transform_1(%arg0: i32) -> (i32, i32, i32) {
    %c0_i32 = arith.constant 0 : i32
    %c0_i32_0 = arith.constant 0 : i32
    %c0_i32_1 = arith.constant 0 : i32
    return %arg0, %c0_i32, %c0_i32_0 : i32, i32, i32
  }
  func.func @transform_2(%arg0: i32) -> (i32, i32, i32) {
    %c0_i32 = arith.constant 0 : i32
    %c0_i32_0 = arith.constant 0 : i32
    %c0_i32_1 = arith.constant 0 : i32
    return %arg0, %c0_i32, %c0_i32_0 : i32, i32, i32
  }
  func.func @transform_3(%arg0: i32) -> (i32, i32, i32, i32) {
    %c0_i32 = arith.constant 0 : i32
    %c0_i32_0 = arith.constant 0 : i32
    %c0_i32_1 = arith.constant 0 : i32
    %c0_i32_2 = arith.constant 0 : i32
    %c0_i32_3 = arith.constant 0 : i32
    return %c0_i32, %c0_i32_0, %c0_i32_1, %c0_i32_2 : i32, i32, i32, i32
  }
  func.func @transform_4(%arg0: i32) -> (i32, i32, i32, i32) {
    %c0_i32 = arith.constant 0 : i32
    %c0_i32_0 = arith.constant 0 : i32
    %c0_i32_1 = arith.constant 0 : i32
    %c0_i32_2 = arith.constant 0 : i32
    %c0_i32_3 = arith.constant 0 : i32
    return %c0_i32, %c0_i32_0, %c0_i32_1, %c0_i32_2 : i32, i32, i32, i32
  }
  func.func @transform_5(%arg0: i32) -> (i32, i32, i32, i32) {
    %c0_i32 = arith.constant 0 : i32
    %c0_i32_0 = arith.constant 0 : i32
    %c0_i32_1 = arith.constant 0 : i32
    %c0_i32_2 = arith.constant 0 : i32
    %c0_i32_3 = arith.constant 0 : i32
    return %c0_i32, %c0_i32_0, %c0_i32_1, %c0_i32_2 : i32, i32, i32, i32
  }
  func.func @transform_6(%arg0: i32) -> (i32, i32, i32, i32) {
    %c0_i32 = arith.constant 0 : i32
    %c0_i32_0 = arith.constant 0 : i32
    %c0_i32_1 = arith.constant 0 : i32
    %c0_i32_2 = arith.constant 0 : i32
    %c0_i32_3 = arith.constant 0 : i32
    return %c0_i32, %c0_i32_0, %c0_i32_1, %c0_i32_2 : i32, i32, i32, i32
  }
  func.func @transform_7(%arg0: i32) -> (i32, i32, i32, i32) {
    %c0_i32 = arith.constant 0 : i32
    %c0_i32_0 = arith.constant 0 : i32
    %c0_i32_1 = arith.constant 0 : i32
    %c0_i32_2 = arith.constant 0 : i32
    %c0_i32_3 = arith.constant 0 : i32
    return %c0_i32, %c0_i32_0, %c0_i32_1, %c0_i32_2 : i32, i32, i32, i32
  }
  func.func @transform_8(%arg0: i32) -> (i32, i32, i32, i32) {
    %c0_i32 = arith.constant 0 : i32
    %c0_i32_0 = arith.constant 0 : i32
    %c0_i32_1 = arith.constant 0 : i32
    %c0_i32_2 = arith.constant 0 : i32
    %c0_i32_3 = arith.constant 0 : i32
    return %c0_i32, %c0_i32_0, %c0_i32_1, %c0_i32_2 : i32, i32, i32, i32
  }
  func.func @transform_9(%arg0: i32) -> (i32, i32, i32, i32) {
    %c0_i32 = arith.constant 0 : i32
    %c0_i32_0 = arith.constant 0 : i32
    %c0_i32_1 = arith.constant 0 : i32
    %c0_i32_2 = arith.constant 0 : i32
    %c0_i32_3 = arith.constant 0 : i32
    return %c0_i32, %c0_i32_0, %c0_i32_1, %c0_i32_2 : i32, i32, i32, i32
  }
  func.func @transform_10(%arg0: i32) -> (i32, i32, i32) {
    %c0_i32 = arith.constant 0 : i32
    %c0_i32_0 = arith.constant 0 : i32
    %c0_i32_1 = arith.constant 0 : i32
    %c0_i32_2 = arith.constant 0 : i32
    return %c0_i32, %c0_i32_0, %c0_i32_1 : i32, i32, i32
  }
  func.func @transform_11(%arg0: i32) -> (i32, i32, i32) {
    %c0_i32 = arith.constant 0 : i32
    %c0_i32_0 = arith.constant 0 : i32
    %c0_i32_1 = arith.constant 0 : i32
    %c0_i32_2 = arith.constant 0 : i32
    return %c0_i32, %c0_i32_0, %c0_i32_1 : i32, i32, i32
  }
  func.func @transform_12(%arg0: i32) -> (i32, i32, i32) {
    %c0_i32 = arith.constant 0 : i32
    %c0_i32_0 = arith.constant 0 : i32
    %c0_i32_1 = arith.constant 0 : i32
    %c0_i32_2 = arith.constant 0 : i32
    return %c0_i32, %c0_i32_0, %c0_i32_1 : i32, i32, i32
  }
  func.func @transform_13(%arg0: i32) -> (i32, i32, i32) {
    %c0_i32 = arith.constant 0 : i32
    %c0_i32_0 = arith.constant 0 : i32
    %c0_i32_1 = arith.constant 0 : i32
    %c0_i32_2 = arith.constant 0 : i32
    return %c0_i32, %c0_i32_0, %c0_i32_1 : i32, i32, i32
  }
  func.func @transform_14(%arg0: i32) -> (i32, i32, i32) {
    %c0_i32 = arith.constant 0 : i32
    %c0_i32_0 = arith.constant 0 : i32
    %c0_i32_1 = arith.constant 0 : i32
    %c0_i32_2 = arith.constant 0 : i32
    return %c0_i32, %c0_i32_0, %c0_i32_1 : i32, i32, i32
  }
  func.func @transform_15(%arg0: i32) -> (i32, i32, i32) {
    %c0_i32 = arith.constant 0 : i32
    %c0_i32_0 = arith.constant 0 : i32
    %c0_i32_1 = arith.constant 0 : i32
    %c0_i32_2 = arith.constant 0 : i32
    return %c0_i32, %c0_i32_0, %c0_i32_1 : i32, i32, i32
  }
  func.func @transform_16(%arg0: i32) -> (i32, i32, i32) {
    %c0_i32 = arith.constant 0 : i32
    %c0_i32_0 = arith.constant 0 : i32
    %c0_i32_1 = arith.constant 0 : i32
    %c0_i32_2 = arith.constant 0 : i32
    return %c0_i32, %c0_i32_0, %c0_i32_1 : i32, i32, i32
  }
  func.func @transform_17(%arg0: i32) -> (i32, i32, i32) {
    %c0_i32 = arith.constant 0 : i32
    %c0_i32_0 = arith.constant 0 : i32
    %c0_i32_1 = arith.constant 0 : i32
    return %arg0, %c0_i32, %c0_i32_0 : i32, i32, i32
  }
}

</mosaic_0001>

<llo_original>
// kernel: decoder_forward.1
$region0: #{decoder_forward.1}
  #allocation0 [shape = 'u32[]', space=smem, size = 0x4, offset = 0x4, fixed_abs, tag = 'smem constant byte address 0x4 - core index']
  #allocation1 [shape = 'u32[144,128]{1,0:T(1,128)}', space=vmem, size = 0x12000, scoped, tag = 'internal scratch']
  %s0 = inlined_call_operand.vmem [shape: f32[2,8,32], index: 0, kind: input, shape index: {}]
  %s1 = inlined_call_operand.vmem [shape: f32[2,8,32], index: 1, kind: input, shape index: {}]
  %s2 = inlined_call_operand.hbm [shape: f32[2,8,8], index: 2, kind: input, shape index: {}]
  %s3 = inlined_call_operand.hbm [shape: f32[2,4,32,8], index: 3, kind: input, shape index: {}]
  %s4 = inlined_call_operand.hbm [shape: f32[2,4,1,8], index: 4, kind: input, shape index: {}]
  %s5 = inlined_call_operand.hbm [shape: f32[2,4,32,8], index: 5, kind: input, shape index: {}]
  %s6 = inlined_call_operand.vmem [shape: f32[2,4,1,8], index: 6, kind: input, shape index: {}]
  %s7 = inlined_call_operand.vmem [shape: f32[2,4,32,8], index: 7, kind: input, shape index: {}]
  %s8 = inlined_call_operand.vmem [shape: f32[2,4,1,8], index: 8, kind: input, shape index: {}]
  %s9 = inlined_call_operand.hbm [shape: f32[2,4,8,32], index: 9, kind: input, shape index: {}]
  %s10 = inlined_call_operand.vmem [shape: f32[2,1,32], index: 10, kind: input, shape index: {}]
  %s11 = inlined_call_operand.hbm [shape: f32[2,32,64], index: 11, kind: input, shape index: {}]
  %s12 = inlined_call_operand.vmem [shape: f32[2,1,64], index: 12, kind: input, shape index: {}]
  %s13 = inlined_call_operand.hbm [shape: f32[2,64,32], index: 13, kind: input, shape index: {}]
  %s14 = inlined_call_operand.vmem [shape: f32[2,1,32], index: 14, kind: input, shape index: {}]
  %s15 = inlined_call_operand.vmem [shape: f32[2,1,32], index: 15, kind: input, shape index: {}]
  %s16 = inlined_call_operand.vmem [shape: f32[2,1,32], index: 16, kind: input, shape index: {}]
  %s17 = inlined_call_operand.hbm [shape: f32[2,8,32], index: 17, kind: output, shape index: {}]
  %s18 = sld [smem:[#allocation0]]
  $region129: #{decoder_forward.1} parent=0
    _
  %s20 = ssub.s32 1, %s18
  %s21 = scalar_select 0, %s20, %s18
  $region1: #{decoder_forward.1} parent=0
    #allocation2 [shape = 'u8[8192]{0}', space=vmem, size = 0x2000, scoped, tag = 'input window, operand 2']
    #allocation3 [shape = 's32[2]{0}', space=sflag, size = 0x8, scoped, tag = 'scoped memory for decoder_forward.1']
    #allocation4 [shape = 's32[2]{0}', space=sflag, size = 0x8, scoped, tag = 'scoped memory for decoder_forward.1']
    #allocation5 [shape = 'u8[131072]{0}', space=vmem, size = 0x20000, scoped, tag = 'input window, operand 3, single buffered']
    #allocation6 [shape = 's32[1]{0}', space=sflag, size = 0x4, scoped, tag = 'scoped memory for decoder_forward.1']
    #allocation7 [shape = 'u8[4096]{0}', space=vmem, size = 0x1000, scoped, tag = 'input window, operand 4, single buffered']
    #allocation8 [shape = 'u8[131072]{0}', space=vmem, size = 0x20000, scoped, tag = 'input window, operand 5, single buffered']
    #allocation9 [shape = 's32[1]{0}', space=sflag, size = 0x4, scoped, tag = 'scoped memory for decoder_forward.1']
    #allocation10 [shape = 'u8[32768]{0}', space=vmem, size = 0x8000, scoped, tag = 'input window, operand 9, single buffered']
    #allocation11 [shape = 'u8[32768]{0}', space=vmem, size = 0x8000, scoped, tag = 'input window, operand 11, single buffered']
    #allocation12 [shape = 's32[1]{0}', space=sflag, size = 0x4, scoped, tag = 'scoped memory for decoder_forward.1']
    #allocation13 [shape = 'u8[65536]{0}', space=vmem, size = 0x10000, scoped, tag = 'input window, operand 13, single buffered']
    #allocation14 [shape = 'u8[8192]{0}', space=vmem, size = 0x2000, scoped, tag = 'output window, operand 0']
    %22 = vsyncpa [#allocation3], 0
    %s23 = scalar_lea.sflag [#allocation3], 1
    %24 = vsyncpa %s23, 0
    %25 = vsyncpa [#allocation6], 0
    %26 = vsyncpa [#allocation9], 0
    %27 = vsyncpa [#allocation12], 0
    %28 = vsyncpa [#allocation4], 0
    %s29 = scalar_lea.sflag [#allocation4], 1
    %30 = vsyncpa %s29, 0
    loop: start=0, step=1, limit=4
    $region2: #{decoder_forward.1} parent=1 // loop_pre_header
      _
    $region3: #{decoder_forward.1} parent=1 // loop_header
      %s32 = sphi 0, %s36
      %p33 = scmp.ge.s32.totalorder %s32, 4
      %s42 = sphi 0, %s44
      %s45 = sphi 0, %s42
      %s46 = sphi 0, %s45
      %s62 = sphi 0, %s46
      %s68 = sphi 0, %s70
      %s71 = sphi 0, %s68
      %s72 = sphi 0, %s71
      %s88 = sphi 0, %s72
      %s94 = sphi 0, %s96
      %s97 = sphi 0, %s94
      %s98 = sphi 0, %s97
      %s114 = sphi 0, %s98
      %s118 = sphi 0, %s118
      %s120 = sphi 0, %s118
      %s121 = sphi 0, %s120
      %s135 = sphi 0, %s121
      %s139 = sphi 0, %s139
      %s141 = sphi 0, %s139
      %s142 = sphi 0, %s141
      %s156 = sphi 0, %s142
      %s160 = sphi 0, %s160
      %s162 = sphi 0, %s160
      %s163 = sphi 0, %s162
      %s177 = sphi 0, %s163
      %s181 = sphi 0, %s181
      %s183 = sphi 0, %s181
      %s184 = sphi 0, %s183
      %s198 = sphi 0, %s184
      %s202 = sphi 0, %s202
      %s204 = sphi 0, %s202
      %s205 = sphi 0, %s204
      %s219 = sphi 0, %s205
      %s223 = sphi 0, %s223
      %s225 = sphi 0, %s223
      %s226 = sphi 0, %s225
      %s240 = sphi 0, %s226
      %s244 = sphi 0, %s244
      %s246 = sphi 0, %s244
      %s247 = sphi 0, %s246
      %s261 = sphi 0, %s247
      %s265 = sphi 0, %s265
      %s267 = sphi 0, %s265
      %s268 = sphi 0, %s267
      %s282 = sphi 0, %s268
      %s286 = sphi 0, %s286
      %s288 = sphi 0, %s286
      %s289 = sphi 0, %s288
      %s303 = sphi 0, %s289
      %s307 = sphi 0, %s307
      %s309 = sphi 0, %s307
      %s310 = sphi 0, %s309
      %s324 = sphi 0, %s310
      %s328 = sphi 0, %s328
      %s330 = sphi 0, %s328
      %s331 = sphi 0, %s330
      %s345 = sphi 0, %s331
      %s349 = sphi 0, %s349
      %s351 = sphi 0, %s349
      %s352 = sphi 0, %s351
      %s366 = sphi 0, %s352
      %s370 = sphi 0, %s370
      %s372 = sphi 0, %s370
      %s373 = sphi 0, %s372
      %s387 = sphi 0, %s373
      %s391 = sphi 0, %s391
      %s393 = sphi 0, %s391
      %s394 = sphi 0, %s393
      %s408 = sphi 0, %s394
      %s414 = sphi 0, %s416
      %s417 = sphi 0, %s414
      %s418 = sphi 0, %s417
      %s434 = sphi 0, %s418
    $region4: #{decoder_forward.1} parent=1 // loop_header_branch
      %35 = sbr.rel (%p33) target = $region8
    $region5: #{decoder_forward.1} parent=1 // loop_body
      %s37 = ssub.s32 %s32, 1
      %s38 = ssub.s32 %s32, 2
      %s39 = sadd.s32 %s32, 1
      %s40 = ssub.s32 %s32, %s39
      %p41 = scmp.eq.s32.totalorder %s40, 0
      %s43 = sadd.s32 %s42, 1
      %s44 = scalar_select %p41, %s42, %s43
      %p47 = pneg %p41
      %p48 = scmp.eq.s32.totalorder %s32, 1
      %p49 = por %p47, %p48
      %p50 = scmp.ne.s32.totalorder %s42, %s45
      %p51 = scmp.eq.s32.totalorder %s32, 0
      %p52 = por %p50, %p51
      %p53 = scmp.ne.s32.totalorder %s42, %s45
      %p54 = scmp.eq.s32.totalorder %s37, 1
      %p55 = por %p53, %p54
      %p56 = scmp.ne.s32.totalorder %s45, %s46
      %p57 = scmp.eq.s32.totalorder %s37, 0
      %p58 = por %p56, %p57
      %p59 = scmp.ne.s32.totalorder %s45, %s46
      %p60 = scmp.eq.s32.totalorder %s38, 1
      %p61 = por %p59, %p60
      %p63 = scmp.ne.s32.totalorder %s46, %s62
      %p64 = scmp.eq.s32.totalorder %s38, 0
      %p65 = por %p63, %p64
      %s66 = ssub.s32 %s32, %s39
      %p67 = scmp.eq.s32.totalorder %s66, 0
      %s69 = sadd.s32 %s68, 1
      %s70 = scalar_select %p67, %s68, %s69
      %p73 = pneg %p67
      %p74 = scmp.eq.s32.totalorder %s32, 1
      %p75 = por %p73, %p74
      %p76 = scmp.ne.s32.totalorder %s68, %s71
      %p77 = scmp.eq.s32.totalorder %s32, 0
      %p78 = por %p76, %p77
      %p79 = scmp.ne.s32.totalorder %s68, %s71
      %p80 = scmp.eq.s32.totalorder %s37, 1
      %p81 = por %p79, %p80
      %p82 = scmp.ne.s32.totalorder %s71, %s72
      %p83 = scmp.eq.s32.totalorder %s37, 0
      %p84 = por %p82, %p83
      %p85 = scmp.ne.s32.totalorder %s71, %s72
      %p86 = scmp.eq.s32.totalorder %s38, 1
      %p87 = por %p85, %p86
      %p89 = scmp.ne.s32.totalorder %s72, %s88
      %p90 = scmp.eq.s32.totalorder %s38, 0
      %p91 = por %p89, %p90
      %s92 = ssub.s32 %s32, %s39
      %p93 = scmp.eq.s32.totalorder %s92, 0
      %s95 = sadd.s32 %s94, 1
      %s96 = scalar_select %p93, %s94, %s95
      %p99 = pneg %p93
      %p100 = scmp.eq.s32.totalorder %s32, 1
      %p101 = por %p99, %p100
      %p102 = scmp.ne.s32.totalorder %s94, %s97
      %p103 = scmp.eq.s32.totalorder %s32, 0
      %p104 = por %p102, %p103
      %p105 = scmp.ne.s32.totalorder %s94, %s97
      %p106 = scmp.eq.s32.totalorder %s37, 1
      %p107 = por %p105, %p106
      %p108 = scmp.ne.s32.totalorder %s97, %s98
      %p109 = scmp.eq.s32.totalorder %s37, 0
      %p110 = por %p108, %p109
      %p111 = scmp.ne.s32.totalorder %s97, %s98
      %p112 = scmp.eq.s32.totalorder %s38, 1
      %p113 = por %p111, %p112
      %p115 = scmp.ne.s32.totalorder %s98, %s114
      %p116 = scmp.eq.s32.totalorder %s38, 0
      %p117 = por %p115, %p116
      %s119 = sadd.s32 %s118, 1
      %p122 = scmp.eq.s32.totalorder %s32, 1
      %p123 = scmp.ne.s32.totalorder %s118, %s120
      %p124 = scmp.eq.s32.totalorder %s32, 0
      %p125 = por %p123, %p124
      %p126 = scmp.ne.s32.totalorder %s118, %s120
      %p127 = scmp.eq.s32.totalorder %s37, 1
      %p128 = por %p126, %p127
      %p129 = scmp.ne.s32.totalorder %s120, %s121
      %p130 = scmp.eq.s32.totalorder %s37, 0
      %p131 = por %p129, %p130
      %p132 = scmp.ne.s32.totalorder %s120, %s121
      %p133 = scmp.eq.s32.totalorder %s38, 1
      %p134 = por %p132, %p133
      %p136 = scmp.ne.s32.totalorder %s121, %s135
      %p137 = scmp.eq.s32.totalorder %s38, 0
      %p138 = por %p136, %p137
      %s140 = sadd.s32 %s139, 1
      %p143 = scmp.eq.s32.totalorder %s32, 1
      %p144 = scmp.ne.s32.totalorder %s139, %s141
      %p145 = scmp.eq.s32.totalorder %s32, 0
      %p146 = por %p144, %p145
      %p147 = scmp.ne.s32.totalorder %s139, %s141
      %p148 = scmp.eq.s32.totalorder %s37, 1
      %p149 = por %p147, %p148
      %p150 = scmp.ne.s32.totalorder %s141, %s142
      %p151 = scmp.eq.s32.totalorder %s37, 0
      %p152 = por %p150, %p151
      %p153 = scmp.ne.s32.totalorder %s141, %s142
      %p154 = scmp.eq.s32.totalorder %s38, 1
      %p155 = por %p153, %p154
      %p157 = scmp.ne.s32.totalorder %s142, %s156
      %p158 = scmp.eq.s32.totalorder %s38, 0
      %p159 = por %p157, %p158
      %s161 = sadd.s32 %s160, 1
      %p164 = scmp.eq.s32.totalorder %s32, 1
      %p165 = scmp.ne.s32.totalorder %s160, %s162
      %p166 = scmp.eq.s32.totalorder %s32, 0
      %p167 = por %p165, %p166
      %p168 = scmp.ne.s32.totalorder %s160, %s162
      %p169 = scmp.eq.s32.totalorder %s37, 1
      %p170 = por %p168, %p169
      %p171 = scmp.ne.s32.totalorder %s162, %s163
      %p172 = scmp.eq.s32.totalorder %s37, 0
      %p173 = por %p171, %p172
      %p174 = scmp.ne.s32.totalorder %s162, %s163
      %p175 = scmp.eq.s32.totalorder %s38, 1
      %p176 = por %p174, %p175
      %p178 = scmp.ne.s32.totalorder %s163, %s177
      %p179 = scmp.eq.s32.totalorder %s38, 0
      %p180 = por %p178, %p179
      %s182 = sadd.s32 %s181, 1
      %p185 = scmp.eq.s32.totalorder %s32, 1
      %p186 = scmp.ne.s32.totalorder %s181, %s183
      %p187 = scmp.eq.s32.totalorder %s32, 0
      %p188 = por %p186, %p187
      %p189 = scmp.ne.s32.totalorder %s181, %s183
      %p190 = scmp.eq.s32.totalorder %s37, 1
      %p191 = por %p189, %p190
      %p192 = scmp.ne.s32.totalorder %s183, %s184
      %p193 = scmp.eq.s32.totalorder %s37, 0
      %p194 = por %p192, %p193
      %p195 = scmp.ne.s32.totalorder %s183, %s184
      %p196 = scmp.eq.s32.totalorder %s38, 1
      %p197 = por %p195, %p196
      %p199 = scmp.ne.s32.totalorder %s184, %s198
      %p200 = scmp.eq.s32.totalorder %s38, 0
      %p201 = por %p199, %p200
      %s203 = sadd.s32 %s202, 1
      %p206 = scmp.eq.s32.totalorder %s32, 1
      %p207 = scmp.ne.s32.totalorder %s202, %s204
      %p208 = scmp.eq.s32.totalorder %s32, 0
      %p209 = por %p207, %p208
      %p210 = scmp.ne.s32.totalorder %s202, %s204
      %p211 = scmp.eq.s32.totalorder %s37, 1
      %p212 = por %p210, %p211
      %p213 = scmp.ne.s32.totalorder %s204, %s205
      %p214 = scmp.eq.s32.totalorder %s37, 0
      %p215 = por %p213, %p214
      %p216 = scmp.ne.s32.totalorder %s204, %s205
      %p217 = scmp.eq.s32.totalorder %s38, 1
      %p218 = por %p216, %p217
      %p220 = scmp.ne.s32.totalorder %s205, %s219
      %p221 = scmp.eq.s32.totalorder %s38, 0
      %p222 = por %p220, %p221
      %s224 = sadd.s32 %s223, 1
      %p227 = scmp.eq.s32.totalorder %s32, 1
      %p228 = scmp.ne.s32.totalorder %s223, %s225
      %p229 = scmp.eq.s32.totalorder %s32, 0
      %p230 = por %p228, %p229
      %p231 = scmp.ne.s32.totalorder %s223, %s225
      %p232 = scmp.eq.s32.totalorder %s37, 1
      %p233 = por %p231, %p232
      %p234 = scmp.ne.s32.totalorder %s225, %s226
      %p235 = scmp.eq.s32.totalorder %s37, 0
      %p236 = por %p234, %p235
      %p237 = scmp.ne.s32.totalorder %s225, %s226
      %p238 = scmp.eq.s32.totalorder %s38, 1
      %p239 = por %p237, %p238
      %p241 = scmp.ne.s32.totalorder %s226, %s240
      %p242 = scmp.eq.s32.totalorder %s38, 0
      %p243 = por %p241, %p242
      %s245 = sadd.s32 %s244, 1
      %p248 = scmp.eq.s32.totalorder %s32, 1
      %p249 = scmp.ne.s32.totalorder %s244, %s246
      %p250 = scmp.eq.s32.totalorder %s32, 0
      %p251 = por %p249, %p250
      %p252 = scmp.ne.s32.totalorder %s244, %s246
      %p253 = scmp.eq.s32.totalorder %s37, 1
      %p254 = por %p252, %p253
      %p255 = scmp.ne.s32.totalorder %s246, %s247
      %p256 = scmp.eq.s32.totalorder %s37, 0
      %p257 = por %p255, %p256
      %p258 = scmp.ne.s32.totalorder %s246, %s247
      %p259 = scmp.eq.s32.totalorder %s38, 1
      %p260 = por %p258, %p259
      %p262 = scmp.ne.s32.totalorder %s247, %s261
      %p263 = scmp.eq.s32.totalorder %s38, 0
      %p264 = por %p262, %p263
      %s266 = sadd.s32 %s265, 1
      %p269 = scmp.eq.s32.totalorder %s32, 1
      %p270 = scmp.ne.s32.totalorder %s265, %s267
      %p271 = scmp.eq.s32.totalorder %s32, 0
      %p272 = por %p270, %p271
      %p273 = scmp.ne.s32.totalorder %s265, %s267
      %p274 = scmp.eq.s32.totalorder %s37, 1
      %p275 = por %p273, %p274
      %p276 = scmp.ne.s32.totalorder %s267, %s268
      %p277 = scmp.eq.s32.totalorder %s37, 0
      %p278 = por %p276, %p277
      %p279 = scmp.ne.s32.totalorder %s267, %s268
      %p280 = scmp.eq.s32.totalorder %s38, 1
      %p281 = por %p279, %p280
      %p283 = scmp.ne.s32.totalorder %s268, %s282
      %p284 = scmp.eq.s32.totalorder %s38, 0
      %p285 = por %p283, %p284
      %s287 = sadd.s32 %s286, 1
      %p290 = scmp.eq.s32.totalorder %s32, 1
      %p291 = scmp.ne.s32.totalorder %s286, %s288
      %p292 = scmp.eq.s32.totalorder %s32, 0
      %p293 = por %p291, %p292
      %p294 = scmp.ne.s32.totalorder %s286, %s288
      %p295 = scmp.eq.s32.totalorder %s37, 1
      %p296 = por %p294, %p295
      %p297 = scmp.ne.s32.totalorder %s288, %s289
      %p298 = scmp.eq.s32.totalorder %s37, 0
      %p299 = por %p297, %p298
      %p300 = scmp.ne.s32.totalorder %s288, %s289
      %p301 = scmp.eq.s32.totalorder %s38, 1
      %p302 = por %p300, %p301
      %p304 = scmp.ne.s32.totalorder %s289, %s303
      %p305 = scmp.eq.s32.totalorder %s38, 0
      %p306 = por %p304, %p305
      %s308 = sadd.s32 %s307, 1
      %p311 = scmp.eq.s32.totalorder %s32, 1
      %p312 = scmp.ne.s32.totalorder %s307, %s309
      %p313 = scmp.eq.s32.totalorder %s32, 0
      %p314 = por %p312, %p313
      %p315 = scmp.ne.s32.totalorder %s307, %s309
      %p316 = scmp.eq.s32.totalorder %s37, 1
      %p317 = por %p315, %p316
      %p318 = scmp.ne.s32.totalorder %s309, %s310
      %p319 = scmp.eq.s32.totalorder %s37, 0
      %p320 = por %p318, %p319
      %p321 = scmp.ne.s32.totalorder %s309, %s310
      %p322 = scmp.eq.s32.totalorder %s38, 1
      %p323 = por %p321, %p322
      %p325 = scmp.ne.s32.totalorder %s310, %s324
      %p326 = scmp.eq.s32.totalorder %s38, 0
      %p327 = por %p325, %p326
      %s329 = sadd.s32 %s328, 1
      %p332 = scmp.eq.s32.totalorder %s32, 1
      %p333 = scmp.ne.s32.totalorder %s328, %s330
      %p334 = scmp.eq.s32.totalorder %s32, 0
      %p335 = por %p333, %p334
      %p336 = scmp.ne.s32.totalorder %s328, %s330
      %p337 = scmp.eq.s32.totalorder %s37, 1
      %p338 = por %p336, %p337
      %p339 = scmp.ne.s32.totalorder %s330, %s331
      %p340 = scmp.eq.s32.totalorder %s37, 0
      %p341 = por %p339, %p340
      %p342 = scmp.ne.s32.totalorder %s330, %s331
      %p343 = scmp.eq.s32.totalorder %s38, 1
      %p344 = por %p342, %p343
      %p346 = scmp.ne.s32.totalorder %s331, %s345
      %p347 = scmp.eq.s32.totalorder %s38, 0
      %p348 = por %p346, %p347
      %s350 = sadd.s32 %s349, 1
      %p353 = scmp.eq.s32.totalorder %s32, 1
      %p354 = scmp.ne.s32.totalorder %s349, %s351
      %p355 = scmp.eq.s32.totalorder %s32, 0
      %p356 = por %p354, %p355
      %p357 = scmp.ne.s32.totalorder %s349, %s351
      %p358 = scmp.eq.s32.totalorder %s37, 1
      %p359 = por %p357, %p358
      %p360 = scmp.ne.s32.totalorder %s351, %s352
      %p361 = scmp.eq.s32.totalorder %s37, 0
      %p362 = por %p360, %p361
      %p363 = scmp.ne.s32.totalorder %s351, %s352
      %p364 = scmp.eq.s32.totalorder %s38, 1
      %p365 = por %p363, %p364
      %p367 = scmp.ne.s32.totalorder %s352, %s366
      %p368 = scmp.eq.s32.totalorder %s38, 0
      %p369 = por %p367, %p368
      %s371 = sadd.s32 %s370, 1
      %p374 = scmp.eq.s32.totalorder %s32, 1
      %p375 = scmp.ne.s32.totalorder %s370, %s372
      %p376 = scmp.eq.s32.totalorder %s32, 0
      %p377 = por %p375, %p376
      %p378 = scmp.ne.s32.totalorder %s370, %s372
      %p379 = scmp.eq.s32.totalorder %s37, 1
      %p380 = por %p378, %p379
      %p381 = scmp.ne.s32.totalorder %s372, %s373
      %p382 = scmp.eq.s32.totalorder %s37, 0
      %p383 = por %p381, %p382
      %p384 = scmp.ne.s32.totalorder %s372, %s373
      %p385 = scmp.eq.s32.totalorder %s38, 1
      %p386 = por %p384, %p385
      %p388 = scmp.ne.s32.totalorder %s373, %s387
      %p389 = scmp.eq.s32.totalorder %s38, 0
      %p390 = por %p388, %p389
      %s392 = sadd.s32 %s391, 1
      %p395 = scmp.eq.s32.totalorder %s32, 1
      %p396 = scmp.ne.s32.totalorder %s391, %s393
      %p397 = scmp.eq.s32.totalorder %s32, 0
      %p398 = por %p396, %p397
      %p399 = scmp.ne.s32.totalorder %s391, %s393
      %p400 = scmp.eq.s32.totalorder %s37, 1
      %p401 = por %p399, %p400
      %p402 = scmp.ne.s32.totalorder %s393, %s394
      %p403 = scmp.eq.s32.totalorder %s37, 0
      %p404 = por %p402, %p403
      %p405 = scmp.ne.s32.totalorder %s393, %s394
      %p406 = scmp.eq.s32.totalorder %s38, 1
      %p407 = por %p405, %p406
      %p409 = scmp.ne.s32.totalorder %s394, %s408
      %p410 = scmp.eq.s32.totalorder %s38, 0
      %p411 = por %p409, %p410
      %s412 = ssub.s32 %s32, %s39
      %p413 = scmp.eq.s32.totalorder %s412, 0
      %s415 = sadd.s32 %s414, 1
      %s416 = scalar_select %p413, %s414, %s415
      %p419 = pneg %p413
      %p420 = scmp.eq.s32.totalorder %s32, 1
      %p421 = por %p419, %p420
      %p422 = scmp.ne.s32.totalorder %s414, %s417
      %p423 = scmp.eq.s32.totalorder %s32, 0
      %p424 = por %p422, %p423
      %p425 = scmp.ne.s32.totalorder %s414, %s417
      %p426 = scmp.eq.s32.totalorder %s37, 1
      %p427 = por %p425, %p426
      %p428 = scmp.ne.s32.totalorder %s417, %s418
      %p429 = scmp.eq.s32.totalorder %s37, 0
      %p430 = por %p428, %p429
      %p431 = scmp.ne.s32.totalorder %s417, %s418
      %p432 = scmp.eq.s32.totalorder %s38, 1
      %p433 = por %p431, %p432
      %p435 = scmp.ne.s32.totalorder %s418, %s434
      %p436 = scmp.eq.s32.totalorder %s38, 0
      %p437 = por %p435, %p436
      %p438 = scmp.le.s32.totalorder 1, %s32
      %p439 = scmp.lt.s32.totalorder %s32, 3
      %p440 = pnand %p438, %p439
      %p441 = pneg %p440
      // Predicated region
      $region9: #{decoder_forward.1} parent=5 // pred_check
        _
      $region10: #{decoder_forward.1} parent=5 // pred_check_branch
        %443 = sbr.rel (%p440) target = $region12
      $region11: #{decoder_forward.1} parent=5 // pred_region
        %s444 = ssub.s32 %s32, 1
        // Predicated region
        $region13: #{decoder_forward.1} parent=11 // pred_check
          %p445 = pneg %p131
        $region14: #{decoder_forward.1} parent=11 // pred_check_branch
          %447 = sbr.rel (%p445) target = $region16
        $region15: #{decoder_forward.1} parent=11 // pred_region
          %s449 = ssub.s32 4096, 4096
          %450 = vsyncadd [#allocation6], %s449
          %s451 = sshll.u32 [#allocation5], 4
          %s452 = int_to_ptr.vmem [resolvable:$true] %s451
          %457 = dma.hbm_to_vmem [thread:$0]  %s3, 4096, %s452, [#allocation6], 128, 128, 8
        $region16: #{decoder_forward.1} parent=11 // pred_fallthru
          _
        // Predicated region
        $region17: #{decoder_forward.1} parent=11 // pred_check
          %p458 = pneg %p152
        $region18: #{decoder_forward.1} parent=11 // pred_check_branch
          %460 = sbr.rel (%p458) target = $region20
        $region19: #{decoder_forward.1} parent=11 // pred_region
          %s462 = ssub.s32 128, 128
          %463 = vsyncadd [#allocation6], %s462
          %s464 = sshll.u32 [#allocation7], 4
          %s465 = int_to_ptr.vmem [resolvable:$true] %s464
          %470 = dma.hbm_to_vmem [thread:$0]  %s4, 128, %s465, [#allocation6], 16, 16, 1
        $region20: #{decoder_forward.1} parent=11 // pred_fallthru
          _
        // Predicated region
        $region21: #{decoder_forward.1} parent=11 // pred_check
          %p471 = pneg %p173
        $region22: #{decoder_forward.1} parent=11 // pred_check_branch
          %473 = sbr.rel (%p471) target = $region24
        $region23: #{decoder_forward.1} parent=11 // pred_region
          %s475 = ssub.s32 4096, 4096
          %476 = vsyncadd [#allocation9], %s475
          %s477 = sshll.u32 [#allocation8], 4
          %s478 = int_to_ptr.vmem [resolvable:$true] %s477
          %483 = dma.hbm_to_vmem [thread:$0]  %s5, 4096, %s478, [#allocation9], 128, 128, 8
        $region24: #{decoder_forward.1} parent=11 // pred_fallthru
          _
        // Predicated region
        $region25: #{decoder_forward.1} parent=11 // pred_check
          %p484 = pneg %p194
        $region26: #{decoder_forward.1} parent=11 // pred_check_branch
          %486 = sbr.rel (%p484) target = $region28
        $region27: #{decoder_forward.1} parent=11 // pred_region
          _
        $region28: #{decoder_forward.1} parent=11 // pred_fallthru
          _
        // Predicated region
        $region29: #{decoder_forward.1} parent=11 // pred_check
          %p487 = pneg %p215
        $region30: #{decoder_forward.1} parent=11 // pred_check_branch
          %489 = sbr.rel (%p487) target = $region32
        $region31: #{decoder_forward.1} parent=11 // pred_region
          _
        $region32: #{decoder_forward.1} parent=11 // pred_fallthru
          _
        // Predicated region
        $region33: #{decoder_forward.1} parent=11 // pred_check
          %p490 = pneg %p236
        $region34: #{decoder_forward.1} parent=11 // pred_check_branch
          %492 = sbr.rel (%p490) target = $region36
        $region35: #{decoder_forward.1} parent=11 // pred_region
          _
        $region36: #{decoder_forward.1} parent=11 // pred_fallthru
          _
        // Predicated region
        $region37: #{decoder_forward.1} parent=11 // pred_check
          %p493 = pneg %p257
        $region38: #{decoder_forward.1} parent=11 // pred_check_branch
          %495 = sbr.rel (%p493) target = $region40
        $region39: #{decoder_forward.1} parent=11 // pred_region
          %s497 = ssub.s32 1024, 1024
          %498 = vsyncadd [#allocation9], %s497
          %s499 = sshll.u32 [#allocation10], 4
          %s500 = int_to_ptr.vmem [resolvable:$true] %s499
          %505 = dma.hbm_to_vmem [thread:$0]  %s9, 1024, %s500, [#allocation9], 128, 128, 8
        $region40: #{decoder_forward.1} parent=11 // pred_fallthru
          _
        // Predicated region
        $region41: #{decoder_forward.1} parent=11 // pred_check
          %p506 = pneg %p278
        $region42: #{decoder_forward.1} parent=11 // pred_check_branch
          %508 = sbr.rel (%p506) target = $region44
        $region43: #{decoder_forward.1} parent=11 // pred_region
          _
        $region44: #{decoder_forward.1} parent=11 // pred_fallthru
          _
        // Predicated region
        $region45: #{decoder_forward.1} parent=11 // pred_check
          %p509 = pneg %p299
        $region46: #{decoder_forward.1} parent=11 // pred_check_branch
          %511 = sbr.rel (%p509) target = $region48
        $region47: #{decoder_forward.1} parent=11 // pred_region
          %s513 = ssub.s32 1024, 1024
          %514 = vsyncadd [#allocation12], %s513
          %s515 = sshll.u32 [#allocation11], 4
          %s516 = int_to_ptr.vmem [resolvable:$true] %s515
          %521 = dma.hbm_to_vmem [thread:$0]  %s11, 1024, %s516, [#allocation12], 128, 128, 8
        $region48: #{decoder_forward.1} parent=11 // pred_fallthru
          _
        // Predicated region
        $region49: #{decoder_forward.1} parent=11 // pred_check
          %p522 = pneg %p320
        $region50: #{decoder_forward.1} parent=11 // pred_check_branch
          %524 = sbr.rel (%p522) target = $region52
        $region51: #{decoder_forward.1} parent=11 // pred_region
          _
        $region52: #{decoder_forward.1} parent=11 // pred_fallthru
          _
        // Predicated region
        $region53: #{decoder_forward.1} parent=11 // pred_check
          %p525 = pneg %p341
        $region54: #{decoder_forward.1} parent=11 // pred_check_branch
          %527 = sbr.rel (%p525) target = $region56
        $region55: #{decoder_forward.1} parent=11 // pred_region
          %s529 = ssub.s32 2048, 2048
          %530 = vsyncadd [#allocation12], %s529
          %s531 = sshll.u32 [#allocation13], 4
          %s532 = int_to_ptr.vmem [resolvable:$true] %s531
          %537 = dma.hbm_to_vmem [thread:$0]  %s13, 2048, %s532, [#allocation12], 128, 128, 8
        $region56: #{decoder_forward.1} parent=11 // pred_fallthru
          _
        // Predicated region
        $region57: #{decoder_forward.1} parent=11 // pred_check
          %p538 = pneg %p362
        $region58: #{decoder_forward.1} parent=11 // pred_check_branch
          %540 = sbr.rel (%p538) target = $region60
        $region59: #{decoder_forward.1} parent=11 // pred_region
          _
        $region60: #{decoder_forward.1} parent=11 // pred_fallthru
          _
        // Predicated region
        $region61: #{decoder_forward.1} parent=11 // pred_check
          %p541 = pneg %p383
        $region62: #{decoder_forward.1} parent=11 // pred_check_branch
          %543 = sbr.rel (%p541) target = $region64
        $region63: #{decoder_forward.1} parent=11 // pred_region
          _
        $region64: #{decoder_forward.1} parent=11 // pred_fallthru
          _
        // Predicated region
        $region65: #{decoder_forward.1} parent=11 // pred_check
          %p544 = pneg %p404
        $region66: #{decoder_forward.1} parent=11 // pred_check_branch
          %546 = sbr.rel (%p544) target = $region68
        $region67: #{decoder_forward.1} parent=11 // pred_region
          _
        $region68: #{decoder_forward.1} parent=11 // pred_fallthru
          _
      $region12: #{decoder_forward.1} parent=5 // pred_fallthru
        _
      %p547 = scmp.lt.s32.totalorder %s32, 2
      // Predicated region
      $region69: #{decoder_forward.1} parent=5 // pred_check
        %p548 = pneg %p547
      $region70: #{decoder_forward.1} parent=5 // pred_check_branch
        %550 = sbr.rel (%p548) target = $region72
      $region71: #{decoder_forward.1} parent=5 // pred_region
        // Predicated region
        $region73: #{decoder_forward.1} parent=71 // pred_check
          %p551 = pneg %p52
        $region74: #{decoder_forward.1} parent=71 // pred_check_branch
          %553 = sbr.rel (%p551) target = $region76
        $region75: #{decoder_forward.1} parent=71 // pred_region
          %p554 = scmp.lt.s32.totalorder %s32, 1
          %s555 = scalar_select %p554, %s32, 1
          %s556 = smul.addr %s555, 8
          %s557 = scalar_lea.vmem %s0, %s556
        $region76: #{decoder_forward.1} parent=71 // pred_fallthru
          _
        // Predicated region
        $region77: #{decoder_forward.1} parent=71 // pred_check
          %p558 = pneg %p78
        $region78: #{decoder_forward.1} parent=71 // pred_check_branch
          %560 = sbr.rel (%p558) target = $region80
        $region79: #{decoder_forward.1} parent=71 // pred_region
          %p561 = scmp.lt.s32.totalorder %s32, 1
          %s562 = scalar_select %p561, %s32, 1
          %s563 = smul.addr %s562, 8
          %s564 = scalar_lea.vmem %s1, %s563
        $region80: #{decoder_forward.1} parent=71 // pred_fallthru
          _
        // Predicated region
        $region81: #{decoder_forward.1} parent=71 // pred_check
          %p565 = pneg %p104
        $region82: #{decoder_forward.1} parent=71 // pred_check_branch
          %567 = sbr.rel (%p565) target = $region84
        $region83: #{decoder_forward.1} parent=71 // pred_region
          %s568 = sand.u32 %s94, 1
          %s569 = scalar_lea.sflag [#allocation3], %s568
          %s570 = sand.u32 %s94, 1
          %s571 = smul.addr %s570, 8
          %s572 = scalar_lea.vmem [#allocation2], %s571
          %s574 = ssub.s32 128, 128
          %575 = vsyncadd %s569, %s574
          %s576 = smul.addr %s32, 128
          %s577 = scalar_lea.hbm %s2, %s576
          %s579 = sshll.u32 %s572, 4
          %s580 = int_to_ptr.vmem [resolvable:$true] %s579
          %582 = dma.hbm_to_vmem [thread:$0]  %s577, 128, %s580, %s569
        $region84: #{decoder_forward.1} parent=71 // pred_fallthru
          _
      $region72: #{decoder_forward.1} parent=5 // pred_fallthru
        _
      %p583 = scmp.le.s32.totalorder 1, %s32
      %p584 = scmp.lt.s32.totalorder %s32, 3
      %p585 = pnand %p583, %p584
      %p586 = pneg %p585
      // Predicated region
      $region85: #{decoder_forward.1} parent=5 // pred_check
        _
      $region86: #{decoder_forward.1} parent=5 // pred_check_branch
        %588 = sbr.rel (%p585) target = $region88
      $region87: #{decoder_forward.1} parent=5 // pred_region
        %s589 = ssub.s32 %s32, 1
        %s590 = sand.u32 %s97, 1
        %s591 = scalar_lea.sflag [#allocation3], %s590
        %s592 = sand.u32 %s97, 1
        %s593 = smul.addr %s592, 8
        %s594 = scalar_lea.vmem [#allocation2], %s593
        // Predicated region
        $region89: #{decoder_forward.1} parent=87 // pred_check
          %p595 = pneg %p110
        $region90: #{decoder_forward.1} parent=87 // pred_check_branch
          %597 = sbr.rel (%p595) target = $region92
        $region91: #{decoder_forward.1} parent=87 // pred_region
          %598 = dma.done %s591, 128
        $region92: #{decoder_forward.1} parent=87 // pred_fallthru
          _
        // Predicated region
        $region93: #{decoder_forward.1} parent=87 // pred_check
          %p599 = pneg %p131
        $region94: #{decoder_forward.1} parent=87 // pred_check_branch
          %601 = sbr.rel (%p599) target = $region96
        $region95: #{decoder_forward.1} parent=87 // pred_region
          %602 = dma.done [#allocation6], 4096
        $region96: #{decoder_forward.1} parent=87 // pred_fallthru
          _
        // Predicated region
        $region97: #{decoder_forward.1} parent=87 // pred_check
          %p603 = pneg %p152
        $region98: #{decoder_forward.1} parent=87 // pred_check_branch
          %605 = sbr.rel (%p603) target = $region100
        $region99: #{decoder_forward.1} parent=87 // pred_region
          %606 = dma.done [#allocation6], 128
        $region100: #{decoder_forward.1} parent=87 // pred_fallthru
          _
        // Predicated region
        $region101: #{decoder_forward.1} parent=87 // pred_check
          %p607 = pneg %p173
        $region102: #{decoder_forward.1} parent=87 // pred_check_branch
          %609 = sbr.rel (%p607) target = $region104
        $region103: #{decoder_forward.1} parent=87 // pred_region
          %610 = dma.done [#allocation9], 4096
        $region104: #{decoder_forward.1} parent=87 // pred_fallthru
          _
        // Predicated region
        $region105: #{decoder_forward.1} parent=87 // pred_check
          %p611 = pneg %p257
        $region106: #{decoder_forward.1} parent=87 // pred_check_branch
          %613 = sbr.rel (%p611) target = $region108
        $region107: #{decoder_forward.1} parent=87 // pred_region
          %614 = dma.done [#allocation9], 1024
        $region108: #{decoder_forward.1} parent=87 // pred_fallthru
          _
        // Predicated region
        $region109: #{decoder_forward.1} parent=87 // pred_check
          %p615 = pneg %p299
        $region110: #{decoder_forward.1} parent=87 // pred_check_branch
          %617 = sbr.rel (%p615) target = $region112
        $region111: #{decoder_forward.1} parent=87 // pred_region
          %618 = dma.done [#allocation12], 1024
        $region112: #{decoder_forward.1} parent=87 // pred_fallthru
          _
        // Predicated region
        $region113: #{decoder_forward.1} parent=87 // pred_check
          %p619 = pneg %p341
        $region114: #{decoder_forward.1} parent=87 // pred_check_branch
          %621 = sbr.rel (%p619) target = $region116
        $region115: #{decoder_forward.1} parent=87 // pred_region
          %622 = dma.done [#allocation12], 2048
        $region116: #{decoder_forward.1} parent=87 // pred_fallthru
          _
        %p623 = scmp.lt.s32.totalorder %s37, 1
        %s624 = scalar_select %p623, %s37, 1
        %s625 = smul.addr %s624, 8
        %s626 = scalar_lea.vmem %s0, %s625
        %p627 = pneg %p58
        %p628 = pneg %p55
        %p629 = scmp.lt.s32.totalorder %s37, 1
        %s630 = scalar_select %p629, %s37, 1
        %s631 = smul.addr %s630, 8
        %s632 = scalar_lea.vmem %s1, %s631
        %p633 = pneg %p84
        %p634 = pneg %p81
        %s635 = sand.u32 %s97, 1
        %s636 = scalar_lea.sflag [#allocation3], %s635
        %s637 = sand.u32 %s97, 1
        %s638 = smul.addr %s637, 8
        %s639 = scalar_lea.vmem [#allocation2], %s638
        %p640 = pneg %p110
        %p641 = pneg %p107
        %p642 = pneg %p131
        %p643 = pneg %p128
        %p644 = pneg %p152
        %p645 = pneg %p149
        %p646 = pneg %p173
        %p647 = pneg %p170
        %p648 = pneg %p194
        %p649 = pneg %p191
        %p650 = pneg %p215
        %p651 = pneg %p212
        %p652 = pneg %p236
        %p653 = pneg %p233
        %p654 = pneg %p257
        %p655 = pneg %p254
        %p656 = pneg %p278
        %p657 = pneg %p275
        %p658 = pneg %p299
        %p659 = pneg %p296
        %p660 = pneg %p320
        %p661 = pneg %p317
        %p662 = pneg %p341
        %p663 = pneg %p338
        %p664 = pneg %p362
        %p665 = pneg %p359
        %p666 = pneg %p383
        %p667 = pneg %p380
        %p668 = pneg %p404
        %p669 = pneg %p401
        %p670 = pneg %p430
        %p671 = pneg %p427
        %s672 = sand.u32 %s417, 1
        %s673 = scalar_lea.sflag [#allocation4], %s672
        %s674 = sand.u32 %s417, 1
        %s675 = smul.addr %s674, 8
        %s676 = scalar_lea.vmem [#allocation14], %s675
        %p677 = scmp.lt.s32.totalorder %s37, 1
        %s678 = scalar_select %p677, %s37, 1
        %s679 = smul.addr %s678, 8
        %s680 = scalar_lea.vmem %s0, %s679
        %p681 = scmp.lt.s32.totalorder %s37, 1
        %s682 = scalar_select %p681, %s37, 1
        %s683 = smul.addr %s682, 8
        %s684 = scalar_lea.vmem %s1, %s683
        %v685 = vld [vmem:[%s680] sm:$0xff]
        %v686 = vld [vmem:[%s684] sm:$0xff]
        %v687 = vld [vmem:[%s594] sm:$0xff]
        %vm688 = vcmp.eq.f32.partialorder %v687, 0.0
        %v689 = vld [vmem:[#allocation5] sm:$0xff]
        %v690 = vld [vmem:[#allocation5 + $0x8] sm:$0xff]
        %v691 = vld [vmem:[#allocation5 + $0x10] sm:$0xff]
        %v692 = vld [vmem:[#allocation5 + $0x18] sm:$0xff]
        %v693 = vld [vmem:[#allocation5 + $0x20] sm:$0xff]
        %v694 = vld [vmem:[#allocation5 + $0x28] sm:$0xff]
        %v695 = vld [vmem:[#allocation5 + $0x30] sm:$0xff]
        %v696 = vld [vmem:[#allocation5 + $0x38] sm:$0xff]
        %v697 = vld [vmem:[#allocation5 + $0x40] sm:$0xff]
        %v698 = vld [vmem:[#allocation5 + $0x48] sm:$0xff]
        %v699 = vld [vmem:[#allocation5 + $0x50] sm:$0xff]
        %v700 = vld [vmem:[#allocation5 + $0x58] sm:$0xff]
        %v701 = vld [vmem:[#allocation5 + $0x60] sm:$0xff]
        %v702 = vld [vmem:[#allocation5 + $0x68] sm:$0xff]
        %v703 = vld [vmem:[#allocation5 + $0x70] sm:$0xff]
        %v704 = vld [vmem:[#allocation5 + $0x78] sm:$0xff]
        %v705 = vld [vmem:[#allocation7] sm:$0x1]
        %v706 = vld [vmem:[#allocation7 + $0x1] sm:$0x1]
        %v707 = vld [vmem:[#allocation7 + $0x2] sm:$0x1]
        %v708 = vld [vmem:[#allocation7 + $0x3] sm:$0x1]
        %v709 = vld [vmem:[#allocation8] sm:$0xff]
        %v710 = vld [vmem:[#allocation8 + $0x8] sm:$0xff]
        %v711 = vld [vmem:[#allocation8 + $0x10] sm:$0xff]
        %v712 = vld [vmem:[#allocation8 + $0x18] sm:$0xff]
        %v713 = vld [vmem:[#allocation8 + $0x20] sm:$0xff]
        %v714 = vld [vmem:[#allocation8 + $0x28] sm:$0xff]
        %v715 = vld [vmem:[#allocation8 + $0x30] sm:$0xff]
        %v716 = vld [vmem:[#allocation8 + $0x38] sm:$0xff]
        %v717 = vld [vmem:[#allocation8 + $0x40] sm:$0xff]
        %v718 = vld [vmem:[#allocation8 + $0x48] sm:$0xff]
        %v719 = vld [vmem:[#allocation8 + $0x50] sm:$0xff]
        %v720 = vld [vmem:[#allocation8 + $0x58] sm:$0xff]
        %v721 = vld [vmem:[#allocation8 + $0x60] sm:$0xff]
        %v722 = vld [vmem:[#allocation8 + $0x68] sm:$0xff]
        %v723 = vld [vmem:[#allocation8 + $0x70] sm:$0xff]
        %v724 = vld [vmem:[#allocation8 + $0x78] sm:$0xff]
        %v725 = vld [vmem:[%s6] sm:$0x1]
        %v726 = vld [vmem:[%s6 + $0x1] sm:$0x1]
        %v727 = vld [vmem:[%s6 + $0x2] sm:$0x1]
        %v728 = vld [vmem:[%s6 + $0x3] sm:$0x1]
        %v729 = vld [vmem:[%s7] sm:$0xff]
        %v730 = vld [vmem:[%s7 + $0x8] sm:$0xff]
        %v731 = vld [vmem:[%s7 + $0x10] sm:$0xff]
        %v732 = vld [vmem:[%s7 + $0x18] sm:$0xff]
        %v733 = vld [vmem:[%s7 + $0x20] sm:$0xff]
        %v734 = vld [vmem:[%s7 + $0x28] sm:$0xff]
        %v735 = vld [vmem:[%s7 + $0x30] sm:$0xff]
        %v736 = vld [vmem:[%s7 + $0x38] sm:$0xff]
        %v737 = vld [vmem:[%s7 + $0x40] sm:$0xff]
        %v738 = vld [vmem:[%s7 + $0x48] sm:$0xff]
        %v739 = vld [vmem:[%s7 + $0x50] sm:$0xff]
        %v740 = vld [vmem:[%s7 + $0x58] sm:$0xff]
        %v741 = vld [vmem:[%s7 + $0x60] sm:$0xff]
        %v742 = vld [vmem:[%s7 + $0x68] sm:$0xff]
        %v743 = vld [vmem:[%s7 + $0x70] sm:$0xff]
        %v744 = vld [vmem:[%s7 + $0x78] sm:$0xff]
        %v745 = vld [vmem:[%s8] sm:$0x1]
        %v746 = vld [vmem:[%s8 + $0x1] sm:$0x1]
        %v747 = vld [vmem:[%s8 + $0x2] sm:$0x1]
        %v748 = vld [vmem:[%s8 + $0x3] sm:$0x1]
        %v749 = vld [vmem:[#allocation10] sm:$0xff]
        %v750 = vld [vmem:[#allocation10 + $0x8] sm:$0xff]
        %v751 = vld [vmem:[#allocation10 + $0x10] sm:$0xff]
        %v752 = vld [vmem:[#allocation10 + $0x18] sm:$0xff]
        %v753 = vld [vmem:[%s10] sm:$0x1]
        %v754 = vld [vmem:[#allocation11] sm:$0xff]
        %v755 = vld [vmem:[#allocation11 + $0x8] sm:$0xff]
        %v756 = vld [vmem:[#allocation11 + $0x10] sm:$0xff]
        %v757 = vld [vmem:[#allocation11 + $0x18] sm:$0xff]
        %v758 = vld [vmem:[%s12] sm:$0x1]
        %v759 = vld [vmem:[#allocation13] sm:$0xff]
        %v760 = vld [vmem:[#allocation13 + $0x8] sm:$0xff]
        %v761 = vld [vmem:[#allocation13 + $0x10] sm:$0xff]
        %v762 = vld [vmem:[#allocation13 + $0x18] sm:$0xff]
        %v763 = vld [vmem:[#allocation13 + $0x20] sm:$0xff]
        %v764 = vld [vmem:[#allocation13 + $0x28] sm:$0xff]
        %v765 = vld [vmem:[#allocation13 + $0x30] sm:$0xff]
        %v766 = vld [vmem:[#allocation13 + $0x38] sm:$0xff]
        %v767 = vld [vmem:[%s14] sm:$0x1]
        %v768 = vld [vmem:[%s15] sm:$0x1]
        %v769 = vld [vmem:[%s16] sm:$0x1]
        %v774 = vlaneseq
        %v775 = vshrl.u32 %v774, 7
        %v776 = vsub.s32 0, %v775
        %v777 = vrot.slane %v705, %v776
        %v778 = vlaneseq
        %v779 = vshrl.u32 %v778, 7
        %v780 = vsub.s32 0, %v779
        %v781 = vrot.slane %v706, %v780
        %v782 = vlaneseq
        %v783 = vshrl.u32 %v782, 7
        %v784 = vsub.s32 0, %v783
        %v785 = vrot.slane %v707, %v784
        %v786 = vlaneseq
        %v787 = vshrl.u32 %v786, 7
        %v788 = vsub.s32 0, %v787
        %v789 = vrot.slane %v708, %v788
        %vm794 = vcmask 261120
        %v796 = vsel %vm794, %v685, 0
        %798 = vmatprep.subr.mxu0 0.0
        %799 = vmatpush1.msra.mxu0 %v689
        %800 = vmatprep.subr.mxu0 0.0
        %801 = vmatpush1.msra.mxu0 %v690
        %802 = vmatprep.subr.mxu0 0.0
        %803 = vmatpush1.msra.mxu0 %v691
        %804 = vmatprep.subr.mxu0 0.0
        %805 = vmatpush1.msra.mxu0 %v692
        %806 = vmatprep.subr.mxu0 0.0
        %807 = vmatpush1.msra.mxu0 0.0
        %808 = vmatprep.subr.mxu0 0.0
        %809 = vmatpush1.msra.mxu0 0.0
        %810 = vmatprep.subr.mxu0 0.0
        %811 = vmatpush1.msra.mxu0 0.0
        %812 = vmatprep.subr.mxu0 0.0
        %813 = vmatpush1.msra.mxu0 0.0
        %814 = vmatprep.subr.mxu0 0.0
        %815 = vmatpush1.msra.mxu0 0.0
        %816 = vmatprep.subr.mxu0 0.0
        %817 = vmatpush1.msra.mxu0 0.0
        %818 = vmatprep.subr.mxu0 0.0
        %819 = vmatpush1.msra.mxu0 0.0
        %820 = vmatprep.subr.mxu0 0.0
        %821 = vmatpush1.msra.mxu0 0.0
        %822 = vmatprep.subr.mxu0 0.0
        %823 = vmatpush1.msra.mxu0 0.0
        %824 = vmatprep.subr.mxu0 0.0
        %825 = vmatpush1.msra.mxu0 0.0
        %826 = vmatprep.subr.mxu0 0.0
        %827 = vmatpush1.msra.mxu0 0.0
        %828 = vmatprep.subr.mxu0 0.0
        %829 = vmatpush1.msra.mxu0 0.0
        %830 = vmatprep.subr.mxu0 0.0
        %831 = vmatpush1.msra.mxu0 0.0
        %832 = vmatprep.subr.mxu0 0.0
        %833 = vmatpush1.msra.mxu0 0.0
        %834 = vmatprep.subr.mxu0 0.0
        %835 = vmatpush1.msra.mxu0 0.0
        %836 = vmatprep.subr.mxu0 0.0
        %837 = vmatpush1.msra.mxu0 0.0
        %838 = vmatprep.subr.mxu0 0.0
        %839 = vmatpush1.msra.mxu0 0.0
        %840 = vmatprep.subr.mxu0 0.0
        %841 = vmatpush1.msra.mxu0 0.0
        %842 = vmatprep.subr.mxu0 0.0
        %843 = vmatpush1.msra.mxu0 0.0
        %844 = vmatprep.subr.mxu0 0.0
        %845 = vmatpush1.msra.mxu0 0.0
        %846 = vmatprep.subr.mxu0 0.0
        %847 = vmatpush1.msra.mxu0 0.0
        %848 = vmatprep.subr.mxu0 0.0
        %849 = vmatpush1.msra.mxu0 0.0
        %850 = vmatprep.subr.mxu0 0.0
        %851 = vmatpush1.msra.mxu0 0.0
        %852 = vmatprep.subr.mxu0 0.0
        %853 = vmatpush1.msra.mxu0 0.0
        %854 = vmatprep.subr.mxu0 0.0
        %855 = vmatpush1.msra.mxu0 0.0
        %856 = vmatprep.subr.mxu0 0.0
        %857 = vmatpush1.msra.mxu0 0.0
        %858 = vmatprep.subr.mxu0 0.0
        %859 = vmatpush1.msra.mxu0 0.0
        %860 = vmatprep.subr.mxu0 0.0
        %861 = vmatpush1.msra.mxu0 0.0
        %862 = vmatprep.mubr.f32.mxu0 0.0
        %863 = vmatmul.mubr.f32.gmra.mrb[0].mxu0 %v796
        %v864 = vpop.f32.mrb[0].mxu0
        %v865 = vadd.f32 %v777, %v864
        %v866 = vpop.f32.mrb[0].mxu0
        %867 = vdwg.mxu0
        %868 = vmatprep.subr.mxu0 0.0
        %869 = vmatpush1.msra.mxu0 %v693
        %870 = vmatprep.subr.mxu0 0.0
        %871 = vmatpush1.msra.mxu0 %v694
        %872 = vmatprep.subr.mxu0 0.0
        %873 = vmatpush1.msra.mxu0 %v695
        %874 = vmatprep.subr.mxu0 0.0
        %875 = vmatpush1.msra.mxu0 %v696
        %876 = vmatprep.subr.mxu0 0.0
        %877 = vmatpush1.msra.mxu0 0.0
        %878 = vmatprep.subr.mxu0 0.0
        %879 = vmatpush1.msra.mxu0 0.0
        %880 = vmatprep.subr.mxu0 0.0
        %881 = vmatpush1.msra.mxu0 0.0
        %882 = vmatprep.subr.mxu0 0.0
        %883 = vmatpush1.msra.mxu0 0.0
        %884 = vmatprep.subr.mxu0 0.0
        %885 = vmatpush1.msra.mxu0 0.0
        %886 = vmatprep.subr.mxu0 0.0
        %887 = vmatpush1.msra.mxu0 0.0
        %888 = vmatprep.subr.mxu0 0.0
        %889 = vmatpush1.msra.mxu0 0.0
        %890 = vmatprep.subr.mxu0 0.0
        %891 = vmatpush1.msra.mxu0 0.0
        %892 = vmatprep.subr.mxu0 0.0
        %893 = vmatpush1.msra.mxu0 0.0
        %894 = vmatprep.subr.mxu0 0.0
        %895 = vmatpush1.msra.mxu0 0.0
        %896 = vmatprep.subr.mxu0 0.0
        %897 = vmatpush1.msra.mxu0 0.0
        %898 = vmatprep.subr.mxu0 0.0
        %899 = vmatpush1.msra.mxu0 0.0
        %900 = vmatprep.subr.mxu0 0.0
        %901 = vmatpush1.msra.mxu0 0.0
        %902 = vmatprep.subr.mxu0 0.0
        %903 = vmatpush1.msra.mxu0 0.0
        %904 = vmatprep.subr.mxu0 0.0
        %905 = vmatpush1.msra.mxu0 0.0
        %906 = vmatprep.subr.mxu0 0.0
        %907 = vmatpush1.msra.mxu0 0.0
        %908 = vmatprep.subr.mxu0 0.0
        %909 = vmatpush1.msra.mxu0 0.0
        %910 = vmatprep.subr.mxu0 0.0
        %911 = vmatpush1.msra.mxu0 0.0
        %912 = vmatprep.subr.mxu0 0.0
        %913 = vmatpush1.msra.mxu0 0.0
        %914 = vmatprep.subr.mxu0 0.0
        %915 = vmatpush1.msra.mxu0 0.0
        %916 = vmatprep.subr.mxu0 0.0
        %917 = vmatpush1.msra.mxu0 0.0
        %918 = vmatprep.subr.mxu0 0.0
        %919 = vmatpush1.msra.mxu0 0.0
        %920 = vmatprep.subr.mxu0 0.0
        %921 = vmatpush1.msra.mxu0 0.0
        %922 = vmatprep.subr.mxu0 0.0
        %923 = vmatpush1.msra.mxu0 0.0
        %924 = vmatprep.subr.mxu0 0.0
        %925 = vmatpush1.msra.mxu0 0.0
        %926 = vmatprep.subr.mxu0 0.0
        %927 = vmatpush1.msra.mxu0 0.0
        %928 = vmatprep.subr.mxu0 0.0
        %929 = vmatpush1.msra.mxu0 0.0
        %930 = vmatprep.subr.mxu0 0.0
        %931 = vmatpush1.msra.mxu0 0.0
        %932 = vmatprep.mubr.f32.mxu0 0.0
        %933 = vmatmul.mubr.f32.gmra.mrb[0].mxu0 %v796
        %v934 = vpop.f32.mrb[0].mxu0
        %v935 = vadd.f32 %v781, %v934
        %v936 = vpop.f32.mrb[0].mxu0
        %937 = vdwg.mxu0
        %938 = vmatprep.subr.mxu0 0.0
        %939 = vmatpush1.msra.mxu0 %v697
        %940 = vmatprep.subr.mxu0 0.0
        %941 = vmatpush1.msra.mxu0 %v698
        %942 = vmatprep.subr.mxu0 0.0
        %943 = vmatpush1.msra.mxu0 %v699
        %944 = vmatprep.subr.mxu0 0.0
        %945 = vmatpush1.msra.mxu0 %v700
        %946 = vmatprep.subr.mxu0 0.0
        %947 = vmatpush1.msra.mxu0 0.0
        %948 = vmatprep.subr.mxu0 0.0
        %949 = vmatpush1.msra.mxu0 0.0
        %950 = vmatprep.subr.mxu0 0.0
        %951 = vmatpush1.msra.mxu0 0.0
        %952 = vmatprep.subr.mxu0 0.0
        %953 = vmatpush1.msra.mxu0 0.0
        %954 = vmatprep.subr.mxu0 0.0
        %955 = vmatpush1.msra.mxu0 0.0
        %956 = vmatprep.subr.mxu0 0.0
        %957 = vmatpush1.msra.mxu0 0.0
        %958 = vmatprep.subr.mxu0 0.0
        %959 = vmatpush1.msra.mxu0 0.0
        %960 = vmatprep.subr.mxu0 0.0
        %961 = vmatpush1.msra.mxu0 0.0
        %962 = vmatprep.subr.mxu0 0.0
        %963 = vmatpush1.msra.mxu0 0.0
        %964 = vmatprep.subr.mxu0 0.0
        %965 = vmatpush1.msra.mxu0 0.0
        %966 = vmatprep.subr.mxu0 0.0
        %967 = vmatpush1.msra.mxu0 0.0
        %968 = vmatprep.subr.mxu0 0.0
        %969 = vmatpush1.msra.mxu0 0.0
        %970 = vmatprep.subr.mxu0 0.0
        %971 = vmatpush1.msra.mxu0 0.0
        %972 = vmatprep.subr.mxu0 0.0
        %973 = vmatpush1.msra.mxu0 0.0
        %974 = vmatprep.subr.mxu0 0.0
        %975 = vmatpush1.msra.mxu0 0.0
        %976 = vmatprep.subr.mxu0 0.0
        %977 = vmatpush1.msra.mxu0 0.0
        %978 = vmatprep.subr.mxu0 0.0
        %979 = vmatpush1.msra.mxu0 0.0
        %980 = vmatprep.subr.mxu0 0.0
        %981 = vmatpush1.msra.mxu0 0.0
        %982 = vmatprep.subr.mxu0 0.0
        %983 = vmatpush1.msra.mxu0 0.0
        %984 = vmatprep.subr.mxu0 0.0
        %985 = vmatpush1.msra.mxu0 0.0
        %986 = vmatprep.subr.mxu0 0.0
        %987 = vmatpush1.msra.mxu0 0.0
        %988 = vmatprep.subr.mxu0 0.0
        %989 = vmatpush1.msra.mxu0 0.0
        %990 = vmatprep.subr.mxu0 0.0
        %991 = vmatpush1.msra.mxu0 0.0
        %992 = vmatprep.subr.mxu0 0.0
        %993 = vmatpush1.msra.mxu0 0.0
        %994 = vmatprep.subr.mxu0 0.0
        %995 = vmatpush1.msra.mxu0 0.0
        %996 = vmatprep.subr.mxu0 0.0
        %997 = vmatpush1.msra.mxu0 0.0
        %998 = vmatprep.subr.mxu0 0.0
        %999 = vmatpush1.msra.mxu0 0.0
        %1000 = vmatprep.subr.mxu0 0.0
        %1001 = vmatpush1.msra.mxu0 0.0
        %1002 = vmatprep.mubr.f32.mxu0 0.0
        %1003 = vmatmul.mubr.f32.gmra.mrb[0].mxu0 %v796
        %v1004 = vpop.f32.mrb[0].mxu0
        %v1005 = vadd.f32 %v785, %v1004
        %v1006 = vpop.f32.mrb[0].mxu0
        %1007 = vdwg.mxu0
        %1008 = vmatprep.subr.mxu0 0.0
        %1009 = vmatpush1.msra.mxu0 %v701
        %1010 = vmatprep.subr.mxu0 0.0
        %1011 = vmatpush1.msra.mxu0 %v702
        %1012 = vmatprep.subr.mxu0 0.0
        %1013 = vmatpush1.msra.mxu0 %v703
        %1014 = vmatprep.subr.mxu0 0.0
        %1015 = vmatpush1.msra.mxu0 %v704
        %1016 = vmatprep.subr.mxu0 0.0
        %1017 = vmatpush1.msra.mxu0 0.0
        %1018 = vmatprep.subr.mxu0 0.0
        %1019 = vmatpush1.msra.mxu0 0.0
        %1020 = vmatprep.subr.mxu0 0.0
        %1021 = vmatpush1.msra.mxu0 0.0
        %1022 = vmatprep.subr.mxu0 0.0
        %1023 = vmatpush1.msra.mxu0 0.0
        %1024 = vmatprep.subr.mxu0 0.0
        %1025 = vmatpush1.msra.mxu0 0.0
        %1026 = vmatprep.subr.mxu0 0.0
        %1027 = vmatpush1.msra.mxu0 0.0
        %1028 = vmatprep.subr.mxu0 0.0
        %1029 = vmatpush1.msra.mxu0 0.0
        %1030 = vmatprep.subr.mxu0 0.0
        %1031 = vmatpush1.msra.mxu0 0.0
        %1032 = vmatprep.subr.mxu0 0.0
        %1033 = vmatpush1.msra.mxu0 0.0
        %1034 = vmatprep.subr.mxu0 0.0
        %1035 = vmatpush1.msra.mxu0 0.0
        %1036 = vmatprep.subr.mxu0 0.0
        %1037 = vmatpush1.msra.mxu0 0.0
        %1038 = vmatprep.subr.mxu0 0.0
        %1039 = vmatpush1.msra.mxu0 0.0
        %1040 = vmatprep.subr.mxu0 0.0
        %1041 = vmatpush1.msra.mxu0 0.0
        %1042 = vmatprep.subr.mxu0 0.0
        %1043 = vmatpush1.msra.mxu0 0.0
        %1044 = vmatprep.subr.mxu0 0.0
        %1045 = vmatpush1.msra.mxu0 0.0
        %1046 = vmatprep.subr.mxu0 0.0
        %1047 = vmatpush1.msra.mxu0 0.0
        %1048 = vmatprep.subr.mxu0 0.0
        %1049 = vmatpush1.msra.mxu0 0.0
        %1050 = vmatprep.subr.mxu0 0.0
        %1051 = vmatpush1.msra.mxu0 0.0
        %1052 = vmatprep.subr.mxu0 0.0
        %1053 = vmatpush1.msra.mxu0 0.0
        %1054 = vmatprep.subr.mxu0 0.0
        %1055 = vmatpush1.msra.mxu0 0.0
        %1056 = vmatprep.subr.mxu0 0.0
        %1057 = vmatpush1.msra.mxu0 0.0
        %1058 = vmatprep.subr.mxu0 0.0
        %1059 = vmatpush1.msra.mxu0 0.0
        %1060 = vmatprep.subr.mxu0 0.0
        %1061 = vmatpush1.msra.mxu0 0.0
        %1062 = vmatprep.subr.mxu0 0.0
        %1063 = vmatpush1.msra.mxu0 0.0
        %1064 = vmatprep.subr.mxu0 0.0
        %1065 = vmatpush1.msra.mxu0 0.0
        %1066 = vmatprep.subr.mxu0 0.0
        %1067 = vmatpush1.msra.mxu0 0.0
        %1068 = vmatprep.subr.mxu0 0.0
        %1069 = vmatpush1.msra.mxu0 0.0
        %1070 = vmatprep.subr.mxu0 0.0
        %1071 = vmatpush1.msra.mxu0 0.0
        %1072 = vmatprep.mubr.f32.mxu0 0.0
        %1073 = vmatmul.mubr.f32.gmra.mrb[0].mxu0 %v796
        %v1074 = vpop.f32.mrb[0].mxu0
        %v1075 = vadd.f32 %v789, %v1074
        %v1076 = vpop.f32.mrb[0].mxu0
        %1077 = vdwg.mxu0
        %v1082 = vlaneseq
        %v1083 = vshrl.u32 %v1082, 7
        %v1084 = vsub.s32 0, %v1083
        %v1085 = vrot.slane %v725, %v1084
        %v1086 = vlaneseq
        %v1087 = vshrl.u32 %v1086, 7
        %v1088 = vsub.s32 0, %v1087
        %v1089 = vrot.slane %v726, %v1088
        %v1090 = vlaneseq
        %v1091 = vshrl.u32 %v1090, 7
        %v1092 = vsub.s32 0, %v1091
        %v1093 = vrot.slane %v727, %v1092
        %v1094 = vlaneseq
        %v1095 = vshrl.u32 %v1094, 7
        %v1096 = vsub.s32 0, %v1095
        %v1097 = vrot.slane %v728, %v1096
        %1102 = vmatprep.subr.mxu0 0.0
        %1103 = vmatpush1.msra.mxu0 %v709
        %1104 = vmatprep.subr.mxu0 0.0
        %1105 = vmatpush1.msra.mxu0 %v710
        %1106 = vmatprep.subr.mxu0 0.0
        %1107 = vmatpush1.msra.mxu0 %v711
        %1108 = vmatprep.subr.mxu0 0.0
        %1109 = vmatpush1.msra.mxu0 %v712
        %1110 = vmatprep.subr.mxu0 0.0
        %1111 = vmatpush1.msra.mxu0 0.0
        %1112 = vmatprep.subr.mxu0 0.0
        %1113 = vmatpush1.msra.mxu0 0.0
        %1114 = vmatprep.subr.mxu0 0.0
        %1115 = vmatpush1.msra.mxu0 0.0
        %1116 = vmatprep.subr.mxu0 0.0
        %1117 = vmatpush1.msra.mxu0 0.0
        %1118 = vmatprep.subr.mxu0 0.0
        %1119 = vmatpush1.msra.mxu0 0.0
        %1120 = vmatprep.subr.mxu0 0.0
        %1121 = vmatpush1.msra.mxu0 0.0
        %1122 = vmatprep.subr.mxu0 0.0
        %1123 = vmatpush1.msra.mxu0 0.0
        %1124 = vmatprep.subr.mxu0 0.0
        %1125 = vmatpush1.msra.mxu0 0.0
        %1126 = vmatprep.subr.mxu0 0.0
        %1127 = vmatpush1.msra.mxu0 0.0
        %1128 = vmatprep.subr.mxu0 0.0
        %1129 = vmatpush1.msra.mxu0 0.0
        %1130 = vmatprep.subr.mxu0 0.0
        %1131 = vmatpush1.msra.mxu0 0.0
        %1132 = vmatprep.subr.mxu0 0.0
        %1133 = vmatpush1.msra.mxu0 0.0
        %1134 = vmatprep.subr.mxu0 0.0
        %1135 = vmatpush1.msra.mxu0 0.0
        %1136 = vmatprep.subr.mxu0 0.0
        %1137 = vmatpush1.msra.mxu0 0.0
        %1138 = vmatprep.subr.mxu0 0.0
        %1139 = vmatpush1.msra.mxu0 0.0
        %1140 = vmatprep.subr.mxu0 0.0
        %1141 = vmatpush1.msra.mxu0 0.0
        %1142 = vmatprep.subr.mxu0 0.0
        %1143 = vmatpush1.msra.mxu0 0.0
        %1144 = vmatprep.subr.mxu0 0.0
        %1145 = vmatpush1.msra.mxu0 0.0
        %1146 = vmatprep.subr.mxu0 0.0
        %1147 = vmatpush1.msra.mxu0 0.0
        %1148 = vmatprep.subr.mxu0 0.0
        %1149 = vmatpush1.msra.mxu0 0.0
        %1150 = vmatprep.subr.mxu0 0.0
        %1151 = vmatpush1.msra.mxu0 0.0
        %1152 = vmatprep.subr.mxu0 0.0
        %1153 = vmatpush1.msra.mxu0 0.0
        %1154 = vmatprep.subr.mxu0 0.0
        %1155 = vmatpush1.msra.mxu0 0.0
        %1156 = vmatprep.subr.mxu0 0.0
        %1157 = vmatpush1.msra.mxu0 0.0
        %1158 = vmatprep.subr.mxu0 0.0
        %1159 = vmatpush1.msra.mxu0 0.0
        %1160 = vmatprep.subr.mxu0 0.0
        %1161 = vmatpush1.msra.mxu0 0.0
        %1162 = vmatprep.subr.mxu0 0.0
        %1163 = vmatpush1.msra.mxu0 0.0
        %1164 = vmatprep.subr.mxu0 0.0
        %1165 = vmatpush1.msra.mxu0 0.0
        %1166 = vmatprep.mubr.f32.mxu0 0.0
        %1167 = vmatmul.mubr.f32.gmra.mrb[0].mxu0 %v796
        %v1168 = vpop.f32.mrb[0].mxu0
        %v1169 = vadd.f32 %v1085, %v1168
        %v1170 = vpop.f32.mrb[0].mxu0
        %1171 = vdwg.mxu0
        %1172 = vmatprep.subr.mxu0 0.0
        %1173 = vmatpush1.msra.mxu0 %v713
        %1174 = vmatprep.subr.mxu0 0.0
        %1175 = vmatpush1.msra.mxu0 %v714
        %1176 = vmatprep.subr.mxu0 0.0
        %1177 = vmatpush1.msra.mxu0 %v715
        %1178 = vmatprep.subr.mxu0 0.0
        %1179 = vmatpush1.msra.mxu0 %v716
        %1180 = vmatprep.subr.mxu0 0.0
        %1181 = vmatpush1.msra.mxu0 0.0
        %1182 = vmatprep.subr.mxu0 0.0
        %1183 = vmatpush1.msra.mxu0 0.0
        %1184 = vmatprep.subr.mxu0 0.0
        %1185 = vmatpush1.msra.mxu0 0.0
        %1186 = vmatprep.subr.mxu0 0.0
        %1187 = vmatpush1.msra.mxu0 0.0
        %1188 = vmatprep.subr.mxu0 0.0
        %1189 = vmatpush1.msra.mxu0 0.0
        %1190 = vmatprep.subr.mxu0 0.0
        %1191 = vmatpush1.msra.mxu0 0.0
        %1192 = vmatprep.subr.mxu0 0.0
        %1193 = vmatpush1.msra.mxu0 0.0
        %1194 = vmatprep.subr.mxu0 0.0
        %1195 = vmatpush1.msra.mxu0 0.0
        %1196 = vmatprep.subr.mxu0 0.0
        %1197 = vmatpush1.msra.mxu0 0.0
        %1198 = vmatprep.subr.mxu0 0.0
        %1199 = vmatpush1.msra.mxu0 0.0
        %1200 = vmatprep.subr.mxu0 0.0
        %1201 = vmatpush1.msra.mxu0 0.0
        %1202 = vmatprep.subr.mxu0 0.0
        %1203 = vmatpush1.msra.mxu0 0.0
        %1204 = vmatprep.subr.mxu0 0.0
        %1205 = vmatpush1.msra.mxu0 0.0
        %1206 = vmatprep.subr.mxu0 0.0
        %1207 = vmatpush1.msra.mxu0 0.0
        %1208 = vmatprep.subr.mxu0 0.0
        %1209 = vmatpush1.msra.mxu0 0.0
        %1210 = vmatprep.subr.mxu0 0.0
        %1211 = vmatpush1.msra.mxu0 0.0
        %1212 = vmatprep.subr.mxu0 0.0
        %1213 = vmatpush1.msra.mxu0 0.0
        %1214 = vmatprep.subr.mxu0 0.0
        %1215 = vmatpush1.msra.mxu0 0.0
        %1216 = vmatprep.subr.mxu0 0.0
        %1217 = vmatpush1.msra.mxu0 0.0
        %1218 = vmatprep.subr.mxu0 0.0
        %1219 = vmatpush1.msra.mxu0 0.0
        %1220 = vmatprep.subr.mxu0 0.0
        %1221 = vmatpush1.msra.mxu0 0.0
        %1222 = vmatprep.subr.mxu0 0.0
        %1223 = vmatpush1.msra.mxu0 0.0
        %1224 = vmatprep.subr.mxu0 0.0
        %1225 = vmatpush1.msra.mxu0 0.0
        %1226 = vmatprep.subr.mxu0 0.0
        %1227 = vmatpush1.msra.mxu0 0.0
        %1228 = vmatprep.subr.mxu0 0.0
        %1229 = vmatpush1.msra.mxu0 0.0
        %1230 = vmatprep.subr.mxu0 0.0
        %1231 = vmatpush1.msra.mxu0 0.0
        %1232 = vmatprep.subr.mxu0 0.0
        %1233 = vmatpush1.msra.mxu0 0.0
        %1234 = vmatprep.subr.mxu0 0.0
        %1235 = vmatpush1.msra.mxu0 0.0
        %1236 = vmatprep.mubr.f32.mxu0 0.0
        %1237 = vmatmul.mubr.f32.gmra.mrb[0].mxu0 %v796
        %v1238 = vpop.f32.mrb[0].mxu0
        %v1239 = vadd.f32 %v1089, %v1238
        %v1240 = vpop.f32.mrb[0].mxu0
        %1241 = vdwg.mxu0
        %1242 = vmatprep.subr.mxu0 0.0
        %1243 = vmatpush1.msra.mxu0 %v717
        %1244 = vmatprep.subr.mxu0 0.0
        %1245 = vmatpush1.msra.mxu0 %v718
        %1246 = vmatprep.subr.mxu0 0.0
        %1247 = vmatpush1.msra.mxu0 %v719
        %1248 = vmatprep.subr.mxu0 0.0
        %1249 = vmatpush1.msra.mxu0 %v720
        %1250 = vmatprep.subr.mxu0 0.0
        %1251 = vmatpush1.msra.mxu0 0.0
        %1252 = vmatprep.subr.mxu0 0.0
        %1253 = vmatpush1.msra.mxu0 0.0
        %1254 = vmatprep.subr.mxu0 0.0
        %1255 = vmatpush1.msra.mxu0 0.0
        %1256 = vmatprep.subr.mxu0 0.0
        %1257 = vmatpush1.msra.mxu0 0.0
        %1258 = vmatprep.subr.mxu0 0.0
        %1259 = vmatpush1.msra.mxu0 0.0
        %1260 = vmatprep.subr.mxu0 0.0
        %1261 = vmatpush1.msra.mxu0 0.0
        %1262 = vmatprep.subr.mxu0 0.0
        %1263 = vmatpush1.msra.mxu0 0.0
        %1264 = vmatprep.subr.mxu0 0.0
        %1265 = vmatpush1.msra.mxu0 0.0
        %1266 = vmatprep.subr.mxu0 0.0
        %1267 = vmatpush1.msra.mxu0 0.0
        %1268 = vmatprep.subr.mxu0 0.0
        %1269 = vmatpush1.msra.mxu0 0.0
        %1270 = vmatprep.subr.mxu0 0.0
        %1271 = vmatpush1.msra.mxu0 0.0
        %1272 = vmatprep.subr.mxu0 0.0
        %1273 = vmatpush1.msra.mxu0 0.0
        %1274 = vmatprep.subr.mxu0 0.0
        %1275 = vmatpush1.msra.mxu0 0.0
        %1276 = vmatprep.subr.mxu0 0.0
        %1277 = vmatpush1.msra.mxu0 0.0
        %1278 = vmatprep.subr.mxu0 0.0
        %1279 = vmatpush1.msra.mxu0 0.0
        %1280 = vmatprep.subr.mxu0 0.0
        %1281 = vmatpush1.msra.mxu0 0.0
        %1282 = vmatprep.subr.mxu0 0.0
        %1283 = vmatpush1.msra.mxu0 0.0
        %1284 = vmatprep.subr.mxu0 0.0
        %1285 = vmatpush1.msra.mxu0 0.0
        %1286 = vmatprep.subr.mxu0 0.0
        %1287 = vmatpush1.msra.mxu0 0.0
        %1288 = vmatprep.subr.mxu0 0.0
        %1289 = vmatpush1.msra.mxu0 0.0
        %1290 = vmatprep.subr.mxu0 0.0
        %1291 = vmatpush1.msra.mxu0 0.0
        %1292 = vmatprep.subr.mxu0 0.0
        %1293 = vmatpush1.msra.mxu0 0.0
        %1294 = vmatprep.subr.mxu0 0.0
        %1295 = vmatpush1.msra.mxu0 0.0
        %1296 = vmatprep.subr.mxu0 0.0
        %1297 = vmatpush1.msra.mxu0 0.0
        %1298 = vmatprep.subr.mxu0 0.0
        %1299 = vmatpush1.msra.mxu0 0.0
        %1300 = vmatprep.subr.mxu0 0.0
        %1301 = vmatpush1.msra.mxu0 0.0
        %1302 = vmatprep.subr.mxu0 0.0
        %1303 = vmatpush1.msra.mxu0 0.0
        %1304 = vmatprep.subr.mxu0 0.0
        %1305 = vmatpush1.msra.mxu0 0.0
        %1306 = vmatprep.mubr.f32.mxu0 0.0
        %1307 = vmatmul.mubr.f32.gmra.mrb[0].mxu0 %v796
        %v1308 = vpop.f32.mrb[0].mxu0
        %v1309 = vadd.f32 %v1093, %v1308
        %v1310 = vpop.f32.mrb[0].mxu0
        %1311 = vdwg.mxu0
        %1312 = vmatprep.subr.mxu0 0.0
        %1313 = vmatpush1.msra.mxu0 %v721
        %1314 = vmatprep.subr.mxu0 0.0
        %1315 = vmatpush1.msra.mxu0 %v722
        %1316 = vmatprep.subr.mxu0 0.0
        %1317 = vmatpush1.msra.mxu0 %v723
        %1318 = vmatprep.subr.mxu0 0.0
        %1319 = vmatpush1.msra.mxu0 %v724
        %1320 = vmatprep.subr.mxu0 0.0
        %1321 = vmatpush1.msra.mxu0 0.0
        %1322 = vmatprep.subr.mxu0 0.0
        %1323 = vmatpush1.msra.mxu0 0.0
        %1324 = vmatprep.subr.mxu0 0.0
        %1325 = vmatpush1.msra.mxu0 0.0
        %1326 = vmatprep.subr.mxu0 0.0
        %1327 = vmatpush1.msra.mxu0 0.0
        %1328 = vmatprep.subr.mxu0 0.0
        %1329 = vmatpush1.msra.mxu0 0.0
        %1330 = vmatprep.subr.mxu0 0.0
        %1331 = vmatpush1.msra.mxu0 0.0
        %1332 = vmatprep.subr.mxu0 0.0
        %1333 = vmatpush1.msra.mxu0 0.0
        %1334 = vmatprep.subr.mxu0 0.0
        %1335 = vmatpush1.msra.mxu0 0.0
        %1336 = vmatprep.subr.mxu0 0.0
        %1337 = vmatpush1.msra.mxu0 0.0
        %1338 = vmatprep.subr.mxu0 0.0
        %1339 = vmatpush1.msra.mxu0 0.0
        %1340 = vmatprep.subr.mxu0 0.0
        %1341 = vmatpush1.msra.mxu0 0.0
        %1342 = vmatprep.subr.mxu0 0.0
        %1343 = vmatpush1.msra.mxu0 0.0
        %1344 = vmatprep.subr.mxu0 0.0
        %1345 = vmatpush1.msra.mxu0 0.0
        %1346 = vmatprep.subr.mxu0 0.0
        %1347 = vmatpush1.msra.mxu0 0.0
        %1348 = vmatprep.subr.mxu0 0.0
        %1349 = vmatpush1.msra.mxu0 0.0
        %1350 = vmatprep.subr.mxu0 0.0
        %1351 = vmatpush1.msra.mxu0 0.0
        %1352 = vmatprep.subr.mxu0 0.0
        %1353 = vmatpush1.msra.mxu0 0.0
        %1354 = vmatprep.subr.mxu0 0.0
        %1355 = vmatpush1.msra.mxu0 0.0
        %1356 = vmatprep.subr.mxu0 0.0
        %1357 = vmatpush1.msra.mxu0 0.0
        %1358 = vmatprep.subr.mxu0 0.0
        %1359 = vmatpush1.msra.mxu0 0.0
        %1360 = vmatprep.subr.mxu0 0.0
        %1361 = vmatpush1.msra.mxu0 0.0
        %1362 = vmatprep.subr.mxu0 0.0
        %1363 = vmatpush1.msra.mxu0 0.0
        %1364 = vmatprep.subr.mxu0 0.0
        %1365 = vmatpush1.msra.mxu0 0.0
        %1366 = vmatprep.subr.mxu0 0.0
        %1367 = vmatpush1.msra.mxu0 0.0
        %1368 = vmatprep.subr.mxu0 0.0
        %1369 = vmatpush1.msra.mxu0 0.0
        %1370 = vmatprep.subr.mxu0 0.0
        %1371 = vmatpush1.msra.mxu0 0.0
        %1372 = vmatprep.subr.mxu0 0.0
        %1373 = vmatpush1.msra.mxu0 0.0
        %1374 = vmatprep.subr.mxu0 0.0
        %1375 = vmatpush1.msra.mxu0 0.0
        %1376 = vmatprep.mubr.f32.mxu0 0.0
        %1377 = vmatmul.mubr.f32.gmra.mrb[0].mxu0 %v796
        %v1378 = vpop.f32.mrb[0].mxu0
        %v1379 = vadd.f32 %v1097, %v1378
        %v1380 = vpop.f32.mrb[0].mxu0
        %1381 = vdwg.mxu0
        %v1386 = vlaneseq
        %v1387 = vshrl.u32 %v1386, 7
        %v1388 = vsub.s32 0, %v1387
        %v1389 = vrot.slane %v745, %v1388
        %v1390 = vlaneseq
        %v1391 = vshrl.u32 %v1390, 7
        %v1392 = vsub.s32 0, %v1391
        %v1393 = vrot.slane %v746, %v1392
        %v1394 = vlaneseq
        %v1395 = vshrl.u32 %v1394, 7
        %v1396 = vsub.s32 0, %v1395
        %v1397 = vrot.slane %v747, %v1396
        %v1398 = vlaneseq
        %v1399 = vshrl.u32 %v1398, 7
        %v1400 = vsub.s32 0, %v1399
        %v1401 = vrot.slane %v748, %v1400
        %1406 = vmatprep.subr.mxu0 0.0
        %1407 = vmatpush1.msra.mxu0 %v729
        %1408 = vmatprep.subr.mxu0 0.0
        %1409 = vmatpush1.msra.mxu0 %v730
        %1410 = vmatprep.subr.mxu0 0.0
        %1411 = vmatpush1.msra.mxu0 %v731
        %1412 = vmatprep.subr.mxu0 0.0
        %1413 = vmatpush1.msra.mxu0 %v732
        %1414 = vmatprep.subr.mxu0 0.0
        %1415 = vmatpush1.msra.mxu0 0.0
        %1416 = vmatprep.subr.mxu0 0.0
        %1417 = vmatpush1.msra.mxu0 0.0
        %1418 = vmatprep.subr.mxu0 0.0
        %1419 = vmatpush1.msra.mxu0 0.0
        %1420 = vmatprep.subr.mxu0 0.0
        %1421 = vmatpush1.msra.mxu0 0.0
        %1422 = vmatprep.subr.mxu0 0.0
        %1423 = vmatpush1.msra.mxu0 0.0
        %1424 = vmatprep.subr.mxu0 0.0
        %1425 = vmatpush1.msra.mxu0 0.0
        %1426 = vmatprep.subr.mxu0 0.0
        %1427 = vmatpush1.msra.mxu0 0.0
        %1428 = vmatprep.subr.mxu0 0.0
        %1429 = vmatpush1.msra.mxu0 0.0
        %1430 = vmatprep.subr.mxu0 0.0
        %1431 = vmatpush1.msra.mxu0 0.0
        %1432 = vmatprep.subr.mxu0 0.0
        %1433 = vmatpush1.msra.mxu0 0.0
        %1434 = vmatprep.subr.mxu0 0.0
        %1435 = vmatpush1.msra.mxu0 0.0
        %1436 = vmatprep.subr.mxu0 0.0
        %1437 = vmatpush1.msra.mxu0 0.0
        %1438 = vmatprep.subr.mxu0 0.0
        %1439 = vmatpush1.msra.mxu0 0.0
        %1440 = vmatprep.subr.mxu0 0.0
        %1441 = vmatpush1.msra.mxu0 0.0
        %1442 = vmatprep.subr.mxu0 0.0
        %1443 = vmatpush1.msra.mxu0 0.0
        %1444 = vmatprep.subr.mxu0 0.0
        %1445 = vmatpush1.msra.mxu0 0.0
        %1446 = vmatprep.subr.mxu0 0.0
        %1447 = vmatpush1.msra.mxu0 0.0
        %1448 = vmatprep.subr.mxu0 0.0
        %1449 = vmatpush1.msra.mxu0 0.0
        %1450 = vmatprep.subr.mxu0 0.0
        %1451 = vmatpush1.msra.mxu0 0.0
        %1452 = vmatprep.subr.mxu0 0.0
        %1453 = vmatpush1.msra.mxu0 0.0
        %1454 = vmatprep.subr.mxu0 0.0
        %1455 = vmatpush1.msra.mxu0 0.0
        %1456 = vmatprep.subr.mxu0 0.0
        %1457 = vmatpush1.msra.mxu0 0.0
        %1458 = vmatprep.subr.mxu0 0.0
        %1459 = vmatpush1.msra.mxu0 0.0
        %1460 = vmatprep.subr.mxu0 0.0
        %1461 = vmatpush1.msra.mxu0 0.0
        %1462 = vmatprep.subr.mxu0 0.0
        %1463 = vmatpush1.msra.mxu0 0.0
        %1464 = vmatprep.subr.mxu0 0.0
        %1465 = vmatpush1.msra.mxu0 0.0
        %1466 = vmatprep.subr.mxu0 0.0
        %1467 = vmatpush1.msra.mxu0 0.0
        %1468 = vmatprep.subr.mxu0 0.0
        %1469 = vmatpush1.msra.mxu0 0.0
        %1470 = vmatprep.mubr.f32.mxu0 0.0
        %1471 = vmatmul.mubr.f32.gmra.mrb[0].mxu0 %v796
        %v1472 = vpop.f32.mrb[0].mxu0
        %v1473 = vadd.f32 %v1389, %v1472
        %v1474 = vpop.f32.mrb[0].mxu0
        %1475 = vdwg.mxu0
        %1476 = vmatprep.subr.mxu0 0.0
        %1477 = vmatpush1.msra.mxu0 %v733
        %1478 = vmatprep.subr.mxu0 0.0
        %1479 = vmatpush1.msra.mxu0 %v734
        %1480 = vmatprep.subr.mxu0 0.0
        %1481 = vmatpush1.msra.mxu0 %v735
        %1482 = vmatprep.subr.mxu0 0.0
        %1483 = vmatpush1.msra.mxu0 %v736
        %1484 = vmatprep.subr.mxu0 0.0
        %1485 = vmatpush1.msra.mxu0 0.0
        %1486 = vmatprep.subr.mxu0 0.0
        %1487 = vmatpush1.msra.mxu0 0.0
        %1488 = vmatprep.subr.mxu0 0.0
        %1489 = vmatpush1.msra.mxu0 0.0
        %1490 = vmatprep.subr.mxu0 0.0
        %1491 = vmatpush1.msra.mxu0 0.0
        %1492 = vmatprep.subr.mxu0 0.0
        %1493 = vmatpush1.msra.mxu0 0.0
        %1494 = vmatprep.subr.mxu0 0.0
        %1495 = vmatpush1.msra.mxu0 0.0
        %1496 = vmatprep.subr.mxu0 0.0
        %1497 = vmatpush1.msra.mxu0 0.0
        %1498 = vmatprep.subr.mxu0 0.0
        %1499 = vmatpush1.msra.mxu0 0.0
        %1500 = vmatprep.subr.mxu0 0.0
        %1501 = vmatpush1.msra.mxu0 0.0
        %1502 = vmatprep.subr.mxu0 0.0
        %1503 = vmatpush1.msra.mxu0 0.0
        %1504 = vmatprep.subr.mxu0 0.0
        %1505 = vmatpush1.msra.mxu0 0.0
        %1506 = vmatprep.subr.mxu0 0.0
        %1507 = vmatpush1.msra.mxu0 0.0
        %1508 = vmatprep.subr.mxu0 0.0
        %1509 = vmatpush1.msra.mxu0 0.0
        %1510 = vmatprep.subr.mxu0 0.0
        %1511 = vmatpush1.msra.mxu0 0.0
        %1512 = vmatprep.subr.mxu0 0.0
        %1513 = vmatpush1.msra.mxu0 0.0
        %1514 = vmatprep.subr.mxu0 0.0
        %1515 = vmatpush1.msra.mxu0 0.0
        %1516 = vmatprep.subr.mxu0 0.0
        %1517 = vmatpush1.msra.mxu0 0.0
        %1518 = vmatprep.subr.mxu0 0.0
        %1519 = vmatpush1.msra.mxu0 0.0
        %1520 = vmatprep.subr.mxu0 0.0
        %1521 = vmatpush1.msra.mxu0 0.0
        %1522 = vmatprep.subr.mxu0 0.0
        %1523 = vmatpush1.msra.mxu0 0.0
        %1524 = vmatprep.subr.mxu0 0.0
        %1525 = vmatpush1.msra.mxu0 0.0
        %1526 = vmatprep.subr.mxu0 0.0
        %1527 = vmatpush1.msra.mxu0 0.0
        %1528 = vmatprep.subr.mxu0 0.0
        %1529 = vmatpush1.msra.mxu0 0.0
        %1530 = vmatprep.subr.mxu0 0.0
        %1531 = vmatpush1.msra.mxu0 0.0
        %1532 = vmatprep.subr.mxu0 0.0
        %1533 = vmatpush1.msra.mxu0 0.0
        %1534 = vmatprep.subr.mxu0 0.0
        %1535 = vmatpush1.msra.mxu0 0.0
        %1536 = vmatprep.subr.mxu0 0.0
        %1537 = vmatpush1.msra.mxu0 0.0
        %1538 = vmatprep.subr.mxu0 0.0
        %1539 = vmatpush1.msra.mxu0 0.0
        %1540 = vmatprep.mubr.f32.mxu0 0.0
        %1541 = vmatmul.mubr.f32.gmra.mrb[0].mxu0 %v796
        %v1542 = vpop.f32.mrb[0].mxu0
        %v1543 = vadd.f32 %v1393, %v1542
        %v1544 = vpop.f32.mrb[0].mxu0
        %1545 = vdwg.mxu0
        %1546 = vmatprep.subr.mxu0 0.0
        %1547 = vmatpush1.msra.mxu0 %v737
        %1548 = vmatprep.subr.mxu0 0.0
        %1549 = vmatpush1.msra.mxu0 %v738
        %1550 = vmatprep.subr.mxu0 0.0
        %1551 = vmatpush1.msra.mxu0 %v739
        %1552 = vmatprep.subr.mxu0 0.0
        %1553 = vmatpush1.msra.mxu0 %v740
        %1554 = vmatprep.subr.mxu0 0.0
        %1555 = vmatpush1.msra.mxu0 0.0
        %1556 = vmatprep.subr.mxu0 0.0
        %1557 = vmatpush1.msra.mxu0 0.0
        %1558 = vmatprep.subr.mxu0 0.0
        %1559 = vmatpush1.msra.mxu0 0.0
        %1560 = vmatprep.subr.mxu0 0.0
        %1561 = vmatpush1.msra.mxu0 0.0
        %1562 = vmatprep.subr.mxu0 0.0
        %1563 = vmatpush1.msra.mxu0 0.0
        %1564 = vmatprep.subr.mxu0 0.0
        %1565 = vmatpush1.msra.mxu0 0.0
        %1566 = vmatprep.subr.mxu0 0.0
        %1567 = vmatpush1.msra.mxu0 0.0
        %1568 = vmatprep.subr.mxu0 0.0
        %1569 = vmatpush1.msra.mxu0 0.0
        %1570 = vmatprep.subr.mxu0 0.0
        %1571 = vmatpush1.msra.mxu0 0.0
        %1572 = vmatprep.subr.mxu0 0.0
        %1573 = vmatpush1.msra.mxu0 0.0
        %1574 = vmatprep.subr.mxu0 0.0
        %1575 = vmatpush1.msra.mxu0 0.0
        %1576 = vmatprep.subr.mxu0 0.0
        %1577 = vmatpush1.msra.mxu0 0.0
        %1578 = vmatprep.subr.mxu0 0.0
        %1579 = vmatpush1.msra.mxu0 0.0
        %1580 = vmatprep.subr.mxu0 0.0
        %1581 = vmatpush1.msra.mxu0 0.0
        %1582 = vmatprep.subr.mxu0 0.0
        %1583 = vmatpush1.msra.mxu0 0.0
        %1584 = vmatprep.subr.mxu0 0.0
        %1585 = vmatpush1.msra.mxu0 0.0
        %1586 = vmatprep.subr.mxu0 0.0
        %1587 = vmatpush1.msra.mxu0 0.0
        %1588 = vmatprep.subr.mxu0 0.0
        %1589 = vmatpush1.msra.mxu0 0.0
        %1590 = vmatprep.subr.mxu0 0.0
        %1591 = vmatpush1.msra.mxu0 0.0
        %1592 = vmatprep.subr.mxu0 0.0
        %1593 = vmatpush1.msra.mxu0 0.0
        %1594 = vmatprep.subr.mxu0 0.0
        %1595 = vmatpush1.msra.mxu0 0.0
        %1596 = vmatprep.subr.mxu0 0.0
        %1597 = vmatpush1.msra.mxu0 0.0
        %1598 = vmatprep.subr.mxu0 0.0
        %1599 = vmatpush1.msra.mxu0 0.0
        %1600 = vmatprep.subr.mxu0 0.0
        %1601 = vmatpush1.msra.mxu0 0.0
        %1602 = vmatprep.subr.mxu0 0.0
        %1603 = vmatpush1.msra.mxu0 0.0
        %1604 = vmatprep.subr.mxu0 0.0
        %1605 = vmatpush1.msra.mxu0 0.0
        %1606 = vmatprep.subr.mxu0 0.0
        %1607 = vmatpush1.msra.mxu0 0.0
        %1608 = vmatprep.subr.mxu0 0.0
        %1609 = vmatpush1.msra.mxu0 0.0
        %1610 = vmatprep.mubr.f32.mxu0 0.0
        %1611 = vmatmul.mubr.f32.gmra.mrb[0].mxu0 %v796
        %v1612 = vpop.f32.mrb[0].mxu0
        %v1613 = vadd.f32 %v1397, %v1612
        %v1614 = vpop.f32.mrb[0].mxu0
        %1615 = vdwg.mxu0
        %1616 = vmatprep.subr.mxu0 0.0
        %1617 = vmatpush1.msra.mxu0 %v741
        %1618 = vmatprep.subr.mxu0 0.0
        %1619 = vmatpush1.msra.mxu0 %v742
        %1620 = vmatprep.subr.mxu0 0.0
        %1621 = vmatpush1.msra.mxu0 %v743
        %1622 = vmatprep.subr.mxu0 0.0
        %1623 = vmatpush1.msra.mxu0 %v744
        %1624 = vmatprep.subr.mxu0 0.0
        %1625 = vmatpush1.msra.mxu0 0.0
        %1626 = vmatprep.subr.mxu0 0.0
        %1627 = vmatpush1.msra.mxu0 0.0
        %1628 = vmatprep.subr.mxu0 0.0
        %1629 = vmatpush1.msra.mxu0 0.0
        %1630 = vmatprep.subr.mxu0 0.0
        %1631 = vmatpush1.msra.mxu0 0.0
        %1632 = vmatprep.subr.mxu0 0.0
        %1633 = vmatpush1.msra.mxu0 0.0
        %1634 = vmatprep.subr.mxu0 0.0
        %1635 = vmatpush1.msra.mxu0 0.0
        %1636 = vmatprep.subr.mxu0 0.0
        %1637 = vmatpush1.msra.mxu0 0.0
        %1638 = vmatprep.subr.mxu0 0.0
        %1639 = vmatpush1.msra.mxu0 0.0
        %1640 = vmatprep.subr.mxu0 0.0
        %1641 = vmatpush1.msra.mxu0 0.0
        %1642 = vmatprep.subr.mxu0 0.0
        %1643 = vmatpush1.msra.mxu0 0.0
        %1644 = vmatprep.subr.mxu0 0.0
        %1645 = vmatpush1.msra.mxu0 0.0
        %1646 = vmatprep.subr.mxu0 0.0
        %1647 = vmatpush1.msra.mxu0 0.0
        %1648 = vmatprep.subr.mxu0 0.0
        %1649 = vmatpush1.msra.mxu0 0.0
        %1650 = vmatprep.subr.mxu0 0.0
        %1651 = vmatpush1.msra.mxu0 0.0
        %1652 = vmatprep.subr.mxu0 0.0
        %1653 = vmatpush1.msra.mxu0 0.0
        %1654 = vmatprep.subr.mxu0 0.0
        %1655 = vmatpush1.msra.mxu0 0.0
        %1656 = vmatprep.subr.mxu0 0.0
        %1657 = vmatpush1.msra.mxu0 0.0
        %1658 = vmatprep.subr.mxu0 0.0
        %1659 = vmatpush1.msra.mxu0 0.0
        %1660 = vmatprep.subr.mxu0 0.0
        %1661 = vmatpush1.msra.mxu0 0.0
        %1662 = vmatprep.subr.mxu0 0.0
        %1663 = vmatpush1.msra.mxu0 0.0
        %1664 = vmatprep.subr.mxu0 0.0
        %1665 = vmatpush1.msra.mxu0 0.0
        %1666 = vmatprep.subr.mxu0 0.0
        %1667 = vmatpush1.msra.mxu0 0.0
        %1668 = vmatprep.subr.mxu0 0.0
        %1669 = vmatpush1.msra.mxu0 0.0
        %1670 = vmatprep.subr.mxu0 0.0
        %1671 = vmatpush1.msra.mxu0 0.0
        %1672 = vmatprep.subr.mxu0 0.0
        %1673 = vmatpush1.msra.mxu0 0.0
        %1674 = vmatprep.subr.mxu0 0.0
        %1675 = vmatpush1.msra.mxu0 0.0
        %1676 = vmatprep.subr.mxu0 0.0
        %1677 = vmatpush1.msra.mxu0 0.0
        %1678 = vmatprep.subr.mxu0 0.0
        %1679 = vmatpush1.msra.mxu0 0.0
        %1680 = vmatprep.mubr.f32.mxu0 0.0
        %1681 = vmatmul.mubr.f32.gmra.mrb[0].mxu0 %v796
        %v1682 = vpop.f32.mrb[0].mxu0
        %v1683 = vadd.f32 %v1401, %v1682
        %v1684 = vpop.f32.mrb[0].mxu0
        %1685 = vdwg.mxu0
        %vm1686 = vcmask 64512
        %v1688 = vsel %vm1686, %v865, 0
        %v1691 = vsel %vm1686, %v1169, 0
        %1693 = vmatprep.subr.mxu0 0.0
        %1694 = vmatpush1.xpose.msra.mxu0 %v1691
        %1695 = vmatprep.subr.mxu0 0.0
        %1696 = vmatpush1.xpose.msra.mxu0 0.0
        %1697 = vmatprep.subr.mxu0 0.0
        %1698 = vmatpush1.xpose.msra.mxu0 0.0
        %1699 = vmatprep.subr.mxu0 0.0
        %1700 = vmatpush1.xpose.msra.mxu0 0.0
        %1701 = vmatprep.subr.mxu0 0.0
        %1702 = vmatpush1.xpose.msra.mxu0 0.0
        %1703 = vmatprep.subr.mxu0 0.0
        %1704 = vmatpush1.xpose.msra.mxu0 0.0
        %1705 = vmatprep.subr.mxu0 0.0
        %1706 = vmatpush1.xpose.msra.mxu0 0.0
        %1707 = vmatprep.subr.mxu0 0.0
        %1708 = vmatpush1.xpose.msra.mxu0 0.0
        %1709 = vmatprep.subr.mxu0 0.0
        %1710 = vmatpush1.xpose.msra.mxu0 0.0
        %1711 = vmatprep.subr.mxu0 0.0
        %1712 = vmatpush1.xpose.msra.mxu0 0.0
        %1713 = vmatprep.subr.mxu0 0.0
        %1714 = vmatpush1.xpose.msra.mxu0 0.0
        %1715 = vmatprep.subr.mxu0 0.0
        %1716 = vmatpush1.xpose.msra.mxu0 0.0
        %1717 = vmatprep.subr.mxu0 0.0
        %1718 = vmatpush1.xpose.msra.mxu0 0.0
        %1719 = vmatprep.subr.mxu0 0.0
        %1720 = vmatpush1.xpose.msra.mxu0 0.0
        %1721 = vmatprep.subr.mxu0 0.0
        %1722 = vmatpush1.xpose.msra.mxu0 0.0
        %1723 = vmatprep.subr.mxu0 0.0
        %1724 = vmatpush1.xpose.msra.mxu0 0.0
        %1725 = vmatprep.subr.mxu0 0.0
        %1726 = vmatpush1.xpose.msra.mxu0 0.0
        %1727 = vmatprep.subr.mxu0 0.0
        %1728 = vmatpush1.xpose.msra.mxu0 0.0
        %1729 = vmatprep.subr.mxu0 0.0
        %1730 = vmatpush1.xpose.msra.mxu0 0.0
        %1731 = vmatprep.subr.mxu0 0.0
        %1732 = vmatpush1.xpose.msra.mxu0 0.0
        %1733 = vmatprep.subr.mxu0 0.0
        %1734 = vmatpush1.xpose.msra.mxu0 0.0
        %1735 = vmatprep.subr.mxu0 0.0
        %1736 = vmatpush1.xpose.msra.mxu0 0.0
        %1737 = vmatprep.subr.mxu0 0.0
        %1738 = vmatpush1.xpose.msra.mxu0 0.0
        %1739 = vmatprep.subr.mxu0 0.0
        %1740 = vmatpush1.xpose.msra.mxu0 0.0
        %1741 = vmatprep.subr.mxu0 0.0
        %1742 = vmatpush1.xpose.msra.mxu0 0.0
        %1743 = vmatprep.subr.mxu0 0.0
        %1744 = vmatpush1.xpose.msra.mxu0 0.0
        %1745 = vmatprep.subr.mxu0 0.0
        %1746 = vmatpush1.xpose.msra.mxu0 0.0
        %1747 = vmatprep.subr.mxu0 0.0
        %1748 = vmatpush1.xpose.msra.mxu0 0.0
        %1749 = vmatprep.subr.mxu0 0.0
        %1750 = vmatpush1.xpose.msra.mxu0 0.0
        %1751 = vmatprep.subr.mxu0 0.0
        %1752 = vmatpush1.xpose.msra.mxu0 0.0
        %1753 = vmatprep.subr.mxu0 0.0
        %1754 = vmatpush1.xpose.msra.mxu0 0.0
        %1755 = vmatprep.subr.mxu0 0.0
        %1756 = vmatpush1.xpose.msra.mxu0 0.0
        %1757 = vmatprep.mubr.f32.mxu0 0.0
        %1758 = vmatmul.mubr.f32.gmra.mrb[0].mxu0 %v1688
        %v1759 = vpop.f32.mrb[0].mxu0
        %v1760 = vadd.f32 0.0, %v1759
        %v1761 = vpop.f32.mrb[0].mxu0
        %1762 = vdwg.mxu0
        %v1764 = vsel %vm1686, %v935, 0
        %v1767 = vsel %vm1686, %v1239, 0
        %1769 = vmatprep.subr.mxu0 0.0
        %1770 = vmatpush1.xpose.msra.mxu0 %v1767
        %1771 = vmatprep.subr.mxu0 0.0
        %1772 = vmatpush1.xpose.msra.mxu0 0.0
        %1773 = vmatprep.subr.mxu0 0.0
        %1774 = vmatpush1.xpose.msra.mxu0 0.0
        %1775 = vmatprep.subr.mxu0 0.0
        %1776 = vmatpush1.xpose.msra.mxu0 0.0
        %1777 = vmatprep.subr.mxu0 0.0
        %1778 = vmatpush1.xpose.msra.mxu0 0.0
        %1779 = vmatprep.subr.mxu0 0.0
        %1780 = vmatpush1.xpose.msra.mxu0 0.0
        %1781 = vmatprep.subr.mxu0 0.0
        %1782 = vmatpush1.xpose.msra.mxu0 0.0
        %1783 = vmatprep.subr.mxu0 0.0
        %1784 = vmatpush1.xpose.msra.mxu0 0.0
        %1785 = vmatprep.subr.mxu0 0.0
        %1786 = vmatpush1.xpose.msra.mxu0 0.0
        %1787 = vmatprep.subr.mxu0 0.0
        %1788 = vmatpush1.xpose.msra.mxu0 0.0
        %1789 = vmatprep.subr.mxu0 0.0
        %1790 = vmatpush1.xpose.msra.mxu0 0.0
        %1791 = vmatprep.subr.mxu0 0.0
        %1792 = vmatpush1.xpose.msra.mxu0 0.0
        %1793 = vmatprep.subr.mxu0 0.0
        %1794 = vmatpush1.xpose.msra.mxu0 0.0
        %1795 = vmatprep.subr.mxu0 0.0
        %1796 = vmatpush1.xpose.msra.mxu0 0.0
        %1797 = vmatprep.subr.mxu0 0.0
        %1798 = vmatpush1.xpose.msra.mxu0 0.0
        %1799 = vmatprep.subr.mxu0 0.0
        %1800 = vmatpush1.xpose.msra.mxu0 0.0
        %1801 = vmatprep.subr.mxu0 0.0
        %1802 = vmatpush1.xpose.msra.mxu0 0.0
        %1803 = vmatprep.subr.mxu0 0.0
        %1804 = vmatpush1.xpose.msra.mxu0 0.0
        %1805 = vmatprep.subr.mxu0 0.0
        %1806 = vmatpush1.xpose.msra.mxu0 0.0
        %1807 = vmatprep.subr.mxu0 0.0
        %1808 = vmatpush1.xpose.msra.mxu0 0.0
        %1809 = vmatprep.subr.mxu0 0.0
        %1810 = vmatpush1.xpose.msra.mxu0 0.0
        %1811 = vmatprep.subr.mxu0 0.0
        %1812 = vmatpush1.xpose.msra.mxu0 0.0
        %1813 = vmatprep.subr.mxu0 0.0
        %1814 = vmatpush1.xpose.msra.mxu0 0.0
        %1815 = vmatprep.subr.mxu0 0.0
        %1816 = vmatpush1.xpose.msra.mxu0 0.0
        %1817 = vmatprep.subr.mxu0 0.0
        %1818 = vmatpush1.xpose.msra.mxu0 0.0
        %1819 = vmatprep.subr.mxu0 0.0
        %1820 = vmatpush1.xpose.msra.mxu0 0.0
        %1821 = vmatprep.subr.mxu0 0.0
        %1822 = vmatpush1.xpose.msra.mxu0 0.0
        %1823 = vmatprep.subr.mxu0 0.0
        %1824 = vmatpush1.xpose.msra.mxu0 0.0
        %1825 = vmatprep.subr.mxu0 0.0
        %1826 = vmatpush1.xpose.msra.mxu0 0.0
        %1827 = vmatprep.subr.mxu0 0.0
        %1828 = vmatpush1.xpose.msra.mxu0 0.0
        %1829 = vmatprep.subr.mxu0 0.0
        %1830 = vmatpush1.xpose.msra.mxu0 0.0
        %1831 = vmatprep.subr.mxu0 0.0
        %1832 = vmatpush1.xpose.msra.mxu0 0.0
        %1833 = vmatprep.mubr.f32.mxu0 0.0
        %1834 = vmatmul.mubr.f32.gmra.mrb[0].mxu0 %v1764
        %v1835 = vpop.f32.mrb[0].mxu0
        %v1836 = vadd.f32 0.0, %v1835
        %v1837 = vpop.f32.mrb[0].mxu0
        %1838 = vdwg.mxu0
        %v1840 = vsel %vm1686, %v1005, 0
        %v1843 = vsel %vm1686, %v1309, 0
        %1845 = vmatprep.subr.mxu0 0.0
        %1846 = vmatpush1.xpose.msra.mxu0 %v1843
        %1847 = vmatprep.subr.mxu0 0.0
        %1848 = vmatpush1.xpose.msra.mxu0 0.0
        %1849 = vmatprep.subr.mxu0 0.0
        %1850 = vmatpush1.xpose.msra.mxu0 0.0
        %1851 = vmatprep.subr.mxu0 0.0
        %1852 = vmatpush1.xpose.msra.mxu0 0.0
        %1853 = vmatprep.subr.mxu0 0.0
        %1854 = vmatpush1.xpose.msra.mxu0 0.0
        %1855 = vmatprep.subr.mxu0 0.0
        %1856 = vmatpush1.xpose.msra.mxu0 0.0
        %1857 = vmatprep.subr.mxu0 0.0
        %1858 = vmatpush1.xpose.msra.mxu0 0.0
        %1859 = vmatprep.subr.mxu0 0.0
        %1860 = vmatpush1.xpose.msra.mxu0 0.0
        %1861 = vmatprep.subr.mxu0 0.0
        %1862 = vmatpush1.xpose.msra.mxu0 0.0
        %1863 = vmatprep.subr.mxu0 0.0
        %1864 = vmatpush1.xpose.msra.mxu0 0.0
        %1865 = vmatprep.subr.mxu0 0.0
        %1866 = vmatpush1.xpose.msra.mxu0 0.0
        %1867 = vmatprep.subr.mxu0 0.0
        %1868 = vmatpush1.xpose.msra.mxu0 0.0
        %1869 = vmatprep.subr.mxu0 0.0
        %1870 = vmatpush1.xpose.msra.mxu0 0.0
        %1871 = vmatprep.subr.mxu0 0.0
        %1872 = vmatpush1.xpose.msra.mxu0 0.0
        %1873 = vmatprep.subr.mxu0 0.0
        %1874 = vmatpush1.xpose.msra.mxu0 0.0
        %1875 = vmatprep.subr.mxu0 0.0
        %1876 = vmatpush1.xpose.msra.mxu0 0.0
        %1877 = vmatprep.subr.mxu0 0.0
        %1878 = vmatpush1.xpose.msra.mxu0 0.0
        %1879 = vmatprep.subr.mxu0 0.0
        %1880 = vmatpush1.xpose.msra.mxu0 0.0
        %1881 = vmatprep.subr.mxu0 0.0
        %1882 = vmatpush1.xpose.msra.mxu0 0.0
        %1883 = vmatprep.subr.mxu0 0.0
        %1884 = vmatpush1.xpose.msra.mxu0 0.0
        %1885 = vmatprep.subr.mxu0 0.0
        %1886 = vmatpush1.xpose.msra.mxu0 0.0
        %1887 = vmatprep.subr.mxu0 0.0
        %1888 = vmatpush1.xpose.msra.mxu0 0.0
        %1889 = vmatprep.subr.mxu0 0.0
        %1890 = vmatpush1.xpose.msra.mxu0 0.0
        %1891 = vmatprep.subr.mxu0 0.0
        %1892 = vmatpush1.xpose.msra.mxu0 0.0
        %1893 = vmatprep.subr.mxu0 0.0
        %1894 = vmatpush1.xpose.msra.mxu0 0.0
        %1895 = vmatprep.subr.mxu0 0.0
        %1896 = vmatpush1.xpose.msra.mxu0 0.0
        %1897 = vmatprep.subr.mxu0 0.0
        %1898 = vmatpush1.xpose.msra.mxu0 0.0
        %1899 = vmatprep.subr.mxu0 0.0
        %1900 = vmatpush1.xpose.msra.mxu0 0.0
        %1901 = vmatprep.subr.mxu0 0.0
        %1902 = vmatpush1.xpose.msra.mxu0 0.0
        %1903 = vmatprep.subr.mxu0 0.0
        %1904 = vmatpush1.xpose.msra.mxu0 0.0
        %1905 = vmatprep.subr.mxu0 0.0
        %1906 = vmatpush1.xpose.msra.mxu0 0.0
        %1907 = vmatprep.subr.mxu0 0.0
        %1908 = vmatpush1.xpose.msra.mxu0 0.0
        %1909 = vmatprep.mubr.f32.mxu0 0.0
        %1910 = vmatmul.mubr.f32.gmra.mrb[0].mxu0 %v1840
        %v1911 = vpop.f32.mrb[0].mxu0
        %v1912 = vadd.f32 0.0, %v1911
        %v1913 = vpop.f32.mrb[0].mxu0
        %1914 = vdwg.mxu0
        %v1916 = vsel %vm1686, %v1075, 0
        %v1919 = vsel %vm1686, %v1379, 0
        %1921 = vmatprep.subr.mxu0 0.0
        %1922 = vmatpush1.xpose.msra.mxu0 %v1919
        %1923 = vmatprep.subr.mxu0 0.0
        %1924 = vmatpush1.xpose.msra.mxu0 0.0
        %1925 = vmatprep.subr.mxu0 0.0
        %1926 = vmatpush1.xpose.msra.mxu0 0.0
        %1927 = vmatprep.subr.mxu0 0.0
        %1928 = vmatpush1.xpose.msra.mxu0 0.0
        %1929 = vmatprep.subr.mxu0 0.0
        %1930 = vmatpush1.xpose.msra.mxu0 0.0
        %1931 = vmatprep.subr.mxu0 0.0
        %1932 = vmatpush1.xpose.msra.mxu0 0.0
        %1933 = vmatprep.subr.mxu0 0.0
        %1934 = vmatpush1.xpose.msra.mxu0 0.0
        %1935 = vmatprep.subr.mxu0 0.0
        %1936 = vmatpush1.xpose.msra.mxu0 0.0
        %1937 = vmatprep.subr.mxu0 0.0
        %1938 = vmatpush1.xpose.msra.mxu0 0.0
        %1939 = vmatprep.subr.mxu0 0.0
        %1940 = vmatpush1.xpose.msra.mxu0 0.0
        %1941 = vmatprep.subr.mxu0 0.0
        %1942 = vmatpush1.xpose.msra.mxu0 0.0
        %1943 = vmatprep.subr.mxu0 0.0
        %1944 = vmatpush1.xpose.msra.mxu0 0.0
        %1945 = vmatprep.subr.mxu0 0.0
        %1946 = vmatpush1.xpose.msra.mxu0 0.0
        %1947 = vmatprep.subr.mxu0 0.0
        %1948 = vmatpush1.xpose.msra.mxu0 0.0
        %1949 = vmatprep.subr.mxu0 0.0
        %1950 = vmatpush1.xpose.msra.mxu0 0.0
        %1951 = vmatprep.subr.mxu0 0.0
        %1952 = vmatpush1.xpose.msra.mxu0 0.0
        %1953 = vmatprep.subr.mxu0 0.0
        %1954 = vmatpush1.xpose.msra.mxu0 0.0
        %1955 = vmatprep.subr.mxu0 0.0
        %1956 = vmatpush1.xpose.msra.mxu0 0.0
        %1957 = vmatprep.subr.mxu0 0.0
        %1958 = vmatpush1.xpose.msra.mxu0 0.0
        %1959 = vmatprep.subr.mxu0 0.0
        %1960 = vmatpush1.xpose.msra.mxu0 0.0
        %1961 = vmatprep.subr.mxu0 0.0
        %1962 = vmatpush1.xpose.msra.mxu0 0.0
        %1963 = vmatprep.subr.mxu0 0.0
        %1964 = vmatpush1.xpose.msra.mxu0 0.0
        %1965 = vmatprep.subr.mxu0 0.0
        %1966 = vmatpush1.xpose.msra.mxu0 0.0
        %1967 = vmatprep.subr.mxu0 0.0
        %1968 = vmatpush1.xpose.msra.mxu0 0.0
        %1969 = vmatprep.subr.mxu0 0.0
        %1970 = vmatpush1.xpose.msra.mxu0 0.0
        %1971 = vmatprep.subr.mxu0 0.0
        %1972 = vmatpush1.xpose.msra.mxu0 0.0
        %1973 = vmatprep.subr.mxu0 0.0
        %1974 = vmatpush1.xpose.msra.mxu0 0.0
        %1975 = vmatprep.subr.mxu0 0.0
        %1976 = vmatpush1.xpose.msra.mxu0 0.0
        %1977 = vmatprep.subr.mxu0 0.0
        %1978 = vmatpush1.xpose.msra.mxu0 0.0
        %1979 = vmatprep.subr.mxu0 0.0
        %1980 = vmatpush1.xpose.msra.mxu0 0.0
        %1981 = vmatprep.subr.mxu0 0.0
        %1982 = vmatpush1.xpose.msra.mxu0 0.0
        %1983 = vmatprep.subr.mxu0 0.0
        %1984 = vmatpush1.xpose.msra.mxu0 0.0
        %1985 = vmatprep.mubr.f32.mxu0 0.0
        %1986 = vmatmul.mubr.f32.gmra.mrb[0].mxu0 %v1916
        %v1987 = vpop.f32.mrb[0].mxu0
        %v1988 = vadd.f32 0.0, %v1987
        %v1989 = vpop.f32.mrb[0].mxu0
        %1990 = vdwg.mxu0
        %v1991 = vsel %vm688, 1, 0
        %vm1992 = vcmp.eq.s32.totalorder %v1991, 1
        %v1993 = vsel %vm1992, -1e+09, %v1760
        %v1994 = vsel %vm1992, -1e+09, %v1836
        %v1995 = vsel %vm1992, -1e+09, %v1912
        %v1996 = vsel %vm1992, -1e+09, %v1988
        %v1997 = vsel %vm1686, %v1993, -inf
        %1998 = vmax.xlane.f32.xlu0 %v1997
        %v1999 = vpop.xlane.xlu0 %1998
        %v2000 = vsel %vm1686, %v1994, -inf
        %2001 = vmax.xlane.f32.xlu0 %v2000
        %v2002 = vpop.xlane.xlu0 %2001
        %v2003 = vsel %vm1686, %v1995, -inf
        %2004 = vmax.xlane.f32.xlu0 %v2003
        %v2005 = vpop.xlane.xlu0 %2004
        %v2006 = vsel %vm1686, %v1996, -inf
        %2007 = vmax.xlane.f32.xlu0 %v2006
        %v2008 = vpop.xlane.xlu0 %2007
        %v2009 = vsub.f32 %v1993, %v1999
        %v2010 = vsub.f32 %v1994, %v2002
        %v2011 = vsub.f32 %v1995, %v2005
        %v2012 = vsub.f32 %v1996, %v2008
        %v2013 = vmul.f32 %v2009, 1.442695
        %v2014 = vpow.pop %v2013
        %v2015 = vmul.f32 %v2010, 1.442695
        %v2016 = vpow.pop %v2015
        %v2017 = vmul.f32 %v2011, 1.442695
        %v2018 = vpow.pop %v2017
        %v2019 = vmul.f32 %v2012, 1.442695
        %v2020 = vpow.pop %v2019
        %v2021 = vsel %vm1686, %v2014, 0.0
        %2022 = vadd.xlane.f32.xlu0 %v2021
        %v2023 = vpop.xlane.xlu0 %2022
        %v2024 = vsel %vm1686, %v2016, 0.0
        %2025 = vadd.xlane.f32.xlu0 %v2024
        %v2026 = vpop.xlane.xlu0 %2025
        %v2027 = vsel %vm1686, %v2018, 0.0
        %2028 = vadd.xlane.f32.xlu0 %v2027
        %v2029 = vpop.xlane.xlu0 %2028
        %v2030 = vsel %vm1686, %v2020, 0.0
        %2031 = vadd.xlane.f32.xlu0 %v2030
        %v2032 = vpop.xlane.xlu0 %2031
        %v2033 = vrcp.pop %v2023
        %v2034 = vrcp.pop %v2026
        %v2035 = vrcp.pop %v2029
        %v2036 = vrcp.pop %v2032
        %v2037 = vmul.f32 %v2014, %v2033
        %v2038 = vmul.f32 %v2016, %v2034
        %v2039 = vmul.f32 %v2018, %v2035
        %v2040 = vmul.f32 %v2020, %v2036
        %v2042 = vsel %vm1686, %v2037, 0
        %2044 = vmatprep.subr.mxu0 0.0
        %2045 = vmatpush1.msra.mxu0 %v1473
        %2046 = vmatprep.subr.mxu0 0.0
        %2047 = vmatpush1.msra.mxu0 0.0
        %2048 = vmatprep.subr.mxu0 0.0
        %2049 = vmatpush1.msra.mxu0 0.0
        %2050 = vmatprep.subr.mxu0 0.0
        %2051 = vmatpush1.msra.mxu0 0.0
        %2052 = vmatprep.subr.mxu0 0.0
        %2053 = vmatpush1.msra.mxu0 0.0
        %2054 = vmatprep.subr.mxu0 0.0
        %2055 = vmatpush1.msra.mxu0 0.0
        %2056 = vmatprep.subr.mxu0 0.0
        %2057 = vmatpush1.msra.mxu0 0.0
        %2058 = vmatprep.subr.mxu0 0.0
        %2059 = vmatpush1.msra.mxu0 0.0
        %2060 = vmatprep.subr.mxu0 0.0
        %2061 = vmatpush1.msra.mxu0 0.0
        %2062 = vmatprep.subr.mxu0 0.0
        %2063 = vmatpush1.msra.mxu0 0.0
        %2064 = vmatprep.subr.mxu0 0.0
        %2065 = vmatpush1.msra.mxu0 0.0
        %2066 = vmatprep.subr.mxu0 0.0
        %2067 = vmatpush1.msra.mxu0 0.0
        %2068 = vmatprep.subr.mxu0 0.0
        %2069 = vmatpush1.msra.mxu0 0.0
        %2070 = vmatprep.subr.mxu0 0.0
        %2071 = vmatpush1.msra.mxu0 0.0
        %2072 = vmatprep.subr.mxu0 0.0
        %2073 = vmatpush1.msra.mxu0 0.0
        %2074 = vmatprep.subr.mxu0 0.0
        %2075 = vmatpush1.msra.mxu0 0.0
        %2076 = vmatprep.subr.mxu0 0.0
        %2077 = vmatpush1.msra.mxu0 0.0
        %2078 = vmatprep.subr.mxu0 0.0
        %2079 = vmatpush1.msra.mxu0 0.0
        %2080 = vmatprep.subr.mxu0 0.0
        %2081 = vmatpush1.msra.mxu0 0.0
        %2082 = vmatprep.subr.mxu0 0.0
        %2083 = vmatpush1.msra.mxu0 0.0
        %2084 = vmatprep.subr.mxu0 0.0
        %2085 = vmatpush1.msra.mxu0 0.0
        %2086 = vmatprep.subr.mxu0 0.0
        %2087 = vmatpush1.msra.mxu0 0.0
        %2088 = vmatprep.subr.mxu0 0.0
        %2089 = vmatpush1.msra.mxu0 0.0
        %2090 = vmatprep.subr.mxu0 0.0
        %2091 = vmatpush1.msra.mxu0 0.0
        %2092 = vmatprep.subr.mxu0 0.0
        %2093 = vmatpush1.msra.mxu0 0.0
        %2094 = vmatprep.subr.mxu0 0.0
        %2095 = vmatpush1.msra.mxu0 0.0
        %2096 = vmatprep.subr.mxu0 0.0
        %2097 = vmatpush1.msra.mxu0 0.0
        %2098 = vmatprep.subr.mxu0 0.0
        %2099 = vmatpush1.msra.mxu0 0.0
        %2100 = vmatprep.subr.mxu0 0.0
        %2101 = vmatpush1.msra.mxu0 0.0
        %2102 = vmatprep.subr.mxu0 0.0
        %2103 = vmatpush1.msra.mxu0 0.0
        %2104 = vmatprep.subr.mxu0 0.0
        %2105 = vmatpush1.msra.mxu0 0.0
        %2106 = vmatprep.subr.mxu0 0.0
        %2107 = vmatpush1.msra.mxu0 0.0
        %2108 = vmatprep.mubr.f32.mxu0 0.0
        %2109 = vmatmul.mubr.f32.gmra.mrb[0].mxu0 %v2042
        %v2110 = vpop.f32.mrb[0].mxu0
        %v2111 = vadd.f32 0.0, %v2110
        %v2112 = vpop.f32.mrb[0].mxu0
        %2113 = vdwg.mxu0
        %v2115 = vsel %vm1686, %v2038, 0
        %2117 = vmatprep.subr.mxu0 0.0
        %2118 = vmatpush1.msra.mxu0 %v1543
        %2119 = vmatprep.subr.mxu0 0.0
        %2120 = vmatpush1.msra.mxu0 0.0
        %2121 = vmatprep.subr.mxu0 0.0
        %2122 = vmatpush1.msra.mxu0 0.0
        %2123 = vmatprep.subr.mxu0 0.0
        %2124 = vmatpush1.msra.mxu0 0.0
        %2125 = vmatprep.subr.mxu0 0.0
        %2126 = vmatpush1.msra.mxu0 0.0
        %2127 = vmatprep.subr.mxu0 0.0
        %2128 = vmatpush1.msra.mxu0 0.0
        %2129 = vmatprep.subr.mxu0 0.0
        %2130 = vmatpush1.msra.mxu0 0.0
        %2131 = vmatprep.subr.mxu0 0.0
        %2132 = vmatpush1.msra.mxu0 0.0
        %2133 = vmatprep.subr.mxu0 0.0
        %2134 = vmatpush1.msra.mxu0 0.0
        %2135 = vmatprep.subr.mxu0 0.0
        %2136 = vmatpush1.msra.mxu0 0.0
        %2137 = vmatprep.subr.mxu0 0.0
        %2138 = vmatpush1.msra.mxu0 0.0
        %2139 = vmatprep.subr.mxu0 0.0
        %2140 = vmatpush1.msra.mxu0 0.0
        %2141 = vmatprep.subr.mxu0 0.0
        %2142 = vmatpush1.msra.mxu0 0.0
        %2143 = vmatprep.subr.mxu0 0.0
        %2144 = vmatpush1.msra.mxu0 0.0
        %2145 = vmatprep.subr.mxu0 0.0
        %2146 = vmatpush1.msra.mxu0 0.0
        %2147 = vmatprep.subr.mxu0 0.0
        %2148 = vmatpush1.msra.mxu0 0.0
        %2149 = vmatprep.subr.mxu0 0.0
        %2150 = vmatpush1.msra.mxu0 0.0
        %2151 = vmatprep.subr.mxu0 0.0
        %2152 = vmatpush1.msra.mxu0 0.0
        %2153 = vmatprep.subr.mxu0 0.0
        %2154 = vmatpush1.msra.mxu0 0.0
        %2155 = vmatprep.subr.mxu0 0.0
        %2156 = vmatpush1.msra.mxu0 0.0
        %2157 = vmatprep.subr.mxu0 0.0
        %2158 = vmatpush1.msra.mxu0 0.0
        %2159 = vmatprep.subr.mxu0 0.0
        %2160 = vmatpush1.msra.mxu0 0.0
        %2161 = vmatprep.subr.mxu0 0.0
        %2162 = vmatpush1.msra.mxu0 0.0
        %2163 = vmatprep.subr.mxu0 0.0
        %2164 = vmatpush1.msra.mxu0 0.0
        %2165 = vmatprep.subr.mxu0 0.0
        %2166 = vmatpush1.msra.mxu0 0.0
        %2167 = vmatprep.subr.mxu0 0.0
        %2168 = vmatpush1.msra.mxu0 0.0
        %2169 = vmatprep.subr.mxu0 0.0
        %2170 = vmatpush1.msra.mxu0 0.0
        %2171 = vmatprep.subr.mxu0 0.0
        %2172 = vmatpush1.msra.mxu0 0.0
        %2173 = vmatprep.subr.mxu0 0.0
        %2174 = vmatpush1.msra.mxu0 0.0
        %2175 = vmatprep.subr.mxu0 0.0
        %2176 = vmatpush1.msra.mxu0 0.0
        %2177 = vmatprep.subr.mxu0 0.0
        %2178 = vmatpush1.msra.mxu0 0.0
        %2179 = vmatprep.subr.mxu0 0.0
        %2180 = vmatpush1.msra.mxu0 0.0
        %2181 = vmatprep.mubr.f32.mxu0 0.0
        %2182 = vmatmul.mubr.f32.gmra.mrb[0].mxu0 %v2115
        %v2183 = vpop.f32.mrb[0].mxu0
        %v2184 = vadd.f32 0.0, %v2183
        %v2185 = vpop.f32.mrb[0].mxu0
        %2186 = vdwg.mxu0
        %v2188 = vsel %vm1686, %v2039, 0
        %2190 = vmatprep.subr.mxu0 0.0
        %2191 = vmatpush1.msra.mxu0 %v1613
        %2192 = vmatprep.subr.mxu0 0.0
        %2193 = vmatpush1.msra.mxu0 0.0
        %2194 = vmatprep.subr.mxu0 0.0
        %2195 = vmatpush1.msra.mxu0 0.0
        %2196 = vmatprep.subr.mxu0 0.0
        %2197 = vmatpush1.msra.mxu0 0.0
        %2198 = vmatprep.subr.mxu0 0.0
        %2199 = vmatpush1.msra.mxu0 0.0
        %2200 = vmatprep.subr.mxu0 0.0
        %2201 = vmatpush1.msra.mxu0 0.0
        %2202 = vmatprep.subr.mxu0 0.0
        %2203 = vmatpush1.msra.mxu0 0.0
        %2204 = vmatprep.subr.mxu0 0.0
        %2205 = vmatpush1.msra.mxu0 0.0
        %2206 = vmatprep.subr.mxu0 0.0
        %2207 = vmatpush1.msra.mxu0 0.0
        %2208 = vmatprep.subr.mxu0 0.0
        %2209 = vmatpush1.msra.mxu0 0.0
        %2210 = vmatprep.subr.mxu0 0.0
        %2211 = vmatpush1.msra.mxu0 0.0
        %2212 = vmatprep.subr.mxu0 0.0
        %2213 = vmatpush1.msra.mxu0 0.0
        %2214 = vmatprep.subr.mxu0 0.0
        %2215 = vmatpush1.msra.mxu0 0.0
        %2216 = vmatprep.subr.mxu0 0.0
        %2217 = vmatpush1.msra.mxu0 0.0
        %2218 = vmatprep.subr.mxu0 0.0
        %2219 = vmatpush1.msra.mxu0 0.0
        %2220 = vmatprep.subr.mxu0 0.0
        %2221 = vmatpush1.msra.mxu0 0.0
        %2222 = vmatprep.subr.mxu0 0.0
        %2223 = vmatpush1.msra.mxu0 0.0
        %2224 = vmatprep.subr.mxu0 0.0
        %2225 = vmatpush1.msra.mxu0 0.0
        %2226 = vmatprep.subr.mxu0 0.0
        %2227 = vmatpush1.msra.mxu0 0.0
        %2228 = vmatprep.subr.mxu0 0.0
        %2229 = vmatpush1.msra.mxu0 0.0
        %2230 = vmatprep.subr.mxu0 0.0
        %2231 = vmatpush1.msra.mxu0 0.0
        %2232 = vmatprep.subr.mxu0 0.0
        %2233 = vmatpush1.msra.mxu0 0.0
        %2234 = vmatprep.subr.mxu0 0.0
        %2235 = vmatpush1.msra.mxu0 0.0
        %2236 = vmatprep.subr.mxu0 0.0
        %2237 = vmatpush1.msra.mxu0 0.0
        %2238 = vmatprep.subr.mxu0 0.0
        %2239 = vmatpush1.msra.mxu0 0.0
        %2240 = vmatprep.subr.mxu0 0.0
        %2241 = vmatpush1.msra.mxu0 0.0
        %2242 = vmatprep.subr.mxu0 0.0
        %2243 = vmatpush1.msra.mxu0 0.0
        %2244 = vmatprep.subr.mxu0 0.0
        %2245 = vmatpush1.msra.mxu0 0.0
        %2246 = vmatprep.subr.mxu0 0.0
        %2247 = vmatpush1.msra.mxu0 0.0
        %2248 = vmatprep.subr.mxu0 0.0
        %2249 = vmatpush1.msra.mxu0 0.0
        %2250 = vmatprep.subr.mxu0 0.0
        %2251 = vmatpush1.msra.mxu0 0.0
        %2252 = vmatprep.subr.mxu0 0.0
        %2253 = vmatpush1.msra.mxu0 0.0
        %2254 = vmatprep.mubr.f32.mxu0 0.0
        %2255 = vmatmul.mubr.f32.gmra.mrb[0].mxu0 %v2188
        %v2256 = vpop.f32.mrb[0].mxu0
        %v2257 = vadd.f32 0.0, %v2256
        %v2258 = vpop.f32.mrb[0].mxu0
        %2259 = vdwg.mxu0
        %v2261 = vsel %vm1686, %v2040, 0
        %2263 = vmatprep.subr.mxu0 0.0
        %2264 = vmatpush1.msra.mxu0 %v1683
        %2265 = vmatprep.subr.mxu0 0.0
        %2266 = vmatpush1.msra.mxu0 0.0
        %2267 = vmatprep.subr.mxu0 0.0
        %2268 = vmatpush1.msra.mxu0 0.0
        %2269 = vmatprep.subr.mxu0 0.0
        %2270 = vmatpush1.msra.mxu0 0.0
        %2271 = vmatprep.subr.mxu0 0.0
        %2272 = vmatpush1.msra.mxu0 0.0
        %2273 = vmatprep.subr.mxu0 0.0
        %2274 = vmatpush1.msra.mxu0 0.0
        %2275 = vmatprep.subr.mxu0 0.0
        %2276 = vmatpush1.msra.mxu0 0.0
        %2277 = vmatprep.subr.mxu0 0.0
        %2278 = vmatpush1.msra.mxu0 0.0
        %2279 = vmatprep.subr.mxu0 0.0
        %2280 = vmatpush1.msra.mxu0 0.0
        %2281 = vmatprep.subr.mxu0 0.0
        %2282 = vmatpush1.msra.mxu0 0.0
        %2283 = vmatprep.subr.mxu0 0.0
        %2284 = vmatpush1.msra.mxu0 0.0
        %2285 = vmatprep.subr.mxu0 0.0
        %2286 = vmatpush1.msra.mxu0 0.0
        %2287 = vmatprep.subr.mxu0 0.0
        %2288 = vmatpush1.msra.mxu0 0.0
        %2289 = vmatprep.subr.mxu0 0.0
        %2290 = vmatpush1.msra.mxu0 0.0
        %2291 = vmatprep.subr.mxu0 0.0
        %2292 = vmatpush1.msra.mxu0 0.0
        %2293 = vmatprep.subr.mxu0 0.0
        %2294 = vmatpush1.msra.mxu0 0.0
        %2295 = vmatprep.subr.mxu0 0.0
        %2296 = vmatpush1.msra.mxu0 0.0
        %2297 = vmatprep.subr.mxu0 0.0
        %2298 = vmatpush1.msra.mxu0 0.0
        %2299 = vmatprep.subr.mxu0 0.0
        %2300 = vmatpush1.msra.mxu0 0.0
        %2301 = vmatprep.subr.mxu0 0.0
        %2302 = vmatpush1.msra.mxu0 0.0
        %2303 = vmatprep.subr.mxu0 0.0
        %2304 = vmatpush1.msra.mxu0 0.0
        %2305 = vmatprep.subr.mxu0 0.0
        %2306 = vmatpush1.msra.mxu0 0.0
        %2307 = vmatprep.subr.mxu0 0.0
        %2308 = vmatpush1.msra.mxu0 0.0
        %2309 = vmatprep.subr.mxu0 0.0
        %2310 = vmatpush1.msra.mxu0 0.0
        %2311 = vmatprep.subr.mxu0 0.0
        %2312 = vmatpush1.msra.mxu0 0.0
        %2313 = vmatprep.subr.mxu0 0.0
        %2314 = vmatpush1.msra.mxu0 0.0
        %2315 = vmatprep.subr.mxu0 0.0
        %2316 = vmatpush1.msra.mxu0 0.0
        %2317 = vmatprep.subr.mxu0 0.0
        %2318 = vmatpush1.msra.mxu0 0.0
        %2319 = vmatprep.subr.mxu0 0.0
        %2320 = vmatpush1.msra.mxu0 0.0
        %2321 = vmatprep.subr.mxu0 0.0
        %2322 = vmatpush1.msra.mxu0 0.0
        %2323 = vmatprep.subr.mxu0 0.0
        %2324 = vmatpush1.msra.mxu0 0.0
        %2325 = vmatprep.subr.mxu0 0.0
        %2326 = vmatpush1.msra.mxu0 0.0
        %2327 = vmatprep.mubr.f32.mxu0 0.0
        %2328 = vmatmul.mubr.f32.gmra.mrb[0].mxu0 %v2261
        %v2329 = vpop.f32.mrb[0].mxu0
        %v2330 = vadd.f32 0.0, %v2329
        %v2331 = vpop.f32.mrb[0].mxu0
        %2332 = vdwg.mxu0
        %v2334 = vsel %vm1686, %v2111, 0
        %2336 = vmatprep.subr.mxu0 0.0
        %2337 = vmatpush1.msra.mxu0 %v749
        %2338 = vmatprep.subr.mxu0 0.0
        %2339 = vmatpush1.msra.mxu0 0.0
        %2340 = vmatprep.subr.mxu0 0.0
        %2341 = vmatpush1.msra.mxu0 0.0
        %2342 = vmatprep.subr.mxu0 0.0
        %2343 = vmatpush1.msra.mxu0 0.0
        %2344 = vmatprep.subr.mxu0 0.0
        %2345 = vmatpush1.msra.mxu0 0.0
        %2346 = vmatprep.subr.mxu0 0.0
        %2347 = vmatpush1.msra.mxu0 0.0
        %2348 = vmatprep.subr.mxu0 0.0
        %2349 = vmatpush1.msra.mxu0 0.0
        %2350 = vmatprep.subr.mxu0 0.0
        %2351 = vmatpush1.msra.mxu0 0.0
        %2352 = vmatprep.subr.mxu0 0.0
        %2353 = vmatpush1.msra.mxu0 0.0
        %2354 = vmatprep.subr.mxu0 0.0
        %2355 = vmatpush1.msra.mxu0 0.0
        %2356 = vmatprep.subr.mxu0 0.0
        %2357 = vmatpush1.msra.mxu0 0.0
        %2358 = vmatprep.subr.mxu0 0.0
        %2359 = vmatpush1.msra.mxu0 0.0
        %2360 = vmatprep.subr.mxu0 0.0
        %2361 = vmatpush1.msra.mxu0 0.0
        %2362 = vmatprep.subr.mxu0 0.0
        %2363 = vmatpush1.msra.mxu0 0.0
        %2364 = vmatprep.subr.mxu0 0.0
        %2365 = vmatpush1.msra.mxu0 0.0
        %2366 = vmatprep.subr.mxu0 0.0
        %2367 = vmatpush1.msra.mxu0 0.0
        %2368 = vmatprep.subr.mxu0 0.0
        %2369 = vmatpush1.msra.mxu0 0.0
        %2370 = vmatprep.subr.mxu0 0.0
        %2371 = vmatpush1.msra.mxu0 0.0
        %2372 = vmatprep.subr.mxu0 0.0
        %2373 = vmatpush1.msra.mxu0 0.0
        %2374 = vmatprep.subr.mxu0 0.0
        %2375 = vmatpush1.msra.mxu0 0.0
        %2376 = vmatprep.subr.mxu0 0.0
        %2377 = vmatpush1.msra.mxu0 0.0
        %2378 = vmatprep.subr.mxu0 0.0
        %2379 = vmatpush1.msra.mxu0 0.0
        %2380 = vmatprep.subr.mxu0 0.0
        %2381 = vmatpush1.msra.mxu0 0.0
        %2382 = vmatprep.subr.mxu0 0.0
        %2383 = vmatpush1.msra.mxu0 0.0
        %2384 = vmatprep.subr.mxu0 0.0
        %2385 = vmatpush1.msra.mxu0 0.0
        %2386 = vmatprep.subr.mxu0 0.0
        %2387 = vmatpush1.msra.mxu0 0.0
        %2388 = vmatprep.subr.mxu0 0.0
        %2389 = vmatpush1.msra.mxu0 0.0
        %2390 = vmatprep.subr.mxu0 0.0
        %2391 = vmatpush1.msra.mxu0 0.0
        %2392 = vmatprep.subr.mxu0 0.0
        %2393 = vmatpush1.msra.mxu0 0.0
        %2394 = vmatprep.subr.mxu0 0.0
        %2395 = vmatpush1.msra.mxu0 0.0
        %2396 = vmatprep.subr.mxu0 0.0
        %2397 = vmatpush1.msra.mxu0 0.0
        %2398 = vmatprep.subr.mxu0 0.0
        %2399 = vmatpush1.msra.mxu0 0.0
        %2400 = vmatprep.mubr.f32.mxu0 0.0
        %2401 = vmatmul.mubr.f32.gmra.mrb[0].mxu0 %v2334
        %v2402 = vpop.f32.mrb[0].mxu0
        %v2403 = vadd.f32 0.0, %v2402
        %v2404 = vpop.f32.mrb[0].mxu0
        %2405 = vdwg.mxu0
        %v2407 = vsel %vm1686, %v2184, 0
        %2409 = vmatprep.subr.mxu0 0.0
        %2410 = vmatpush1.msra.mxu0 %v750
        %2411 = vmatprep.subr.mxu0 0.0
        %2412 = vmatpush1.msra.mxu0 0.0
        %2413 = vmatprep.subr.mxu0 0.0
        %2414 = vmatpush1.msra.mxu0 0.0
        %2415 = vmatprep.subr.mxu0 0.0
        %2416 = vmatpush1.msra.mxu0 0.0
        %2417 = vmatprep.subr.mxu0 0.0
        %2418 = vmatpush1.msra.mxu0 0.0
        %2419 = vmatprep.subr.mxu0 0.0
        %2420 = vmatpush1.msra.mxu0 0.0
        %2421 = vmatprep.subr.mxu0 0.0
        %2422 = vmatpush1.msra.mxu0 0.0
        %2423 = vmatprep.subr.mxu0 0.0
        %2424 = vmatpush1.msra.mxu0 0.0
        %2425 = vmatprep.subr.mxu0 0.0
        %2426 = vmatpush1.msra.mxu0 0.0
        %2427 = vmatprep.subr.mxu0 0.0
        %2428 = vmatpush1.msra.mxu0 0.0
        %2429 = vmatprep.subr.mxu0 0.0
        %2430 = vmatpush1.msra.mxu0 0.0
        %2431 = vmatprep.subr.mxu0 0.0
        %2432 = vmatpush1.msra.mxu0 0.0
        %2433 = vmatprep.subr.mxu0 0.0
        %2434 = vmatpush1.msra.mxu0 0.0
        %2435 = vmatprep.subr.mxu0 0.0
        %2436 = vmatpush1.msra.mxu0 0.0
        %2437 = vmatprep.subr.mxu0 0.0
        %2438 = vmatpush1.msra.mxu0 0.0
        %2439 = vmatprep.subr.mxu0 0.0
        %2440 = vmatpush1.msra.mxu0 0.0
        %2441 = vmatprep.subr.mxu0 0.0
        %2442 = vmatpush1.msra.mxu0 0.0
        %2443 = vmatprep.subr.mxu0 0.0
        %2444 = vmatpush1.msra.mxu0 0.0
        %2445 = vmatprep.subr.mxu0 0.0
        %2446 = vmatpush1.msra.mxu0 0.0
        %2447 = vmatprep.subr.mxu0 0.0
        %2448 = vmatpush1.msra.mxu0 0.0
        %2449 = vmatprep.subr.mxu0 0.0
        %2450 = vmatpush1.msra.mxu0 0.0
        %2451 = vmatprep.subr.mxu0 0.0
        %2452 = vmatpush1.msra.mxu0 0.0
        %2453 = vmatprep.subr.mxu0 0.0
        %2454 = vmatpush1.msra.mxu0 0.0
        %2455 = vmatprep.subr.mxu0 0.0
        %2456 = vmatpush1.msra.mxu0 0.0
        %2457 = vmatprep.subr.mxu0 0.0
        %2458 = vmatpush1.msra.mxu0 0.0
        %2459 = vmatprep.subr.mxu0 0.0
        %2460 = vmatpush1.msra.mxu0 0.0
        %2461 = vmatprep.subr.mxu0 0.0
        %2462 = vmatpush1.msra.mxu0 0.0
        %2463 = vmatprep.subr.mxu0 0.0
        %2464 = vmatpush1.msra.mxu0 0.0
        %2465 = vmatprep.subr.mxu0 0.0
        %2466 = vmatpush1.msra.mxu0 0.0
        %2467 = vmatprep.subr.mxu0 0.0
        %2468 = vmatpush1.msra.mxu0 0.0
        %2469 = vmatprep.subr.mxu0 0.0
        %2470 = vmatpush1.msra.mxu0 0.0
        %2471 = vmatprep.subr.mxu0 0.0
        %2472 = vmatpush1.msra.mxu0 0.0
        %2473 = vmatprep.mubr.f32.mxu0 0.0
        %2474 = vmatmul.mubr.f32.gmra.mrb[0].mxu0 %v2407
        %v2475 = vpop.f32.mrb[0].mxu0
        %v2476 = vadd.f32 0.0, %v2475
        %v2477 = vpop.f32.mrb[0].mxu0
        %2478 = vdwg.mxu0
        %v2480 = vsel %vm1686, %v2257, 0
        %2482 = vmatprep.subr.mxu0 0.0
        %2483 = vmatpush1.msra.mxu0 %v751
        %2484 = vmatprep.subr.mxu0 0.0
        %2485 = vmatpush1.msra.mxu0 0.0
        %2486 = vmatprep.subr.mxu0 0.0
        %2487 = vmatpush1.msra.mxu0 0.0
        %2488 = vmatprep.subr.mxu0 0.0
        %2489 = vmatpush1.msra.mxu0 0.0
        %2490 = vmatprep.subr.mxu0 0.0
        %2491 = vmatpush1.msra.mxu0 0.0
        %2492 = vmatprep.subr.mxu0 0.0
        %2493 = vmatpush1.msra.mxu0 0.0
        %2494 = vmatprep.subr.mxu0 0.0
        %2495 = vmatpush1.msra.mxu0 0.0
        %2496 = vmatprep.subr.mxu0 0.0
        %2497 = vmatpush1.msra.mxu0 0.0
        %2498 = vmatprep.subr.mxu0 0.0
        %2499 = vmatpush1.msra.mxu0 0.0
        %2500 = vmatprep.subr.mxu0 0.0
        %2501 = vmatpush1.msra.mxu0 0.0
        %2502 = vmatprep.subr.mxu0 0.0
        %2503 = vmatpush1.msra.mxu0 0.0
        %2504 = vmatprep.subr.mxu0 0.0
        %2505 = vmatpush1.msra.mxu0 0.0
        %2506 = vmatprep.subr.mxu0 0.0
        %2507 = vmatpush1.msra.mxu0 0.0
        %2508 = vmatprep.subr.mxu0 0.0
        %2509 = vmatpush1.msra.mxu0 0.0
        %2510 = vmatprep.subr.mxu0 0.0
        %2511 = vmatpush1.msra.mxu0 0.0
        %2512 = vmatprep.subr.mxu0 0.0
        %2513 = vmatpush1.msra.mxu0 0.0
        %2514 = vmatprep.subr.mxu0 0.0
        %2515 = vmatpush1.msra.mxu0 0.0
        %2516 = vmatprep.subr.mxu0 0.0
        %2517 = vmatpush1.msra.mxu0 0.0
        %2518 = vmatprep.subr.mxu0 0.0
        %2519 = vmatpush1.msra.mxu0 0.0
        %2520 = vmatprep.subr.mxu0 0.0
        %2521 = vmatpush1.msra.mxu0 0.0
        %2522 = vmatprep.subr.mxu0 0.0
        %2523 = vmatpush1.msra.mxu0 0.0
        %2524 = vmatprep.subr.mxu0 0.0
        %2525 = vmatpush1.msra.mxu0 0.0
        %2526 = vmatprep.subr.mxu0 0.0
        %2527 = vmatpush1.msra.mxu0 0.0
        %2528 = vmatprep.subr.mxu0 0.0
        %2529 = vmatpush1.msra.mxu0 0.0
        %2530 = vmatprep.subr.mxu0 0.0
        %2531 = vmatpush1.msra.mxu0 0.0
        %2532 = vmatprep.subr.mxu0 0.0
        %2533 = vmatpush1.msra.mxu0 0.0
        %2534 = vmatprep.subr.mxu0 0.0
        %2535 = vmatpush1.msra.mxu0 0.0
        %2536 = vmatprep.subr.mxu0 0.0
        %2537 = vmatpush1.msra.mxu0 0.0
        %2538 = vmatprep.subr.mxu0 0.0
        %2539 = vmatpush1.msra.mxu0 0.0
        %2540 = vmatprep.subr.mxu0 0.0
        %2541 = vmatpush1.msra.mxu0 0.0
        %2542 = vmatprep.subr.mxu0 0.0
        %2543 = vmatpush1.msra.mxu0 0.0
        %2544 = vmatprep.subr.mxu0 0.0
        %2545 = vmatpush1.msra.mxu0 0.0
        %2546 = vmatprep.mubr.f32.mxu0 0.0
        %2547 = vmatmul.mubr.f32.gmra.mrb[0].mxu0 %v2480
        %v2548 = vpop.f32.mrb[0].mxu0
        %v2549 = vadd.f32 0.0, %v2548
        %v2550 = vpop.f32.mrb[0].mxu0
        %2551 = vdwg.mxu0
        %v2553 = vsel %vm1686, %v2330, 0
        %2555 = vmatprep.subr.mxu0 0.0
        %2556 = vmatpush1.msra.mxu0 %v752
        %2557 = vmatprep.subr.mxu0 0.0
        %2558 = vmatpush1.msra.mxu0 0.0
        %2559 = vmatprep.subr.mxu0 0.0
        %2560 = vmatpush1.msra.mxu0 0.0
        %2561 = vmatprep.subr.mxu0 0.0
        %2562 = vmatpush1.msra.mxu0 0.0
        %2563 = vmatprep.subr.mxu0 0.0
        %2564 = vmatpush1.msra.mxu0 0.0
        %2565 = vmatprep.subr.mxu0 0.0
        %2566 = vmatpush1.msra.mxu0 0.0
        %2567 = vmatprep.subr.mxu0 0.0
        %2568 = vmatpush1.msra.mxu0 0.0
        %2569 = vmatprep.subr.mxu0 0.0
        %2570 = vmatpush1.msra.mxu0 0.0
        %2571 = vmatprep.subr.mxu0 0.0
        %2572 = vmatpush1.msra.mxu0 0.0
        %2573 = vmatprep.subr.mxu0 0.0
        %2574 = vmatpush1.msra.mxu0 0.0
        %2575 = vmatprep.subr.mxu0 0.0
        %2576 = vmatpush1.msra.mxu0 0.0
        %2577 = vmatprep.subr.mxu0 0.0
        %2578 = vmatpush1.msra.mxu0 0.0
        %2579 = vmatprep.subr.mxu0 0.0
        %2580 = vmatpush1.msra.mxu0 0.0
        %2581 = vmatprep.subr.mxu0 0.0
        %2582 = vmatpush1.msra.mxu0 0.0
        %2583 = vmatprep.subr.mxu0 0.0
        %2584 = vmatpush1.msra.mxu0 0.0
        %2585 = vmatprep.subr.mxu0 0.0
        %2586 = vmatpush1.msra.mxu0 0.0
        %2587 = vmatprep.subr.mxu0 0.0
        %2588 = vmatpush1.msra.mxu0 0.0
        %2589 = vmatprep.subr.mxu0 0.0
        %2590 = vmatpush1.msra.mxu0 0.0
        %2591 = vmatprep.subr.mxu0 0.0
        %2592 = vmatpush1.msra.mxu0 0.0
        %2593 = vmatprep.subr.mxu0 0.0
        %2594 = vmatpush1.msra.mxu0 0.0
        %2595 = vmatprep.subr.mxu0 0.0
        %2596 = vmatpush1.msra.mxu0 0.0
        %2597 = vmatprep.subr.mxu0 0.0
        %2598 = vmatpush1.msra.mxu0 0.0
        %2599 = vmatprep.subr.mxu0 0.0
        %2600 = vmatpush1.msra.mxu0 0.0
        %2601 = vmatprep.subr.mxu0 0.0
        %2602 = vmatpush1.msra.mxu0 0.0
        %2603 = vmatprep.subr.mxu0 0.0
        %2604 = vmatpush1.msra.mxu0 0.0
        %2605 = vmatprep.subr.mxu0 0.0
        %2606 = vmatpush1.msra.mxu0 0.0
        %2607 = vmatprep.subr.mxu0 0.0
        %2608 = vmatpush1.msra.mxu0 0.0
        %2609 = vmatprep.subr.mxu0 0.0
        %2610 = vmatpush1.msra.mxu0 0.0
        %2611 = vmatprep.subr.mxu0 0.0
        %2612 = vmatpush1.msra.mxu0 0.0
        %2613 = vmatprep.subr.mxu0 0.0
        %2614 = vmatpush1.msra.mxu0 0.0
        %2615 = vmatprep.subr.mxu0 0.0
        %2616 = vmatpush1.msra.mxu0 0.0
        %2617 = vmatprep.subr.mxu0 0.0
        %2618 = vmatpush1.msra.mxu0 0.0
        %2619 = vmatprep.mubr.f32.mxu0 0.0
        %2620 = vmatmul.mubr.f32.gmra.mrb[0].mxu0 %v2553
        %v2621 = vpop.f32.mrb[0].mxu0
        %v2622 = vadd.f32 0.0, %v2621
        %v2623 = vpop.f32.mrb[0].mxu0
        %2624 = vdwg.mxu0
        %v2625 = vsel %vm794, %v2403, 0.0
        %v2626 = vsel %vm794, %v2476, 0.0
        %v2627 = vadd.f32 %v2625, %v2626
        %v2628 = vsel %vm794, %v2549, 0.0
        %v2629 = vadd.f32 %v2627, %v2628
        %v2630 = vsel %vm794, %v2622, 0.0
        %v2631 = vadd.f32 %v2629, %v2630
        %v2633 = vlaneseq
        %v2634 = vshrl.u32 %v2633, 7
        %v2635 = vsub.s32 0, %v2634
        %v2636 = vrot.slane %v753, %v2635
        %v2638 = vadd.f32 %v2631, %v2636
        %v2639 = vadd.f32 %v685, %v2638
        %v2640 = vsel %vm794, %v2639, 0.0
        %2641 = vadd.xlane.f32.xlu0 %v2640
        %v2642 = vpop.xlane.xlu0 %2641
        %v2643 = vrcp.pop 32.0
        %v2644 = vmul.f32 %v2642, %v2643
        %v2645 = vmul.f32 %v2639, %v2639
        %v2646 = vsel %vm794, %v2645, 0.0
        %2647 = vadd.xlane.f32.xlu0 %v2646
        %v2648 = vpop.xlane.xlu0 %2647
        %v2649 = vmul.f32 %v2648, %v2643
        %v2650 = vmul.f32 %v2644, %v2644
        %v2651 = vsub.f32 %v2649, %v2650
        %v2652 = vmax.f32 %v2651, 0.0
        %v2653 = vsub.f32 %v2639, %v2644
        %v2655 = vlaneseq
        %v2656 = vshrl.u32 %v2655, 7
        %v2657 = vsub.s32 0, %v2656
        %v2658 = vrot.slane %v768, %v2657
        %v2660 = vmul.f32 %v2658, %v2653
        %v2661 = vadd.f32 %v2652, 1e-06
        %v2662 = vrsqrt.pop %v2661
        %v2663 = vmul.f32 %v2660, %v2662
        %v2665 = vlaneseq
        %v2666 = vshrl.u32 %v2665, 7
        %v2667 = vsub.s32 0, %v2666
        %v2668 = vrot.slane %v769, %v2667
        %v2670 = vadd.f32 %v2663, %v2668
        %v2672 = vsel %vm794, %v2670, 0
        %2674 = vmatprep.subr.mxu0 0.0
        %2675 = vmatpush1.msra.mxu0 %v689
        %2676 = vmatprep.subr.mxu0 0.0
        %2677 = vmatpush1.msra.mxu0 %v690
        %2678 = vmatprep.subr.mxu0 0.0
        %2679 = vmatpush1.msra.mxu0 %v691
        %2680 = vmatprep.subr.mxu0 0.0
        %2681 = vmatpush1.msra.mxu0 %v692
        %2682 = vmatprep.subr.mxu0 0.0
        %2683 = vmatpush1.msra.mxu0 0.0
        %2684 = vmatprep.subr.mxu0 0.0
        %2685 = vmatpush1.msra.mxu0 0.0
        %2686 = vmatprep.subr.mxu0 0.0
        %2687 = vmatpush1.msra.mxu0 0.0
        %2688 = vmatprep.subr.mxu0 0.0
        %2689 = vmatpush1.msra.mxu0 0.0
        %2690 = vmatprep.subr.mxu0 0.0
        %2691 = vmatpush1.msra.mxu0 0.0
        %2692 = vmatprep.subr.mxu0 0.0
        %2693 = vmatpush1.msra.mxu0 0.0
        %2694 = vmatprep.subr.mxu0 0.0
        %2695 = vmatpush1.msra.mxu0 0.0
        %2696 = vmatprep.subr.mxu0 0.0
        %2697 = vmatpush1.msra.mxu0 0.0
        %2698 = vmatprep.subr.mxu0 0.0
        %2699 = vmatpush1.msra.mxu0 0.0
        %2700 = vmatprep.subr.mxu0 0.0
        %2701 = vmatpush1.msra.mxu0 0.0
        %2702 = vmatprep.subr.mxu0 0.0
        %2703 = vmatpush1.msra.mxu0 0.0
        %2704 = vmatprep.subr.mxu0 0.0
        %2705 = vmatpush1.msra.mxu0 0.0
        %2706 = vmatprep.subr.mxu0 0.0
        %2707 = vmatpush1.msra.mxu0 0.0
        %2708 = vmatprep.subr.mxu0 0.0
        %2709 = vmatpush1.msra.mxu0 0.0
        %2710 = vmatprep.subr.mxu0 0.0
        %2711 = vmatpush1.msra.mxu0 0.0
        %2712 = vmatprep.subr.mxu0 0.0
        %2713 = vmatpush1.msra.mxu0 0.0
        %2714 = vmatprep.subr.mxu0 0.0
        %2715 = vmatpush1.msra.mxu0 0.0
        %2716 = vmatprep.subr.mxu0 0.0
        %2717 = vmatpush1.msra.mxu0 0.0
        %2718 = vmatprep.subr.mxu0 0.0
        %2719 = vmatpush1.msra.mxu0 0.0
        %2720 = vmatprep.subr.mxu0 0.0
        %2721 = vmatpush1.msra.mxu0 0.0
        %2722 = vmatprep.subr.mxu0 0.0
        %2723 = vmatpush1.msra.mxu0 0.0
        %2724 = vmatprep.subr.mxu0 0.0
        %2725 = vmatpush1.msra.mxu0 0.0
        %2726 = vmatprep.subr.mxu0 0.0
        %2727 = vmatpush1.msra.mxu0 0.0
        %2728 = vmatprep.subr.mxu0 0.0
        %2729 = vmatpush1.msra.mxu0 0.0
        %2730 = vmatprep.subr.mxu0 0.0
        %2731 = vmatpush1.msra.mxu0 0.0
        %2732 = vmatprep.subr.mxu0 0.0
        %2733 = vmatpush1.msra.mxu0 0.0
        %2734 = vmatprep.subr.mxu0 0.0
        %2735 = vmatpush1.msra.mxu0 0.0
        %2736 = vmatprep.subr.mxu0 0.0
        %2737 = vmatpush1.msra.mxu0 0.0
        %2738 = vmatprep.mubr.f32.mxu0 0.0
        %2739 = vmatmul.mubr.f32.gmra.mrb[0].mxu0 %v2672
        %v2740 = vpop.f32.mrb[0].mxu0
        %v2741 = vadd.f32 %v777, %v2740
        %v2742 = vpop.f32.mrb[0].mxu0
        %2743 = vdwg.mxu0
        %2744 = vmatprep.subr.mxu0 0.0
        %2745 = vmatpush1.msra.mxu0 %v693
        %2746 = vmatprep.subr.mxu0 0.0
        %2747 = vmatpush1.msra.mxu0 %v694
        %2748 = vmatprep.subr.mxu0 0.0
        %2749 = vmatpush1.msra.mxu0 %v695
        %2750 = vmatprep.subr.mxu0 0.0
        %2751 = vmatpush1.msra.mxu0 %v696
        %2752 = vmatprep.subr.mxu0 0.0
        %2753 = vmatpush1.msra.mxu0 0.0
        %2754 = vmatprep.subr.mxu0 0.0
        %2755 = vmatpush1.msra.mxu0 0.0
        %2756 = vmatprep.subr.mxu0 0.0
        %2757 = vmatpush1.msra.mxu0 0.0
        %2758 = vmatprep.subr.mxu0 0.0
        %2759 = vmatpush1.msra.mxu0 0.0
        %2760 = vmatprep.subr.mxu0 0.0
        %2761 = vmatpush1.msra.mxu0 0.0
        %2762 = vmatprep.subr.mxu0 0.0
        %2763 = vmatpush1.msra.mxu0 0.0
        %2764 = vmatprep.subr.mxu0 0.0
        %2765 = vmatpush1.msra.mxu0 0.0
        %2766 = vmatprep.subr.mxu0 0.0
        %2767 = vmatpush1.msra.mxu0 0.0
        %2768 = vmatprep.subr.mxu0 0.0
        %2769 = vmatpush1.msra.mxu0 0.0
        %2770 = vmatprep.subr.mxu0 0.0
        %2771 = vmatpush1.msra.mxu0 0.0
        %2772 = vmatprep.subr.mxu0 0.0
        %2773 = vmatpush1.msra.mxu0 0.0
        %2774 = vmatprep.subr.mxu0 0.0
        %2775 = vmatpush1.msra.mxu0 0.0
        %2776 = vmatprep.subr.mxu0 0.0
        %2777 = vmatpush1.msra.mxu0 0.0
        %2778 = vmatprep.subr.mxu0 0.0
        %2779 = vmatpush1.msra.mxu0 0.0
        %2780 = vmatprep.subr.mxu0 0.0
        %2781 = vmatpush1.msra.mxu0 0.0
        %2782 = vmatprep.subr.mxu0 0.0
        %2783 = vmatpush1.msra.mxu0 0.0
        %2784 = vmatprep.subr.mxu0 0.0
        %2785 = vmatpush1.msra.mxu0 0.0
        %2786 = vmatprep.subr.mxu0 0.0
        %2787 = vmatpush1.msra.mxu0 0.0
        %2788 = vmatprep.subr.mxu0 0.0
        %2789 = vmatpush1.msra.mxu0 0.0
        %2790 = vmatprep.subr.mxu0 0.0
        %2791 = vmatpush1.msra.mxu0 0.0
        %2792 = vmatprep.subr.mxu0 0.0
        %2793 = vmatpush1.msra.mxu0 0.0
        %2794 = vmatprep.subr.mxu0 0.0
        %2795 = vmatpush1.msra.mxu0 0.0
        %2796 = vmatprep.subr.mxu0 0.0
        %2797 = vmatpush1.msra.mxu0 0.0
        %2798 = vmatprep.subr.mxu0 0.0
        %2799 = vmatpush1.msra.mxu0 0.0
        %2800 = vmatprep.subr.mxu0 0.0
        %2801 = vmatpush1.msra.mxu0 0.0
        %2802 = vmatprep.subr.mxu0 0.0
        %2803 = vmatpush1.msra.mxu0 0.0
        %2804 = vmatprep.subr.mxu0 0.0
        %2805 = vmatpush1.msra.mxu0 0.0
        %2806 = vmatprep.subr.mxu0 0.0
        %2807 = vmatpush1.msra.mxu0 0.0
        %2808 = vmatprep.mubr.f32.mxu0 0.0
        %2809 = vmatmul.mubr.f32.gmra.mrb[0].mxu0 %v2672
        %v2810 = vpop.f32.mrb[0].mxu0
        %v2811 = vadd.f32 %v781, %v2810
        %v2812 = vpop.f32.mrb[0].mxu0
        %2813 = vdwg.mxu0
        %2814 = vmatprep.subr.mxu0 0.0
        %2815 = vmatpush1.msra.mxu0 %v697
        %2816 = vmatprep.subr.mxu0 0.0
        %2817 = vmatpush1.msra.mxu0 %v698
        %2818 = vmatprep.subr.mxu0 0.0
        %2819 = vmatpush1.msra.mxu0 %v699
        %2820 = vmatprep.subr.mxu0 0.0
        %2821 = vmatpush1.msra.mxu0 %v700
        %2822 = vmatprep.subr.mxu0 0.0
        %2823 = vmatpush1.msra.mxu0 0.0
        %2824 = vmatprep.subr.mxu0 0.0
        %2825 = vmatpush1.msra.mxu0 0.0
        %2826 = vmatprep.subr.mxu0 0.0
        %2827 = vmatpush1.msra.mxu0 0.0
        %2828 = vmatprep.subr.mxu0 0.0
        %2829 = vmatpush1.msra.mxu0 0.0
        %2830 = vmatprep.subr.mxu0 0.0
        %2831 = vmatpush1.msra.mxu0 0.0
        %2832 = vmatprep.subr.mxu0 0.0
        %2833 = vmatpush1.msra.mxu0 0.0
        %2834 = vmatprep.subr.mxu0 0.0
        %2835 = vmatpush1.msra.mxu0 0.0
        %2836 = vmatprep.subr.mxu0 0.0
        %2837 = vmatpush1.msra.mxu0 0.0
        %2838 = vmatprep.subr.mxu0 0.0
        %2839 = vmatpush1.msra.mxu0 0.0
        %2840 = vmatprep.subr.mxu0 0.0
        %2841 = vmatpush1.msra.mxu0 0.0
        %2842 = vmatprep.subr.mxu0 0.0
        %2843 = vmatpush1.msra.mxu0 0.0
        %2844 = vmatprep.subr.mxu0 0.0
        %2845 = vmatpush1.msra.mxu0 0.0
        %2846 = vmatprep.subr.mxu0 0.0
        %2847 = vmatpush1.msra.mxu0 0.0
        %2848 = vmatprep.subr.mxu0 0.0
        %2849 = vmatpush1.msra.mxu0 0.0
        %2850 = vmatprep.subr.mxu0 0.0
        %2851 = vmatpush1.msra.mxu0 0.0
        %2852 = vmatprep.subr.mxu0 0.0
        %2853 = vmatpush1.msra.mxu0 0.0
        %2854 = vmatprep.subr.mxu0 0.0
        %2855 = vmatpush1.msra.mxu0 0.0
        %2856 = vmatprep.subr.mxu0 0.0
        %2857 = vmatpush1.msra.mxu0 0.0
        %2858 = vmatprep.subr.mxu0 0.0
        %2859 = vmatpush1.msra.mxu0 0.0
        %2860 = vmatprep.subr.mxu0 0.0
        %2861 = vmatpush1.msra.mxu0 0.0
        %2862 = vmatprep.subr.mxu0 0.0
        %2863 = vmatpush1.msra.mxu0 0.0
        %2864 = vmatprep.subr.mxu0 0.0
        %2865 = vmatpush1.msra.mxu0 0.0
        %2866 = vmatprep.subr.mxu0 0.0
        %2867 = vmatpush1.msra.mxu0 0.0
        %2868 = vmatprep.subr.mxu0 0.0
        %2869 = vmatpush1.msra.mxu0 0.0
        %2870 = vmatprep.subr.mxu0 0.0
        %2871 = vmatpush1.msra.mxu0 0.0
        %2872 = vmatprep.subr.mxu0 0.0
        %2873 = vmatpush1.msra.mxu0 0.0
        %2874 = vmatprep.subr.mxu0 0.0
        %2875 = vmatpush1.msra.mxu0 0.0
        %2876 = vmatprep.subr.mxu0 0.0
        %2877 = vmatpush1.msra.mxu0 0.0
        %2878 = vmatprep.mubr.f32.mxu0 0.0
        %2879 = vmatmul.mubr.f32.gmra.mrb[0].mxu0 %v2672
        %v2880 = vpop.f32.mrb[0].mxu0
        %v2881 = vadd.f32 %v785, %v2880
        %v2882 = vpop.f32.mrb[0].mxu0
        %2883 = vdwg.mxu0
        %2884 = vmatprep.subr.mxu0 0.0
        %2885 = vmatpush1.msra.mxu0 %v701
        %2886 = vmatprep.subr.mxu0 0.0
        %2887 = vmatpush1.msra.mxu0 %v702
        %2888 = vmatprep.subr.mxu0 0.0
        %2889 = vmatpush1.msra.mxu0 %v703
        %2890 = vmatprep.subr.mxu0 0.0
        %2891 = vmatpush1.msra.mxu0 %v704
        %2892 = vmatprep.subr.mxu0 0.0
        %2893 = vmatpush1.msra.mxu0 0.0
        %2894 = vmatprep.subr.mxu0 0.0
        %2895 = vmatpush1.msra.mxu0 0.0
        %2896 = vmatprep.subr.mxu0 0.0
        %2897 = vmatpush1.msra.mxu0 0.0
        %2898 = vmatprep.subr.mxu0 0.0
        %2899 = vmatpush1.msra.mxu0 0.0
        %2900 = vmatprep.subr.mxu0 0.0
        %2901 = vmatpush1.msra.mxu0 0.0
        %2902 = vmatprep.subr.mxu0 0.0
        %2903 = vmatpush1.msra.mxu0 0.0
        %2904 = vmatprep.subr.mxu0 0.0
        %2905 = vmatpush1.msra.mxu0 0.0
        %2906 = vmatprep.subr.mxu0 0.0
        %2907 = vmatpush1.msra.mxu0 0.0
        %2908 = vmatprep.subr.mxu0 0.0
        %2909 = vmatpush1.msra.mxu0 0.0
        %2910 = vmatprep.subr.mxu0 0.0
        %2911 = vmatpush1.msra.mxu0 0.0
        %2912 = vmatprep.subr.mxu0 0.0
        %2913 = vmatpush1.msra.mxu0 0.0
        %2914 = vmatprep.subr.mxu0 0.0
        %2915 = vmatpush1.msra.mxu0 0.0
        %2916 = vmatprep.subr.mxu0 0.0
        %2917 = vmatpush1.msra.mxu0 0.0
        %2918 = vmatprep.subr.mxu0 0.0
        %2919 = vmatpush1.msra.mxu0 0.0
        %2920 = vmatprep.subr.mxu0 0.0
        %2921 = vmatpush1.msra.mxu0 0.0
        %2922 = vmatprep.subr.mxu0 0.0
        %2923 = vmatpush1.msra.mxu0 0.0
        %2924 = vmatprep.subr.mxu0 0.0
        %2925 = vmatpush1.msra.mxu0 0.0
        %2926 = vmatprep.subr.mxu0 0.0
        %2927 = vmatpush1.msra.mxu0 0.0
        %2928 = vmatprep.subr.mxu0 0.0
        %2929 = vmatpush1.msra.mxu0 0.0
        %2930 = vmatprep.subr.mxu0 0.0
        %2931 = vmatpush1.msra.mxu0 0.0
        %2932 = vmatprep.subr.mxu0 0.0
        %2933 = vmatpush1.msra.mxu0 0.0
        %2934 = vmatprep.subr.mxu0 0.0
        %2935 = vmatpush1.msra.mxu0 0.0
        %2936 = vmatprep.subr.mxu0 0.0
        %2937 = vmatpush1.msra.mxu0 0.0
        %2938 = vmatprep.subr.mxu0 0.0
        %2939 = vmatpush1.msra.mxu0 0.0
        %2940 = vmatprep.subr.mxu0 0.0
        %2941 = vmatpush1.msra.mxu0 0.0
        %2942 = vmatprep.subr.mxu0 0.0
        %2943 = vmatpush1.msra.mxu0 0.0
        %2944 = vmatprep.subr.mxu0 0.0
        %2945 = vmatpush1.msra.mxu0 0.0
        %2946 = vmatprep.subr.mxu0 0.0
        %2947 = vmatpush1.msra.mxu0 0.0
        %2948 = vmatprep.mubr.f32.mxu0 0.0
        %2949 = vmatmul.mubr.f32.gmra.mrb[0].mxu0 %v2672
        %v2950 = vpop.f32.mrb[0].mxu0
        %v2951 = vadd.f32 %v789, %v2950
        %v2952 = vpop.f32.mrb[0].mxu0
        %2953 = vdwg.mxu0
        %v2955 = vsel %vm794, %v686, 0
        %2957 = vmatprep.subr.mxu0 0.0
        %2958 = vmatpush1.msra.mxu0 %v709
        %2959 = vmatprep.subr.mxu0 0.0
        %2960 = vmatpush1.msra.mxu0 %v710
        %2961 = vmatprep.subr.mxu0 0.0
        %2962 = vmatpush1.msra.mxu0 %v711
        %2963 = vmatprep.subr.mxu0 0.0
        %2964 = vmatpush1.msra.mxu0 %v712
        %2965 = vmatprep.subr.mxu0 0.0
        %2966 = vmatpush1.msra.mxu0 0.0
        %2967 = vmatprep.subr.mxu0 0.0
        %2968 = vmatpush1.msra.mxu0 0.0
        %2969 = vmatprep.subr.mxu0 0.0
        %2970 = vmatpush1.msra.mxu0 0.0
        %2971 = vmatprep.subr.mxu0 0.0
        %2972 = vmatpush1.msra.mxu0 0.0
        %2973 = vmatprep.subr.mxu0 0.0
        %2974 = vmatpush1.msra.mxu0 0.0
        %2975 = vmatprep.subr.mxu0 0.0
        %2976 = vmatpush1.msra.mxu0 0.0
        %2977 = vmatprep.subr.mxu0 0.0
        %2978 = vmatpush1.msra.mxu0 0.0
        %2979 = vmatprep.subr.mxu0 0.0
        %2980 = vmatpush1.msra.mxu0 0.0
        %2981 = vmatprep.subr.mxu0 0.0
        %2982 = vmatpush1.msra.mxu0 0.0
        %2983 = vmatprep.subr.mxu0 0.0
        %2984 = vmatpush1.msra.mxu0 0.0
        %2985 = vmatprep.subr.mxu0 0.0
        %2986 = vmatpush1.msra.mxu0 0.0
        %2987 = vmatprep.subr.mxu0 0.0
        %2988 = vmatpush1.msra.mxu0 0.0
        %2989 = vmatprep.subr.mxu0 0.0
        %2990 = vmatpush1.msra.mxu0 0.0
        %2991 = vmatprep.subr.mxu0 0.0
        %2992 = vmatpush1.msra.mxu0 0.0
        %2993 = vmatprep.subr.mxu0 0.0
        %2994 = vmatpush1.msra.mxu0 0.0
        %2995 = vmatprep.subr.mxu0 0.0
        %2996 = vmatpush1.msra.mxu0 0.0
        %2997 = vmatprep.subr.mxu0 0.0
        %2998 = vmatpush1.msra.mxu0 0.0
        %2999 = vmatprep.subr.mxu0 0.0
        %3000 = vmatpush1.msra.mxu0 0.0
        %3001 = vmatprep.subr.mxu0 0.0
        %3002 = vmatpush1.msra.mxu0 0.0
        %3003 = vmatprep.subr.mxu0 0.0
        %3004 = vmatpush1.msra.mxu0 0.0
        %3005 = vmatprep.subr.mxu0 0.0
        %3006 = vmatpush1.msra.mxu0 0.0
        %3007 = vmatprep.subr.mxu0 0.0
        %3008 = vmatpush1.msra.mxu0 0.0
        %3009 = vmatprep.subr.mxu0 0.0
        %3010 = vmatpush1.msra.mxu0 0.0
        %3011 = vmatprep.subr.mxu0 0.0
        %3012 = vmatpush1.msra.mxu0 0.0
        %3013 = vmatprep.subr.mxu0 0.0
        %3014 = vmatpush1.msra.mxu0 0.0
        %3015 = vmatprep.subr.mxu0 0.0
        %3016 = vmatpush1.msra.mxu0 0.0
        %3017 = vmatprep.subr.mxu0 0.0
        %3018 = vmatpush1.msra.mxu0 0.0
        %3019 = vmatprep.subr.mxu0 0.0
        %3020 = vmatpush1.msra.mxu0 0.0
        %3021 = vmatprep.mubr.f32.mxu0 0.0
        %3022 = vmatmul.mubr.f32.gmra.mrb[0].mxu0 %v2955
        %v3023 = vpop.f32.mrb[0].mxu0
        %v3024 = vadd.f32 %v1085, %v3023
        %v3025 = vpop.f32.mrb[0].mxu0
        %3026 = vdwg.mxu0
        %3027 = vmatprep.subr.mxu0 0.0
        %3028 = vmatpush1.msra.mxu0 %v713
        %3029 = vmatprep.subr.mxu0 0.0
        %3030 = vmatpush1.msra.mxu0 %v714
        %3031 = vmatprep.subr.mxu0 0.0
        %3032 = vmatpush1.msra.mxu0 %v715
        %3033 = vmatprep.subr.mxu0 0.0
        %3034 = vmatpush1.msra.mxu0 %v716
        %3035 = vmatprep.subr.mxu0 0.0
        %3036 = vmatpush1.msra.mxu0 0.0
        %3037 = vmatprep.subr.mxu0 0.0
        %3038 = vmatpush1.msra.mxu0 0.0
        %3039 = vmatprep.subr.mxu0 0.0
        %3040 = vmatpush1.msra.mxu0 0.0
        %3041 = vmatprep.subr.mxu0 0.0
        %3042 = vmatpush1.msra.mxu0 0.0
        %3043 = vmatprep.subr.mxu0 0.0
        %3044 = vmatpush1.msra.mxu0 0.0
        %3045 = vmatprep.subr.mxu0 0.0
        %3046 = vmatpush1.msra.mxu0 0.0
        %3047 = vmatprep.subr.mxu0 0.0
        %3048 = vmatpush1.msra.mxu0 0.0
        %3049 = vmatprep.subr.mxu0 0.0
        %3050 = vmatpush1.msra.mxu0 0.0
        %3051 = vmatprep.subr.mxu0 0.0
        %3052 = vmatpush1.msra.mxu0 0.0
        %3053 = vmatprep.subr.mxu0 0.0
        %3054 = vmatpush1.msra.mxu0 0.0
        %3055 = vmatprep.subr.mxu0 0.0
        %3056 = vmatpush1.msra.mxu0 0.0
        %3057 = vmatprep.subr.mxu0 0.0
        %3058 = vmatpush1.msra.mxu0 0.0
        %3059 = vmatprep.subr.mxu0 0.0
        %3060 = vmatpush1.msra.mxu0 0.0
        %3061 = vmatprep.subr.mxu0 0.0
        %3062 = vmatpush1.msra.mxu0 0.0
        %3063 = vmatprep.subr.mxu0 0.0
        %3064 = vmatpush1.msra.mxu0 0.0
        %3065 = vmatprep.subr.mxu0 0.0
        %3066 = vmatpush1.msra.mxu0 0.0
        %3067 = vmatprep.subr.mxu0 0.0
        %3068 = vmatpush1.msra.mxu0 0.0
        %3069 = vmatprep.subr.mxu0 0.0
        %3070 = vmatpush1.msra.mxu0 0.0
        %3071 = vmatprep.subr.mxu0 0.0
        %3072 = vmatpush1.msra.mxu0 0.0
        %3073 = vmatprep.subr.mxu0 0.0
        %3074 = vmatpush1.msra.mxu0 0.0
        %3075 = vmatprep.subr.mxu0 0.0
        %3076 = vmatpush1.msra.mxu0 0.0
        %3077 = vmatprep.subr.mxu0 0.0
        %3078 = vmatpush1.msra.mxu0 0.0
        %3079 = vmatprep.subr.mxu0 0.0
        %3080 = vmatpush1.msra.mxu0 0.0
        %3081 = vmatprep.subr.mxu0 0.0
        %3082 = vmatpush1.msra.mxu0 0.0
        %3083 = vmatprep.subr.mxu0 0.0
        %3084 = vmatpush1.msra.mxu0 0.0
        %3085 = vmatprep.subr.mxu0 0.0
        %3086 = vmatpush1.msra.mxu0 0.0
        %3087 = vmatprep.subr.mxu0 0.0
        %3088 = vmatpush1.msra.mxu0 0.0
        %3089 = vmatprep.subr.mxu0 0.0
        %3090 = vmatpush1.msra.mxu0 0.0
        %3091 = vmatprep.mubr.f32.mxu0 0.0
        %3092 = vmatmul.mubr.f32.gmra.mrb[0].mxu0 %v2955
        %v3093 = vpop.f32.mrb[0].mxu0
        %v3094 = vadd.f32 %v1089, %v3093
        %v3095 = vpop.f32.mrb[0].mxu0
        %3096 = vdwg.mxu0
        %3097 = vmatprep.subr.mxu0 0.0
        %3098 = vmatpush1.msra.mxu0 %v717
        %3099 = vmatprep.subr.mxu0 0.0
        %3100 = vmatpush1.msra.mxu0 %v718
        %3101 = vmatprep.subr.mxu0 0.0
        %3102 = vmatpush1.msra.mxu0 %v719
        %3103 = vmatprep.subr.mxu0 0.0
        %3104 = vmatpush1.msra.mxu0 %v720
        %3105 = vmatprep.subr.mxu0 0.0
        %3106 = vmatpush1.msra.mxu0 0.0
        %3107 = vmatprep.subr.mxu0 0.0
        %3108 = vmatpush1.msra.mxu0 0.0
        %3109 = vmatprep.subr.mxu0 0.0
        %3110 = vmatpush1.msra.mxu0 0.0
        %3111 = vmatprep.subr.mxu0 0.0
        %3112 = vmatpush1.msra.mxu0 0.0
        %3113 = vmatprep.subr.mxu0 0.0
        %3114 = vmatpush1.msra.mxu0 0.0
        %3115 = vmatprep.subr.mxu0 0.0
        %3116 = vmatpush1.msra.mxu0 0.0
        %3117 = vmatprep.subr.mxu0 0.0
        %3118 = vmatpush1.msra.mxu0 0.0
        %3119 = vmatprep.subr.mxu0 0.0
        %3120 = vmatpush1.msra.mxu0 0.0
        %3121 = vmatprep.subr.mxu0 0.0
        %3122 = vmatpush1.msra.mxu0 0.0
        %3123 = vmatprep.subr.mxu0 0.0
        %3124 = vmatpush1.msra.mxu0 0.0
        %3125 = vmatprep.subr.mxu0 0.0
        %3126 = vmatpush1.msra.mxu0 0.0
        %3127 = vmatprep.subr.mxu0 0.0
        %3128 = vmatpush1.msra.mxu0 0.0
        %3129 = vmatprep.subr.mxu0 0.0
        %3130 = vmatpush1.msra.mxu0 0.0
        %3131 = vmatprep.subr.mxu0 0.0
        %3132 = vmatpush1.msra.mxu0 0.0
        %3133 = vmatprep.subr.mxu0 0.0
        %3134 = vmatpush1.msra.mxu0 0.0
        %3135 = vmatprep.subr.mxu0 0.0
        %3136 = vmatpush1.msra.mxu0 0.0
        %3137 = vmatprep.subr.mxu0 0.0
        %3138 = vmatpush1.msra.mxu0 0.0
        %3139 = vmatprep.subr.mxu0 0.0
        %3140 = vmatpush1.msra.mxu0 0.0
        %3141 = vmatprep.subr.mxu0 0.0
        %3142 = vmatpush1.msra.mxu0 0.0
        %3143 = vmatprep.subr.mxu0 0.0
        %3144 = vmatpush1.msra.mxu0 0.0
        %3145 = vmatprep.subr.mxu0 0.0
        %3146 = vmatpush1.msra.mxu0 0.0
        %3147 = vmatprep.subr.mxu0 0.0
        %3148 = vmatpush1.msra.mxu0 0.0
        %3149 = vmatprep.subr.mxu0 0.0
        %3150 = vmatpush1.msra.mxu0 0.0
        %3151 = vmatprep.subr.mxu0 0.0
        %3152 = vmatpush1.msra.mxu0 0.0
        %3153 = vmatprep.subr.mxu0 0.0
        %3154 = vmatpush1.msra.mxu0 0.0
        %3155 = vmatprep.subr.mxu0 0.0
        %3156 = vmatpush1.msra.mxu0 0.0
        %3157 = vmatprep.subr.mxu0 0.0
        %3158 = vmatpush1.msra.mxu0 0.0
        %3159 = vmatprep.subr.mxu0 0.0
        %3160 = vmatpush1.msra.mxu0 0.0
        %3161 = vmatprep.mubr.f32.mxu0 0.0
        %3162 = vmatmul.mubr.f32.gmra.mrb[0].mxu0 %v2955
        %v3163 = vpop.f32.mrb[0].mxu0
        %v3164 = vadd.f32 %v1093, %v3163
        %v3165 = vpop.f32.mrb[0].mxu0
        %3166 = vdwg.mxu0
        %3167 = vmatprep.subr.mxu0 0.0
        %3168 = vmatpush1.msra.mxu0 %v721
        %3169 = vmatprep.subr.mxu0 0.0
        %3170 = vmatpush1.msra.mxu0 %v722
        %3171 = vmatprep.subr.mxu0 0.0
        %3172 = vmatpush1.msra.mxu0 %v723
        %3173 = vmatprep.subr.mxu0 0.0
        %3174 = vmatpush1.msra.mxu0 %v724
        %3175 = vmatprep.subr.mxu0 0.0
        %3176 = vmatpush1.msra.mxu0 0.0
        %3177 = vmatprep.subr.mxu0 0.0
        %3178 = vmatpush1.msra.mxu0 0.0
        %3179 = vmatprep.subr.mxu0 0.0
        %3180 = vmatpush1.msra.mxu0 0.0
        %3181 = vmatprep.subr.mxu0 0.0
        %3182 = vmatpush1.msra.mxu0 0.0
        %3183 = vmatprep.subr.mxu0 0.0
        %3184 = vmatpush1.msra.mxu0 0.0
        %3185 = vmatprep.subr.mxu0 0.0
        %3186 = vmatpush1.msra.mxu0 0.0
        %3187 = vmatprep.subr.mxu0 0.0
        %3188 = vmatpush1.msra.mxu0 0.0
        %3189 = vmatprep.subr.mxu0 0.0
        %3190 = vmatpush1.msra.mxu0 0.0
        %3191 = vmatprep.subr.mxu0 0.0
        %3192 = vmatpush1.msra.mxu0 0.0
        %3193 = vmatprep.subr.mxu0 0.0
        %3194 = vmatpush1.msra.mxu0 0.0
        %3195 = vmatprep.subr.mxu0 0.0
        %3196 = vmatpush1.msra.mxu0 0.0
        %3197 = vmatprep.subr.mxu0 0.0
        %3198 = vmatpush1.msra.mxu0 0.0
        %3199 = vmatprep.subr.mxu0 0.0
        %3200 = vmatpush1.msra.mxu0 0.0
        %3201 = vmatprep.subr.mxu0 0.0
        %3202 = vmatpush1.msra.mxu0 0.0
        %3203 = vmatprep.subr.mxu0 0.0
        %3204 = vmatpush1.msra.mxu0 0.0
        %3205 = vmatprep.subr.mxu0 0.0
        %3206 = vmatpush1.msra.mxu0 0.0
        %3207 = vmatprep.subr.mxu0 0.0
        %3208 = vmatpush1.msra.mxu0 0.0
        %3209 = vmatprep.subr.mxu0 0.0
        %3210 = vmatpush1.msra.mxu0 0.0
        %3211 = vmatprep.subr.mxu0 0.0
        %3212 = vmatpush1.msra.mxu0 0.0
        %3213 = vmatprep.subr.mxu0 0.0
        %3214 = vmatpush1.msra.mxu0 0.0
        %3215 = vmatprep.subr.mxu0 0.0
        %3216 = vmatpush1.msra.mxu0 0.0
        %3217 = vmatprep.subr.mxu0 0.0
        %3218 = vmatpush1.msra.mxu0 0.0
        %3219 = vmatprep.subr.mxu0 0.0
        %3220 = vmatpush1.msra.mxu0 0.0
        %3221 = vmatprep.subr.mxu0 0.0
        %3222 = vmatpush1.msra.mxu0 0.0
        %3223 = vmatprep.subr.mxu0 0.0
        %3224 = vmatpush1.msra.mxu0 0.0
        %3225 = vmatprep.subr.mxu0 0.0
        %3226 = vmatpush1.msra.mxu0 0.0
        %3227 = vmatprep.subr.mxu0 0.0
        %3228 = vmatpush1.msra.mxu0 0.0
        %3229 = vmatprep.subr.mxu0 0.0
        %3230 = vmatpush1.msra.mxu0 0.0
        %3231 = vmatprep.mubr.f32.mxu0 0.0
        %3232 = vmatmul.mubr.f32.gmra.mrb[0].mxu0 %v2955
        %v3233 = vpop.f32.mrb[0].mxu0
        %v3234 = vadd.f32 %v1097, %v3233
        %v3235 = vpop.f32.mrb[0].mxu0
        %3236 = vdwg.mxu0
        %3237 = vmatprep.subr.mxu0 0.0
        %3238 = vmatpush1.msra.mxu0 %v729
        %3239 = vmatprep.subr.mxu0 0.0
        %3240 = vmatpush1.msra.mxu0 %v730
        %3241 = vmatprep.subr.mxu0 0.0
        %3242 = vmatpush1.msra.mxu0 %v731
        %3243 = vmatprep.subr.mxu0 0.0
        %3244 = vmatpush1.msra.mxu0 %v732
        %3245 = vmatprep.subr.mxu0 0.0
        %3246 = vmatpush1.msra.mxu0 0.0
        %3247 = vmatprep.subr.mxu0 0.0
        %3248 = vmatpush1.msra.mxu0 0.0
        %3249 = vmatprep.subr.mxu0 0.0
        %3250 = vmatpush1.msra.mxu0 0.0
        %3251 = vmatprep.subr.mxu0 0.0
        %3252 = vmatpush1.msra.mxu0 0.0
        %3253 = vmatprep.subr.mxu0 0.0
        %3254 = vmatpush1.msra.mxu0 0.0
        %3255 = vmatprep.subr.mxu0 0.0
        %3256 = vmatpush1.msra.mxu0 0.0
        %3257 = vmatprep.subr.mxu0 0.0
        %3258 = vmatpush1.msra.mxu0 0.0
        %3259 = vmatprep.subr.mxu0 0.0
        %3260 = vmatpush1.msra.mxu0 0.0
        %3261 = vmatprep.subr.mxu0 0.0
        %3262 = vmatpush1.msra.mxu0 0.0
        %3263 = vmatprep.subr.mxu0 0.0
        %3264 = vmatpush1.msra.mxu0 0.0
        %3265 = vmatprep.subr.mxu0 0.0
        %3266 = vmatpush1.msra.mxu0 0.0
        %3267 = vmatprep.subr.mxu0 0.0
        %3268 = vmatpush1.msra.mxu0 0.0
        %3269 = vmatprep.subr.mxu0 0.0
        %3270 = vmatpush1.msra.mxu0 0.0
        %3271 = vmatprep.subr.mxu0 0.0
        %3272 = vmatpush1.msra.mxu0 0.0
        %3273 = vmatprep.subr.mxu0 0.0
        %3274 = vmatpush1.msra.mxu0 0.0
        %3275 = vmatprep.subr.mxu0 0.0
        %3276 = vmatpush1.msra.mxu0 0.0
        %3277 = vmatprep.subr.mxu0 0.0
        %3278 = vmatpush1.msra.mxu0 0.0
        %3279 = vmatprep.subr.mxu0 0.0
        %3280 = vmatpush1.msra.mxu0 0.0
        %3281 = vmatprep.subr.mxu0 0.0
        %3282 = vmatpush1.msra.mxu0 0.0
        %3283 = vmatprep.subr.mxu0 0.0
        %3284 = vmatpush1.msra.mxu0 0.0
        %3285 = vmatprep.subr.mxu0 0.0
        %3286 = vmatpush1.msra.mxu0 0.0
        %3287 = vmatprep.subr.mxu0 0.0
        %3288 = vmatpush1.msra.mxu0 0.0
        %3289 = vmatprep.subr.mxu0 0.0
        %3290 = vmatpush1.msra.mxu0 0.0
        %3291 = vmatprep.subr.mxu0 0.0
        %3292 = vmatpush1.msra.mxu0 0.0
        %3293 = vmatprep.subr.mxu0 0.0
        %3294 = vmatpush1.msra.mxu0 0.0
        %3295 = vmatprep.subr.mxu0 0.0
        %3296 = vmatpush1.msra.mxu0 0.0
        %3297 = vmatprep.subr.mxu0 0.0
        %3298 = vmatpush1.msra.mxu0 0.0
        %3299 = vmatprep.subr.mxu0 0.0
        %3300 = vmatpush1.msra.mxu0 0.0
        %3301 = vmatprep.mubr.f32.mxu0 0.0
        %3302 = vmatmul.mubr.f32.gmra.mrb[0].mxu0 %v2955
        %v3303 = vpop.f32.mrb[0].mxu0
        %v3304 = vadd.f32 %v1389, %v3303
        %v3305 = vpop.f32.mrb[0].mxu0
        %3306 = vdwg.mxu0
        %3307 = vmatprep.subr.mxu0 0.0
        %3308 = vmatpush1.msra.mxu0 %v733
        %3309 = vmatprep.subr.mxu0 0.0
        %3310 = vmatpush1.msra.mxu0 %v734
        %3311 = vmatprep.subr.mxu0 0.0
        %3312 = vmatpush1.msra.mxu0 %v735
        %3313 = vmatprep.subr.mxu0 0.0
        %3314 = vmatpush1.msra.mxu0 %v736
        %3315 = vmatprep.subr.mxu0 0.0
        %3316 = vmatpush1.msra.mxu0 0.0
        %3317 = vmatprep.subr.mxu0 0.0
        %3318 = vmatpush1.msra.mxu0 0.0
        %3319 = vmatprep.subr.mxu0 0.0
        %3320 = vmatpush1.msra.mxu0 0.0
        %3321 = vmatprep.subr.mxu0 0.0
        %3322 = vmatpush1.msra.mxu0 0.0
        %3323 = vmatprep.subr.mxu0 0.0
        %3324 = vmatpush1.msra.mxu0 0.0
        %3325 = vmatprep.subr.mxu0 0.0
        %3326 = vmatpush1.msra.mxu0 0.0
        %3327 = vmatprep.subr.mxu0 0.0
        %3328 = vmatpush1.msra.mxu0 0.0
        %3329 = vmatprep.subr.mxu0 0.0
        %3330 = vmatpush1.msra.mxu0 0.0
        %3331 = vmatprep.subr.mxu0 0.0
        %3332 = vmatpush1.msra.mxu0 0.0
        %3333 = vmatprep.subr.mxu0 0.0
        %3334 = vmatpush1.msra.mxu0 0.0
        %3335 = vmatprep.subr.mxu0 0.0
        %3336 = vmatpush1.msra.mxu0 0.0
        %3337 = vmatprep.subr.mxu0 0.0
        %3338 = vmatpush1.msra.mxu0 0.0
        %3339 = vmatprep.subr.mxu0 0.0
        %3340 = vmatpush1.msra.mxu0 0.0
        %3341 = vmatprep.subr.mxu0 0.0
        %3342 = vmatpush1.msra.mxu0 0.0
        %3343 = vmatprep.subr.mxu0 0.0
        %3344 = vmatpush1.msra.mxu0 0.0
        %3345 = vmatprep.subr.mxu0 0.0
        %3346 = vmatpush1.msra.mxu0 0.0
        %3347 = vmatprep.subr.mxu0 0.0
        %3348 = vmatpush1.msra.mxu0 0.0
        %3349 = vmatprep.subr.mxu0 0.0
        %3350 = vmatpush1.msra.mxu0 0.0
        %3351 = vmatprep.subr.mxu0 0.0
        %3352 = vmatpush1.msra.mxu0 0.0
        %3353 = vmatprep.subr.mxu0 0.0
        %3354 = vmatpush1.msra.mxu0 0.0
        %3355 = vmatprep.subr.mxu0 0.0
        %3356 = vmatpush1.msra.mxu0 0.0
        %3357 = vmatprep.subr.mxu0 0.0
        %3358 = vmatpush1.msra.mxu0 0.0
        %3359 = vmatprep.subr.mxu0 0.0
        %3360 = vmatpush1.msra.mxu0 0.0
        %3361 = vmatprep.subr.mxu0 0.0
        %3362 = vmatpush1.msra.mxu0 0.0
        %3363 = vmatprep.subr.mxu0 0.0
        %3364 = vmatpush1.msra.mxu0 0.0
        %3365 = vmatprep.subr.mxu0 0.0
        %3366 = vmatpush1.msra.mxu0 0.0
        %3367 = vmatprep.subr.mxu0 0.0
        %3368 = vmatpush1.msra.mxu0 0.0
        %3369 = vmatprep.subr.mxu0 0.0
        %3370 = vmatpush1.msra.mxu0 0.0
        %3371 = vmatprep.mubr.f32.mxu0 0.0
        %3372 = vmatmul.mubr.f32.gmra.mrb[0].mxu0 %v2955
        %v3373 = vpop.f32.mrb[0].mxu0
        %v3374 = vadd.f32 %v1393, %v3373
        %v3375 = vpop.f32.mrb[0].mxu0
        %3376 = vdwg.mxu0
        %3377 = vmatprep.subr.mxu0 0.0
        %3378 = vmatpush1.msra.mxu0 %v737
        %3379 = vmatprep.subr.mxu0 0.0
        %3380 = vmatpush1.msra.mxu0 %v738
        %3381 = vmatprep.subr.mxu0 0.0
        %3382 = vmatpush1.msra.mxu0 %v739
        %3383 = vmatprep.subr.mxu0 0.0
        %3384 = vmatpush1.msra.mxu0 %v740
        %3385 = vmatprep.subr.mxu0 0.0
        %3386 = vmatpush1.msra.mxu0 0.0
        %3387 = vmatprep.subr.mxu0 0.0
        %3388 = vmatpush1.msra.mxu0 0.0
        %3389 = vmatprep.subr.mxu0 0.0
        %3390 = vmatpush1.msra.mxu0 0.0
        %3391 = vmatprep.subr.mxu0 0.0
        %3392 = vmatpush1.msra.mxu0 0.0
        %3393 = vmatprep.subr.mxu0 0.0
        %3394 = vmatpush1.msra.mxu0 0.0
        %3395 = vmatprep.subr.mxu0 0.0
        %3396 = vmatpush1.msra.mxu0 0.0
        %3397 = vmatprep.subr.mxu0 0.0
        %3398 = vmatpush1.msra.mxu0 0.0
        %3399 = vmatprep.subr.mxu0 0.0
        %3400 = vmatpush1.msra.mxu0 0.0
        %3401 = vmatprep.subr.mxu0 0.0
        %3402 = vmatpush1.msra.mxu0 0.0
        %3403 = vmatprep.subr.mxu0 0.0
        %3404 = vmatpush1.msra.mxu0 0.0
        %3405 = vmatprep.subr.mxu0 0.0
        %3406 = vmatpush1.msra.mxu0 0.0
        %3407 = vmatprep.subr.mxu0 0.0
        %3408 = vmatpush1.msra.mxu0 0.0
        %3409 = vmatprep.subr.mxu0 0.0
        %3410 = vmatpush1.msra.mxu0 0.0
        %3411 = vmatprep.subr.mxu0 0.0
        %3412 = vmatpush1.msra.mxu0 0.0
        %3413 = vmatprep.subr.mxu0 0.0
        %3414 = vmatpush1.msra.mxu0 0.0
        %3415 = vmatprep.subr.mxu0 0.0
        %3416 = vmatpush1.msra.mxu0 0.0
        %3417 = vmatprep.subr.mxu0 0.0
        %3418 = vmatpush1.msra.mxu0 0.0
        %3419 = vmatprep.subr.mxu0 0.0
        %3420 = vmatpush1.msra.mxu0 0.0
        %3421 = vmatprep.subr.mxu0 0.0
        %3422 = vmatpush1.msra.mxu0 0.0
        %3423 = vmatprep.subr.mxu0 0.0
        %3424 = vmatpush1.msra.mxu0 0.0
        %3425 = vmatprep.subr.mxu0 0.0
        %3426 = vmatpush1.msra.mxu0 0.0
        %3427 = vmatprep.subr.mxu0 0.0
        %3428 = vmatpush1.msra.mxu0 0.0
        %3429 = vmatprep.subr.mxu0 0.0
        %3430 = vmatpush1.msra.mxu0 0.0
        %3431 = vmatprep.subr.mxu0 0.0
        %3432 = vmatpush1.msra.mxu0 0.0
        %3433 = vmatprep.subr.mxu0 0.0
        %3434 = vmatpush1.msra.mxu0 0.0
        %3435 = vmatprep.subr.mxu0 0.0
        %3436 = vmatpush1.msra.mxu0 0.0
        %3437 = vmatprep.subr.mxu0 0.0
        %3438 = vmatpush1.msra.mxu0 0.0
        %3439 = vmatprep.subr.mxu0 0.0
        %3440 = vmatpush1.msra.mxu0 0.0
        %3441 = vmatprep.mubr.f32.mxu0 0.0
        %3442 = vmatmul.mubr.f32.gmra.mrb[0].mxu0 %v2955
        %v3443 = vpop.f32.mrb[0].mxu0
        %v3444 = vadd.f32 %v1397, %v3443
        %v3445 = vpop.f32.mrb[0].mxu0
        %3446 = vdwg.mxu0
        %3447 = vmatprep.subr.mxu0 0.0
        %3448 = vmatpush1.msra.mxu0 %v741
        %3449 = vmatprep.subr.mxu0 0.0
        %3450 = vmatpush1.msra.mxu0 %v742
        %3451 = vmatprep.subr.mxu0 0.0
        %3452 = vmatpush1.msra.mxu0 %v743
        %3453 = vmatprep.subr.mxu0 0.0
        %3454 = vmatpush1.msra.mxu0 %v744
        %3455 = vmatprep.subr.mxu0 0.0
        %3456 = vmatpush1.msra.mxu0 0.0
        %3457 = vmatprep.subr.mxu0 0.0
        %3458 = vmatpush1.msra.mxu0 0.0
        %3459 = vmatprep.subr.mxu0 0.0
        %3460 = vmatpush1.msra.mxu0 0.0
        %3461 = vmatprep.subr.mxu0 0.0
        %3462 = vmatpush1.msra.mxu0 0.0
        %3463 = vmatprep.subr.mxu0 0.0
        %3464 = vmatpush1.msra.mxu0 0.0
        %3465 = vmatprep.subr.mxu0 0.0
        %3466 = vmatpush1.msra.mxu0 0.0
        %3467 = vmatprep.subr.mxu0 0.0
        %3468 = vmatpush1.msra.mxu0 0.0
        %3469 = vmatprep.subr.mxu0 0.0
        %3470 = vmatpush1.msra.mxu0 0.0
        %3471 = vmatprep.subr.mxu0 0.0
        %3472 = vmatpush1.msra.mxu0 0.0
        %3473 = vmatprep.subr.mxu0 0.0
        %3474 = vmatpush1.msra.mxu0 0.0
        %3475 = vmatprep.subr.mxu0 0.0
        %3476 = vmatpush1.msra.mxu0 0.0
        %3477 = vmatprep.subr.mxu0 0.0
        %3478 = vmatpush1.msra.mxu0 0.0
        %3479 = vmatprep.subr.mxu0 0.0
        %3480 = vmatpush1.msra.mxu0 0.0
        %3481 = vmatprep.subr.mxu0 0.0
        %3482 = vmatpush1.msra.mxu0 0.0
        %3483 = vmatprep.subr.mxu0 0.0
        %3484 = vmatpush1.msra.mxu0 0.0
        %3485 = vmatprep.subr.mxu0 0.0
        %3486 = vmatpush1.msra.mxu0 0.0
        %3487 = vmatprep.subr.mxu0 0.0
        %3488 = vmatpush1.msra.mxu0 0.0
        %3489 = vmatprep.subr.mxu0 0.0
        %3490 = vmatpush1.msra.mxu0 0.0
        %3491 = vmatprep.subr.mxu0 0.0
        %3492 = vmatpush1.msra.mxu0 0.0
        %3493 = vmatprep.subr.mxu0 0.0
        %3494 = vmatpush1.msra.mxu0 0.0
        %3495 = vmatprep.subr.mxu0 0.0
        %3496 = vmatpush1.msra.mxu0 0.0
        %3497 = vmatprep.subr.mxu0 0.0
        %3498 = vmatpush1.msra.mxu0 0.0
        %3499 = vmatprep.subr.mxu0 0.0
        %3500 = vmatpush1.msra.mxu0 0.0
        %3501 = vmatprep.subr.mxu0 0.0
        %3502 = vmatpush1.msra.mxu0 0.0
        %3503 = vmatprep.subr.mxu0 0.0
        %3504 = vmatpush1.msra.mxu0 0.0
        %3505 = vmatprep.subr.mxu0 0.0
        %3506 = vmatpush1.msra.mxu0 0.0
        %3507 = vmatprep.subr.mxu0 0.0
        %3508 = vmatpush1.msra.mxu0 0.0
        %3509 = vmatprep.subr.mxu0 0.0
        %3510 = vmatpush1.msra.mxu0 0.0
        %3511 = vmatprep.mubr.f32.mxu0 0.0
        %3512 = vmatmul.mubr.f32.gmra.mrb[0].mxu0 %v2955
        %v3513 = vpop.f32.mrb[0].mxu0
        %v3514 = vadd.f32 %v1401, %v3513
        %v3515 = vpop.f32.mrb[0].mxu0
        %3516 = vdwg.mxu0
        %v3518 = vsel %vm1686, %v2741, 0
        %v3521 = vsel %vm1686, %v3024, 0
        %3523 = vmatprep.subr.mxu0 0.0
        %3524 = vmatpush1.xpose.msra.mxu0 %v3521
        %3525 = vmatprep.subr.mxu0 0.0
        %3526 = vmatpush1.xpose.msra.mxu0 0.0
        %3527 = vmatprep.subr.mxu0 0.0
        %3528 = vmatpush1.xpose.msra.mxu0 0.0
        %3529 = vmatprep.subr.mxu0 0.0
        %3530 = vmatpush1.xpose.msra.mxu0 0.0
        %3531 = vmatprep.subr.mxu0 0.0
        %3532 = vmatpush1.xpose.msra.mxu0 0.0
        %3533 = vmatprep.subr.mxu0 0.0
        %3534 = vmatpush1.xpose.msra.mxu0 0.0
        %3535 = vmatprep.subr.mxu0 0.0
        %3536 = vmatpush1.xpose.msra.mxu0 0.0
        %3537 = vmatprep.subr.mxu0 0.0
        %3538 = vmatpush1.xpose.msra.mxu0 0.0
        %3539 = vmatprep.subr.mxu0 0.0
        %3540 = vmatpush1.xpose.msra.mxu0 0.0
        %3541 = vmatprep.subr.mxu0 0.0
        %3542 = vmatpush1.xpose.msra.mxu0 0.0
        %3543 = vmatprep.subr.mxu0 0.0
        %3544 = vmatpush1.xpose.msra.mxu0 0.0
        %3545 = vmatprep.subr.mxu0 0.0
        %3546 = vmatpush1.xpose.msra.mxu0 0.0
        %3547 = vmatprep.subr.mxu0 0.0
        %3548 = vmatpush1.xpose.msra.mxu0 0.0
        %3549 = vmatprep.subr.mxu0 0.0
        %3550 = vmatpush1.xpose.msra.mxu0 0.0
        %3551 = vmatprep.subr.mxu0 0.0
        %3552 = vmatpush1.xpose.msra.mxu0 0.0
        %3553 = vmatprep.subr.mxu0 0.0
        %3554 = vmatpush1.xpose.msra.mxu0 0.0
        %3555 = vmatprep.subr.mxu0 0.0
        %3556 = vmatpush1.xpose.msra.mxu0 0.0
        %3557 = vmatprep.subr.mxu0 0.0
        %3558 = vmatpush1.xpose.msra.mxu0 0.0
        %3559 = vmatprep.subr.mxu0 0.0
        %3560 = vmatpush1.xpose.msra.mxu0 0.0
        %3561 = vmatprep.subr.mxu0 0.0
        %3562 = vmatpush1.xpose.msra.mxu0 0.0
        %3563 = vmatprep.subr.mxu0 0.0
        %3564 = vmatpush1.xpose.msra.mxu0 0.0
        %3565 = vmatprep.subr.mxu0 0.0
        %3566 = vmatpush1.xpose.msra.mxu0 0.0
        %3567 = vmatprep.subr.mxu0 0.0
        %3568 = vmatpush1.xpose.msra.mxu0 0.0
        %3569 = vmatprep.subr.mxu0 0.0
        %3570 = vmatpush1.xpose.msra.mxu0 0.0
        %3571 = vmatprep.subr.mxu0 0.0
        %3572 = vmatpush1.xpose.msra.mxu0 0.0
        %3573 = vmatprep.subr.mxu0 0.0
        %3574 = vmatpush1.xpose.msra.mxu0 0.0
        %3575 = vmatprep.subr.mxu0 0.0
        %3576 = vmatpush1.xpose.msra.mxu0 0.0
        %3577 = vmatprep.subr.mxu0 0.0
        %3578 = vmatpush1.xpose.msra.mxu0 0.0
        %3579 = vmatprep.subr.mxu0 0.0
        %3580 = vmatpush1.xpose.msra.mxu0 0.0
        %3581 = vmatprep.subr.mxu0 0.0
        %3582 = vmatpush1.xpose.msra.mxu0 0.0
        %3583 = vmatprep.subr.mxu0 0.0
        %3584 = vmatpush1.xpose.msra.mxu0 0.0
        %3585 = vmatprep.subr.mxu0 0.0
        %3586 = vmatpush1.xpose.msra.mxu0 0.0
        %3587 = vmatprep.mubr.f32.mxu0 0.0
        %3588 = vmatmul.mubr.f32.gmra.mrb[0].mxu0 %v3518
        %v3589 = vpop.f32.mrb[0].mxu0
        %v3590 = vadd.f32 0.0, %v3589
        %v3591 = vpop.f32.mrb[0].mxu0
        %3592 = vdwg.mxu0
        %v3594 = vsel %vm1686, %v2811, 0
        %v3597 = vsel %vm1686, %v3094, 0
        %3599 = vmatprep.subr.mxu0 0.0
        %3600 = vmatpush1.xpose.msra.mxu0 %v3597
        %3601 = vmatprep.subr.mxu0 0.0
        %3602 = vmatpush1.xpose.msra.mxu0 0.0
        %3603 = vmatprep.subr.mxu0 0.0
        %3604 = vmatpush1.xpose.msra.mxu0 0.0
        %3605 = vmatprep.subr.mxu0 0.0
        %3606 = vmatpush1.xpose.msra.mxu0 0.0
        %3607 = vmatprep.subr.mxu0 0.0
        %3608 = vmatpush1.xpose.msra.mxu0 0.0
        %3609 = vmatprep.subr.mxu0 0.0
        %3610 = vmatpush1.xpose.msra.mxu0 0.0
        %3611 = vmatprep.subr.mxu0 0.0
        %3612 = vmatpush1.xpose.msra.mxu0 0.0
        %3613 = vmatprep.subr.mxu0 0.0
        %3614 = vmatpush1.xpose.msra.mxu0 0.0
        %3615 = vmatprep.subr.mxu0 0.0
        %3616 = vmatpush1.xpose.msra.mxu0 0.0
        %3617 = vmatprep.subr.mxu0 0.0
        %3618 = vmatpush1.xpose.msra.mxu0 0.0
        %3619 = vmatprep.subr.mxu0 0.0
        %3620 = vmatpush1.xpose.msra.mxu0 0.0
        %3621 = vmatprep.subr.mxu0 0.0
        %3622 = vmatpush1.xpose.msra.mxu0 0.0
        %3623 = vmatprep.subr.mxu0 0.0
        %3624 = vmatpush1.xpose.msra.mxu0 0.0
        %3625 = vmatprep.subr.mxu0 0.0
        %3626 = vmatpush1.xpose.msra.mxu0 0.0
        %3627 = vmatprep.subr.mxu0 0.0
        %3628 = vmatpush1.xpose.msra.mxu0 0.0
        %3629 = vmatprep.subr.mxu0 0.0
        %3630 = vmatpush1.xpose.msra.mxu0 0.0
        %3631 = vmatprep.subr.mxu0 0.0
        %3632 = vmatpush1.xpose.msra.mxu0 0.0
        %3633 = vmatprep.subr.mxu0 0.0
        %3634 = vmatpush1.xpose.msra.mxu0 0.0
        %3635 = vmatprep.subr.mxu0 0.0
        %3636 = vmatpush1.xpose.msra.mxu0 0.0
        %3637 = vmatprep.subr.mxu0 0.0
        %3638 = vmatpush1.xpose.msra.mxu0 0.0
        %3639 = vmatprep.subr.mxu0 0.0
        %3640 = vmatpush1.xpose.msra.mxu0 0.0
        %3641 = vmatprep.subr.mxu0 0.0
        %3642 = vmatpush1.xpose.msra.mxu0 0.0
        %3643 = vmatprep.subr.mxu0 0.0
        %3644 = vmatpush1.xpose.msra.mxu0 0.0
        %3645 = vmatprep.subr.mxu0 0.0
        %3646 = vmatpush1.xpose.msra.mxu0 0.0
        %3647 = vmatprep.subr.mxu0 0.0
        %3648 = vmatpush1.xpose.msra.mxu0 0.0
        %3649 = vmatprep.subr.mxu0 0.0
        %3650 = vmatpush1.xpose.msra.mxu0 0.0
        %3651 = vmatprep.subr.mxu0 0.0
        %3652 = vmatpush1.xpose.msra.mxu0 0.0
        %3653 = vmatprep.subr.mxu0 0.0
        %3654 = vmatpush1.xpose.msra.mxu0 0.0
        %3655 = vmatprep.subr.mxu0 0.0
        %3656 = vmatpush1.xpose.msra.mxu0 0.0
        %3657 = vmatprep.subr.mxu0 0.0
        %3658 = vmatpush1.xpose.msra.mxu0 0.0
        %3659 = vmatprep.subr.mxu0 0.0
        %3660 = vmatpush1.xpose.msra.mxu0 0.0
        %3661 = vmatprep.subr.mxu0 0.0
        %3662 = vmatpush1.xpose.msra.mxu0 0.0
        %3663 = vmatprep.mubr.f32.mxu0 0.0
        %3664 = vmatmul.mubr.f32.gmra.mrb[0].mxu0 %v3594
        %v3665 = vpop.f32.mrb[0].mxu0
        %v3666 = vadd.f32 0.0, %v3665
        %v3667 = vpop.f32.mrb[0].mxu0
        %3668 = vdwg.mxu0
        %v3670 = vsel %vm1686, %v2881, 0
        %v3673 = vsel %vm1686, %v3164, 0
        %3675 = vmatprep.subr.mxu0 0.0
        %3676 = vmatpush1.xpose.msra.mxu0 %v3673
        %3677 = vmatprep.subr.mxu0 0.0
        %3678 = vmatpush1.xpose.msra.mxu0 0.0
        %3679 = vmatprep.subr.mxu0 0.0
        %3680 = vmatpush1.xpose.msra.mxu0 0.0
        %3681 = vmatprep.subr.mxu0 0.0
        %3682 = vmatpush1.xpose.msra.mxu0 0.0
        %3683 = vmatprep.subr.mxu0 0.0
        %3684 = vmatpush1.xpose.msra.mxu0 0.0
        %3685 = vmatprep.subr.mxu0 0.0
        %3686 = vmatpush1.xpose.msra.mxu0 0.0
        %3687 = vmatprep.subr.mxu0 0.0
        %3688 = vmatpush1.xpose.msra.mxu0 0.0
        %3689 = vmatprep.subr.mxu0 0.0
        %3690 = vmatpush1.xpose.msra.mxu0 0.0
        %3691 = vmatprep.subr.mxu0 0.0
        %3692 = vmatpush1.xpose.msra.mxu0 0.0
        %3693 = vmatprep.subr.mxu0 0.0
        %3694 = vmatpush1.xpose.msra.mxu0 0.0
        %3695 = vmatprep.subr.mxu0 0.0
        %3696 = vmatpush1.xpose.msra.mxu0 0.0
        %3697 = vmatprep.subr.mxu0 0.0
        %3698 = vmatpush1.xpose.msra.mxu0 0.0
        %3699 = vmatprep.subr.mxu0 0.0
        %3700 = vmatpush1.xpose.msra.mxu0 0.0
        %3701 = vmatprep.subr.mxu0 0.0
        %3702 = vmatpush1.xpose.msra.mxu0 0.0
        %3703 = vmatprep.subr.mxu0 0.0
        %3704 = vmatpush1.xpose.msra.mxu0 0.0
        %3705 = vmatprep.subr.mxu0 0.0
        %3706 = vmatpush1.xpose.msra.mxu0 0.0
        %3707 = vmatprep.subr.mxu0 0.0
        %3708 = vmatpush1.xpose.msra.mxu0 0.0
        %3709 = vmatprep.subr.mxu0 0.0
        %3710 = vmatpush1.xpose.msra.mxu0 0.0
        %3711 = vmatprep.subr.mxu0 0.0
        %3712 = vmatpush1.xpose.msra.mxu0 0.0
        %3713 = vmatprep.subr.mxu0 0.0
        %3714 = vmatpush1.xpose.msra.mxu0 0.0
        %3715 = vmatprep.subr.mxu0 0.0
        %3716 = vmatpush1.xpose.msra.mxu0 0.0
        %3717 = vmatprep.subr.mxu0 0.0
        %3718 = vmatpush1.xpose.msra.mxu0 0.0
        %3719 = vmatprep.subr.mxu0 0.0
        %3720 = vmatpush1.xpose.msra.mxu0 0.0
        %3721 = vmatprep.subr.mxu0 0.0
        %3722 = vmatpush1.xpose.msra.mxu0 0.0
        %3723 = vmatprep.subr.mxu0 0.0
        %3724 = vmatpush1.xpose.msra.mxu0 0.0
        %3725 = vmatprep.subr.mxu0 0.0
        %3726 = vmatpush1.xpose.msra.mxu0 0.0
        %3727 = vmatprep.subr.mxu0 0.0
        %3728 = vmatpush1.xpose.msra.mxu0 0.0
        %3729 = vmatprep.subr.mxu0 0.0
        %3730 = vmatpush1.xpose.msra.mxu0 0.0
        %3731 = vmatprep.subr.mxu0 0.0
        %3732 = vmatpush1.xpose.msra.mxu0 0.0
        %3733 = vmatprep.subr.mxu0 0.0
        %3734 = vmatpush1.xpose.msra.mxu0 0.0
        %3735 = vmatprep.subr.mxu0 0.0
        %3736 = vmatpush1.xpose.msra.mxu0 0.0
        %3737 = vmatprep.subr.mxu0 0.0
        %3738 = vmatpush1.xpose.msra.mxu0 0.0
        %3739 = vmatprep.mubr.f32.mxu0 0.0
        %3740 = vmatmul.mubr.f32.gmra.mrb[0].mxu0 %v3670
        %v3741 = vpop.f32.mrb[0].mxu0
        %v3742 = vadd.f32 0.0, %v3741
        %v3743 = vpop.f32.mrb[0].mxu0
        %3744 = vdwg.mxu0
        %v3746 = vsel %vm1686, %v2951, 0
        %v3749 = vsel %vm1686, %v3234, 0
        %3751 = vmatprep.subr.mxu0 0.0
        %3752 = vmatpush1.xpose.msra.mxu0 %v3749
        %3753 = vmatprep.subr.mxu0 0.0
        %3754 = vmatpush1.xpose.msra.mxu0 0.0
        %3755 = vmatprep.subr.mxu0 0.0
        %3756 = vmatpush1.xpose.msra.mxu0 0.0
        %3757 = vmatprep.subr.mxu0 0.0
        %3758 = vmatpush1.xpose.msra.mxu0 0.0
        %3759 = vmatprep.subr.mxu0 0.0
        %3760 = vmatpush1.xpose.msra.mxu0 0.0
        %3761 = vmatprep.subr.mxu0 0.0
        %3762 = vmatpush1.xpose.msra.mxu0 0.0
        %3763 = vmatprep.subr.mxu0 0.0
        %3764 = vmatpush1.xpose.msra.mxu0 0.0
        %3765 = vmatprep.subr.mxu0 0.0
        %3766 = vmatpush1.xpose.msra.mxu0 0.0
        %3767 = vmatprep.subr.mxu0 0.0
        %3768 = vmatpush1.xpose.msra.mxu0 0.0
        %3769 = vmatprep.subr.mxu0 0.0
        %3770 = vmatpush1.xpose.msra.mxu0 0.0
        %3771 = vmatprep.subr.mxu0 0.0
        %3772 = vmatpush1.xpose.msra.mxu0 0.0
        %3773 = vmatprep.subr.mxu0 0.0
        %3774 = vmatpush1.xpose.msra.mxu0 0.0
        %3775 = vmatprep.subr.mxu0 0.0
        %3776 = vmatpush1.xpose.msra.mxu0 0.0
        %3777 = vmatprep.subr.mxu0 0.0
        %3778 = vmatpush1.xpose.msra.mxu0 0.0
        %3779 = vmatprep.subr.mxu0 0.0
        %3780 = vmatpush1.xpose.msra.mxu0 0.0
        %3781 = vmatprep.subr.mxu0 0.0
        %3782 = vmatpush1.xpose.msra.mxu0 0.0
        %3783 = vmatprep.subr.mxu0 0.0
        %3784 = vmatpush1.xpose.msra.mxu0 0.0
        %3785 = vmatprep.subr.mxu0 0.0
        %3786 = vmatpush1.xpose.msra.mxu0 0.0
        %3787 = vmatprep.subr.mxu0 0.0
        %3788 = vmatpush1.xpose.msra.mxu0 0.0
        %3789 = vmatprep.subr.mxu0 0.0
        %3790 = vmatpush1.xpose.msra.mxu0 0.0
        %3791 = vmatprep.subr.mxu0 0.0
        %3792 = vmatpush1.xpose.msra.mxu0 0.0
        %3793 = vmatprep.subr.mxu0 0.0
        %3794 = vmatpush1.xpose.msra.mxu0 0.0
        %3795 = vmatprep.subr.mxu0 0.0
        %3796 = vmatpush1.xpose.msra.mxu0 0.0
        %3797 = vmatprep.subr.mxu0 0.0
        %3798 = vmatpush1.xpose.msra.mxu0 0.0
        %3799 = vmatprep.subr.mxu0 0.0
        %3800 = vmatpush1.xpose.msra.mxu0 0.0
        %3801 = vmatprep.subr.mxu0 0.0
        %3802 = vmatpush1.xpose.msra.mxu0 0.0
        %3803 = vmatprep.subr.mxu0 0.0
        %3804 = vmatpush1.xpose.msra.mxu0 0.0
        %3805 = vmatprep.subr.mxu0 0.0
        %3806 = vmatpush1.xpose.msra.mxu0 0.0
        %3807 = vmatprep.subr.mxu0 0.0
        %3808 = vmatpush1.xpose.msra.mxu0 0.0
        %3809 = vmatprep.subr.mxu0 0.0
        %3810 = vmatpush1.xpose.msra.mxu0 0.0
        %3811 = vmatprep.subr.mxu0 0.0
        %3812 = vmatpush1.xpose.msra.mxu0 0.0
        %3813 = vmatprep.subr.mxu0 0.0
        %3814 = vmatpush1.xpose.msra.mxu0 0.0
        %3815 = vmatprep.mubr.f32.mxu0 0.0
        %3816 = vmatmul.mubr.f32.gmra.mrb[0].mxu0 %v3746
        %v3817 = vpop.f32.mrb[0].mxu0
        %v3818 = vadd.f32 0.0, %v3817
        %v3819 = vpop.f32.mrb[0].mxu0
        %3820 = vdwg.mxu0
        %v3821 = vsel %vm1992, -1e+09, %v3590
        %v3822 = vsel %vm1992, -1e+09, %v3666
        %v3823 = vsel %vm1992, -1e+09, %v3742
        %v3824 = vsel %vm1992, -1e+09, %v3818
        %v3825 = vsel %vm1686, %v3821, -inf
        %3826 = vmax.xlane.f32.xlu0 %v3825
        %v3827 = vpop.xlane.xlu0 %3826
        %v3828 = vsel %vm1686, %v3822, -inf
        %3829 = vmax.xlane.f32.xlu0 %v3828
        %v3830 = vpop.xlane.xlu0 %3829
        %v3831 = vsel %vm1686, %v3823, -inf
        %3832 = vmax.xlane.f32.xlu0 %v3831
        %v3833 = vpop.xlane.xlu0 %3832
        %v3834 = vsel %vm1686, %v3824, -inf
        %3835 = vmax.xlane.f32.xlu0 %v3834
        %v3836 = vpop.xlane.xlu0 %3835
        %v3837 = vsub.f32 %v3821, %v3827
        %v3838 = vsub.f32 %v3822, %v3830
        %v3839 = vsub.f32 %v3823, %v3833
        %v3840 = vsub.f32 %v3824, %v3836
        %v3841 = vmul.f32 %v3837, 1.442695
        %v3842 = vpow.pop %v3841
        %v3843 = vmul.f32 %v3838, 1.442695
        %v3844 = vpow.pop %v3843
        %v3845 = vmul.f32 %v3839, 1.442695
        %v3846 = vpow.pop %v3845
        %v3847 = vmul.f32 %v3840, 1.442695
        %v3848 = vpow.pop %v3847
        %v3849 = vsel %vm1686, %v3842, 0.0
        %3850 = vadd.xlane.f32.xlu0 %v3849
        %v3851 = vpop.xlane.xlu0 %3850
        %v3852 = vsel %vm1686, %v3844, 0.0
        %3853 = vadd.xlane.f32.xlu0 %v3852
        %v3854 = vpop.xlane.xlu0 %3853
        %v3855 = vsel %vm1686, %v3846, 0.0
        %3856 = vadd.xlane.f32.xlu0 %v3855
        %v3857 = vpop.xlane.xlu0 %3856
        %v3858 = vsel %vm1686, %v3848, 0.0
        %3859 = vadd.xlane.f32.xlu0 %v3858
        %v3860 = vpop.xlane.xlu0 %3859
        %v3861 = vrcp.pop %v3851
        %v3862 = vrcp.pop %v3854
        %v3863 = vrcp.pop %v3857
        %v3864 = vrcp.pop %v3860
        %v3865 = vmul.f32 %v3842, %v3861
        %v3866 = vmul.f32 %v3844, %v3862
        %v3867 = vmul.f32 %v3846, %v3863
        %v3868 = vmul.f32 %v3848, %v3864
        %v3870 = vsel %vm1686, %v3865, 0
        %3872 = vmatprep.subr.mxu0 0.0
        %3873 = vmatpush1.msra.mxu0 %v3304
        %3874 = vmatprep.subr.mxu0 0.0
        %3875 = vmatpush1.msra.mxu0 0.0
        %3876 = vmatprep.subr.mxu0 0.0
        %3877 = vmatpush1.msra.mxu0 0.0
        %3878 = vmatprep.subr.mxu0 0.0
        %3879 = vmatpush1.msra.mxu0 0.0
        %3880 = vmatprep.subr.mxu0 0.0
        %3881 = vmatpush1.msra.mxu0 0.0
        %3882 = vmatprep.subr.mxu0 0.0
        %3883 = vmatpush1.msra.mxu0 0.0
        %3884 = vmatprep.subr.mxu0 0.0
        %3885 = vmatpush1.msra.mxu0 0.0
        %3886 = vmatprep.subr.mxu0 0.0
        %3887 = vmatpush1.msra.mxu0 0.0
        %3888 = vmatprep.subr.mxu0 0.0
        %3889 = vmatpush1.msra.mxu0 0.0
        %3890 = vmatprep.subr.mxu0 0.0
        %3891 = vmatpush1.msra.mxu0 0.0
        %3892 = vmatprep.subr.mxu0 0.0
        %3893 = vmatpush1.msra.mxu0 0.0
        %3894 = vmatprep.subr.mxu0 0.0
        %3895 = vmatpush1.msra.mxu0 0.0
        %3896 = vmatprep.subr.mxu0 0.0
        %3897 = vmatpush1.msra.mxu0 0.0
        %3898 = vmatprep.subr.mxu0 0.0
        %3899 = vmatpush1.msra.mxu0 0.0
        %3900 = vmatprep.subr.mxu0 0.0
        %3901 = vmatpush1.msra.mxu0 0.0
        %3902 = vmatprep.subr.mxu0 0.0
        %3903 = vmatpush1.msra.mxu0 0.0
        %3904 = vmatprep.subr.mxu0 0.0
        %3905 = vmatpush1.msra.mxu0 0.0
        %3906 = vmatprep.subr.mxu0 0.0
        %3907 = vmatpush1.msra.mxu0 0.0
        %3908 = vmatprep.subr.mxu0 0.0
        %3909 = vmatpush1.msra.mxu0 0.0
        %3910 = vmatprep.subr.mxu0 0.0
        %3911 = vmatpush1.msra.mxu0 0.0
        %3912 = vmatprep.subr.mxu0 0.0
        %3913 = vmatpush1.msra.mxu0 0.0
        %3914 = vmatprep.subr.mxu0 0.0
        %3915 = vmatpush1.msra.mxu0 0.0
        %3916 = vmatprep.subr.mxu0 0.0
        %3917 = vmatpush1.msra.mxu0 0.0
        %3918 = vmatprep.subr.mxu0 0.0
        %3919 = vmatpush1.msra.mxu0 0.0
        %3920 = vmatprep.subr.mxu0 0.0
        %3921 = vmatpush1.msra.mxu0 0.0
        %3922 = vmatprep.subr.mxu0 0.0
        %3923 = vmatpush1.msra.mxu0 0.0
        %3924 = vmatprep.subr.mxu0 0.0
        %3925 = vmatpush1.msra.mxu0 0.0
        %3926 = vmatprep.subr.mxu0 0.0
        %3927 = vmatpush1.msra.mxu0 0.0
        %3928 = vmatprep.subr.mxu0 0.0
        %3929 = vmatpush1.msra.mxu0 0.0
        %3930 = vmatprep.subr.mxu0 0.0
        %3931 = vmatpush1.msra.mxu0 0.0
        %3932 = vmatprep.subr.mxu0 0.0
        %3933 = vmatpush1.msra.mxu0 0.0
        %3934 = vmatprep.subr.mxu0 0.0
        %3935 = vmatpush1.msra.mxu0 0.0
        %3936 = vmatprep.mubr.f32.mxu0 0.0
        %3937 = vmatmul.mubr.f32.gmra.mrb[0].mxu0 %v3870
        %v3938 = vpop.f32.mrb[0].mxu0
        %v3939 = vadd.f32 0.0, %v3938
        %v3940 = vpop.f32.mrb[0].mxu0
        %3941 = vdwg.mxu0
        %v3943 = vsel %vm1686, %v3866, 0
        %3945 = vmatprep.subr.mxu0 0.0
        %3946 = vmatpush1.msra.mxu0 %v3374
        %3947 = vmatprep.subr.mxu0 0.0
        %3948 = vmatpush1.msra.mxu0 0.0
        %3949 = vmatprep.subr.mxu0 0.0
        %3950 = vmatpush1.msra.mxu0 0.0
        %3951 = vmatprep.subr.mxu0 0.0
        %3952 = vmatpush1.msra.mxu0 0.0
        %3953 = vmatprep.subr.mxu0 0.0
        %3954 = vmatpush1.msra.mxu0 0.0
        %3955 = vmatprep.subr.mxu0 0.0
        %3956 = vmatpush1.msra.mxu0 0.0
        %3957 = vmatprep.subr.mxu0 0.0
        %3958 = vmatpush1.msra.mxu0 0.0
        %3959 = vmatprep.subr.mxu0 0.0
        %3960 = vmatpush1.msra.mxu0 0.0
        %3961 = vmatprep.subr.mxu0 0.0
        %3962 = vmatpush1.msra.mxu0 0.0
        %3963 = vmatprep.subr.mxu0 0.0
        %3964 = vmatpush1.msra.mxu0 0.0
        %3965 = vmatprep.subr.mxu0 0.0
        %3966 = vmatpush1.msra.mxu0 0.0
        %3967 = vmatprep.subr.mxu0 0.0
        %3968 = vmatpush1.msra.mxu0 0.0
        %3969 = vmatprep.subr.mxu0 0.0
        %3970 = vmatpush1.msra.mxu0 0.0
        %3971 = vmatprep.subr.mxu0 0.0
        %3972 = vmatpush1.msra.mxu0 0.0
        %3973 = vmatprep.subr.mxu0 0.0
        %3974 = vmatpush1.msra.mxu0 0.0
        %3975 = vmatprep.subr.mxu0 0.0
        %3976 = vmatpush1.msra.mxu0 0.0
        %3977 = vmatprep.subr.mxu0 0.0
        %3978 = vmatpush1.msra.mxu0 0.0
        %3979 = vmatprep.subr.mxu0 0.0
        %3980 = vmatpush1.msra.mxu0 0.0
        %3981 = vmatprep.subr.mxu0 0.0
        %3982 = vmatpush1.msra.mxu0 0.0
        %3983 = vmatprep.subr.mxu0 0.0
        %3984 = vmatpush1.msra.mxu0 0.0
        %3985 = vmatprep.subr.mxu0 0.0
        %3986 = vmatpush1.msra.mxu0 0.0
        %3987 = vmatprep.subr.mxu0 0.0
        %3988 = vmatpush1.msra.mxu0 0.0
        %3989 = vmatprep.subr.mxu0 0.0
        %3990 = vmatpush1.msra.mxu0 0.0
        %3991 = vmatprep.subr.mxu0 0.0
        %3992 = vmatpush1.msra.mxu0 0.0
        %3993 = vmatprep.subr.mxu0 0.0
        %3994 = vmatpush1.msra.mxu0 0.0
        %3995 = vmatprep.subr.mxu0 0.0
        %3996 = vmatpush1.msra.mxu0 0.0
        %3997 = vmatprep.subr.mxu0 0.0
        %3998 = vmatpush1.msra.mxu0 0.0
        %3999 = vmatprep.subr.mxu0 0.0
        %4000 = vmatpush1.msra.mxu0 0.0
        %4001 = vmatprep.subr.mxu0 0.0
        %4002 = vmatpush1.msra.mxu0 0.0
        %4003 = vmatprep.subr.mxu0 0.0
        %4004 = vmatpush1.msra.mxu0 0.0
        %4005 = vmatprep.subr.mxu0 0.0
        %4006 = vmatpush1.msra.mxu0 0.0
        %4007 = vmatprep.subr.mxu0 0.0
        %4008 = vmatpush1.msra.mxu0 0.0
        %4009 = vmatprep.mubr.f32.mxu0 0.0
        %4010 = vmatmul.mubr.f32.gmra.mrb[0].mxu0 %v3943
        %v4011 = vpop.f32.mrb[0].mxu0
        %v4012 = vadd.f32 0.0, %v4011
        %v4013 = vpop.f32.mrb[0].mxu0
        %4014 = vdwg.mxu0
        %v4016 = vsel %vm1686, %v3867, 0
        %4018 = vmatprep.subr.mxu0 0.0
        %4019 = vmatpush1.msra.mxu0 %v3444
        %4020 = vmatprep.subr.mxu0 0.0
        %4021 = vmatpush1.msra.mxu0 0.0
        %4022 = vmatprep.subr.mxu0 0.0
        %4023 = vmatpush1.msra.mxu0 0.0
        %4024 = vmatprep.subr.mxu0 0.0
        %4025 = vmatpush1.msra.mxu0 0.0
        %4026 = vmatprep.subr.mxu0 0.0
        %4027 = vmatpush1.msra.mxu0 0.0
        %4028 = vmatprep.subr.mxu0 0.0
        %4029 = vmatpush1.msra.mxu0 0.0
        %4030 = vmatprep.subr.mxu0 0.0
        %4031 = vmatpush1.msra.mxu0 0.0
        %4032 = vmatprep.subr.mxu0 0.0
        %4033 = vmatpush1.msra.mxu0 0.0
        %4034 = vmatprep.subr.mxu0 0.0
        %4035 = vmatpush1.msra.mxu0 0.0
        %4036 = vmatprep.subr.mxu0 0.0
        %4037 = vmatpush1.msra.mxu0 0.0
        %4038 = vmatprep.subr.mxu0 0.0
        %4039 = vmatpush1.msra.mxu0 0.0
        %4040 = vmatprep.subr.mxu0 0.0
        %4041 = vmatpush1.msra.mxu0 0.0
        %4042 = vmatprep.subr.mxu0 0.0
        %4043 = vmatpush1.msra.mxu0 0.0
        %4044 = vmatprep.subr.mxu0 0.0
        %4045 = vmatpush1.msra.mxu0 0.0
        %4046 = vmatprep.subr.mxu0 0.0
        %4047 = vmatpush1.msra.mxu0 0.0
        %4048 = vmatprep.subr.mxu0 0.0
        %4049 = vmatpush1.msra.mxu0 0.0
        %4050 = vmatprep.subr.mxu0 0.0
        %4051 = vmatpush1.msra.mxu0 0.0
        %4052 = vmatprep.subr.mxu0 0.0
        %4053 = vmatpush1.msra.mxu0 0.0
        %4054 = vmatprep.subr.mxu0 0.0
        %4055 = vmatpush1.msra.mxu0 0.0
        %4056 = vmatprep.subr.mxu0 0.0
        %4057 = vmatpush1.msra.mxu0 0.0
        %4058 = vmatprep.subr.mxu0 0.0
        %4059 = vmatpush1.msra.mxu0 0.0
        %4060 = vmatprep.subr.mxu0 0.0
        %4061 = vmatpush1.msra.mxu0 0.0
        %4062 = vmatprep.subr.mxu0 0.0
        %4063 = vmatpush1.msra.mxu0 0.0
        %4064 = vmatprep.subr.mxu0 0.0
        %4065 = vmatpush1.msra.mxu0 0.0
        %4066 = vmatprep.subr.mxu0 0.0
        %4067 = vmatpush1.msra.mxu0 0.0
        %4068 = vmatprep.subr.mxu0 0.0
        %4069 = vmatpush1.msra.mxu0 0.0
        %4070 = vmatprep.subr.mxu0 0.0
        %4071 = vmatpush1.msra.mxu0 0.0
        %4072 = vmatprep.subr.mxu0 0.0
        %4073 = vmatpush1.msra.mxu0 0.0
        %4074 = vmatprep.subr.mxu0 0.0
        %4075 = vmatpush1.msra.mxu0 0.0
        %4076 = vmatprep.subr.mxu0 0.0
        %4077 = vmatpush1.msra.mxu0 0.0
        %4078 = vmatprep.subr.mxu0 0.0
        %4079 = vmatpush1.msra.mxu0 0.0
        %4080 = vmatprep.subr.mxu0 0.0
        %4081 = vmatpush1.msra.mxu0 0.0
        %4082 = vmatprep.mubr.f32.mxu0 0.0
        %4083 = vmatmul.mubr.f32.gmra.mrb[0].mxu0 %v4016
        %v4084 = vpop.f32.mrb[0].mxu0
        %v4085 = vadd.f32 0.0, %v4084
        %v4086 = vpop.f32.mrb[0].mxu0
        %4087 = vdwg.mxu0
        %v4089 = vsel %vm1686, %v3868, 0
        %4091 = vmatprep.subr.mxu0 0.0
        %4092 = vmatpush1.msra.mxu0 %v3514
        %4093 = vmatprep.subr.mxu0 0.0
        %4094 = vmatpush1.msra.mxu0 0.0
        %4095 = vmatprep.subr.mxu0 0.0
        %4096 = vmatpush1.msra.mxu0 0.0
        %4097 = vmatprep.subr.mxu0 0.0
        %4098 = vmatpush1.msra.mxu0 0.0
        %4099 = vmatprep.subr.mxu0 0.0
        %4100 = vmatpush1.msra.mxu0 0.0
        %4101 = vmatprep.subr.mxu0 0.0
        %4102 = vmatpush1.msra.mxu0 0.0
        %4103 = vmatprep.subr.mxu0 0.0
        %4104 = vmatpush1.msra.mxu0 0.0
        %4105 = vmatprep.subr.mxu0 0.0
        %4106 = vmatpush1.msra.mxu0 0.0
        %4107 = vmatprep.subr.mxu0 0.0
        %4108 = vmatpush1.msra.mxu0 0.0
        %4109 = vmatprep.subr.mxu0 0.0
        %4110 = vmatpush1.msra.mxu0 0.0
        %4111 = vmatprep.subr.mxu0 0.0
        %4112 = vmatpush1.msra.mxu0 0.0
        %4113 = vmatprep.subr.mxu0 0.0
        %4114 = vmatpush1.msra.mxu0 0.0
        %4115 = vmatprep.subr.mxu0 0.0
        %4116 = vmatpush1.msra.mxu0 0.0
        %4117 = vmatprep.subr.mxu0 0.0
        %4118 = vmatpush1.msra.mxu0 0.0
        %4119 = vmatprep.subr.mxu0 0.0
        %4120 = vmatpush1.msra.mxu0 0.0
        %4121 = vmatprep.subr.mxu0 0.0
        %4122 = vmatpush1.msra.mxu0 0.0
        %4123 = vmatprep.subr.mxu0 0.0
        %4124 = vmatpush1.msra.mxu0 0.0
        %4125 = vmatprep.subr.mxu0 0.0
        %4126 = vmatpush1.msra.mxu0 0.0
        %4127 = vmatprep.subr.mxu0 0.0
        %4128 = vmatpush1.msra.mxu0 0.0
        %4129 = vmatprep.subr.mxu0 0.0
        %4130 = vmatpush1.msra.mxu0 0.0
        %4131 = vmatprep.subr.mxu0 0.0
        %4132 = vmatpush1.msra.mxu0 0.0
        %4133 = vmatprep.subr.mxu0 0.0
        %4134 = vmatpush1.msra.mxu0 0.0
        %4135 = vmatprep.subr.mxu0 0.0
        %4136 = vmatpush1.msra.mxu0 0.0
        %4137 = vmatprep.subr.mxu0 0.0
        %4138 = vmatpush1.msra.mxu0 0.0
        %4139 = vmatprep.subr.mxu0 0.0
        %4140 = vmatpush1.msra.mxu0 0.0
        %4141 = vmatprep.subr.mxu0 0.0
        %4142 = vmatpush1.msra.mxu0 0.0
        %4143 = vmatprep.subr.mxu0 0.0
        %4144 = vmatpush1.msra.mxu0 0.0
        %4145 = vmatprep.subr.mxu0 0.0
        %4146 = vmatpush1.msra.mxu0 0.0
        %4147 = vmatprep.subr.mxu0 0.0
        %4148 = vmatpush1.msra.mxu0 0.0
        %4149 = vmatprep.subr.mxu0 0.0
        %4150 = vmatpush1.msra.mxu0 0.0
        %4151 = vmatprep.subr.mxu0 0.0
        %4152 = vmatpush1.msra.mxu0 0.0
        %4153 = vmatprep.subr.mxu0 0.0
        %4154 = vmatpush1.msra.mxu0 0.0
        %4155 = vmatprep.mubr.f32.mxu0 0.0
        %4156 = vmatmul.mubr.f32.gmra.mrb[0].mxu0 %v4089
        %v4157 = vpop.f32.mrb[0].mxu0
        %v4158 = vadd.f32 0.0, %v4157
        %v4159 = vpop.f32.mrb[0].mxu0
        %4160 = vdwg.mxu0
        %v4162 = vsel %vm1686, %v3939, 0
        %4164 = vmatprep.subr.mxu0 0.0
        %4165 = vmatpush1.msra.mxu0 %v749
        %4166 = vmatprep.subr.mxu0 0.0
        %4167 = vmatpush1.msra.mxu0 0.0
        %4168 = vmatprep.subr.mxu0 0.0
        %4169 = vmatpush1.msra.mxu0 0.0
        %4170 = vmatprep.subr.mxu0 0.0
        %4171 = vmatpush1.msra.mxu0 0.0
        %4172 = vmatprep.subr.mxu0 0.0
        %4173 = vmatpush1.msra.mxu0 0.0
        %4174 = vmatprep.subr.mxu0 0.0
        %4175 = vmatpush1.msra.mxu0 0.0
        %4176 = vmatprep.subr.mxu0 0.0
        %4177 = vmatpush1.msra.mxu0 0.0
        %4178 = vmatprep.subr.mxu0 0.0
        %4179 = vmatpush1.msra.mxu0 0.0
        %4180 = vmatprep.subr.mxu0 0.0
        %4181 = vmatpush1.msra.mxu0 0.0
        %4182 = vmatprep.subr.mxu0 0.0
        %4183 = vmatpush1.msra.mxu0 0.0
        %4184 = vmatprep.subr.mxu0 0.0
        %4185 = vmatpush1.msra.mxu0 0.0
        %4186 = vmatprep.subr.mxu0 0.0
        %4187 = vmatpush1.msra.mxu0 0.0
        %4188 = vmatprep.subr.mxu0 0.0
        %4189 = vmatpush1.msra.mxu0 0.0
        %4190 = vmatprep.subr.mxu0 0.0
        %4191 = vmatpush1.msra.mxu0 0.0
        %4192 = vmatprep.subr.mxu0 0.0
        %4193 = vmatpush1.msra.mxu0 0.0
        %4194 = vmatprep.subr.mxu0 0.0
        %4195 = vmatpush1.msra.mxu0 0.0
        %4196 = vmatprep.subr.mxu0 0.0
        %4197 = vmatpush1.msra.mxu0 0.0
        %4198 = vmatprep.subr.mxu0 0.0
        %4199 = vmatpush1.msra.mxu0 0.0
        %4200 = vmatprep.subr.mxu0 0.0
        %4201 = vmatpush1.msra.mxu0 0.0
        %4202 = vmatprep.subr.mxu0 0.0
        %4203 = vmatpush1.msra.mxu0 0.0
        %4204 = vmatprep.subr.mxu0 0.0
        %4205 = vmatpush1.msra.mxu0 0.0
        %4206 = vmatprep.subr.mxu0 0.0
        %4207 = vmatpush1.msra.mxu0 0.0
        %4208 = vmatprep.subr.mxu0 0.0
        %4209 = vmatpush1.msra.mxu0 0.0
        %4210 = vmatprep.subr.mxu0 0.0
        %4211 = vmatpush1.msra.mxu0 0.0
        %4212 = vmatprep.subr.mxu0 0.0
        %4213 = vmatpush1.msra.mxu0 0.0
        %4214 = vmatprep.subr.mxu0 0.0
        %4215 = vmatpush1.msra.mxu0 0.0
        %4216 = vmatprep.subr.mxu0 0.0
        %4217 = vmatpush1.msra.mxu0 0.0
        %4218 = vmatprep.subr.mxu0 0.0
        %4219 = vmatpush1.msra.mxu0 0.0
        %4220 = vmatprep.subr.mxu0 0.0
        %4221 = vmatpush1.msra.mxu0 0.0
        %4222 = vmatprep.subr.mxu0 0.0
        %4223 = vmatpush1.msra.mxu0 0.0
        %4224 = vmatprep.subr.mxu0 0.0
        %4225 = vmatpush1.msra.mxu0 0.0
        %4226 = vmatprep.subr.mxu0 0.0
        %4227 = vmatpush1.msra.mxu0 0.0
        %4228 = vmatprep.mubr.f32.mxu0 0.0
        %4229 = vmatmul.mubr.f32.gmra.mrb[0].mxu0 %v4162
        %v4230 = vpop.f32.mrb[0].mxu0
        %v4231 = vadd.f32 0.0, %v4230
        %v4232 = vpop.f32.mrb[0].mxu0
        %4233 = vdwg.mxu0
        %v4235 = vsel %vm1686, %v4012, 0
        %4237 = vmatprep.subr.mxu0 0.0
        %4238 = vmatpush1.msra.mxu0 %v750
        %4239 = vmatprep.subr.mxu0 0.0
        %4240 = vmatpush1.msra.mxu0 0.0
        %4241 = vmatprep.subr.mxu0 0.0
        %4242 = vmatpush1.msra.mxu0 0.0
        %4243 = vmatprep.subr.mxu0 0.0
        %4244 = vmatpush1.msra.mxu0 0.0
        %4245 = vmatprep.subr.mxu0 0.0
        %4246 = vmatpush1.msra.mxu0 0.0
        %4247 = vmatprep.subr.mxu0 0.0
        %4248 = vmatpush1.msra.mxu0 0.0
        %4249 = vmatprep.subr.mxu0 0.0
        %4250 = vmatpush1.msra.mxu0 0.0
        %4251 = vmatprep.subr.mxu0 0.0
        %4252 = vmatpush1.msra.mxu0 0.0
        %4253 = vmatprep.subr.mxu0 0.0
        %4254 = vmatpush1.msra.mxu0 0.0
        %4255 = vmatprep.subr.mxu0 0.0
        %4256 = vmatpush1.msra.mxu0 0.0
        %4257 = vmatprep.subr.mxu0 0.0
        %4258 = vmatpush1.msra.mxu0 0.0
        %4259 = vmatprep.subr.mxu0 0.0
        %4260 = vmatpush1.msra.mxu0 0.0
        %4261 = vmatprep.subr.mxu0 0.0
        %4262 = vmatpush1.msra.mxu0 0.0
        %4263 = vmatprep.subr.mxu0 0.0
        %4264 = vmatpush1.msra.mxu0 0.0
        %4265 = vmatprep.subr.mxu0 0.0
        %4266 = vmatpush1.msra.mxu0 0.0
        %4267 = vmatprep.subr.mxu0 0.0
        %4268 = vmatpush1.msra.mxu0 0.0
        %4269 = vmatprep.subr.mxu0 0.0
        %4270 = vmatpush1.msra.mxu0 0.0
        %4271 = vmatprep.subr.mxu0 0.0
        %4272 = vmatpush1.msra.mxu0 0.0
        %4273 = vmatprep.subr.mxu0 0.0
        %4274 = vmatpush1.msra.mxu0 0.0
        %4275 = vmatprep.subr.mxu0 0.0
        %4276 = vmatpush1.msra.mxu0 0.0
        %4277 = vmatprep.subr.mxu0 0.0
        %4278 = vmatpush1.msra.mxu0 0.0
        %4279 = vmatprep.subr.mxu0 0.0
        %4280 = vmatpush1.msra.mxu0 0.0
        %4281 = vmatprep.subr.mxu0 0.0
        %4282 = vmatpush1.msra.mxu0 0.0
        %4283 = vmatprep.subr.mxu0 0.0
        %4284 = vmatpush1.msra.mxu0 0.0
        %4285 = vmatprep.subr.mxu0 0.0
        %4286 = vmatpush1.msra.mxu0 0.0
        %4287 = vmatprep.subr.mxu0 0.0
        %4288 = vmatpush1.msra.mxu0 0.0
        %4289 = vmatprep.subr.mxu0 0.0
        %4290 = vmatpush1.msra.mxu0 0.0
        %4291 = vmatprep.subr.mxu0 0.0
        %4292 = vmatpush1.msra.mxu0 0.0
        %4293 = vmatprep.subr.mxu0 0.0
        %4294 = vmatpush1.msra.mxu0 0.0
        %4295 = vmatprep.subr.mxu0 0.0
        %4296 = vmatpush1.msra.mxu0 0.0
        %4297 = vmatprep.subr.mxu0 0.0
        %4298 = vmatpush1.msra.mxu0 0.0
        %4299 = vmatprep.subr.mxu0 0.0
        %4300 = vmatpush1.msra.mxu0 0.0
        %4301 = vmatprep.mubr.f32.mxu0 0.0
        %4302 = vmatmul.mubr.f32.gmra.mrb[0].mxu0 %v4235
        %v4303 = vpop.f32.mrb[0].mxu0
        %v4304 = vadd.f32 0.0, %v4303
        %v4305 = vpop.f32.mrb[0].mxu0
        %4306 = vdwg.mxu0
        %v4308 = vsel %vm1686, %v4085, 0
        %4310 = vmatprep.subr.mxu0 0.0
        %4311 = vmatpush1.msra.mxu0 %v751
        %4312 = vmatprep.subr.mxu0 0.0
        %4313 = vmatpush1.msra.mxu0 0.0
        %4314 = vmatprep.subr.mxu0 0.0
        %4315 = vmatpush1.msra.mxu0 0.0
        %4316 = vmatprep.subr.mxu0 0.0
        %4317 = vmatpush1.msra.mxu0 0.0
        %4318 = vmatprep.subr.mxu0 0.0
        %4319 = vmatpush1.msra.mxu0 0.0
        %4320 = vmatprep.subr.mxu0 0.0
        %4321 = vmatpush1.msra.mxu0 0.0
        %4322 = vmatprep.subr.mxu0 0.0
        %4323 = vmatpush1.msra.mxu0 0.0
        %4324 = vmatprep.subr.mxu0 0.0
        %4325 = vmatpush1.msra.mxu0 0.0
        %4326 = vmatprep.subr.mxu0 0.0
        %4327 = vmatpush1.msra.mxu0 0.0
        %4328 = vmatprep.subr.mxu0 0.0
        %4329 = vmatpush1.msra.mxu0 0.0
        %4330 = vmatprep.subr.mxu0 0.0
        %4331 = vmatpush1.msra.mxu0 0.0
        %4332 = vmatprep.subr.mxu0 0.0
        %4333 = vmatpush1.msra.mxu0 0.0
        %4334 = vmatprep.subr.mxu0 0.0
        %4335 = vmatpush1.msra.mxu0 0.0
        %4336 = vmatprep.subr.mxu0 0.0
        %4337 = vmatpush1.msra.mxu0 0.0
        %4338 = vmatprep.subr.mxu0 0.0
        %4339 = vmatpush1.msra.mxu0 0.0
        %4340 = vmatprep.subr.mxu0 0.0
        %4341 = vmatpush1.msra.mxu0 0.0
        %4342 = vmatprep.subr.mxu0 0.0
        %4343 = vmatpush1.msra.mxu0 0.0
        %4344 = vmatprep.subr.mxu0 0.0
        %4345 = vmatpush1.msra.mxu0 0.0
        %4346 = vmatprep.subr.mxu0 0.0
        %4347 = vmatpush1.msra.mxu0 0.0
        %4348 = vmatprep.subr.mxu0 0.0
        %4349 = vmatpush1.msra.mxu0 0.0
        %4350 = vmatprep.subr.mxu0 0.0
        %4351 = vmatpush1.msra.mxu0 0.0
        %4352 = vmatprep.subr.mxu0 0.0
        %4353 = vmatpush1.msra.mxu0 0.0
        %4354 = vmatprep.subr.mxu0 0.0
        %4355 = vmatpush1.msra.mxu0 0.0
        %4356 = vmatprep.subr.mxu0 0.0
        %4357 = vmatpush1.msra.mxu0 0.0
        %4358 = vmatprep.subr.mxu0 0.0
        %4359 = vmatpush1.msra.mxu0 0.0
        %4360 = vmatprep.subr.mxu0 0.0
        %4361 = vmatpush1.msra.mxu0 0.0
        %4362 = vmatprep.subr.mxu0 0.0
        %4363 = vmatpush1.msra.mxu0 0.0
        %4364 = vmatprep.subr.mxu0 0.0
        %4365 = vmatpush1.msra.mxu0 0.0
        %4366 = vmatprep.subr.mxu0 0.0
        %4367 = vmatpush1.msra.mxu0 0.0
        %4368 = vmatprep.subr.mxu0 0.0
        %4369 = vmatpush1.msra.mxu0 0.0
        %4370 = vmatprep.subr.mxu0 0.0
        %4371 = vmatpush1.msra.mxu0 0.0
        %4372 = vmatprep.subr.mxu0 0.0
        %4373 = vmatpush1.msra.mxu0 0.0
        %4374 = vmatprep.mubr.f32.mxu0 0.0
        %4375 = vmatmul.mubr.f32.gmra.mrb[0].mxu0 %v4308
        %v4376 = vpop.f32.mrb[0].mxu0
        %v4377 = vadd.f32 0.0, %v4376
        %v4378 = vpop.f32.mrb[0].mxu0
        %4379 = vdwg.mxu0
        %v4381 = vsel %vm1686, %v4158, 0
        %4383 = vmatprep.subr.mxu0 0.0
        %4384 = vmatpush1.msra.mxu0 %v752
        %4385 = vmatprep.subr.mxu0 0.0
        %4386 = vmatpush1.msra.mxu0 0.0
        %4387 = vmatprep.subr.mxu0 0.0
        %4388 = vmatpush1.msra.mxu0 0.0
        %4389 = vmatprep.subr.mxu0 0.0
        %4390 = vmatpush1.msra.mxu0 0.0
        %4391 = vmatprep.subr.mxu0 0.0
        %4392 = vmatpush1.msra.mxu0 0.0
        %4393 = vmatprep.subr.mxu0 0.0
        %4394 = vmatpush1.msra.mxu0 0.0
        %4395 = vmatprep.subr.mxu0 0.0
        %4396 = vmatpush1.msra.mxu0 0.0
        %4397 = vmatprep.subr.mxu0 0.0
        %4398 = vmatpush1.msra.mxu0 0.0
        %4399 = vmatprep.subr.mxu0 0.0
        %4400 = vmatpush1.msra.mxu0 0.0
        %4401 = vmatprep.subr.mxu0 0.0
        %4402 = vmatpush1.msra.mxu0 0.0
        %4403 = vmatprep.subr.mxu0 0.0
        %4404 = vmatpush1.msra.mxu0 0.0
        %4405 = vmatprep.subr.mxu0 0.0
        %4406 = vmatpush1.msra.mxu0 0.0
        %4407 = vmatprep.subr.mxu0 0.0
        %4408 = vmatpush1.msra.mxu0 0.0
        %4409 = vmatprep.subr.mxu0 0.0
        %4410 = vmatpush1.msra.mxu0 0.0
        %4411 = vmatprep.subr.mxu0 0.0
        %4412 = vmatpush1.msra.mxu0 0.0
        %4413 = vmatprep.subr.mxu0 0.0
        %4414 = vmatpush1.msra.mxu0 0.0
        %4415 = vmatprep.subr.mxu0 0.0
        %4416 = vmatpush1.msra.mxu0 0.0
        %4417 = vmatprep.subr.mxu0 0.0
        %4418 = vmatpush1.msra.mxu0 0.0
        %4419 = vmatprep.subr.mxu0 0.0
        %4420 = vmatpush1.msra.mxu0 0.0
        %4421 = vmatprep.subr.mxu0 0.0
        %4422 = vmatpush1.msra.mxu0 0.0
        %4423 = vmatprep.subr.mxu0 0.0
        %4424 = vmatpush1.msra.mxu0 0.0
        %4425 = vmatprep.subr.mxu0 0.0
        %4426 = vmatpush1.msra.mxu0 0.0
        %4427 = vmatprep.subr.mxu0 0.0
        %4428 = vmatpush1.msra.mxu0 0.0
        %4429 = vmatprep.subr.mxu0 0.0
        %4430 = vmatpush1.msra.mxu0 0.0
        %4431 = vmatprep.subr.mxu0 0.0
        %4432 = vmatpush1.msra.mxu0 0.0
        %4433 = vmatprep.subr.mxu0 0.0
        %4434 = vmatpush1.msra.mxu0 0.0
        %4435 = vmatprep.subr.mxu0 0.0
        %4436 = vmatpush1.msra.mxu0 0.0
        %4437 = vmatprep.subr.mxu0 0.0
        %4438 = vmatpush1.msra.mxu0 0.0
        %4439 = vmatprep.subr.mxu0 0.0
        %4440 = vmatpush1.msra.mxu0 0.0
        %4441 = vmatprep.subr.mxu0 0.0
        %4442 = vmatpush1.msra.mxu0 0.0
        %4443 = vmatprep.subr.mxu0 0.0
        %4444 = vmatpush1.msra.mxu0 0.0
        %4445 = vmatprep.subr.mxu0 0.0
        %4446 = vmatpush1.msra.mxu0 0.0
        %4447 = vmatprep.mubr.f32.mxu0 0.0
        %4448 = vmatmul.mubr.f32.gmra.mrb[0].mxu0 %v4381
        %v4449 = vpop.f32.mrb[0].mxu0
        %v4450 = vadd.f32 0.0, %v4449
        %v4451 = vpop.f32.mrb[0].mxu0
        %4452 = vdwg.mxu0
        %v4453 = vsel %vm794, %v4231, 0.0
        %v4454 = vsel %vm794, %v4304, 0.0
        %v4455 = vadd.f32 %v4453, %v4454
        %v4456 = vsel %vm794, %v4377, 0.0
        %v4457 = vadd.f32 %v4455, %v4456
        %v4458 = vsel %vm794, %v4450, 0.0
        %v4459 = vadd.f32 %v4457, %v4458
        %v4460 = vadd.f32 %v4459, %v2636
        %v4461 = vadd.f32 %v2670, %v4460
        %v4462 = vsel %vm794, %v4461, 0.0
        %4463 = vadd.xlane.f32.xlu0 %v4462
        %v4464 = vpop.xlane.xlu0 %4463
        %v4465 = vmul.f32 %v4464, %v2643
        %v4466 = vmul.f32 %v4461, %v4461
        %v4467 = vsel %vm794, %v4466, 0.0
        %4468 = vadd.xlane.f32.xlu0 %v4467
        %v4469 = vpop.xlane.xlu0 %4468
        %v4470 = vmul.f32 %v4469, %v2643
        %v4471 = vmul.f32 %v4465, %v4465
        %v4472 = vsub.f32 %v4470, %v4471
        %v4473 = vmax.f32 %v4472, 0.0
        %v4474 = vsub.f32 %v4461, %v4465
        %v4475 = vmul.f32 %v2658, %v4474
        %v4476 = vadd.f32 %v4473, 1e-06
        %v4477 = vrsqrt.pop %v4476
        %v4478 = vmul.f32 %v4475, %v4477
        %v4479 = vadd.f32 %v4478, %v2668
        %v4481 = vlaneseq
        %v4482 = vshrl.u32 %v4481, 7
        %v4483 = vsub.s32 0, %v4482
        %v4484 = vrot.slane %v758, %v4483
        %v4487 = vsel %vm794, %v4479, 0
        %4489 = vmatprep.subr.mxu0 0.0
        %4490 = vmatpush1.msra.mxu0 %v754
        %4491 = vmatprep.subr.mxu0 0.0
        %4492 = vmatpush1.msra.mxu0 %v755
        %4493 = vmatprep.subr.mxu0 0.0
        %4494 = vmatpush1.msra.mxu0 %v756
        %4495 = vmatprep.subr.mxu0 0.0
        %4496 = vmatpush1.msra.mxu0 %v757
        %4497 = vmatprep.subr.mxu0 0.0
        %4498 = vmatpush1.msra.mxu0 0.0
        %4499 = vmatprep.subr.mxu0 0.0
        %4500 = vmatpush1.msra.mxu0 0.0
        %4501 = vmatprep.subr.mxu0 0.0
        %4502 = vmatpush1.msra.mxu0 0.0
        %4503 = vmatprep.subr.mxu0 0.0
        %4504 = vmatpush1.msra.mxu0 0.0
        %4505 = vmatprep.subr.mxu0 0.0
        %4506 = vmatpush1.msra.mxu0 0.0
        %4507 = vmatprep.subr.mxu0 0.0
        %4508 = vmatpush1.msra.mxu0 0.0
        %4509 = vmatprep.subr.mxu0 0.0
        %4510 = vmatpush1.msra.mxu0 0.0
        %4511 = vmatprep.subr.mxu0 0.0
        %4512 = vmatpush1.msra.mxu0 0.0
        %4513 = vmatprep.subr.mxu0 0.0
        %4514 = vmatpush1.msra.mxu0 0.0
        %4515 = vmatprep.subr.mxu0 0.0
        %4516 = vmatpush1.msra.mxu0 0.0
        %4517 = vmatprep.subr.mxu0 0.0
        %4518 = vmatpush1.msra.mxu0 0.0
        %4519 = vmatprep.subr.mxu0 0.0
        %4520 = vmatpush1.msra.mxu0 0.0
        %4521 = vmatprep.subr.mxu0 0.0
        %4522 = vmatpush1.msra.mxu0 0.0
        %4523 = vmatprep.subr.mxu0 0.0
        %4524 = vmatpush1.msra.mxu0 0.0
        %4525 = vmatprep.subr.mxu0 0.0
        %4526 = vmatpush1.msra.mxu0 0.0
        %4527 = vmatprep.subr.mxu0 0.0
        %4528 = vmatpush1.msra.mxu0 0.0
        %4529 = vmatprep.subr.mxu0 0.0
        %4530 = vmatpush1.msra.mxu0 0.0
        %4531 = vmatprep.subr.mxu0 0.0
        %4532 = vmatpush1.msra.mxu0 0.0
        %4533 = vmatprep.subr.mxu0 0.0
        %4534 = vmatpush1.msra.mxu0 0.0
        %4535 = vmatprep.subr.mxu0 0.0
        %4536 = vmatpush1.msra.mxu0 0.0
        %4537 = vmatprep.subr.mxu0 0.0
        %4538 = vmatpush1.msra.mxu0 0.0
        %4539 = vmatprep.subr.mxu0 0.0
        %4540 = vmatpush1.msra.mxu0 0.0
        %4541 = vmatprep.subr.mxu0 0.0
        %4542 = vmatpush1.msra.mxu0 0.0
        %4543 = vmatprep.subr.mxu0 0.0
        %4544 = vmatpush1.msra.mxu0 0.0
        %4545 = vmatprep.subr.mxu0 0.0
        %4546 = vmatpush1.msra.mxu0 0.0
        %4547 = vmatprep.subr.mxu0 0.0
        %4548 = vmatpush1.msra.mxu0 0.0
        %4549 = vmatprep.subr.mxu0 0.0
        %4550 = vmatpush1.msra.mxu0 0.0
        %4551 = vmatprep.subr.mxu0 0.0
        %4552 = vmatpush1.msra.mxu0 0.0
        %4553 = vmatprep.mubr.f32.mxu0 0.0
        %4554 = vmatmul.mubr.f32.gmra.mrb[0].mxu0 %v4487
        %v4555 = vpop.f32.mrb[0].mxu0
        %v4556 = vadd.f32 %v4484, %v4555
        %v4557 = vpop.f32.mrb[0].mxu0
        %4558 = vdwg.mxu0
        %v4559 = vmax.f32 %v4556, 0.0
        %v4561 = vlaneseq
        %v4562 = vshrl.u32 %v4561, 7
        %v4563 = vsub.s32 0, %v4562
        %v4564 = vrot.slane %v767, %v4563
        %vm4566 = vcmask 523264
        %v4568 = vsel %vm4566, %v4559, 0
        %4570 = vmatprep.subr.mxu0 0.0
        %4571 = vmatpush1.msra.mxu0 %v759
        %4572 = vmatprep.subr.mxu0 0.0
        %4573 = vmatpush1.msra.mxu0 %v760
        %4574 = vmatprep.subr.mxu0 0.0
        %4575 = vmatpush1.msra.mxu0 %v761
        %4576 = vmatprep.subr.mxu0 0.0
        %4577 = vmatpush1.msra.mxu0 %v762
        %4578 = vmatprep.subr.mxu0 0.0
        %4579 = vmatpush1.msra.mxu0 %v763
        %4580 = vmatprep.subr.mxu0 0.0
        %4581 = vmatpush1.msra.mxu0 %v764
        %4582 = vmatprep.subr.mxu0 0.0
        %4583 = vmatpush1.msra.mxu0 %v765
        %4584 = vmatprep.subr.mxu0 0.0
        %4585 = vmatpush1.msra.mxu0 %v766
        %4586 = vmatprep.subr.mxu0 0.0
        %4587 = vmatpush1.msra.mxu0 0.0
        %4588 = vmatprep.subr.mxu0 0.0
        %4589 = vmatpush1.msra.mxu0 0.0
        %4590 = vmatprep.subr.mxu0 0.0
        %4591 = vmatpush1.msra.mxu0 0.0
        %4592 = vmatprep.subr.mxu0 0.0
        %4593 = vmatpush1.msra.mxu0 0.0
        %4594 = vmatprep.subr.mxu0 0.0
        %4595 = vmatpush1.msra.mxu0 0.0
        %4596 = vmatprep.subr.mxu0 0.0
        %4597 = vmatpush1.msra.mxu0 0.0
        %4598 = vmatprep.subr.mxu0 0.0
        %4599 = vmatpush1.msra.mxu0 0.0
        %4600 = vmatprep.subr.mxu0 0.0
        %4601 = vmatpush1.msra.mxu0 0.0
        %4602 = vmatprep.subr.mxu0 0.0
        %4603 = vmatpush1.msra.mxu0 0.0
        %4604 = vmatprep.subr.mxu0 0.0
        %4605 = vmatpush1.msra.mxu0 0.0
        %4606 = vmatprep.subr.mxu0 0.0
        %4607 = vmatpush1.msra.mxu0 0.0
        %4608 = vmatprep.subr.mxu0 0.0
        %4609 = vmatpush1.msra.mxu0 0.0
        %4610 = vmatprep.subr.mxu0 0.0
        %4611 = vmatpush1.msra.mxu0 0.0
        %4612 = vmatprep.subr.mxu0 0.0
        %4613 = vmatpush1.msra.mxu0 0.0
        %4614 = vmatprep.subr.mxu0 0.0
        %4615 = vmatpush1.msra.mxu0 0.0
        %4616 = vmatprep.subr.mxu0 0.0
        %4617 = vmatpush1.msra.mxu0 0.0
        %4618 = vmatprep.subr.mxu0 0.0
        %4619 = vmatpush1.msra.mxu0 0.0
        %4620 = vmatprep.subr.mxu0 0.0
        %4621 = vmatpush1.msra.mxu0 0.0
        %4622 = vmatprep.subr.mxu0 0.0
        %4623 = vmatpush1.msra.mxu0 0.0
        %4624 = vmatprep.subr.mxu0 0.0
        %4625 = vmatpush1.msra.mxu0 0.0
        %4626 = vmatprep.subr.mxu0 0.0
        %4627 = vmatpush1.msra.mxu0 0.0
        %4628 = vmatprep.subr.mxu0 0.0
        %4629 = vmatpush1.msra.mxu0 0.0
        %4630 = vmatprep.subr.mxu0 0.0
        %4631 = vmatpush1.msra.mxu0 0.0
        %4632 = vmatprep.subr.mxu0 0.0
        %4633 = vmatpush1.msra.mxu0 0.0
        %4634 = vmatprep.mubr.f32.mxu0 0.0
        %4635 = vmatmul.mubr.f32.gmra.mrb[0].mxu0 %v4568
        %v4636 = vpop.f32.mrb[0].mxu0
        %v4637 = vadd.f32 %v4564, %v4636
        %v4638 = vpop.f32.mrb[0].mxu0
        %4639 = vdwg.mxu0
        %v4640 = vadd.f32 %v4479, %v4637
        %v4641 = vsel %vm794, %v4640, 0.0
        %4642 = vadd.xlane.f32.xlu0 %v4641
        %v4643 = vpop.xlane.xlu0 %4642
        %v4644 = vmul.f32 %v4643, %v2643
        %v4645 = vmul.f32 %v4640, %v4640
        %v4646 = vsel %vm794, %v4645, 0.0
        %4647 = vadd.xlane.f32.xlu0 %v4646
        %v4648 = vpop.xlane.xlu0 %4647
        %v4649 = vmul.f32 %v4648, %v2643
        %v4650 = vmul.f32 %v4644, %v4644
        %v4651 = vsub.f32 %v4649, %v4650
        %v4652 = vmax.f32 %v4651, 0.0
        %v4653 = vsub.f32 %v4640, %v4644
        %v4654 = vmul.f32 %v2658, %v4653
        %v4655 = vadd.f32 %v4652, 1e-06
        %v4656 = vrsqrt.pop %v4655
        %v4657 = vmul.f32 %v4654, %v4656
        %v4658 = vadd.f32 %v4657, %v2668
        %s4659 = scalar_lea.vmem [#allocation5], 128
        %v4660 = vld [vmem:[%s4659] sm:$0xff]
        %v4661 = vld [vmem:[%s4659 + $0x8] sm:$0xff]
        %v4662 = vld [vmem:[%s4659 + $0x10] sm:$0xff]
        %v4663 = vld [vmem:[%s4659 + $0x18] sm:$0xff]
        %v4664 = vld [vmem:[%s4659 + $0x20] sm:$0xff]
        %v4665 = vld [vmem:[%s4659 + $0x28] sm:$0xff]
        %v4666 = vld [vmem:[%s4659 + $0x30] sm:$0xff]
        %v4667 = vld [vmem:[%s4659 + $0x38] sm:$0xff]
        %v4668 = vld [vmem:[%s4659 + $0x40] sm:$0xff]
        %v4669 = vld [vmem:[%s4659 + $0x48] sm:$0xff]
        %v4670 = vld [vmem:[%s4659 + $0x50] sm:$0xff]
        %v4671 = vld [vmem:[%s4659 + $0x58] sm:$0xff]
        %v4672 = vld [vmem:[%s4659 + $0x60] sm:$0xff]
        %v4673 = vld [vmem:[%s4659 + $0x68] sm:$0xff]
        %v4674 = vld [vmem:[%s4659 + $0x70] sm:$0xff]
        %v4675 = vld [vmem:[%s4659 + $0x78] sm:$0xff]
        %s4676 = scalar_lea.vmem [#allocation7], 4
        %v4677 = vld [vmem:[%s4676] sm:$0x1]
        %v4678 = vld [vmem:[%s4676 + $0x1] sm:$0x1]
        %v4679 = vld [vmem:[%s4676 + $0x2] sm:$0x1]
        %v4680 = vld [vmem:[%s4676 + $0x3] sm:$0x1]
        %s4681 = scalar_lea.vmem [#allocation8], 128
        %v4682 = vld [vmem:[%s4681] sm:$0xff]
        %v4683 = vld [vmem:[%s4681 + $0x8] sm:$0xff]
        %v4684 = vld [vmem:[%s4681 + $0x10] sm:$0xff]
        %v4685 = vld [vmem:[%s4681 + $0x18] sm:$0xff]
        %v4686 = vld [vmem:[%s4681 + $0x20] sm:$0xff]
        %v4687 = vld [vmem:[%s4681 + $0x28] sm:$0xff]
        %v4688 = vld [vmem:[%s4681 + $0x30] sm:$0xff]
        %v4689 = vld [vmem:[%s4681 + $0x38] sm:$0xff]
        %v4690 = vld [vmem:[%s4681 + $0x40] sm:$0xff]
        %v4691 = vld [vmem:[%s4681 + $0x48] sm:$0xff]
        %v4692 = vld [vmem:[%s4681 + $0x50] sm:$0xff]
        %v4693 = vld [vmem:[%s4681 + $0x58] sm:$0xff]
        %v4694 = vld [vmem:[%s4681 + $0x60] sm:$0xff]
        %v4695 = vld [vmem:[%s4681 + $0x68] sm:$0xff]
        %v4696 = vld [vmem:[%s4681 + $0x70] sm:$0xff]
        %v4697 = vld [vmem:[%s4681 + $0x78] sm:$0xff]
        %s4698 = scalar_lea.vmem %s6, 4
        %v4699 = vld [vmem:[%s4698] sm:$0x1]
        %v4700 = vld [vmem:[%s4698 + $0x1] sm:$0x1]
        %v4701 = vld [vmem:[%s4698 + $0x2] sm:$0x1]
        %v4702 = vld [vmem:[%s4698 + $0x3] sm:$0x1]
        %s4703 = scalar_lea.vmem %s7, 128
        %v4704 = vld [vmem:[%s4703] sm:$0xff]
        %v4705 = vld [vmem:[%s4703 + $0x8] sm:$0xff]
        %v4706 = vld [vmem:[%s4703 + $0x10] sm:$0xff]
        %v4707 = vld [vmem:[%s4703 + $0x18] sm:$0xff]
        %v4708 = vld [vmem:[%s4703 + $0x20] sm:$0xff]
        %v4709 = vld [vmem:[%s4703 + $0x28] sm:$0xff]
        %v4710 = vld [vmem:[%s4703 + $0x30] sm:$0xff]
        %v4711 = vld [vmem:[%s4703 + $0x38] sm:$0xff]
        %v4712 = vld [vmem:[%s4703 + $0x40] sm:$0xff]
        %v4713 = vld [vmem:[%s4703 + $0x48] sm:$0xff]
        %v4714 = vld [vmem:[%s4703 + $0x50] sm:$0xff]
        %v4715 = vld [vmem:[%s4703 + $0x58] sm:$0xff]
        %v4716 = vld [vmem:[%s4703 + $0x60] sm:$0xff]
        %v4717 = vld [vmem:[%s4703 + $0x68] sm:$0xff]
        %v4718 = vld [vmem:[%s4703 + $0x70] sm:$0xff]
        %v4719 = vld [vmem:[%s4703 + $0x78] sm:$0xff]
        %s4720 = scalar_lea.vmem %s8, 4
        %v4721 = vld [vmem:[%s4720] sm:$0x1]
        %v4722 = vld [vmem:[%s4720 + $0x1] sm:$0x1]
        %v4723 = vld [vmem:[%s4720 + $0x2] sm:$0x1]
        %v4724 = vld [vmem:[%s4720 + $0x3] sm:$0x1]
        %s4725 = scalar_lea.vmem [#allocation10], 32
        %v4726 = vld [vmem:[%s4725] sm:$0xff]
        %v4727 = vld [vmem:[%s4725 + $0x8] sm:$0xff]
        %v4728 = vld [vmem:[%s4725 + $0x10] sm:$0xff]
        %v4729 = vld [vmem:[%s4725 + $0x18] sm:$0xff]
        %s4730 = scalar_lea.vmem %s10, 1
        %v4731 = vld [vmem:[%s4730] sm:$0x1]
        %s4732 = scalar_lea.vmem [#allocation11], 32
        %v4733 = vld [vmem:[%s4732] sm:$0xff]
        %v4734 = vld [vmem:[%s4732 + $0x8] sm:$0xff]
        %v4735 = vld [vmem:[%s4732 + $0x10] sm:$0xff]
        %v4736 = vld [vmem:[%s4732 + $0x18] sm:$0xff]
        %s4737 = scalar_lea.vmem %s12, 1
        %v4738 = vld [vmem:[%s4737] sm:$0x1]
        %s4739 = scalar_lea.vmem [#allocation13], 64
        %v4740 = vld [vmem:[%s4739] sm:$0xff]
        %v4741 = vld [vmem:[%s4739 + $0x8] sm:$0xff]
        %v4742 = vld [vmem:[%s4739 + $0x10] sm:$0xff]
        %v4743 = vld [vmem:[%s4739 + $0x18] sm:$0xff]
        %v4744 = vld [vmem:[%s4739 + $0x20] sm:$0xff]
        %v4745 = vld [vmem:[%s4739 + $0x28] sm:$0xff]
        %v4746 = vld [vmem:[%s4739 + $0x30] sm:$0xff]
        %v4747 = vld [vmem:[%s4739 + $0x38] sm:$0xff]
        %s4748 = scalar_lea.vmem %s14, 1
        %v4749 = vld [vmem:[%s4748] sm:$0x1]
        %s4750 = scalar_lea.vmem %s15, 1
        %v4751 = vld [vmem:[%s4750] sm:$0x1]
        %s4752 = scalar_lea.vmem %s16, 1
        %v4753 = vld [vmem:[%s4752] sm:$0x1]
        %v4758 = vlaneseq
        %v4759 = vshrl.u32 %v4758, 7
        %v4760 = vsub.s32 0, %v4759
        %v4761 = vrot.slane %v4677, %v4760
        %v4762 = vlaneseq
        %v4763 = vshrl.u32 %v4762, 7
        %v4764 = vsub.s32 0, %v4763
        %v4765 = vrot.slane %v4678, %v4764
        %v4766 = vlaneseq
        %v4767 = vshrl.u32 %v4766, 7
        %v4768 = vsub.s32 0, %v4767
        %v4769 = vrot.slane %v4679, %v4768
        %v4770 = vlaneseq
        %v4771 = vshrl.u32 %v4770, 7
        %v4772 = vsub.s32 0, %v4771
        %v4773 = vrot.slane %v4680, %v4772
        %v4779 = vsel %vm794, %v4658, 0
        %4781 = vmatprep.subr.mxu0 0.0
        %4782 = vmatpush1.msra.mxu0 %v4660
        %4783 = vmatprep.subr.mxu0 0.0
        %4784 = vmatpush1.msra.mxu0 %v4661
        %4785 = vmatprep.subr.mxu0 0.0
        %4786 = vmatpush1.msra.mxu0 %v4662
        %4787 = vmatprep.subr.mxu0 0.0
        %4788 = vmatpush1.msra.mxu0 %v4663
        %4789 = vmatprep.subr.mxu0 0.0
        %4790 = vmatpush1.msra.mxu0 0.0
        %4791 = vmatprep.subr.mxu0 0.0
        %4792 = vmatpush1.msra.mxu0 0.0
        %4793 = vmatprep.subr.mxu0 0.0
        %4794 = vmatpush1.msra.mxu0 0.0
        %4795 = vmatprep.subr.mxu0 0.0
        %4796 = vmatpush1.msra.mxu0 0.0
        %4797 = vmatprep.subr.mxu0 0.0
        %4798 = vmatpush1.msra.mxu0 0.0
        %4799 = vmatprep.subr.mxu0 0.0
        %4800 = vmatpush1.msra.mxu0 0.0
        %4801 = vmatprep.subr.mxu0 0.0
        %4802 = vmatpush1.msra.mxu0 0.0
        %4803 = vmatprep.subr.mxu0 0.0
        %4804 = vmatpush1.msra.mxu0 0.0
        %4805 = vmatprep.subr.mxu0 0.0
        %4806 = vmatpush1.msra.mxu0 0.0
        %4807 = vmatprep.subr.mxu0 0.0
        %4808 = vmatpush1.msra.mxu0 0.0
        %4809 = vmatprep.subr.mxu0 0.0
        %4810 = vmatpush1.msra.mxu0 0.0
        %4811 = vmatprep.subr.mxu0 0.0
        %4812 = vmatpush1.msra.mxu0 0.0
        %4813 = vmatprep.subr.mxu0 0.0
        %4814 = vmatpush1.msra.mxu0 0.0
        %4815 = vmatprep.subr.mxu0 0.0
        %4816 = vmatpush1.msra.mxu0 0.0
        %4817 = vmatprep.subr.mxu0 0.0
        %4818 = vmatpush1.msra.mxu0 0.0
        %4819 = vmatprep.subr.mxu0 0.0
        %4820 = vmatpush1.msra.mxu0 0.0
        %4821 = vmatprep.subr.mxu0 0.0
        %4822 = vmatpush1.msra.mxu0 0.0
        %4823 = vmatprep.subr.mxu0 0.0
        %4824 = vmatpush1.msra.mxu0 0.0
        %4825 = vmatprep.subr.mxu0 0.0
        %4826 = vmatpush1.msra.mxu0 0.0
        %4827 = vmatprep.subr.mxu0 0.0
        %4828 = vmatpush1.msra.mxu0 0.0
        %4829 = vmatprep.subr.mxu0 0.0
        %4830 = vmatpush1.msra.mxu0 0.0
        %4831 = vmatprep.subr.mxu0 0.0
        %4832 = vmatpush1.msra.mxu0 0.0
        %4833 = vmatprep.subr.mxu0 0.0
        %4834 = vmatpush1.msra.mxu0 0.0
        %4835 = vmatprep.subr.mxu0 0.0
        %4836 = vmatpush1.msra.mxu0 0.0
        %4837 = vmatprep.subr.mxu0 0.0
        %4838 = vmatpush1.msra.mxu0 0.0
        %4839 = vmatprep.subr.mxu0 0.0
        %4840 = vmatpush1.msra.mxu0 0.0
        %4841 = vmatprep.subr.mxu0 0.0
        %4842 = vmatpush1.msra.mxu0 0.0
        %4843 = vmatprep.subr.mxu0 0.0
        %4844 = vmatpush1.msra.mxu0 0.0
        %4845 = vmatprep.mubr.f32.mxu0 0.0
        %4846 = vmatmul.mubr.f32.gmra.mrb[0].mxu0 %v4779
        %v4847 = vpop.f32.mrb[0].mxu0
        %v4848 = vadd.f32 %v4761, %v4847
        %v4849 = vpop.f32.mrb[0].mxu0
        %4850 = vdwg.mxu0
        %4851 = vmatprep.subr.mxu0 0.0
        %4852 = vmatpush1.msra.mxu0 %v4664
        %4853 = vmatprep.subr.mxu0 0.0
        %4854 = vmatpush1.msra.mxu0 %v4665
        %4855 = vmatprep.subr.mxu0 0.0
        %4856 = vmatpush1.msra.mxu0 %v4666
        %4857 = vmatprep.subr.mxu0 0.0
        %4858 = vmatpush1.msra.mxu0 %v4667
        %4859 = vmatprep.subr.mxu0 0.0
        %4860 = vmatpush1.msra.mxu0 0.0
        %4861 = vmatprep.subr.mxu0 0.0
        %4862 = vmatpush1.msra.mxu0 0.0
        %4863 = vmatprep.subr.mxu0 0.0
        %4864 = vmatpush1.msra.mxu0 0.0
        %4865 = vmatprep.subr.mxu0 0.0
        %4866 = vmatpush1.msra.mxu0 0.0
        %4867 = vmatprep.subr.mxu0 0.0
        %4868 = vmatpush1.msra.mxu0 0.0
        %4869 = vmatprep.subr.mxu0 0.0
        %4870 = vmatpush1.msra.mxu0 0.0
        %4871 = vmatprep.subr.mxu0 0.0
        %4872 = vmatpush1.msra.mxu0 0.0
        %4873 = vmatprep.subr.mxu0 0.0
        %4874 = vmatpush1.msra.mxu0 0.0
        %4875 = vmatprep.subr.mxu0 0.0
        %4876 = vmatpush1.msra.mxu0 0.0
        %4877 = vmatprep.subr.mxu0 0.0
        %4878 = vmatpush1.msra.mxu0 0.0
        %4879 = vmatprep.subr.mxu0 0.0
        %4880 = vmatpush1.msra.mxu0 0.0
        %4881 = vmatprep.subr.mxu0 0.0
        %4882 = vmatpush1.msra.mxu0 0.0
        %4883 = vmatprep.subr.mxu0 0.0
        %4884 = vmatpush1.msra.mxu0 0.0
        %4885 = vmatprep.subr.mxu0 0.0
        %4886 = vmatpush1.msra.mxu0 0.0
        %4887 = vmatprep.subr.mxu0 0.0
        %4888 = vmatpush1.msra.mxu0 0.0
        %4889 = vmatprep.subr.mxu0 0.0
        %4890 = vmatpush1.msra.mxu0 0.0
        %4891 = vmatprep.subr.mxu0 0.0
        %4892 = vmatpush1.msra.mxu0 0.0
        %4893 = vmatprep.subr.mxu0 0.0
        %4894 = vmatpush1.msra.mxu0 0.0
        %4895 = vmatprep.subr.mxu0 0.0
        %4896 = vmatpush1.msra.mxu0 0.0
        %4897 = vmatprep.subr.mxu0 0.0
        %4898 = vmatpush1.msra.mxu0 0.0
        %4899 = vmatprep.subr.mxu0 0.0
        %4900 = vmatpush1.msra.mxu0 0.0
        %4901 = vmatprep.subr.mxu0 0.0
        %4902 = vmatpush1.msra.mxu0 0.0
        %4903 = vmatprep.subr.mxu0 0.0
        %4904 = vmatpush1.msra.mxu0 0.0
        %4905 = vmatprep.subr.mxu0 0.0
        %4906 = vmatpush1.msra.mxu0 0.0
        %4907 = vmatprep.subr.mxu0 0.0
        %4908 = vmatpush1.msra.mxu0 0.0
        %4909 = vmatprep.subr.mxu0 0.0
        %4910 = vmatpush1.msra.mxu0 0.0
        %4911 = vmatprep.subr.mxu0 0.0
        %4912 = vmatpush1.msra.mxu0 0.0
        %4913 = vmatprep.subr.mxu0 0.0
        %4914 = vmatpush1.msra.mxu0 0.0
        %4915 = vmatprep.mubr.f32.mxu0 0.0
        %4916 = vmatmul.mubr.f32.gmra.mrb[0].mxu0 %v4779
        %v4917 = vpop.f32.mrb[0].mxu0
        %v4918 = vadd.f32 %v4765, %v4917
        %v4919 = vpop.f32.mrb[0].mxu0
        %4920 = vdwg.mxu0
        %4921 = vmatprep.subr.mxu0 0.0
        %4922 = vmatpush1.msra.mxu0 %v4668
        %4923 = vmatprep.subr.mxu0 0.0
        %4924 = vmatpush1.msra.mxu0 %v4669
        %4925 = vmatprep.subr.mxu0 0.0
        %4926 = vmatpush1.msra.mxu0 %v4670
        %4927 = vmatprep.subr.mxu0 0.0
        %4928 = vmatpush1.msra.mxu0 %v4671
        %4929 = vmatprep.subr.mxu0 0.0
        %4930 = vmatpush1.msra.mxu0 0.0
        %4931 = vmatprep.subr.mxu0 0.0
        %4932 = vmatpush1.msra.mxu0 0.0
        %4933 = vmatprep.subr.mxu0 0.0
        %4934 = vmatpush1.msra.mxu0 0.0
        %4935 = vmatprep.subr.mxu0 0.0
        %4936 = vmatpush1.msra.mxu0 0.0
        %4937 = vmatprep.subr.mxu0 0.0
        %4938 = vmatpush1.msra.mxu0 0.0
        %4939 = vmatprep.subr.mxu0 0.0
        %4940 = vmatpush1.msra.mxu0 0.0
        %4941 = vmatprep.subr.mxu0 0.0
        %4942 = vmatpush1.msra.mxu0 0.0
        %4943 = vmatprep.subr.mxu0 0.0
        %4944 = vmatpush1.msra.mxu0 0.0
        %4945 = vmatprep.subr.mxu0 0.0
        %4946 = vmatpush1.msra.mxu0 0.0
        %4947 = vmatprep.subr.mxu0 0.0
        %4948 = vmatpush1.msra.mxu0 0.0
        %4949 = vmatprep.subr.mxu0 0.0
        %4950 = vmatpush1.msra.mxu0 0.0
        %4951 = vmatprep.subr.mxu0 0.0
        %4952 = vmatpush1.msra.mxu0 0.0
        %4953 = vmatprep.subr.mxu0 0.0
        %4954 = vmatpush1.msra.mxu0 0.0
        %4955 = vmatprep.subr.mxu0 0.0
        %4956 = vmatpush1.msra.mxu0 0.0
        %4957 = vmatprep.subr.mxu0 0.0
        %4958 = vmatpush1.msra.mxu0 0.0
        %4959 = vmatprep.subr.mxu0 0.0
        %4960 = vmatpush1.msra.mxu0 0.0
        %4961 = vmatprep.subr.mxu0 0.0
        %4962 = vmatpush1.msra.mxu0 0.0
        %4963 = vmatprep.subr.mxu0 0.0
        %4964 = vmatpush1.msra.mxu0 0.0
        %4965 = vmatprep.subr.mxu0 0.0
        %4966 = vmatpush1.msra.mxu0 0.0
        %4967 = vmatprep.subr.mxu0 0.0
        %4968 = vmatpush1.msra.mxu0 0.0
        %4969 = vmatprep.subr.mxu0 0.0
        %4970 = vmatpush1.msra.mxu0 0.0
        %4971 = vmatprep.subr.mxu0 0.0
        %4972 = vmatpush1.msra.mxu0 0.0
        %4973 = vmatprep.subr.mxu0 0.0
        %4974 = vmatpush1.msra.mxu0 0.0
        %4975 = vmatprep.subr.mxu0 0.0
        %4976 = vmatpush1.msra.mxu0 0.0
        %4977 = vmatprep.subr.mxu0 0.0
        %4978 = vmatpush1.msra.mxu0 0.0
        %4979 = vmatprep.subr.mxu0 0.0
        %4980 = vmatpush1.msra.mxu0 0.0
        %4981 = vmatprep.subr.mxu0 0.0
        %4982 = vmatpush1.msra.mxu0 0.0
        %4983 = vmatprep.subr.mxu0 0.0
        %4984 = vmatpush1.msra.mxu0 0.0
        %4985 = vmatprep.mubr.f32.mxu0 0.0
        %4986 = vmatmul.mubr.f32.gmra.mrb[0].mxu0 %v4779
        %v4987 = vpop.f32.mrb[0].mxu0
        %v4988 = vadd.f32 %v4769, %v4987
        %v4989 = vpop.f32.mrb[0].mxu0
        %4990 = vdwg.mxu0
        %4991 = vmatprep.subr.mxu0 0.0
        %4992 = vmatpush1.msra.mxu0 %v4672
        %4993 = vmatprep.subr.mxu0 0.0
        %4994 = vmatpush1.msra.mxu0 %v4673
        %4995 = vmatprep.subr.mxu0 0.0
        %4996 = vmatpush1.msra.mxu0 %v4674
        %4997 = vmatprep.subr.mxu0 0.0
        %4998 = vmatpush1.msra.mxu0 %v4675
        %4999 = vmatprep.subr.mxu0 0.0
        %5000 = vmatpush1.msra.mxu0 0.0
        %5001 = vmatprep.subr.mxu0 0.0
        %5002 = vmatpush1.msra.mxu0 0.0
        %5003 = vmatprep.subr.mxu0 0.0
        %5004 = vmatpush1.msra.mxu0 0.0
        %5005 = vmatprep.subr.mxu0 0.0
        %5006 = vmatpush1.msra.mxu0 0.0
        %5007 = vmatprep.subr.mxu0 0.0
        %5008 = vmatpush1.msra.mxu0 0.0
        %5009 = vmatprep.subr.mxu0 0.0
        %5010 = vmatpush1.msra.mxu0 0.0
        %5011 = vmatprep.subr.mxu0 0.0
        %5012 = vmatpush1.msra.mxu0 0.0
        %5013 = vmatprep.subr.mxu0 0.0
        %5014 = vmatpush1.msra.mxu0 0.0
        %5015 = vmatprep.subr.mxu0 0.0
        %5016 = vmatpush1.msra.mxu0 0.0
        %5017 = vmatprep.subr.mxu0 0.0
        %5018 = vmatpush1.msra.mxu0 0.0
        %5019 = vmatprep.subr.mxu0 0.0
        %5020 = vmatpush1.msra.mxu0 0.0
        %5021 = vmatprep.subr.mxu0 0.0
        %5022 = vmatpush1.msra.mxu0 0.0
        %5023 = vmatprep.subr.mxu0 0.0
        %5024 = vmatpush1.msra.mxu0 0.0
        %5025 = vmatprep.subr.mxu0 0.0
        %5026 = vmatpush1.msra.mxu0 0.0
        %5027 = vmatprep.subr.mxu0 0.0
        %5028 = vmatpush1.msra.mxu0 0.0
        %5029 = vmatprep.subr.mxu0 0.0
        %5030 = vmatpush1.msra.mxu0 0.0
        %5031 = vmatprep.subr.mxu0 0.0
        %5032 = vmatpush1.msra.mxu0 0.0
        %5033 = vmatprep.subr.mxu0 0.0
        %5034 = vmatpush1.msra.mxu0 0.0
        %5035 = vmatprep.subr.mxu0 0.0
        %5036 = vmatpush1.msra.mxu0 0.0
        %5037 = vmatprep.subr.mxu0 0.0
        %5038 = vmatpush1.msra.mxu0 0.0
        %5039 = vmatprep.subr.mxu0 0.0
        %5040 = vmatpush1.msra.mxu0 0.0
        %5041 = vmatprep.subr.mxu0 0.0
        %5042 = vmatpush1.msra.mxu0 0.0
        %5043 = vmatprep.subr.mxu0 0.0
        %5044 = vmatpush1.msra.mxu0 0.0
        %5045 = vmatprep.subr.mxu0 0.0
        %5046 = vmatpush1.msra.mxu0 0.0
        %5047 = vmatprep.subr.mxu0 0.0
        %5048 = vmatpush1.msra.mxu0 0.0
        %5049 = vmatprep.subr.mxu0 0.0
        %5050 = vmatpush1.msra.mxu0 0.0
        %5051 = vmatprep.subr.mxu0 0.0
        %5052 = vmatpush1.msra.mxu0 0.0
        %5053 = vmatprep.subr.mxu0 0.0
        %5054 = vmatpush1.msra.mxu0 0.0
        %5055 = vmatprep.mubr.f32.mxu0 0.0
        %5056 = vmatmul.mubr.f32.gmra.mrb[0].mxu0 %v4779
        %v5057 = vpop.f32.mrb[0].mxu0
        %v5058 = vadd.f32 %v4773, %v5057
        %v5059 = vpop.f32.mrb[0].mxu0
        %5060 = vdwg.mxu0
        %v5065 = vlaneseq
        %v5066 = vshrl.u32 %v5065, 7
        %v5067 = vsub.s32 0, %v5066
        %v5068 = vrot.slane %v4699, %v5067
        %v5069 = vlaneseq
        %v5070 = vshrl.u32 %v5069, 7
        %v5071 = vsub.s32 0, %v5070
        %v5072 = vrot.slane %v4700, %v5071
        %v5073 = vlaneseq
        %v5074 = vshrl.u32 %v5073, 7
        %v5075 = vsub.s32 0, %v5074
        %v5076 = vrot.slane %v4701, %v5075
        %v5077 = vlaneseq
        %v5078 = vshrl.u32 %v5077, 7
        %v5079 = vsub.s32 0, %v5078
        %v5080 = vrot.slane %v4702, %v5079
        %5085 = vmatprep.subr.mxu0 0.0
        %5086 = vmatpush1.msra.mxu0 %v4682
        %5087 = vmatprep.subr.mxu0 0.0
        %5088 = vmatpush1.msra.mxu0 %v4683
        %5089 = vmatprep.subr.mxu0 0.0
        %5090 = vmatpush1.msra.mxu0 %v4684
        %5091 = vmatprep.subr.mxu0 0.0
        %5092 = vmatpush1.msra.mxu0 %v4685
        %5093 = vmatprep.subr.mxu0 0.0
        %5094 = vmatpush1.msra.mxu0 0.0
        %5095 = vmatprep.subr.mxu0 0.0
        %5096 = vmatpush1.msra.mxu0 0.0
        %5097 = vmatprep.subr.mxu0 0.0
        %5098 = vmatpush1.msra.mxu0 0.0
        %5099 = vmatprep.subr.mxu0 0.0
        %5100 = vmatpush1.msra.mxu0 0.0
        %5101 = vmatprep.subr.mxu0 0.0
        %5102 = vmatpush1.msra.mxu0 0.0
        %5103 = vmatprep.subr.mxu0 0.0
        %5104 = vmatpush1.msra.mxu0 0.0
        %5105 = vmatprep.subr.mxu0 0.0
        %5106 = vmatpush1.msra.mxu0 0.0
        %5107 = vmatprep.subr.mxu0 0.0
        %5108 = vmatpush1.msra.mxu0 0.0
        %5109 = vmatprep.subr.mxu0 0.0
        %5110 = vmatpush1.msra.mxu0 0.0
        %5111 = vmatprep.subr.mxu0 0.0
        %5112 = vmatpush1.msra.mxu0 0.0
        %5113 = vmatprep.subr.mxu0 0.0
        %5114 = vmatpush1.msra.mxu0 0.0
        %5115 = vmatprep.subr.mxu0 0.0
        %5116 = vmatpush1.msra.mxu0 0.0
        %5117 = vmatprep.subr.mxu0 0.0
        %5118 = vmatpush1.msra.mxu0 0.0
        %5119 = vmatprep.subr.mxu0 0.0
        %5120 = vmatpush1.msra.mxu0 0.0
        %5121 = vmatprep.subr.mxu0 0.0
        %5122 = vmatpush1.msra.mxu0 0.0
        %5123 = vmatprep.subr.mxu0 0.0
        %5124 = vmatpush1.msra.mxu0 0.0
        %5125 = vmatprep.subr.mxu0 0.0
        %5126 = vmatpush1.msra.mxu0 0.0
        %5127 = vmatprep.subr.mxu0 0.0
        %5128 = vmatpush1.msra.mxu0 0.0
        %5129 = vmatprep.subr.mxu0 0.0
        %5130 = vmatpush1.msra.mxu0 0.0
        %5131 = vmatprep.subr.mxu0 0.0
        %5132 = vmatpush1.msra.mxu0 0.0
        %5133 = vmatprep.subr.mxu0 0.0
        %5134 = vmatpush1.msra.mxu0 0.0
        %5135 = vmatprep.subr.mxu0 0.0
        %5136 = vmatpush1.msra.mxu0 0.0
        %5137 = vmatprep.subr.mxu0 0.0
        %5138 = vmatpush1.msra.mxu0 0.0
        %5139 = vmatprep.subr.mxu0 0.0
        %5140 = vmatpush1.msra.mxu0 0.0
        %5141 = vmatprep.subr.mxu0 0.0
        %5142 = vmatpush1.msra.mxu0 0.0
        %5143 = vmatprep.subr.mxu0 0.0
        %5144 = vmatpush1.msra.mxu0 0.0
        %5145 = vmatprep.subr.mxu0 0.0
        %5146 = vmatpush1.msra.mxu0 0.0
        %5147 = vmatprep.subr.mxu0 0.0
        %5148 = vmatpush1.msra.mxu0 0.0
        %5149 = vmatprep.mubr.f32.mxu0 0.0
        %5150 = vmatmul.mubr.f32.gmra.mrb[0].mxu0 %v4779
        %v5151 = vpop.f32.mrb[0].mxu0
        %v5152 = vadd.f32 %v5068, %v5151
        %v5153 = vpop.f32.mrb[0].mxu0
        %5154 = vdwg.mxu0
        %5155 = vmatprep.subr.mxu0 0.0
        %5156 = vmatpush1.msra.mxu0 %v4686
        %5157 = vmatprep.subr.mxu0 0.0
        %5158 = vmatpush1.msra.mxu0 %v4687
        %5159 = vmatprep.subr.mxu0 0.0
        %5160 = vmatpush1.msra.mxu0 %v4688
        %5161 = vmatprep.subr.mxu0 0.0
        %5162 = vmatpush1.msra.mxu0 %v4689
        %5163 = vmatprep.subr.mxu0 0.0
        %5164 = vmatpush1.msra.mxu0 0.0
        %5165 = vmatprep.subr.mxu0 0.0
        %5166 = vmatpush1.msra.mxu0 0.0
        %5167 = vmatprep.subr.mxu0 0.0
        %5168 = vmatpush1.msra.mxu0 0.0
        %5169 = vmatprep.subr.mxu0 0.0
        %5170 = vmatpush1.msra.mxu0 0.0
        %5171 = vmatprep.subr.mxu0 0.0
        %5172 = vmatpush1.msra.mxu0 0.0
        %5173 = vmatprep.subr.mxu0 0.0
        %5174 = vmatpush1.msra.mxu0 0.0
        %5175 = vmatprep.subr.mxu0 0.0
        %5176 = vmatpush1.msra.mxu0 0.0
        %5177 = vmatprep.subr.mxu0 0.0
        %5178 = vmatpush1.msra.mxu0 0.0
        %5179 = vmatprep.subr.mxu0 0.0
        %5180 = vmatpush1.msra.mxu0 0.0
        %5181 = vmatprep.subr.mxu0 0.0
        %5182 = vmatpush1.msra.mxu0 0.0
        %5183 = vmatprep.subr.mxu0 0.0
        %5184 = vmatpush1.msra.mxu0 0.0
        %5185 = vmatprep.subr.mxu0 0.0
        %5186 = vmatpush1.msra.mxu0 0.0
        %5187 = vmatprep.subr.mxu0 0.0
        %5188 = vmatpush1.msra.mxu0 0.0
        %5189 = vmatprep.subr.mxu0 0.0
        %5190 = vmatpush1.msra.mxu0 0.0
        %5191 = vmatprep.subr.mxu0 0.0
        %5192 = vmatpush1.msra.mxu0 0.0
        %5193 = vmatprep.subr.mxu0 0.0
        %5194 = vmatpush1.msra.mxu0 0.0
        %5195 = vmatprep.subr.mxu0 0.0
        %5196 = vmatpush1.msra.mxu0 0.0
        %5197 = vmatprep.subr.mxu0 0.0
        %5198 = vmatpush1.msra.mxu0 0.0
        %5199 = vmatprep.subr.mxu0 0.0
        %5200 = vmatpush1.msra.mxu0 0.0
        %5201 = vmatprep.subr.mxu0 0.0
        %5202 = vmatpush1.msra.mxu0 0.0
        %5203 = vmatprep.subr.mxu0 0.0
        %5204 = vmatpush1.msra.mxu0 0.0
        %5205 = vmatprep.subr.mxu0 0.0
        %5206 = vmatpush1.msra.mxu0 0.0
        %5207 = vmatprep.subr.mxu0 0.0
        %5208 = vmatpush1.msra.mxu0 0.0
        %5209 = vmatprep.subr.mxu0 0.0
        %5210 = vmatpush1.msra.mxu0 0.0
        %5211 = vmatprep.subr.mxu0 0.0
        %5212 = vmatpush1.msra.mxu0 0.0
        %5213 = vmatprep.subr.mxu0 0.0
        %5214 = vmatpush1.msra.mxu0 0.0
        %5215 = vmatprep.subr.mxu0 0.0
        %5216 = vmatpush1.msra.mxu0 0.0
        %5217 = vmatprep.subr.mxu0 0.0
        %5218 = vmatpush1.msra.mxu0 0.0
        %5219 = vmatprep.mubr.f32.mxu0 0.0
        %5220 = vmatmul.mubr.f32.gmra.mrb[0].mxu0 %v4779
        %v5221 = vpop.f32.mrb[0].mxu0
        %v5222 = vadd.f32 %v5072, %v5221
        %v5223 = vpop.f32.mrb[0].mxu0
        %5224 = vdwg.mxu0
        %5225 = vmatprep.subr.mxu0 0.0
        %5226 = vmatpush1.msra.mxu0 %v4690
        %5227 = vmatprep.subr.mxu0 0.0
        %5228 = vmatpush1.msra.mxu0 %v4691
        %5229 = vmatprep.subr.mxu0 0.0
        %5230 = vmatpush1.msra.mxu0 %v4692
        %5231 = vmatprep.subr.mxu0 0.0
        %5232 = vmatpush1.msra.mxu0 %v4693
        %5233 = vmatprep.subr.mxu0 0.0
        %5234 = vmatpush1.msra.mxu0 0.0
        %5235 = vmatprep.subr.mxu0 0.0
        %5236 = vmatpush1.msra.mxu0 0.0
        %5237 = vmatprep.subr.mxu0 0.0
        %5238 = vmatpush1.msra.mxu0 0.0
        %5239 = vmatprep.subr.mxu0 0.0
        %5240 = vmatpush1.msra.mxu0 0.0
        %5241 = vmatprep.subr.mxu0 0.0
        %5242 = vmatpush1.msra.mxu0 0.0
        %5243 = vmatprep.subr.mxu0 0.0
        %5244 = vmatpush1.msra.mxu0 0.0
        %5245 = vmatprep.subr.mxu0 0.0
        %5246 = vmatpush1.msra.mxu0 0.0
        %5247 = vmatprep.subr.mxu0 0.0
        %5248 = vmatpush1.msra.mxu0 0.0
        %5249 = vmatprep.subr.mxu0 0.0
        %5250 = vmatpush1.msra.mxu0 0.0
        %5251 = vmatprep.subr.mxu0 0.0
        %5252 = vmatpush1.msra.mxu0 0.0
        %5253 = vmatprep.subr.mxu0 0.0
        %5254 = vmatpush1.msra.mxu0 0.0
        %5255 = vmatprep.subr.mxu0 0.0
        %5256 = vmatpush1.msra.mxu0 0.0
        %5257 = vmatprep.subr.mxu0 0.0
        %5258 = vmatpush1.msra.mxu0 0.0
        %5259 = vmatprep.subr.mxu0 0.0
        %5260 = vmatpush1.msra.mxu0 0.0
        %5261 = vmatprep.subr.mxu0 0.0
        %5262 = vmatpush1.msra.mxu0 0.0
        %5263 = vmatprep.subr.mxu0 0.0
        %5264 = vmatpush1.msra.mxu0 0.0
        %5265 = vmatprep.subr.mxu0 0.0
        %5266 = vmatpush1.msra.mxu0 0.0
        %5267 = vmatprep.subr.mxu0 0.0
        %5268 = vmatpush1.msra.mxu0 0.0
        %5269 = vmatprep.subr.mxu0 0.0
        %5270 = vmatpush1.msra.mxu0 0.0
        %5271 = vmatprep.subr.mxu0 0.0
        %5272 = vmatpush1.msra.mxu0 0.0
        %5273 = vmatprep.subr.mxu0 0.0
        %5274 = vmatpush1.msra.mxu0 0.0
        %5275 = vmatprep.subr.mxu0 0.0
        %5276 = vmatpush1.msra.mxu0 0.0
        %5277 = vmatprep.subr.mxu0 0.0
        %5278 = vmatpush1.msra.mxu0 0.0
        %5279 = vmatprep.subr.mxu0 0.0
        %5280 = vmatpush1.msra.mxu0 0.0
        %5281 = vmatprep.subr.mxu0 0.0
        %5282 = vmatpush1.msra.mxu0 0.0
        %5283 = vmatprep.subr.mxu0 0.0
        %5284 = vmatpush1.msra.mxu0 0.0
        %5285 = vmatprep.subr.mxu0 0.0
        %5286 = vmatpush1.msra.mxu0 0.0
        %5287 = vmatprep.subr.mxu0 0.0
        %5288 = vmatpush1.msra.mxu0 0.0
        %5289 = vmatprep.mubr.f32.mxu0 0.0
        %5290 = vmatmul.mubr.f32.gmra.mrb[0].mxu0 %v4779
        %v5291 = vpop.f32.mrb[0].mxu0
        %v5292 = vadd.f32 %v5076, %v5291
        %v5293 = vpop.f32.mrb[0].mxu0
        %5294 = vdwg.mxu0
        %5295 = vmatprep.subr.mxu0 0.0
        %5296 = vmatpush1.msra.mxu0 %v4694
        %5297 = vmatprep.subr.mxu0 0.0
        %5298 = vmatpush1.msra.mxu0 %v4695
        %5299 = vmatprep.subr.mxu0 0.0
        %5300 = vmatpush1.msra.mxu0 %v4696
        %5301 = vmatprep.subr.mxu0 0.0
        %5302 = vmatpush1.msra.mxu0 %v4697
        %5303 = vmatprep.subr.mxu0 0.0
        %5304 = vmatpush1.msra.mxu0 0.0
        %5305 = vmatprep.subr.mxu0 0.0
        %5306 = vmatpush1.msra.mxu0 0.0
        %5307 = vmatprep.subr.mxu0 0.0
        %5308 = vmatpush1.msra.mxu0 0.0
        %5309 = vmatprep.subr.mxu0 0.0
        %5310 = vmatpush1.msra.mxu0 0.0
        %5311 = vmatprep.subr.mxu0 0.0
        %5312 = vmatpush1.msra.mxu0 0.0
        %5313 = vmatprep.subr.mxu0 0.0
        %5314 = vmatpush1.msra.mxu0 0.0
        %5315 = vmatprep.subr.mxu0 0.0
        %5316 = vmatpush1.msra.mxu0 0.0
        %5317 = vmatprep.subr.mxu0 0.0
        %5318 = vmatpush1.msra.mxu0 0.0
        %5319 = vmatprep.subr.mxu0 0.0
        %5320 = vmatpush1.msra.mxu0 0.0
        %5321 = vmatprep.subr.mxu0 0.0
        %5322 = vmatpush1.msra.mxu0 0.0
        %5323 = vmatprep.subr.mxu0 0.0
        %5324 = vmatpush1.msra.mxu0 0.0
        %5325 = vmatprep.subr.mxu0 0.0
        %5326 = vmatpush1.msra.mxu0 0.0
        %5327 = vmatprep.subr.mxu0 0.0
        %5328 = vmatpush1.msra.mxu0 0.0
        %5329 = vmatprep.subr.mxu0 0.0
        %5330 = vmatpush1.msra.mxu0 0.0
        %5331 = vmatprep.subr.mxu0 0.0
        %5332 = vmatpush1.msra.mxu0 0.0
        %5333 = vmatprep.subr.mxu0 0.0
        %5334 = vmatpush1.msra.mxu0 0.0
        %5335 = vmatprep.subr.mxu0 0.0
        %5336 = vmatpush1.msra.mxu0 0.0
        %5337 = vmatprep.subr.mxu0 0.0
        %5338 = vmatpush1.msra.mxu0 0.0
        %5339 = vmatprep.subr.mxu0 0.0
        %5340 = vmatpush1.msra.mxu0 0.0
        %5341 = vmatprep.subr.mxu0 0.0
        %5342 = vmatpush1.msra.mxu0 0.0
        %5343 = vmatprep.subr.mxu0 0.0
        %5344 = vmatpush1.msra.mxu0 0.0
        %5345 = vmatprep.subr.mxu0 0.0
        %5346 = vmatpush1.msra.mxu0 0.0
        %5347 = vmatprep.subr.mxu0 0.0
        %5348 = vmatpush1.msra.mxu0 0.0
        %5349 = vmatprep.subr.mxu0 0.0
        %5350 = vmatpush1.msra.mxu0 0.0
        %5351 = vmatprep.subr.mxu0 0.0
        %5352 = vmatpush1.msra.mxu0 0.0
        %5353 = vmatprep.subr.mxu0 0.0
        %5354 = vmatpush1.msra.mxu0 0.0
        %5355 = vmatprep.subr.mxu0 0.0
        %5356 = vmatpush1.msra.mxu0 0.0
        %5357 = vmatprep.subr.mxu0 0.0
        %5358 = vmatpush1.msra.mxu0 0.0
        %5359 = vmatprep.mubr.f32.mxu0 0.0
        %5360 = vmatmul.mubr.f32.gmra.mrb[0].mxu0 %v4779
        %v5361 = vpop.f32.mrb[0].mxu0
        %v5362 = vadd.f32 %v5080, %v5361
        %v5363 = vpop.f32.mrb[0].mxu0
        %5364 = vdwg.mxu0
        %v5369 = vlaneseq
        %v5370 = vshrl.u32 %v5369, 7
        %v5371 = vsub.s32 0, %v5370
        %v5372 = vrot.slane %v4721, %v5371
        %v5373 = vlaneseq
        %v5374 = vshrl.u32 %v5373, 7
        %v5375 = vsub.s32 0, %v5374
        %v5376 = vrot.slane %v4722, %v5375
        %v5377 = vlaneseq
        %v5378 = vshrl.u32 %v5377, 7
        %v5379 = vsub.s32 0, %v5378
        %v5380 = vrot.slane %v4723, %v5379
        %v5381 = vlaneseq
        %v5382 = vshrl.u32 %v5381, 7
        %v5383 = vsub.s32 0, %v5382
        %v5384 = vrot.slane %v4724, %v5383
        %5389 = vmatprep.subr.mxu0 0.0
        %5390 = vmatpush1.msra.mxu0 %v4704
        %5391 = vmatprep.subr.mxu0 0.0
        %5392 = vmatpush1.msra.mxu0 %v4705
        %5393 = vmatprep.subr.mxu0 0.0
        %5394 = vmatpush1.msra.mxu0 %v4706
        %5395 = vmatprep.subr.mxu0 0.0
        %5396 = vmatpush1.msra.mxu0 %v4707
        %5397 = vmatprep.subr.mxu0 0.0
        %5398 = vmatpush1.msra.mxu0 0.0
        %5399 = vmatprep.subr.mxu0 0.0
        %5400 = vmatpush1.msra.mxu0 0.0
        %5401 = vmatprep.subr.mxu0 0.0
        %5402 = vmatpush1.msra.mxu0 0.0
        %5403 = vmatprep.subr.mxu0 0.0
        %5404 = vmatpush1.msra.mxu0 0.0
        %5405 = vmatprep.subr.mxu0 0.0
        %5406 = vmatpush1.msra.mxu0 0.0
        %5407 = vmatprep.subr.mxu0 0.0
        %5408 = vmatpush1.msra.mxu0 0.0
        %5409 = vmatprep.subr.mxu0 0.0
        %5410 = vmatpush1.msra.mxu0 0.0
        %5411 = vmatprep.subr.mxu0 0.0
        %5412 = vmatpush1.msra.mxu0 0.0
        %5413 = vmatprep.subr.mxu0 0.0
        %5414 = vmatpush1.msra.mxu0 0.0
        %5415 = vmatprep.subr.mxu0 0.0
        %5416 = vmatpush1.msra.mxu0 0.0
        %5417 = vmatprep.subr.mxu0 0.0
        %5418 = vmatpush1.msra.mxu0 0.0
        %5419 = vmatprep.subr.mxu0 0.0
        %5420 = vmatpush1.msra.mxu0 0.0
        %5421 = vmatprep.subr.mxu0 0.0
        %5422 = vmatpush1.msra.mxu0 0.0
        %5423 = vmatprep.subr.mxu0 0.0
        %5424 = vmatpush1.msra.mxu0 0.0
        %5425 = vmatprep.subr.mxu0 0.0
        %5426 = vmatpush1.msra.mxu0 0.0
        %5427 = vmatprep.subr.mxu0 0.0
        %5428 = vmatpush1.msra.mxu0 0.0
        %5429 = vmatprep.subr.mxu0 0.0
        %5430 = vmatpush1.msra.mxu0 0.0
        %5431 = vmatprep.subr.mxu0 0.0
        %5432 = vmatpush1.msra.mxu0 0.0
        %5433 = vmatprep.subr.mxu0 0.0
        %5434 = vmatpush1.msra.mxu0 0.0
        %5435 = vmatprep.subr.mxu0 0.0
        %5436 = vmatpush1.msra.mxu0 0.0
        %5437 = vmatprep.subr.mxu0 0.0
        %5438 = vmatpush1.msra.mxu0 0.0
        %5439 = vmatprep.subr.mxu0 0.0
        %5440 = vmatpush1.msra.mxu0 0.0
        %5441 = vmatprep.subr.mxu0 0.0
        %5442 = vmatpush1.msra.mxu0 0.0
        %5443 = vmatprep.subr.mxu0 0.0
        %5444 = vmatpush1.msra.mxu0 0.0
        %5445 = vmatprep.subr.mxu0 0.0
        %5446 = vmatpush1.msra.mxu0 0.0
        %5447 = vmatprep.subr.mxu0 0.0
        %5448 = vmatpush1.msra.mxu0 0.0
        %5449 = vmatprep.subr.mxu0 0.0
        %5450 = vmatpush1.msra.mxu0 0.0
        %5451 = vmatprep.subr.mxu0 0.0
        %5452 = vmatpush1.msra.mxu0 0.0
        %5453 = vmatprep.mubr.f32.mxu0 0.0
        %5454 = vmatmul.mubr.f32.gmra.mrb[0].mxu0 %v4779
        %v5455 = vpop.f32.mrb[0].mxu0
        %v5456 = vadd.f32 %v5372, %v5455
        %v5457 = vpop.f32.mrb[0].mxu0
        %5458 = vdwg.mxu0
        %5459 = vmatprep.subr.mxu0 0.0
        %5460 = vmatpush1.msra.mxu0 %v4708
        %5461 = vmatprep.subr.mxu0 0.0
        %5462 = vmatpush1.msra.mxu0 %v4709
        %5463 = vmatprep.subr.mxu0 0.0
        %5464 = vmatpush1.msra.mxu0 %v4710
        %5465 = vmatprep.subr.mxu0 0.0
        %5466 = vmatpush1.msra.mxu0 %v4711
        %5467 = vmatprep.subr.mxu0 0.0
        %5468 = vmatpush1.msra.mxu0 0.0
        %5469 = vmatprep.subr.mxu0 0.0
        %5470 = vmatpush1.msra.mxu0 0.0
        %5471 = vmatprep.subr.mxu0 0.0
        %5472 = vmatpush1.msra.mxu0 0.0
        %5473 = vmatprep.subr.mxu0 0.0
        %5474 = vmatpush1.msra.mxu0 0.0
        %5475 = vmatprep.subr.mxu0 0.0
        %5476 = vmatpush1.msra.mxu0 0.0
        %5477 = vmatprep.subr.mxu0 0.0
        %5478 = vmatpush1.msra.mxu0 0.0
        %5479 = vmatprep.subr.mxu0 0.0
        %5480 = vmatpush1.msra.mxu0 0.0
        %5481 = vmatprep.subr.mxu0 0.0
        %5482 = vmatpush1.msra.mxu0 0.0
        %5483 = vmatprep.subr.mxu0 0.0
        %5484 = vmatpush1.msra.mxu0 0.0
        %5485 = vmatprep.subr.mxu0 0.0
        %5486 = vmatpush1.msra.mxu0 0.0
        %5487 = vmatprep.subr.mxu0 0.0
        %5488 = vmatpush1.msra.mxu0 0.0
        %5489 = vmatprep.subr.mxu0 0.0
        %5490 = vmatpush1.msra.mxu0 0.0
        %5491 = vmatprep.subr.mxu0 0.0
        %5492 = vmatpush1.msra.mxu0 0.0
        %5493 = vmatprep.subr.mxu0 0.0
        %5494 = vmatpush1.msra.mxu0 0.0
        %5495 = vmatprep.subr.mxu0 0.0
        %5496 = vmatpush1.msra.mxu0 0.0
        %5497 = vmatprep.subr.mxu0 0.0
        %5498 = vmatpush1.msra.mxu0 0.0
        %5499 = vmatprep.subr.mxu0 0.0
        %5500 = vmatpush1.msra.mxu0 0.0
        %5501 = vmatprep.subr.mxu0 0.0
        %5502 = vmatpush1.msra.mxu0 0.0
        %5503 = vmatprep.subr.mxu0 0.0
        %5504 = vmatpush1.msra.mxu0 0.0
        %5505 = vmatprep.subr.mxu0 0.0
        %5506 = vmatpush1.msra.mxu0 0.0
        %5507 = vmatprep.subr.mxu0 0.0
        %5508 = vmatpush1.msra.mxu0 0.0
        %5509 = vmatprep.subr.mxu0 0.0
        %5510 = vmatpush1.msra.mxu0 0.0
        %5511 = vmatprep.subr.mxu0 0.0
        %5512 = vmatpush1.msra.mxu0 0.0
        %5513 = vmatprep.subr.mxu0 0.0
        %5514 = vmatpush1.msra.mxu0 0.0
        %5515 = vmatprep.subr.mxu0 0.0
        %5516 = vmatpush1.msra.mxu0 0.0
        %5517 = vmatprep.subr.mxu0 0.0
        %5518 = vmatpush1.msra.mxu0 0.0
        %5519 = vmatprep.subr.mxu0 0.0
        %5520 = vmatpush1.msra.mxu0 0.0
        %5521 = vmatprep.subr.mxu0 0.0
        %5522 = vmatpush1.msra.mxu0 0.0
        %5523 = vmatprep.mubr.f32.mxu0 0.0
        %5524 = vmatmul.mubr.f32.gmra.mrb[0].mxu0 %v4779
        %v5525 = vpop.f32.mrb[0].mxu0
        %v5526 = vadd.f32 %v5376, %v5525
        %v5527 = vpop.f32.mrb[0].mxu0
        %5528 = vdwg.mxu0
        %5529 = vmatprep.subr.mxu0 0.0
        %5530 = vmatpush1.msra.mxu0 %v4712
        %5531 = vmatprep.subr.mxu0 0.0
        %5532 = vmatpush1.msra.mxu0 %v4713
        %5533 = vmatprep.subr.mxu0 0.0
        %5534 = vmatpush1.msra.mxu0 %v4714
        %5535 = vmatprep.subr.mxu0 0.0
        %5536 = vmatpush1.msra.mxu0 %v4715
        %5537 = vmatprep.subr.mxu0 0.0
        %5538 = vmatpush1.msra.mxu0 0.0
        %5539 = vmatprep.subr.mxu0 0.0
        %5540 = vmatpush1.msra.mxu0 0.0
        %5541 = vmatprep.subr.mxu0 0.0
        %5542 = vmatpush1.msra.mxu0 0.0
        %5543 = vmatprep.subr.mxu0 0.0
        %5544 = vmatpush1.msra.mxu0 0.0
        %5545 = vmatprep.subr.mxu0 0.0
        %5546 = vmatpush1.msra.mxu0 0.0
        %5547 = vmatprep.subr.mxu0 0.0
        %5548 = vmatpush1.msra.mxu0 0.0
        %5549 = vmatprep.subr.mxu0 0.0
        %5550 = vmatpush1.msra.mxu0 0.0
        %5551 = vmatprep.subr.mxu0 0.0
        %5552 = vmatpush1.msra.mxu0 0.0
        %5553 = vmatprep.subr.mxu0 0.0
        %5554 = vmatpush1.msra.mxu0 0.0
        %5555 = vmatprep.subr.mxu0 0.0
        %5556 = vmatpush1.msra.mxu0 0.0
        %5557 = vmatprep.subr.mxu0 0.0
        %5558 = vmatpush1.msra.mxu0 0.0
        %5559 = vmatprep.subr.mxu0 0.0
        %5560 = vmatpush1.msra.mxu0 0.0
        %5561 = vmatprep.subr.mxu0 0.0
        %5562 = vmatpush1.msra.mxu0 0.0
        %5563 = vmatprep.subr.mxu0 0.0
        %5564 = vmatpush1.msra.mxu0 0.0
        %5565 = vmatprep.subr.mxu0 0.0
        %5566 = vmatpush1.msra.mxu0 0.0
        %5567 = vmatprep.subr.mxu0 0.0
        %5568 = vmatpush1.msra.mxu0 0.0
        %5569 = vmatprep.subr.mxu0 0.0
        %5570 = vmatpush1.msra.mxu0 0.0
        %5571 = vmatprep.subr.mxu0 0.0
        %5572 = vmatpush1.msra.mxu0 0.0
        %5573 = vmatprep.subr.mxu0 0.0
        %5574 = vmatpush1.msra.mxu0 0.0
        %5575 = vmatprep.subr.mxu0 0.0
        %5576 = vmatpush1.msra.mxu0 0.0
        %5577 = vmatprep.subr.mxu0 0.0
        %5578 = vmatpush1.msra.mxu0 0.0
        %5579 = vmatprep.subr.mxu0 0.0
        %5580 = vmatpush1.msra.mxu0 0.0
        %5581 = vmatprep.subr.mxu0 0.0
        %5582 = vmatpush1.msra.mxu0 0.0
        %5583 = vmatprep.subr.mxu0 0.0
        %5584 = vmatpush1.msra.mxu0 0.0
        %5585 = vmatprep.subr.mxu0 0.0
        %5586 = vmatpush1.msra.mxu0 0.0
        %5587 = vmatprep.subr.mxu0 0.0
        %5588 = vmatpush1.msra.mxu0 0.0
        %5589 = vmatprep.subr.mxu0 0.0
        %5590 = vmatpush1.msra.mxu0 0.0
        %5591 = vmatprep.subr.mxu0 0.0
        %5592 = vmatpush1.msra.mxu0 0.0
        %5593 = vmatprep.mubr.f32.mxu0 0.0
        %5594 = vmatmul.mubr.f32.gmra.mrb[0].mxu0 %v4779
        %v5595 = vpop.f32.mrb[0].mxu0
        %v5596 = vadd.f32 %v5380, %v5595
        %v5597 = vpop.f32.mrb[0].mxu0
        %5598 = vdwg.mxu0
        %5599 = vmatprep.subr.mxu0 0.0
        %5600 = vmatpush1.msra.mxu0 %v4716
        %5601 = vmatprep.subr.mxu0 0.0
        %5602 = vmatpush1.msra.mxu0 %v4717
        %5603 = vmatprep.subr.mxu0 0.0
        %5604 = vmatpush1.msra.mxu0 %v4718
        %5605 = vmatprep.subr.mxu0 0.0
        %5606 = vmatpush1.msra.mxu0 %v4719
        %5607 = vmatprep.subr.mxu0 0.0
        %5608 = vmatpush1.msra.mxu0 0.0
        %5609 = vmatprep.subr.mxu0 0.0
        %5610 = vmatpush1.msra.mxu0 0.0
        %5611 = vmatprep.subr.mxu0 0.0
        %5612 = vmatpush1.msra.mxu0 0.0
        %5613 = vmatprep.subr.mxu0 0.0
        %5614 = vmatpush1.msra.mxu0 0.0
        %5615 = vmatprep.subr.mxu0 0.0
        %5616 = vmatpush1.msra.mxu0 0.0
        %5617 = vmatprep.subr.mxu0 0.0
        %5618 = vmatpush1.msra.mxu0 0.0
        %5619 = vmatprep.subr.mxu0 0.0
        %5620 = vmatpush1.msra.mxu0 0.0
        %5621 = vmatprep.subr.mxu0 0.0
        %5622 = vmatpush1.msra.mxu0 0.0
        %5623 = vmatprep.subr.mxu0 0.0
        %5624 = vmatpush1.msra.mxu0 0.0
        %5625 = vmatprep.subr.mxu0 0.0
        %5626 = vmatpush1.msra.mxu0 0.0
        %5627 = vmatprep.subr.mxu0 0.0
        %5628 = vmatpush1.msra.mxu0 0.0
        %5629 = vmatprep.subr.mxu0 0.0
        %5630 = vmatpush1.msra.mxu0 0.0
        %5631 = vmatprep.subr.mxu0 0.0
        %5632 = vmatpush1.msra.mxu0 0.0
        %5633 = vmatprep.subr.mxu0 0.0
        %5634 = vmatpush1.msra.mxu0 0.0
        %5635 = vmatprep.subr.mxu0 0.0
        %5636 = vmatpush1.msra.mxu0 0.0
        %5637 = vmatprep.subr.mxu0 0.0
        %5638 = vmatpush1.msra.mxu0 0.0
        %5639 = vmatprep.subr.mxu0 0.0
        %5640 = vmatpush1.msra.mxu0 0.0
        %5641 = vmatprep.subr.mxu0 0.0
        %5642 = vmatpush1.msra.mxu0 0.0
        %5643 = vmatprep.subr.mxu0 0.0
        %5644 = vmatpush1.msra.mxu0 0.0
        %5645 = vmatprep.subr.mxu0 0.0
        %5646 = vmatpush1.msra.mxu0 0.0
        %5647 = vmatprep.subr.mxu0 0.0
        %5648 = vmatpush1.msra.mxu0 0.0
        %5649 = vmatprep.subr.mxu0 0.0
        %5650 = vmatpush1.msra.mxu0 0.0
        %5651 = vmatprep.subr.mxu0 0.0
        %5652 = vmatpush1.msra.mxu0 0.0
        %5653 = vmatprep.subr.mxu0 0.0
        %5654 = vmatpush1.msra.mxu0 0.0
        %5655 = vmatprep.subr.mxu0 0.0
        %5656 = vmatpush1.msra.mxu0 0.0
        %5657 = vmatprep.subr.mxu0 0.0
        %5658 = vmatpush1.msra.mxu0 0.0
        %5659 = vmatprep.subr.mxu0 0.0
        %5660 = vmatpush1.msra.mxu0 0.0
        %5661 = vmatprep.subr.mxu0 0.0
        %5662 = vmatpush1.msra.mxu0 0.0
        %5663 = vmatprep.mubr.f32.mxu0 0.0
        %5664 = vmatmul.mubr.f32.gmra.mrb[0].mxu0 %v4779
        %v5665 = vpop.f32.mrb[0].mxu0
        %v5666 = vadd.f32 %v5384, %v5665
        %v5667 = vpop.f32.mrb[0].mxu0
        %5668 = vdwg.mxu0
        %v5670 = vsel %vm1686, %v4848, 0
        %v5673 = vsel %vm1686, %v5152, 0
        %5675 = vmatprep.subr.mxu0 0.0
        %5676 = vmatpush1.xpose.msra.mxu0 %v5673
        %5677 = vmatprep.subr.mxu0 0.0
        %5678 = vmatpush1.xpose.msra.mxu0 0.0
        %5679 = vmatprep.subr.mxu0 0.0
        %5680 = vmatpush1.xpose.msra.mxu0 0.0
        %5681 = vmatprep.subr.mxu0 0.0
        %5682 = vmatpush1.xpose.msra.mxu0 0.0
        %5683 = vmatprep.subr.mxu0 0.0
        %5684 = vmatpush1.xpose.msra.mxu0 0.0
        %5685 = vmatprep.subr.mxu0 0.0
        %5686 = vmatpush1.xpose.msra.mxu0 0.0
        %5687 = vmatprep.subr.mxu0 0.0
        %5688 = vmatpush1.xpose.msra.mxu0 0.0
        %5689 = vmatprep.subr.mxu0 0.0
        %5690 = vmatpush1.xpose.msra.mxu0 0.0
        %5691 = vmatprep.subr.mxu0 0.0
        %5692 = vmatpush1.xpose.msra.mxu0 0.0
        %5693 = vmatprep.subr.mxu0 0.0
        %5694 = vmatpush1.xpose.msra.mxu0 0.0
        %5695 = vmatprep.subr.mxu0 0.0
        %5696 = vmatpush1.xpose.msra.mxu0 0.0
        %5697 = vmatprep.subr.mxu0 0.0
        %5698 = vmatpush1.xpose.msra.mxu0 0.0
        %5699 = vmatprep.subr.mxu0 0.0
        %5700 = vmatpush1.xpose.msra.mxu0 0.0
        %5701 = vmatprep.subr.mxu0 0.0
        %5702 = vmatpush1.xpose.msra.mxu0 0.0
        %5703 = vmatprep.subr.mxu0 0.0
        %5704 = vmatpush1.xpose.msra.mxu0 0.0
        %5705 = vmatprep.subr.mxu0 0.0
        %5706 = vmatpush1.xpose.msra.mxu0 0.0
        %5707 = vmatprep.subr.mxu0 0.0
        %5708 = vmatpush1.xpose.msra.mxu0 0.0
        %5709 = vmatprep.subr.mxu0 0.0
        %5710 = vmatpush1.xpose.msra.mxu0 0.0
        %5711 = vmatprep.subr.mxu0 0.0
        %5712 = vmatpush1.xpose.msra.mxu0 0.0
        %5713 = vmatprep.subr.mxu0 0.0
        %5714 = vmatpush1.xpose.msra.mxu0 0.0
        %5715 = vmatprep.subr.mxu0 0.0
        %5716 = vmatpush1.xpose.msra.mxu0 0.0
        %5717 = vmatprep.subr.mxu0 0.0
        %5718 = vmatpush1.xpose.msra.mxu0 0.0
        %5719 = vmatprep.subr.mxu0 0.0
        %5720 = vmatpush1.xpose.msra.mxu0 0.0
        %5721 = vmatprep.subr.mxu0 0.0
        %5722 = vmatpush1.xpose.msra.mxu0 0.0
        %5723 = vmatprep.subr.mxu0 0.0
        %5724 = vmatpush1.xpose.msra.mxu0 0.0
        %5725 = vmatprep.subr.mxu0 0.0
        %5726 = vmatpush1.xpose.msra.mxu0 0.0
        %5727 = vmatprep.subr.mxu0 0.0
        %5728 = vmatpush1.xpose.msra.mxu0 0.0
        %5729 = vmatprep.subr.mxu0 0.0
        %5730 = vmatpush1.xpose.msra.mxu0 0.0
        %5731 = vmatprep.subr.mxu0 0.0
        %5732 = vmatpush1.xpose.msra.mxu0 0.0
        %5733 = vmatprep.subr.mxu0 0.0
        %5734 = vmatpush1.xpose.msra.mxu0 0.0
        %5735 = vmatprep.subr.mxu0 0.0
        %5736 = vmatpush1.xpose.msra.mxu0 0.0
        %5737 = vmatprep.subr.mxu0 0.0
        %5738 = vmatpush1.xpose.msra.mxu0 0.0
        %5739 = vmatprep.mubr.f32.mxu0 0.0
        %5740 = vmatmul.mubr.f32.gmra.mrb[0].mxu0 %v5670
        %v5741 = vpop.f32.mrb[0].mxu0
        %v5742 = vadd.f32 0.0, %v5741
        %v5743 = vpop.f32.mrb[0].mxu0
        %5744 = vdwg.mxu0
        %v5746 = vsel %vm1686, %v4918, 0
        %v5749 = vsel %vm1686, %v5222, 0
        %5751 = vmatprep.subr.mxu0 0.0
        %5752 = vmatpush1.xpose.msra.mxu0 %v5749
        %5753 = vmatprep.subr.mxu0 0.0
        %5754 = vmatpush1.xpose.msra.mxu0 0.0
        %5755 = vmatprep.subr.mxu0 0.0
        %5756 = vmatpush1.xpose.msra.mxu0 0.0
        %5757 = vmatprep.subr.mxu0 0.0
        %5758 = vmatpush1.xpose.msra.mxu0 0.0
        %5759 = vmatprep.subr.mxu0 0.0
        %5760 = vmatpush1.xpose.msra.mxu0 0.0
        %5761 = vmatprep.subr.mxu0 0.0
        %5762 = vmatpush1.xpose.msra.mxu0 0.0
        %5763 = vmatprep.subr.mxu0 0.0
        %5764 = vmatpush1.xpose.msra.mxu0 0.0
        %5765 = vmatprep.subr.mxu0 0.0
        %5766 = vmatpush1.xpose.msra.mxu0 0.0
        %5767 = vmatprep.subr.mxu0 0.0
        %5768 = vmatpush1.xpose.msra.mxu0 0.0
        %5769 = vmatprep.subr.mxu0 0.0
        %5770 = vmatpush1.xpose.msra.mxu0 0.0
        %5771 = vmatprep.subr.mxu0 0.0
        %5772 = vmatpush1.xpose.msra.mxu0 0.0
        %5773 = vmatprep.subr.mxu0 0.0
        %5774 = vmatpush1.xpose.msra.mxu0 0.0
        %5775 = vmatprep.subr.mxu0 0.0
        %5776 = vmatpush1.xpose.msra.mxu0 0.0
        %5777 = vmatprep.subr.mxu0 0.0
        %5778 = vmatpush1.xpose.msra.mxu0 0.0
        %5779 = vmatprep.subr.mxu0 0.0
        %5780 = vmatpush1.xpose.msra.mxu0 0.0
        %5781 = vmatprep.subr.mxu0 0.0
        %5782 = vmatpush1.xpose.msra.mxu0 0.0
        %5783 = vmatprep.subr.mxu0 0.0
        %5784 = vmatpush1.xpose.msra.mxu0 0.0
        %5785 = vmatprep.subr.mxu0 0.0
        %5786 = vmatpush1.xpose.msra.mxu0 0.0
        %5787 = vmatprep.subr.mxu0 0.0
        %5788 = vmatpush1.xpose.msra.mxu0 0.0
        %5789 = vmatprep.subr.mxu0 0.0
        %5790 = vmatpush1.xpose.msra.mxu0 0.0
        %5791 = vmatprep.subr.mxu0 0.0
        %5792 = vmatpush1.xpose.msra.mxu0 0.0
        %5793 = vmatprep.subr.mxu0 0.0
        %5794 = vmatpush1.xpose.msra.mxu0 0.0
        %5795 = vmatprep.subr.mxu0 0.0
        %5796 = vmatpush1.xpose.msra.mxu0 0.0
        %5797 = vmatprep.subr.mxu0 0.0
        %5798 = vmatpush1.xpose.msra.mxu0 0.0
        %5799 = vmatprep.subr.mxu0 0.0
        %5800 = vmatpush1.xpose.msra.mxu0 0.0
        %5801 = vmatprep.subr.mxu0 0.0
        %5802 = vmatpush1.xpose.msra.mxu0 0.0
        %5803 = vmatprep.subr.mxu0 0.0
        %5804 = vmatpush1.xpose.msra.mxu0 0.0
        %5805 = vmatprep.subr.mxu0 0.0
        %5806 = vmatpush1.xpose.msra.mxu0 0.0
        %5807 = vmatprep.subr.mxu0 0.0
        %5808 = vmatpush1.xpose.msra.mxu0 0.0
        %5809 = vmatprep.subr.mxu0 0.0
        %5810 = vmatpush1.xpose.msra.mxu0 0.0
        %5811 = vmatprep.subr.mxu0 0.0
        %5812 = vmatpush1.xpose.msra.mxu0 0.0
        %5813 = vmatprep.subr.mxu0 0.0
        %5814 = vmatpush1.xpose.msra.mxu0 0.0
        %5815 = vmatprep.mubr.f32.mxu0 0.0
        %5816 = vmatmul.mubr.f32.gmra.mrb[0].mxu0 %v5746
        %v5817 = vpop.f32.mrb[0].mxu0
        %v5818 = vadd.f32 0.0, %v5817
        %v5819 = vpop.f32.mrb[0].mxu0
        %5820 = vdwg.mxu0
        %v5822 = vsel %vm1686, %v4988, 0
        %v5825 = vsel %vm1686, %v5292, 0
        %5827 = vmatprep.subr.mxu0 0.0
        %5828 = vmatpush1.xpose.msra.mxu0 %v5825
        %5829 = vmatprep.subr.mxu0 0.0
        %5830 = vmatpush1.xpose.msra.mxu0 0.0
        %5831 = vmatprep.subr.mxu0 0.0
        %5832 = vmatpush1.xpose.msra.mxu0 0.0
        %5833 = vmatprep.subr.mxu0 0.0
        %5834 = vmatpush1.xpose.msra.mxu0 0.0
        %5835 = vmatprep.subr.mxu0 0.0
        %5836 = vmatpush1.xpose.msra.mxu0 0.0
        %5837 = vmatprep.subr.mxu0 0.0
        %5838 = vmatpush1.xpose.msra.mxu0 0.0
        %5839 = vmatprep.subr.mxu0 0.0
        %5840 = vmatpush1.xpose.msra.mxu0 0.0
        %5841 = vmatprep.subr.mxu0 0.0
        %5842 = vmatpush1.xpose.msra.mxu0 0.0
        %5843 = vmatprep.subr.mxu0 0.0
        %5844 = vmatpush1.xpose.msra.mxu0 0.0
        %5845 = vmatprep.subr.mxu0 0.0
        %5846 = vmatpush1.xpose.msra.mxu0 0.0
        %5847 = vmatprep.subr.mxu0 0.0
        %5848 = vmatpush1.xpose.msra.mxu0 0.0
        %5849 = vmatprep.subr.mxu0 0.0
        %5850 = vmatpush1.xpose.msra.mxu0 0.0
        %5851 = vmatprep.subr.mxu0 0.0
        %5852 = vmatpush1.xpose.msra.mxu0 0.0
        %5853 = vmatprep.subr.mxu0 0.0
        %5854 = vmatpush1.xpose.msra.mxu0 0.0
        %5855 = vmatprep.subr.mxu0 0.0
        %5856 = vmatpush1.xpose.msra.mxu0 0.0
        %5857 = vmatprep.subr.mxu0 0.0
        %5858 = vmatpush1.xpose.msra.mxu0 0.0
        %5859 = vmatprep.subr.mxu0 0.0
        %5860 = vmatpush1.xpose.msra.mxu0 0.0
        %5861 = vmatprep.subr.mxu0 0.0
        %5862 = vmatpush1.xpose.msra.mxu0 0.0
        %5863 = vmatprep.subr.mxu0 0.0
        %5864 = vmatpush1.xpose.msra.mxu0 0.0
        %5865 = vmatprep.subr.mxu0 0.0
        %5866 = vmatpush1.xpose.msra.mxu0 0.0
        %5867 = vmatprep.subr.mxu0 0.0
        %5868 = vmatpush1.xpose.msra.mxu0 0.0
        %5869 = vmatprep.subr.mxu0 0.0
        %5870 = vmatpush1.xpose.msra.mxu0 0.0
        %5871 = vmatprep.subr.mxu0 0.0
        %5872 = vmatpush1.xpose.msra.mxu0 0.0
        %5873 = vmatprep.subr.mxu0 0.0
        %5874 = vmatpush1.xpose.msra.mxu0 0.0
        %5875 = vmatprep.subr.mxu0 0.0
        %5876 = vmatpush1.xpose.msra.mxu0 0.0
        %5877 = vmatprep.subr.mxu0 0.0
        %5878 = vmatpush1.xpose.msra.mxu0 0.0
        %5879 = vmatprep.subr.mxu0 0.0
        %5880 = vmatpush1.xpose.msra.mxu0 0.0
        %5881 = vmatprep.subr.mxu0 0.0
        %5882 = vmatpush1.xpose.msra.mxu0 0.0
        %5883 = vmatprep.subr.mxu0 0.0
        %5884 = vmatpush1.xpose.msra.mxu0 0.0
        %5885 = vmatprep.subr.mxu0 0.0
        %5886 = vmatpush1.xpose.msra.mxu0 0.0
        %5887 = vmatprep.subr.mxu0 0.0
        %5888 = vmatpush1.xpose.msra.mxu0 0.0
        %5889 = vmatprep.subr.mxu0 0.0
        %5890 = vmatpush1.xpose.msra.mxu0 0.0
        %5891 = vmatprep.mubr.f32.mxu0 0.0
        %5892 = vmatmul.mubr.f32.gmra.mrb[0].mxu0 %v5822
        %v5893 = vpop.f32.mrb[0].mxu0
        %v5894 = vadd.f32 0.0, %v5893
        %v5895 = vpop.f32.mrb[0].mxu0
        %5896 = vdwg.mxu0
        %v5898 = vsel %vm1686, %v5058, 0
        %v5901 = vsel %vm1686, %v5362, 0
        %5903 = vmatprep.subr.mxu0 0.0
        %5904 = vmatpush1.xpose.msra.mxu0 %v5901
        %5905 = vmatprep.subr.mxu0 0.0
        %5906 = vmatpush1.xpose.msra.mxu0 0.0
        %5907 = vmatprep.subr.mxu0 0.0
        %5908 = vmatpush1.xpose.msra.mxu0 0.0
        %5909 = vmatprep.subr.mxu0 0.0
        %5910 = vmatpush1.xpose.msra.mxu0 0.0
        %5911 = vmatprep.subr.mxu0 0.0
        %5912 = vmatpush1.xpose.msra.mxu0 0.0
        %5913 = vmatprep.subr.mxu0 0.0
        %5914 = vmatpush1.xpose.msra.mxu0 0.0
        %5915 = vmatprep.subr.mxu0 0.0
        %5916 = vmatpush1.xpose.msra.mxu0 0.0
        %5917 = vmatprep.subr.mxu0 0.0
        %5918 = vmatpush1.xpose.msra.mxu0 0.0
        %5919 = vmatprep.subr.mxu0 0.0
        %5920 = vmatpush1.xpose.msra.mxu0 0.0
        %5921 = vmatprep.subr.mxu0 0.0
        %5922 = vmatpush1.xpose.msra.mxu0 0.0
        %5923 = vmatprep.subr.mxu0 0.0
        %5924 = vmatpush1.xpose.msra.mxu0 0.0
        %5925 = vmatprep.subr.mxu0 0.0
        %5926 = vmatpush1.xpose.msra.mxu0 0.0
        %5927 = vmatprep.subr.mxu0 0.0
        %5928 = vmatpush1.xpose.msra.mxu0 0.0
        %5929 = vmatprep.subr.mxu0 0.0
        %5930 = vmatpush1.xpose.msra.mxu0 0.0
        %5931 = vmatprep.subr.mxu0 0.0
        %5932 = vmatpush1.xpose.msra.mxu0 0.0
        %5933 = vmatprep.subr.mxu0 0.0
        %5934 = vmatpush1.xpose.msra.mxu0 0.0
        %5935 = vmatprep.subr.mxu0 0.0
        %5936 = vmatpush1.xpose.msra.mxu0 0.0
        %5937 = vmatprep.subr.mxu0 0.0
        %5938 = vmatpush1.xpose.msra.mxu0 0.0
        %5939 = vmatprep.subr.mxu0 0.0
        %5940 = vmatpush1.xpose.msra.mxu0 0.0
        %5941 = vmatprep.subr.mxu0 0.0
        %5942 = vmatpush1.xpose.msra.mxu0 0.0
        %5943 = vmatprep.subr.mxu0 0.0
        %5944 = vmatpush1.xpose.msra.mxu0 0.0
        %5945 = vmatprep.subr.mxu0 0.0
        %5946 = vmatpush1.xpose.msra.mxu0 0.0
        %5947 = vmatprep.subr.mxu0 0.0
        %5948 = vmatpush1.xpose.msra.mxu0 0.0
        %5949 = vmatprep.subr.mxu0 0.0
        %5950 = vmatpush1.xpose.msra.mxu0 0.0
        %5951 = vmatprep.subr.mxu0 0.0
        %5952 = vmatpush1.xpose.msra.mxu0 0.0
        %5953 = vmatprep.subr.mxu0 0.0
        %5954 = vmatpush1.xpose.msra.mxu0 0.0
        %5955 = vmatprep.subr.mxu0 0.0
        %5956 = vmatpush1.xpose.msra.mxu0 0.0
        %5957 = vmatprep.subr.mxu0 0.0
        %5958 = vmatpush1.xpose.msra.mxu0 0.0
        %5959 = vmatprep.subr.mxu0 0.0
        %5960 = vmatpush1.xpose.msra.mxu0 0.0
        %5961 = vmatprep.subr.mxu0 0.0
        %5962 = vmatpush1.xpose.msra.mxu0 0.0
        %5963 = vmatprep.subr.mxu0 0.0
        %5964 = vmatpush1.xpose.msra.mxu0 0.0
        %5965 = vmatprep.subr.mxu0 0.0
        %5966 = vmatpush1.xpose.msra.mxu0 0.0
        %5967 = vmatprep.mubr.f32.mxu0 0.0
        %5968 = vmatmul.mubr.f32.gmra.mrb[0].mxu0 %v5898
        %v5969 = vpop.f32.mrb[0].mxu0
        %v5970 = vadd.f32 0.0, %v5969
        %v5971 = vpop.f32.mrb[0].mxu0
        %5972 = vdwg.mxu0
        %v5973 = vsel %vm1992, -1e+09, %v5742
        %v5974 = vsel %vm1992, -1e+09, %v5818
        %v5975 = vsel %vm1992, -1e+09, %v5894
        %v5976 = vsel %vm1992, -1e+09, %v5970
        %v5977 = vsel %vm1686, %v5973, -inf
        %5978 = vmax.xlane.f32.xlu0 %v5977
        %v5979 = vpop.xlane.xlu0 %5978
        %v5980 = vsel %vm1686, %v5974, -inf
        %5981 = vmax.xlane.f32.xlu0 %v5980
        %v5982 = vpop.xlane.xlu0 %5981
        %v5983 = vsel %vm1686, %v5975, -inf
        %5984 = vmax.xlane.f32.xlu0 %v5983
        %v5985 = vpop.xlane.xlu0 %5984
        %v5986 = vsel %vm1686, %v5976, -inf
        %5987 = vmax.xlane.f32.xlu0 %v5986
        %v5988 = vpop.xlane.xlu0 %5987
        %v5989 = vsub.f32 %v5973, %v5979
        %v5990 = vsub.f32 %v5974, %v5982
        %v5991 = vsub.f32 %v5975, %v5985
        %v5992 = vsub.f32 %v5976, %v5988
        %v5993 = vmul.f32 %v5989, 1.442695
        %v5994 = vpow.pop %v5993
        %v5995 = vmul.f32 %v5990, 1.442695
        %v5996 = vpow.pop %v5995
        %v5997 = vmul.f32 %v5991, 1.442695
        %v5998 = vpow.pop %v5997
        %v5999 = vmul.f32 %v5992, 1.442695
        %v6000 = vpow.pop %v5999
        %v6001 = vsel %vm1686, %v5994, 0.0
        %6002 = vadd.xlane.f32.xlu0 %v6001
        %v6003 = vpop.xlane.xlu0 %6002
        %v6004 = vsel %vm1686, %v5996, 0.0
        %6005 = vadd.xlane.f32.xlu0 %v6004
        %v6006 = vpop.xlane.xlu0 %6005
        %v6007 = vsel %vm1686, %v5998, 0.0
        %6008 = vadd.xlane.f32.xlu0 %v6007
        %v6009 = vpop.xlane.xlu0 %6008
        %v6010 = vsel %vm1686, %v6000, 0.0
        %6011 = vadd.xlane.f32.xlu0 %v6010
        %v6012 = vpop.xlane.xlu0 %6011
        %v6013 = vrcp.pop %v6003
        %v6014 = vrcp.pop %v6006
        %v6015 = vrcp.pop %v6009
        %v6016 = vrcp.pop %v6012
        %v6017 = vmul.f32 %v5994, %v6013
        %v6018 = vmul.f32 %v5996, %v6014
        %v6019 = vmul.f32 %v5998, %v6015
        %v6020 = vmul.f32 %v6000, %v6016
        %v6022 = vsel %vm1686, %v6017, 0
        %6024 = vmatprep.subr.mxu0 0.0
        %6025 = vmatpush1.msra.mxu0 %v5456
        %6026 = vmatprep.subr.mxu0 0.0
        %6027 = vmatpush1.msra.mxu0 0.0
        %6028 = vmatprep.subr.mxu0 0.0
        %6029 = vmatpush1.msra.mxu0 0.0
        %6030 = vmatprep.subr.mxu0 0.0
        %6031 = vmatpush1.msra.mxu0 0.0
        %6032 = vmatprep.subr.mxu0 0.0
        %6033 = vmatpush1.msra.mxu0 0.0
        %6034 = vmatprep.subr.mxu0 0.0
        %6035 = vmatpush1.msra.mxu0 0.0
        %6036 = vmatprep.subr.mxu0 0.0
        %6037 = vmatpush1.msra.mxu0 0.0
        %6038 = vmatprep.subr.mxu0 0.0
        %6039 = vmatpush1.msra.mxu0 0.0
        %6040 = vmatprep.subr.mxu0 0.0
        %6041 = vmatpush1.msra.mxu0 0.0
        %6042 = vmatprep.subr.mxu0 0.0
        %6043 = vmatpush1.msra.mxu0 0.0
        %6044 = vmatprep.subr.mxu0 0.0
        %6045 = vmatpush1.msra.mxu0 0.0
        %6046 = vmatprep.subr.mxu0 0.0
        %6047 = vmatpush1.msra.mxu0 0.0
        %6048 = vmatprep.subr.mxu0 0.0
        %6049 = vmatpush1.msra.mxu0 0.0
        %6050 = vmatprep.subr.mxu0 0.0
        %6051 = vmatpush1.msra.mxu0 0.0
        %6052 = vmatprep.subr.mxu0 0.0
        %6053 = vmatpush1.msra.mxu0 0.0
        %6054 = vmatprep.subr.mxu0 0.0
        %6055 = vmatpush1.msra.mxu0 0.0
        %6056 = vmatprep.subr.mxu0 0.0
        %6057 = vmatpush1.msra.mxu0 0.0
        %6058 = vmatprep.subr.mxu0 0.0
        %6059 = vmatpush1.msra.mxu0 0.0
        %6060 = vmatprep.subr.mxu0 0.0
        %6061 = vmatpush1.msra.mxu0 0.0
        %6062 = vmatprep.subr.mxu0 0.0
        %6063 = vmatpush1.msra.mxu0 0.0
        %6064 = vmatprep.subr.mxu0 0.0
        %6065 = vmatpush1.msra.mxu0 0.0
        %6066 = vmatprep.subr.mxu0 0.0
        %6067 = vmatpush1.msra.mxu0 0.0
        %6068 = vmatprep.subr.mxu0 0.0
        %6069 = vmatpush1.msra.mxu0 0.0
        %6070 = vmatprep.subr.mxu0 0.0
        %6071 = vmatpush1.msra.mxu0 0.0
        %6072 = vmatprep.subr.mxu0 0.0
        %6073 = vmatpush1.msra.mxu0 0.0
        %6074 = vmatprep.subr.mxu0 0.0
        %6075 = vmatpush1.msra.mxu0 0.0
        %6076 = vmatprep.subr.mxu0 0.0
        %6077 = vmatpush1.msra.mxu0 0.0
        %6078 = vmatprep.subr.mxu0 0.0
        %6079 = vmatpush1.msra.mxu0 0.0
        %6080 = vmatprep.subr.mxu0 0.0
        %6081 = vmatpush1.msra.mxu0 0.0
        %6082 = vmatprep.subr.mxu0 0.0
        %6083 = vmatpush1.msra.mxu0 0.0
        %6084 = vmatprep.subr.mxu0 0.0
        %6085 = vmatpush1.msra.mxu0 0.0
        %6086 = vmatprep.subr.mxu0 0.0
        %6087 = vmatpush1.msra.mxu0 0.0
        %6088 = vmatprep.mubr.f32.mxu0 0.0
        %6089 = vmatmul.mubr.f32.gmra.mrb[0].mxu0 %v6022
        %v6090 = vpop.f32.mrb[0].mxu0
        %v6091 = vadd.f32 0.0, %v6090
        %v6092 = vpop.f32.mrb[0].mxu0
        %6093 = vdwg.mxu0
        %v6095 = vsel %vm1686, %v6018, 0
        %6097 = vmatprep.subr.mxu0 0.0
        %6098 = vmatpush1.msra.mxu0 %v5526
        %6099 = vmatprep.subr.mxu0 0.0
        %6100 = vmatpush1.msra.mxu0 0.0
        %6101 = vmatprep.subr.mxu0 0.0
        %6102 = vmatpush1.msra.mxu0 0.0
        %6103 = vmatprep.subr.mxu0 0.0
        %6104 = vmatpush1.msra.mxu0 0.0
        %6105 = vmatprep.subr.mxu0 0.0
        %6106 = vmatpush1.msra.mxu0 0.0
        %6107 = vmatprep.subr.mxu0 0.0
        %6108 = vmatpush1.msra.mxu0 0.0
        %6109 = vmatprep.subr.mxu0 0.0
        %6110 = vmatpush1.msra.mxu0 0.0
        %6111 = vmatprep.subr.mxu0 0.0
        %6112 = vmatpush1.msra.mxu0 0.0
        %6113 = vmatprep.subr.mxu0 0.0
        %6114 = vmatpush1.msra.mxu0 0.0
        %6115 = vmatprep.subr.mxu0 0.0
        %6116 = vmatpush1.msra.mxu0 0.0
        %6117 = vmatprep.subr.mxu0 0.0
        %6118 = vmatpush1.msra.mxu0 0.0
        %6119 = vmatprep.subr.mxu0 0.0
        %6120 = vmatpush1.msra.mxu0 0.0
        %6121 = vmatprep.subr.mxu0 0.0
        %6122 = vmatpush1.msra.mxu0 0.0
        %6123 = vmatprep.subr.mxu0 0.0
        %6124 = vmatpush1.msra.mxu0 0.0
        %6125 = vmatprep.subr.mxu0 0.0
        %6126 = vmatpush1.msra.mxu0 0.0
        %6127 = vmatprep.subr.mxu0 0.0
        %6128 = vmatpush1.msra.mxu0 0.0
        %6129 = vmatprep.subr.mxu0 0.0
        %6130 = vmatpush1.msra.mxu0 0.0
        %6131 = vmatprep.subr.mxu0 0.0
        %6132 = vmatpush1.msra.mxu0 0.0
        %6133 = vmatprep.subr.mxu0 0.0
        %6134 = vmatpush1.msra.mxu0 0.0
        %6135 = vmatprep.subr.mxu0 0.0
        %6136 = vmatpush1.msra.mxu0 0.0
        %6137 = vmatprep.subr.mxu0 0.0
        %6138 = vmatpush1.msra.mxu0 0.0
        %6139 = vmatprep.subr.mxu0 0.0
        %6140 = vmatpush1.msra.mxu0 0.0
        %6141 = vmatprep.subr.mxu0 0.0
        %6142 = vmatpush1.msra.mxu0 0.0
        %6143 = vmatprep.subr.mxu0 0.0
        %6144 = vmatpush1.msra.mxu0 0.0
        %6145 = vmatprep.subr.mxu0 0.0
        %6146 = vmatpush1.msra.mxu0 0.0
        %6147 = vmatprep.subr.mxu0 0.0
        %6148 = vmatpush1.msra.mxu0 0.0
        %6149 = vmatprep.subr.mxu0 0.0
        %6150 = vmatpush1.msra.mxu0 0.0
        %6151 = vmatprep.subr.mxu0 0.0
        %6152 = vmatpush1.msra.mxu0 0.0
        %6153 = vmatprep.subr.mxu0 0.0
        %6154 = vmatpush1.msra.mxu0 0.0
        %6155 = vmatprep.subr.mxu0 0.0
        %6156 = vmatpush1.msra.mxu0 0.0
        %6157 = vmatprep.subr.mxu0 0.0
        %6158 = vmatpush1.msra.mxu0 0.0
        %6159 = vmatprep.subr.mxu0 0.0
        %6160 = vmatpush1.msra.mxu0 0.0
        %6161 = vmatprep.mubr.f32.mxu0 0.0
        %6162 = vmatmul.mubr.f32.gmra.mrb[0].mxu0 %v6095
        %v6163 = vpop.f32.mrb[0].mxu0
        %v6164 = vadd.f32 0.0, %v6163
        %v6165 = vpop.f32.mrb[0].mxu0
        %6166 = vdwg.mxu0
        %v6168 = vsel %vm1686, %v6019, 0
        %6170 = vmatprep.subr.mxu0 0.0
        %6171 = vmatpush1.msra.mxu0 %v5596
        %6172 = vmatprep.subr.mxu0 0.0
        %6173 = vmatpush1.msra.mxu0 0.0
        %6174 = vmatprep.subr.mxu0 0.0
        %6175 = vmatpush1.msra.mxu0 0.0
        %6176 = vmatprep.subr.mxu0 0.0
        %6177 = vmatpush1.msra.mxu0 0.0
        %6178 = vmatprep.subr.mxu0 0.0
        %6179 = vmatpush1.msra.mxu0 0.0
        %6180 = vmatprep.subr.mxu0 0.0
        %6181 = vmatpush1.msra.mxu0 0.0
        %6182 = vmatprep.subr.mxu0 0.0
        %6183 = vmatpush1.msra.mxu0 0.0
        %6184 = vmatprep.subr.mxu0 0.0
        %6185 = vmatpush1.msra.mxu0 0.0
        %6186 = vmatprep.subr.mxu0 0.0
        %6187 = vmatpush1.msra.mxu0 0.0
        %6188 = vmatprep.subr.mxu0 0.0
        %6189 = vmatpush1.msra.mxu0 0.0
        %6190 = vmatprep.subr.mxu0 0.0
        %6191 = vmatpush1.msra.mxu0 0.0
        %6192 = vmatprep.subr.mxu0 0.0
        %6193 = vmatpush1.msra.mxu0 0.0
        %6194 = vmatprep.subr.mxu0 0.0
        %6195 = vmatpush1.msra.mxu0 0.0
        %6196 = vmatprep.subr.mxu0 0.0
        %6197 = vmatpush1.msra.mxu0 0.0
        %6198 = vmatprep.subr.mxu0 0.0
        %6199 = vmatpush1.msra.mxu0 0.0
        %6200 = vmatprep.subr.mxu0 0.0
        %6201 = vmatpush1.msra.mxu0 0.0
        %6202 = vmatprep.subr.mxu0 0.0
        %6203 = vmatpush1.msra.mxu0 0.0
        %6204 = vmatprep.subr.mxu0 0.0
        %6205 = vmatpush1.msra.mxu0 0.0
        %6206 = vmatprep.subr.mxu0 0.0
        %6207 = vmatpush1.msra.mxu0 0.0
        %6208 = vmatprep.subr.mxu0 0.0
        %6209 = vmatpush1.msra.mxu0 0.0
        %6210 = vmatprep.subr.mxu0 0.0
        %6211 = vmatpush1.msra.mxu0 0.0
        %6212 = vmatprep.subr.mxu0 0.0
        %6213 = vmatpush1.msra.mxu0 0.0
        %6214 = vmatprep.subr.mxu0 0.0
        %6215 = vmatpush1.msra.mxu0 0.0
        %6216 = vmatprep.subr.mxu0 0.0
        %6217 = vmatpush1.msra.mxu0 0.0
        %6218 = vmatprep.subr.mxu0 0.0
        %6219 = vmatpush1.msra.mxu0 0.0
        %6220 = vmatprep.subr.mxu0 0.0
        %6221 = vmatpush1.msra.mxu0 0.0
        %6222 = vmatprep.subr.mxu0 0.0
        %6223 = vmatpush1.msra.mxu0 0.0
        %6224 = vmatprep.subr.mxu0 0.0
        %6225 = vmatpush1.msra.mxu0 0.0
        %6226 = vmatprep.subr.mxu0 0.0
        %6227 = vmatpush1.msra.mxu0 0.0
        %6228 = vmatprep.subr.mxu0 0.0
        %6229 = vmatpush1.msra.mxu0 0.0
        %6230 = vmatprep.subr.mxu0 0.0
        %6231 = vmatpush1.msra.mxu0 0.0
        %6232 = vmatprep.subr.mxu0 0.0
        %6233 = vmatpush1.msra.mxu0 0.0
        %6234 = vmatprep.mubr.f32.mxu0 0.0
        %6235 = vmatmul.mubr.f32.gmra.mrb[0].mxu0 %v6168
        %v6236 = vpop.f32.mrb[0].mxu0
        %v6237 = vadd.f32 0.0, %v6236
        %v6238 = vpop.f32.mrb[0].mxu0
        %6239 = vdwg.mxu0
        %v6241 = vsel %vm1686, %v6020, 0
        %6243 = vmatprep.subr.mxu0 0.0
        %6244 = vmatpush1.msra.mxu0 %v5666
        %6245 = vmatprep.subr.mxu0 0.0
        %6246 = vmatpush1.msra.mxu0 0.0
        %6247 = vmatprep.subr.mxu0 0.0
        %6248 = vmatpush1.msra.mxu0 0.0
        %6249 = vmatprep.subr.mxu0 0.0
        %6250 = vmatpush1.msra.mxu0 0.0
        %6251 = vmatprep.subr.mxu0 0.0
        %6252 = vmatpush1.msra.mxu0 0.0
        %6253 = vmatprep.subr.mxu0 0.0
        %6254 = vmatpush1.msra.mxu0 0.0
        %6255 = vmatprep.subr.mxu0 0.0
        %6256 = vmatpush1.msra.mxu0 0.0
        %6257 = vmatprep.subr.mxu0 0.0
        %6258 = vmatpush1.msra.mxu0 0.0
        %6259 = vmatprep.subr.mxu0 0.0
        %6260 = vmatpush1.msra.mxu0 0.0
        %6261 = vmatprep.subr.mxu0 0.0
        %6262 = vmatpush1.msra.mxu0 0.0
        %6263 = vmatprep.subr.mxu0 0.0
        %6264 = vmatpush1.msra.mxu0 0.0
        %6265 = vmatprep.subr.mxu0 0.0
        %6266 = vmatpush1.msra.mxu0 0.0
        %6267 = vmatprep.subr.mxu0 0.0
        %6268 = vmatpush1.msra.mxu0 0.0
        %6269 = vmatprep.subr.mxu0 0.0
        %6270 = vmatpush1.msra.mxu0 0.0
        %6271 = vmatprep.subr.mxu0 0.0
        %6272 = vmatpush1.msra.mxu0 0.0
        %6273 = vmatprep.subr.mxu0 0.0
        %6274 = vmatpush1.msra.mxu0 0.0
        %6275 = vmatprep.subr.mxu0 0.0
        %6276 = vmatpush1.msra.mxu0 0.0
        %6277 = vmatprep.subr.mxu0 0.0
        %6278 = vmatpush1.msra.mxu0 0.0
        %6279 = vmatprep.subr.mxu0 0.0
        %6280 = vmatpush1.msra.mxu0 0.0
        %6281 = vmatprep.subr.mxu0 0.0
        %6282 = vmatpush1.msra.mxu0 0.0
        %6283 = vmatprep.subr.mxu0 0.0
        %6284 = vmatpush1.msra.mxu0 0.0
        %6285 = vmatprep.subr.mxu0 0.0
        %6286 = vmatpush1.msra.mxu0 0.0
        %6287 = vmatprep.subr.mxu0 0.0
        %6288 = vmatpush1.msra.mxu0 0.0
        %6289 = vmatprep.subr.mxu0 0.0
        %6290 = vmatpush1.msra.mxu0 0.0
        %6291 = vmatprep.subr.mxu0 0.0
        %6292 = vmatpush1.msra.mxu0 0.0
        %6293 = vmatprep.subr.mxu0 0.0
        %6294 = vmatpush1.msra.mxu0 0.0
        %6295 = vmatprep.subr.mxu0 0.0
        %6296 = vmatpush1.msra.mxu0 0.0
        %6297 = vmatprep.subr.mxu0 0.0
        %6298 = vmatpush1.msra.mxu0 0.0
        %6299 = vmatprep.subr.mxu0 0.0
        %6300 = vmatpush1.msra.mxu0 0.0
        %6301 = vmatprep.subr.mxu0 0.0
        %6302 = vmatpush1.msra.mxu0 0.0
        %6303 = vmatprep.subr.mxu0 0.0
        %6304 = vmatpush1.msra.mxu0 0.0
        %6305 = vmatprep.subr.mxu0 0.0
        %6306 = vmatpush1.msra.mxu0 0.0
        %6307 = vmatprep.mubr.f32.mxu0 0.0
        %6308 = vmatmul.mubr.f32.gmra.mrb[0].mxu0 %v6241
        %v6309 = vpop.f32.mrb[0].mxu0
        %v6310 = vadd.f32 0.0, %v6309
        %v6311 = vpop.f32.mrb[0].mxu0
        %6312 = vdwg.mxu0
        %v6314 = vsel %vm1686, %v6091, 0
        %6316 = vmatprep.subr.mxu0 0.0
        %6317 = vmatpush1.msra.mxu0 %v4726
        %6318 = vmatprep.subr.mxu0 0.0
        %6319 = vmatpush1.msra.mxu0 0.0
        %6320 = vmatprep.subr.mxu0 0.0
        %6321 = vmatpush1.msra.mxu0 0.0
        %6322 = vmatprep.subr.mxu0 0.0
        %6323 = vmatpush1.msra.mxu0 0.0
        %6324 = vmatprep.subr.mxu0 0.0
        %6325 = vmatpush1.msra.mxu0 0.0
        %6326 = vmatprep.subr.mxu0 0.0
        %6327 = vmatpush1.msra.mxu0 0.0
        %6328 = vmatprep.subr.mxu0 0.0
        %6329 = vmatpush1.msra.mxu0 0.0
        %6330 = vmatprep.subr.mxu0 0.0
        %6331 = vmatpush1.msra.mxu0 0.0
        %6332 = vmatprep.subr.mxu0 0.0
        %6333 = vmatpush1.msra.mxu0 0.0
        %6334 = vmatprep.subr.mxu0 0.0
        %6335 = vmatpush1.msra.mxu0 0.0
        %6336 = vmatprep.subr.mxu0 0.0
        %6337 = vmatpush1.msra.mxu0 0.0
        %6338 = vmatprep.subr.mxu0 0.0
        %6339 = vmatpush1.msra.mxu0 0.0
        %6340 = vmatprep.subr.mxu0 0.0
        %6341 = vmatpush1.msra.mxu0 0.0
        %6342 = vmatprep.subr.mxu0 0.0
        %6343 = vmatpush1.msra.mxu0 0.0
        %6344 = vmatprep.subr.mxu0 0.0
        %6345 = vmatpush1.msra.mxu0 0.0
        %6346 = vmatprep.subr.mxu0 0.0
        %6347 = vmatpush1.msra.mxu0 0.0
        %6348 = vmatprep.subr.mxu0 0.0
        %6349 = vmatpush1.msra.mxu0 0.0
        %6350 = vmatprep.subr.mxu0 0.0
        %6351 = vmatpush1.msra.mxu0 0.0
        %6352 = vmatprep.subr.mxu0 0.0
        %6353 = vmatpush1.msra.mxu0 0.0
        %6354 = vmatprep.subr.mxu0 0.0
        %6355 = vmatpush1.msra.mxu0 0.0
        %6356 = vmatprep.subr.mxu0 0.0
        %6357 = vmatpush1.msra.mxu0 0.0
        %6358 = vmatprep.subr.mxu0 0.0
        %6359 = vmatpush1.msra.mxu0 0.0
        %6360 = vmatprep.subr.mxu0 0.0
        %6361 = vmatpush1.msra.mxu0 0.0
        %6362 = vmatprep.subr.mxu0 0.0
        %6363 = vmatpush1.msra.mxu0 0.0
        %6364 = vmatprep.subr.mxu0 0.0
        %6365 = vmatpush1.msra.mxu0 0.0
        %6366 = vmatprep.subr.mxu0 0.0
        %6367 = vmatpush1.msra.mxu0 0.0
        %6368 = vmatprep.subr.mxu0 0.0
        %6369 = vmatpush1.msra.mxu0 0.0
        %6370 = vmatprep.subr.mxu0 0.0
        %6371 = vmatpush1.msra.mxu0 0.0
        %6372 = vmatprep.subr.mxu0 0.0
        %6373 = vmatpush1.msra.mxu0 0.0
        %6374 = vmatprep.subr.mxu0 0.0
        %6375 = vmatpush1.msra.mxu0 0.0
        %6376 = vmatprep.subr.mxu0 0.0
        %6377 = vmatpush1.msra.mxu0 0.0
        %6378 = vmatprep.subr.mxu0 0.0
        %6379 = vmatpush1.msra.mxu0 0.0
        %6380 = vmatprep.mubr.f32.mxu0 0.0
        %6381 = vmatmul.mubr.f32.gmra.mrb[0].mxu0 %v6314
        %v6382 = vpop.f32.mrb[0].mxu0
        %v6383 = vadd.f32 0.0, %v6382
        %v6384 = vpop.f32.mrb[0].mxu0
        %6385 = vdwg.mxu0
        %v6387 = vsel %vm1686, %v6164, 0
        %6389 = vmatprep.subr.mxu0 0.0
        %6390 = vmatpush1.msra.mxu0 %v4727
        %6391 = vmatprep.subr.mxu0 0.0
        %6392 = vmatpush1.msra.mxu0 0.0
        %6393 = vmatprep.subr.mxu0 0.0
        %6394 = vmatpush1.msra.mxu0 0.0
        %6395 = vmatprep.subr.mxu0 0.0
        %6396 = vmatpush1.msra.mxu0 0.0
        %6397 = vmatprep.subr.mxu0 0.0
        %6398 = vmatpush1.msra.mxu0 0.0
        %6399 = vmatprep.subr.mxu0 0.0
        %6400 = vmatpush1.msra.mxu0 0.0
        %6401 = vmatprep.subr.mxu0 0.0
        %6402 = vmatpush1.msra.mxu0 0.0
        %6403 = vmatprep.subr.mxu0 0.0
        %6404 = vmatpush1.msra.mxu0 0.0
        %6405 = vmatprep.subr.mxu0 0.0
        %6406 = vmatpush1.msra.mxu0 0.0
        %6407 = vmatprep.subr.mxu0 0.0
        %6408 = vmatpush1.msra.mxu0 0.0
        %6409 = vmatprep.subr.mxu0 0.0
        %6410 = vmatpush1.msra.mxu0 0.0
        %6411 = vmatprep.subr.mxu0 0.0
        %6412 = vmatpush1.msra.mxu0 0.0
        %6413 = vmatprep.subr.mxu0 0.0
        %6414 = vmatpush1.msra.mxu0 0.0
        %6415 = vmatprep.subr.mxu0 0.0
        %6416 = vmatpush1.msra.mxu0 0.0
        %6417 = vmatprep.subr.mxu0 0.0
        %6418 = vmatpush1.msra.mxu0 0.0
        %6419 = vmatprep.subr.mxu0 0.0
        %6420 = vmatpush1.msra.mxu0 0.0
        %6421 = vmatprep.subr.mxu0 0.0
        %6422 = vmatpush1.msra.mxu0 0.0
        %6423 = vmatprep.subr.mxu0 0.0
        %6424 = vmatpush1.msra.mxu0 0.0
        %6425 = vmatprep.subr.mxu0 0.0
        %6426 = vmatpush1.msra.mxu0 0.0
        %6427 = vmatprep.subr.mxu0 0.0
        %6428 = vmatpush1.msra.mxu0 0.0
        %6429 = vmatprep.subr.mxu0 0.0
        %6430 = vmatpush1.msra.mxu0 0.0
        %6431 = vmatprep.subr.mxu0 0.0
        %6432 = vmatpush1.msra.mxu0 0.0
        %6433 = vmatprep.subr.mxu0 0.0
        %6434 = vmatpush1.msra.mxu0 0.0
        %6435 = vmatprep.subr.mxu0 0.0
        %6436 = vmatpush1.msra.mxu0 0.0
        %6437 = vmatprep.subr.mxu0 0.0
        %6438 = vmatpush1.msra.mxu0 0.0
        %6439 = vmatprep.subr.mxu0 0.0
        %6440 = vmatpush1.msra.mxu0 0.0
        %6441 = vmatprep.subr.mxu0 0.0
        %6442 = vmatpush1.msra.mxu0 0.0
        %6443 = vmatprep.subr.mxu0 0.0
        %6444 = vmatpush1.msra.mxu0 0.0
        %6445 = vmatprep.subr.mxu0 0.0
        %6446 = vmatpush1.msra.mxu0 0.0
        %6447 = vmatprep.subr.mxu0 0.0
        %6448 = vmatpush1.msra.mxu0 0.0
        %6449 = vmatprep.subr.mxu0 0.0
        %6450 = vmatpush1.msra.mxu0 0.0
        %6451 = vmatprep.subr.mxu0 0.0
        %6452 = vmatpush1.msra.mxu0 0.0
        %6453 = vmatprep.mubr.f32.mxu0 0.0
        %6454 = vmatmul.mubr.f32.gmra.mrb[0].mxu0 %v6387
        %v6455 = vpop.f32.mrb[0].mxu0
        %v6456 = vadd.f32 0.0, %v6455
        %v6457 = vpop.f32.mrb[0].mxu0
        %6458 = vdwg.mxu0
        %v6460 = vsel %vm1686, %v6237, 0
        %6462 = vmatprep.subr.mxu0 0.0
        %6463 = vmatpush1.msra.mxu0 %v4728
        %6464 = vmatprep.subr.mxu0 0.0
        %6465 = vmatpush1.msra.mxu0 0.0
        %6466 = vmatprep.subr.mxu0 0.0
        %6467 = vmatpush1.msra.mxu0 0.0
        %6468 = vmatprep.subr.mxu0 0.0
        %6469 = vmatpush1.msra.mxu0 0.0
        %6470 = vmatprep.subr.mxu0 0.0
        %6471 = vmatpush1.msra.mxu0 0.0
        %6472 = vmatprep.subr.mxu0 0.0
        %6473 = vmatpush1.msra.mxu0 0.0
        %6474 = vmatprep.subr.mxu0 0.0
        %6475 = vmatpush1.msra.mxu0 0.0
        %6476 = vmatprep.subr.mxu0 0.0
        %6477 = vmatpush1.msra.mxu0 0.0
        %6478 = vmatprep.subr.mxu0 0.0
        %6479 = vmatpush1.msra.mxu0 0.0
        %6480 = vmatprep.subr.mxu0 0.0
        %6481 = vmatpush1.msra.mxu0 0.0
        %6482 = vmatprep.subr.mxu0 0.0
        %6483 = vmatpush1.msra.mxu0 0.0
        %6484 = vmatprep.subr.mxu0 0.0
        %6485 = vmatpush1.msra.mxu0 0.0
        %6486 = vmatprep.subr.mxu0 0.0
        %6487 = vmatpush1.msra.mxu0 0.0
        %6488 = vmatprep.subr.mxu0 0.0
        %6489 = vmatpush1.msra.mxu0 0.0
        %6490 = vmatprep.subr.mxu0 0.0
        %6491 = vmatpush1.msra.mxu0 0.0
        %6492 = vmatprep.subr.mxu0 0.0
        %6493 = vmatpush1.msra.mxu0 0.0
        %6494 = vmatprep.subr.mxu0 0.0
        %6495 = vmatpush1.msra.mxu0 0.0
        %6496 = vmatprep.subr.mxu0 0.0
        %6497 = vmatpush1.msra.mxu0 0.0
        %6498 = vmatprep.subr.mxu0 0.0
        %6499 = vmatpush1.msra.mxu0 0.0
        %6500 = vmatprep.subr.mxu0 0.0
        %6501 = vmatpush1.msra.mxu0 0.0
        %6502 = vmatprep.subr.mxu0 0.0
        %6503 = vmatpush1.msra.mxu0 0.0
        %6504 = vmatprep.subr.mxu0 0.0
        %6505 = vmatpush1.msra.mxu0 0.0
        %6506 = vmatprep.subr.mxu0 0.0
        %6507 = vmatpush1.msra.mxu0 0.0
        %6508 = vmatprep.subr.mxu0 0.0
        %6509 = vmatpush1.msra.mxu0 0.0
        %6510 = vmatprep.subr.mxu0 0.0
        %6511 = vmatpush1.msra.mxu0 0.0
        %6512 = vmatprep.subr.mxu0 0.0
        %6513 = vmatpush1.msra.mxu0 0.0
        %6514 = vmatprep.subr.mxu0 0.0
        %6515 = vmatpush1.msra.mxu0 0.0
        %6516 = vmatprep.subr.mxu0 0.0
        %6517 = vmatpush1.msra.mxu0 0.0
        %6518 = vmatprep.subr.mxu0 0.0
        %6519 = vmatpush1.msra.mxu0 0.0
        %6520 = vmatprep.subr.mxu0 0.0
        %6521 = vmatpush1.msra.mxu0 0.0
        %6522 = vmatprep.subr.mxu0 0.0
        %6523 = vmatpush1.msra.mxu0 0.0
        %6524 = vmatprep.subr.mxu0 0.0
        %6525 = vmatpush1.msra.mxu0 0.0
        %6526 = vmatprep.mubr.f32.mxu0 0.0
        %6527 = vmatmul.mubr.f32.gmra.mrb[0].mxu0 %v6460
        %v6528 = vpop.f32.mrb[0].mxu0
        %v6529 = vadd.f32 0.0, %v6528
        %v6530 = vpop.f32.mrb[0].mxu0
        %6531 = vdwg.mxu0
        %v6533 = vsel %vm1686, %v6310, 0
        %6535 = vmatprep.subr.mxu0 0.0
        %6536 = vmatpush1.msra.mxu0 %v4729
        %6537 = vmatprep.subr.mxu0 0.0
        %6538 = vmatpush1.msra.mxu0 0.0
        %6539 = vmatprep.subr.mxu0 0.0
        %6540 = vmatpush1.msra.mxu0 0.0
        %6541 = vmatprep.subr.mxu0 0.0
        %6542 = vmatpush1.msra.mxu0 0.0
        %6543 = vmatprep.subr.mxu0 0.0
        %6544 = vmatpush1.msra.mxu0 0.0
        %6545 = vmatprep.subr.mxu0 0.0
        %6546 = vmatpush1.msra.mxu0 0.0
        %6547 = vmatprep.subr.mxu0 0.0
        %6548 = vmatpush1.msra.mxu0 0.0
        %6549 = vmatprep.subr.mxu0 0.0
        %6550 = vmatpush1.msra.mxu0 0.0
        %6551 = vmatprep.subr.mxu0 0.0
        %6552 = vmatpush1.msra.mxu0 0.0
        %6553 = vmatprep.subr.mxu0 0.0
        %6554 = vmatpush1.msra.mxu0 0.0
        %6555 = vmatprep.subr.mxu0 0.0
        %6556 = vmatpush1.msra.mxu0 0.0
        %6557 = vmatprep.subr.mxu0 0.0
        %6558 = vmatpush1.msra.mxu0 0.0
        %6559 = vmatprep.subr.mxu0 0.0
        %6560 = vmatpush1.msra.mxu0 0.0
        %6561 = vmatprep.subr.mxu0 0.0
        %6562 = vmatpush1.msra.mxu0 0.0
        %6563 = vmatprep.subr.mxu0 0.0
        %6564 = vmatpush1.msra.mxu0 0.0
        %6565 = vmatprep.subr.mxu0 0.0
        %6566 = vmatpush1.msra.mxu0 0.0
        %6567 = vmatprep.subr.mxu0 0.0
        %6568 = vmatpush1.msra.mxu0 0.0
        %6569 = vmatprep.subr.mxu0 0.0
        %6570 = vmatpush1.msra.mxu0 0.0
        %6571 = vmatprep.subr.mxu0 0.0
        %6572 = vmatpush1.msra.mxu0 0.0
        %6573 = vmatprep.subr.mxu0 0.0
        %6574 = vmatpush1.msra.mxu0 0.0
        %6575 = vmatprep.subr.mxu0 0.0
        %6576 = vmatpush1.msra.mxu0 0.0
        %6577 = vmatprep.subr.mxu0 0.0
        %6578 = vmatpush1.msra.mxu0 0.0
        %6579 = vmatprep.subr.mxu0 0.0
        %6580 = vmatpush1.msra.mxu0 0.0
        %6581 = vmatprep.subr.mxu0 0.0
        %6582 = vmatpush1.msra.mxu0 0.0
        %6583 = vmatprep.subr.mxu0 0.0
        %6584 = vmatpush1.msra.mxu0 0.0
        %6585 = vmatprep.subr.mxu0 0.0
        %6586 = vmatpush1.msra.mxu0 0.0
        %6587 = vmatprep.subr.mxu0 0.0
        %6588 = vmatpush1.msra.mxu0 0.0
        %6589 = vmatprep.subr.mxu0 0.0
        %6590 = vmatpush1.msra.mxu0 0.0
        %6591 = vmatprep.subr.mxu0 0.0
        %6592 = vmatpush1.msra.mxu0 0.0
        %6593 = vmatprep.subr.mxu0 0.0
        %6594 = vmatpush1.msra.mxu0 0.0
        %6595 = vmatprep.subr.mxu0 0.0
        %6596 = vmatpush1.msra.mxu0 0.0
        %6597 = vmatprep.subr.mxu0 0.0
        %6598 = vmatpush1.msra.mxu0 0.0
        %6599 = vmatprep.mubr.f32.mxu0 0.0
        %6600 = vmatmul.mubr.f32.gmra.mrb[0].mxu0 %v6533
        %v6601 = vpop.f32.mrb[0].mxu0
        %v6602 = vadd.f32 0.0, %v6601
        %v6603 = vpop.f32.mrb[0].mxu0
        %6604 = vdwg.mxu0
        %v6605 = vsel %vm794, %v6383, 0.0
        %v6606 = vsel %vm794, %v6456, 0.0
        %v6607 = vadd.f32 %v6605, %v6606
        %v6608 = vsel %vm794, %v6529, 0.0
        %v6609 = vadd.f32 %v6607, %v6608
        %v6610 = vsel %vm794, %v6602, 0.0
        %v6611 = vadd.f32 %v6609, %v6610
        %v6613 = vlaneseq
        %v6614 = vshrl.u32 %v6613, 7
        %v6615 = vsub.s32 0, %v6614
        %v6616 = vrot.slane %v4731, %v6615
        %v6618 = vadd.f32 %v6611, %v6616
        %v6619 = vadd.f32 %v4658, %v6618
        %v6620 = vsel %vm794, %v6619, 0.0
        %6621 = vadd.xlane.f32.xlu0 %v6620
        %v6622 = vpop.xlane.xlu0 %6621
        %v6623 = vmul.f32 %v6622, %v2643
        %v6624 = vmul.f32 %v6619, %v6619
        %v6625 = vsel %vm794, %v6624, 0.0
        %6626 = vadd.xlane.f32.xlu0 %v6625
        %v6627 = vpop.xlane.xlu0 %6626
        %v6628 = vmul.f32 %v6627, %v2643
        %v6629 = vmul.f32 %v6623, %v6623
        %v6630 = vsub.f32 %v6628, %v6629
        %v6631 = vmax.f32 %v6630, 0.0
        %v6632 = vsub.f32 %v6619, %v6623
        %v6634 = vlaneseq
        %v6635 = vshrl.u32 %v6634, 7
        %v6636 = vsub.s32 0, %v6635
        %v6637 = vrot.slane %v4751, %v6636
        %v6639 = vmul.f32 %v6637, %v6632
        %v6640 = vadd.f32 %v6631, 1e-06
        %v6641 = vrsqrt.pop %v6640
        %v6642 = vmul.f32 %v6639, %v6641
        %v6644 = vlaneseq
        %v6645 = vshrl.u32 %v6644, 7
        %v6646 = vsub.s32 0, %v6645
        %v6647 = vrot.slane %v4753, %v6646
        %v6649 = vadd.f32 %v6642, %v6647
        %v6651 = vsel %vm794, %v6649, 0
        %6653 = vmatprep.subr.mxu0 0.0
        %6654 = vmatpush1.msra.mxu0 %v4660
        %6655 = vmatprep.subr.mxu0 0.0
        %6656 = vmatpush1.msra.mxu0 %v4661
        %6657 = vmatprep.subr.mxu0 0.0
        %6658 = vmatpush1.msra.mxu0 %v4662
        %6659 = vmatprep.subr.mxu0 0.0
        %6660 = vmatpush1.msra.mxu0 %v4663
        %6661 = vmatprep.subr.mxu0 0.0
        %6662 = vmatpush1.msra.mxu0 0.0
        %6663 = vmatprep.subr.mxu0 0.0
        %6664 = vmatpush1.msra.mxu0 0.0
        %6665 = vmatprep.subr.mxu0 0.0
        %6666 = vmatpush1.msra.mxu0 0.0
        %6667 = vmatprep.subr.mxu0 0.0
        %6668 = vmatpush1.msra.mxu0 0.0
        %6669 = vmatprep.subr.mxu0 0.0
        %6670 = vmatpush1.msra.mxu0 0.0
        %6671 = vmatprep.subr.mxu0 0.0
        %6672 = vmatpush1.msra.mxu0 0.0
        %6673 = vmatprep.subr.mxu0 0.0
        %6674 = vmatpush1.msra.mxu0 0.0
        %6675 = vmatprep.subr.mxu0 0.0
        %6676 = vmatpush1.msra.mxu0 0.0
        %6677 = vmatprep.subr.mxu0 0.0
        %6678 = vmatpush1.msra.mxu0 0.0
        %6679 = vmatprep.subr.mxu0 0.0
        %6680 = vmatpush1.msra.mxu0 0.0
        %6681 = vmatprep.subr.mxu0 0.0
        %6682 = vmatpush1.msra.mxu0 0.0
        %6683 = vmatprep.subr.mxu0 0.0
        %6684 = vmatpush1.msra.mxu0 0.0
        %6685 = vmatprep.subr.mxu0 0.0
        %6686 = vmatpush1.msra.mxu0 0.0
        %6687 = vmatprep.subr.mxu0 0.0
        %6688 = vmatpush1.msra.mxu0 0.0
        %6689 = vmatprep.subr.mxu0 0.0
        %6690 = vmatpush1.msra.mxu0 0.0
        %6691 = vmatprep.subr.mxu0 0.0
        %6692 = vmatpush1.msra.mxu0 0.0
        %6693 = vmatprep.subr.mxu0 0.0
        %6694 = vmatpush1.msra.mxu0 0.0
        %6695 = vmatprep.subr.mxu0 0.0
        %6696 = vmatpush1.msra.mxu0 0.0
        %6697 = vmatprep.subr.mxu0 0.0
        %6698 = vmatpush1.msra.mxu0 0.0
        %6699 = vmatprep.subr.mxu0 0.0
        %6700 = vmatpush1.msra.mxu0 0.0
        %6701 = vmatprep.subr.mxu0 0.0
        %6702 = vmatpush1.msra.mxu0 0.0
        %6703 = vmatprep.subr.mxu0 0.0
        %6704 = vmatpush1.msra.mxu0 0.0
        %6705 = vmatprep.subr.mxu0 0.0
        %6706 = vmatpush1.msra.mxu0 0.0
        %6707 = vmatprep.subr.mxu0 0.0
        %6708 = vmatpush1.msra.mxu0 0.0
        %6709 = vmatprep.subr.mxu0 0.0
        %6710 = vmatpush1.msra.mxu0 0.0
        %6711 = vmatprep.subr.mxu0 0.0
        %6712 = vmatpush1.msra.mxu0 0.0
        %6713 = vmatprep.subr.mxu0 0.0
        %6714 = vmatpush1.msra.mxu0 0.0
        %6715 = vmatprep.subr.mxu0 0.0
        %6716 = vmatpush1.msra.mxu0 0.0
        %6717 = vmatprep.mubr.f32.mxu0 0.0
        %6718 = vmatmul.mubr.f32.gmra.mrb[0].mxu0 %v6651
        %v6719 = vpop.f32.mrb[0].mxu0
        %v6720 = vadd.f32 %v4761, %v6719
        %v6721 = vpop.f32.mrb[0].mxu0
        %6722 = vdwg.mxu0
        %6723 = vmatprep.subr.mxu0 0.0
        %6724 = vmatpush1.msra.mxu0 %v4664
        %6725 = vmatprep.subr.mxu0 0.0
        %6726 = vmatpush1.msra.mxu0 %v4665
        %6727 = vmatprep.subr.mxu0 0.0
        %6728 = vmatpush1.msra.mxu0 %v4666
        %6729 = vmatprep.subr.mxu0 0.0
        %6730 = vmatpush1.msra.mxu0 %v4667
        %6731 = vmatprep.subr.mxu0 0.0
        %6732 = vmatpush1.msra.mxu0 0.0
        %6733 = vmatprep.subr.mxu0 0.0
        %6734 = vmatpush1.msra.mxu0 0.0
        %6735 = vmatprep.subr.mxu0 0.0
        %6736 = vmatpush1.msra.mxu0 0.0
        %6737 = vmatprep.subr.mxu0 0.0
        %6738 = vmatpush1.msra.mxu0 0.0
        %6739 = vmatprep.subr.mxu0 0.0
        %6740 = vmatpush1.msra.mxu0 0.0
        %6741 = vmatprep.subr.mxu0 0.0
        %6742 = vmatpush1.msra.mxu0 0.0
        %6743 = vmatprep.subr.mxu0 0.0
        %6744 = vmatpush1.msra.mxu0 0.0
        %6745 = vmatprep.subr.mxu0 0.0
        %6746 = vmatpush1.msra.mxu0 0.0
        %6747 = vmatprep.subr.mxu0 0.0
        %6748 = vmatpush1.msra.mxu0 0.0
        %6749 = vmatprep.subr.mxu0 0.0
        %6750 = vmatpush1.msra.mxu0 0.0
        %6751 = vmatprep.subr.mxu0 0.0
        %6752 = vmatpush1.msra.mxu0 0.0
        %6753 = vmatprep.subr.mxu0 0.0
        %6754 = vmatpush1.msra.mxu0 0.0
        %6755 = vmatprep.subr.mxu0 0.0
        %6756 = vmatpush1.msra.mxu0 0.0
        %6757 = vmatprep.subr.mxu0 0.0
        %6758 = vmatpush1.msra.mxu0 0.0
        %6759 = vmatprep.subr.mxu0 0.0
        %6760 = vmatpush1.msra.mxu0 0.0
        %6761 = vmatprep.subr.mxu0 0.0
        %6762 = vmatpush1.msra.mxu0 0.0
        %6763 = vmatprep.subr.mxu0 0.0
        %6764 = vmatpush1.msra.mxu0 0.0
        %6765 = vmatprep.subr.mxu0 0.0
        %6766 = vmatpush1.msra.mxu0 0.0
        %6767 = vmatprep.subr.mxu0 0.0
        %6768 = vmatpush1.msra.mxu0 0.0
        %6769 = vmatprep.subr.mxu0 0.0
        %6770 = vmatpush1.msra.mxu0 0.0
        %6771 = vmatprep.subr.mxu0 0.0
        %6772 = vmatpush1.msra.mxu0 0.0
        %6773 = vmatprep.subr.mxu0 0.0
        %6774 = vmatpush1.msra.mxu0 0.0
        %6775 = vmatprep.subr.mxu0 0.0
        %6776 = vmatpush1.msra.mxu0 0.0
        %6777 = vmatprep.subr.mxu0 0.0
        %6778 = vmatpush1.msra.mxu0 0.0
        %6779 = vmatprep.subr.mxu0 0.0
        %6780 = vmatpush1.msra.mxu0 0.0
        %6781 = vmatprep.subr.mxu0 0.0
        %6782 = vmatpush1.msra.mxu0 0.0
        %6783 = vmatprep.subr.mxu0 0.0
        %6784 = vmatpush1.msra.mxu0 0.0
        %6785 = vmatprep.subr.mxu0 0.0
        %6786 = vmatpush1.msra.mxu0 0.0
        %6787 = vmatprep.mubr.f32.mxu0 0.0
        %6788 = vmatmul.mubr.f32.gmra.mrb[0].mxu0 %v6651
        %v6789 = vpop.f32.mrb[0].mxu0
        %v6790 = vadd.f32 %v4765, %v6789
        %v6791 = vpop.f32.mrb[0].mxu0
        %6792 = vdwg.mxu0
        %6793 = vmatprep.subr.mxu0 0.0
        %6794 = vmatpush1.msra.mxu0 %v4668
        %6795 = vmatprep.subr.mxu0 0.0
        %6796 = vmatpush1.msra.mxu0 %v4669
        %6797 = vmatprep.subr.mxu0 0.0
        %6798 = vmatpush1.msra.mxu0 %v4670
        %6799 = vmatprep.subr.mxu0 0.0
        %6800 = vmatpush1.msra.mxu0 %v4671
        %6801 = vmatprep.subr.mxu0 0.0
        %6802 = vmatpush1.msra.mxu0 0.0
        %6803 = vmatprep.subr.mxu0 0.0
        %6804 = vmatpush1.msra.mxu0 0.0
        %6805 = vmatprep.subr.mxu0 0.0
        %6806 = vmatpush1.msra.mxu0 0.0
        %6807 = vmatprep.subr.mxu0 0.0
        %6808 = vmatpush1.msra.mxu0 0.0
        %6809 = vmatprep.subr.mxu0 0.0
        %6810 = vmatpush1.msra.mxu0 0.0
        %6811 = vmatprep.subr.mxu0 0.0
        %6812 = vmatpush1.msra.mxu0 0.0
        %6813 = vmatprep.subr.mxu0 0.0
        %6814 = vmatpush1.msra.mxu0 0.0
        %6815 = vmatprep.subr.mxu0 0.0
        %6816 = vmatpush1.msra.mxu0 0.0
        %6817 = vmatprep.subr.mxu0 0.0
        %6818 = vmatpush1.msra.mxu0 0.0
        %6819 = vmatprep.subr.mxu0 0.0
        %6820 = vmatpush1.msra.mxu0 0.0
        %6821 = vmatprep.subr.mxu0 0.0
        %6822 = vmatpush1.msra.mxu0 0.0
        %6823 = vmatprep.subr.mxu0 0.0
        %6824 = vmatpush1.msra.mxu0 0.0
        %6825 = vmatprep.subr.mxu0 0.0
        %6826 = vmatpush1.msra.mxu0 0.0
        %6827 = vmatprep.subr.mxu0 0.0
        %6828 = vmatpush1.msra.mxu0 0.0
        %6829 = vmatprep.subr.mxu0 0.0
        %6830 = vmatpush1.msra.mxu0 0.0
        %6831 = vmatprep.subr.mxu0 0.0
        %6832 = vmatpush1.msra.mxu0 0.0
        %6833 = vmatprep.subr.mxu0 0.0
        %6834 = vmatpush1.msra.mxu0 0.0
        %6835 = vmatprep.subr.mxu0 0.0
        %6836 = vmatpush1.msra.mxu0 0.0
        %6837 = vmatprep.subr.mxu0 0.0
        %6838 = vmatpush1.msra.mxu0 0.0
        %6839 = vmatprep.subr.mxu0 0.0
        %6840 = vmatpush1.msra.mxu0 0.0
        %6841 = vmatprep.subr.mxu0 0.0
        %6842 = vmatpush1.msra.mxu0 0.0
        %6843 = vmatprep.subr.mxu0 0.0
        %6844 = vmatpush1.msra.mxu0 0.0
        %6845 = vmatprep.subr.mxu0 0.0
        %6846 = vmatpush1.msra.mxu0 0.0
        %6847 = vmatprep.subr.mxu0 0.0
        %6848 = vmatpush1.msra.mxu0 0.0
        %6849 = vmatprep.subr.mxu0 0.0
        %6850 = vmatpush1.msra.mxu0 0.0
        %6851 = vmatprep.subr.mxu0 0.0
        %6852 = vmatpush1.msra.mxu0 0.0
        %6853 = vmatprep.subr.mxu0 0.0
        %6854 = vmatpush1.msra.mxu0 0.0
        %6855 = vmatprep.subr.mxu0 0.0
        %6856 = vmatpush1.msra.mxu0 0.0
        %6857 = vmatprep.mubr.f32.mxu0 0.0
        %6858 = vmatmul.mubr.f32.gmra.mrb[0].mxu0 %v6651
        %v6859 = vpop.f32.mrb[0].mxu0
        %v6860 = vadd.f32 %v4769, %v6859
        %v6861 = vpop.f32.mrb[0].mxu0
        %6862 = vdwg.mxu0
        %6863 = vmatprep.subr.mxu0 0.0
        %6864 = vmatpush1.msra.mxu0 %v4672
        %6865 = vmatprep.subr.mxu0 0.0
        %6866 = vmatpush1.msra.mxu0 %v4673
        %6867 = vmatprep.subr.mxu0 0.0
        %6868 = vmatpush1.msra.mxu0 %v4674
        %6869 = vmatprep.subr.mxu0 0.0
        %6870 = vmatpush1.msra.mxu0 %v4675
        %6871 = vmatprep.subr.mxu0 0.0
        %6872 = vmatpush1.msra.mxu0 0.0
        %6873 = vmatprep.subr.mxu0 0.0
        %6874 = vmatpush1.msra.mxu0 0.0
        %6875 = vmatprep.subr.mxu0 0.0
        %6876 = vmatpush1.msra.mxu0 0.0
        %6877 = vmatprep.subr.mxu0 0.0
        %6878 = vmatpush1.msra.mxu0 0.0
        %6879 = vmatprep.subr.mxu0 0.0
        %6880 = vmatpush1.msra.mxu0 0.0
        %6881 = vmatprep.subr.mxu0 0.0
        %6882 = vmatpush1.msra.mxu0 0.0
        %6883 = vmatprep.subr.mxu0 0.0
        %6884 = vmatpush1.msra.mxu0 0.0
        %6885 = vmatprep.subr.mxu0 0.0
        %6886 = vmatpush1.msra.mxu0 0.0
        %6887 = vmatprep.subr.mxu0 0.0
        %6888 = vmatpush1.msra.mxu0 0.0
        %6889 = vmatprep.subr.mxu0 0.0
        %6890 = vmatpush1.msra.mxu0 0.0
        %6891 = vmatprep.subr.mxu0 0.0
        %6892 = vmatpush1.msra.mxu0 0.0
        %6893 = vmatprep.subr.mxu0 0.0
        %6894 = vmatpush1.msra.mxu0 0.0
        %6895 = vmatprep.subr.mxu0 0.0
        %6896 = vmatpush1.msra.mxu0 0.0
        %6897 = vmatprep.subr.mxu0 0.0
        %6898 = vmatpush1.msra.mxu0 0.0
        %6899 = vmatprep.subr.mxu0 0.0
        %6900 = vmatpush1.msra.mxu0 0.0
        %6901 = vmatprep.subr.mxu0 0.0
        %6902 = vmatpush1.msra.mxu0 0.0
        %6903 = vmatprep.subr.mxu0 0.0
        %6904 = vmatpush1.msra.mxu0 0.0
        %6905 = vmatprep.subr.mxu0 0.0
        %6906 = vmatpush1.msra.mxu0 0.0
        %6907 = vmatprep.subr.mxu0 0.0
        %6908 = vmatpush1.msra.mxu0 0.0
        %6909 = vmatprep.subr.mxu0 0.0
        %6910 = vmatpush1.msra.mxu0 0.0
        %6911 = vmatprep.subr.mxu0 0.0
        %6912 = vmatpush1.msra.mxu0 0.0
        %6913 = vmatprep.subr.mxu0 0.0
        %6914 = vmatpush1.msra.mxu0 0.0
        %6915 = vmatprep.subr.mxu0 0.0
        %6916 = vmatpush1.msra.mxu0 0.0
        %6917 = vmatprep.subr.mxu0 0.0
        %6918 = vmatpush1.msra.mxu0 0.0
        %6919 = vmatprep.subr.mxu0 0.0
        %6920 = vmatpush1.msra.mxu0 0.0
        %6921 = vmatprep.subr.mxu0 0.0
        %6922 = vmatpush1.msra.mxu0 0.0
        %6923 = vmatprep.subr.mxu0 0.0
        %6924 = vmatpush1.msra.mxu0 0.0
        %6925 = vmatprep.subr.mxu0 0.0
        %6926 = vmatpush1.msra.mxu0 0.0
        %6927 = vmatprep.mubr.f32.mxu0 0.0
        %6928 = vmatmul.mubr.f32.gmra.mrb[0].mxu0 %v6651
        %v6929 = vpop.f32.mrb[0].mxu0
        %v6930 = vadd.f32 %v4773, %v6929
        %v6931 = vpop.f32.mrb[0].mxu0
        %6932 = vdwg.mxu0
        %6933 = vmatprep.subr.mxu0 0.0
        %6934 = vmatpush1.msra.mxu0 %v4682
        %6935 = vmatprep.subr.mxu0 0.0
        %6936 = vmatpush1.msra.mxu0 %v4683
        %6937 = vmatprep.subr.mxu0 0.0
        %6938 = vmatpush1.msra.mxu0 %v4684
        %6939 = vmatprep.subr.mxu0 0.0
        %6940 = vmatpush1.msra.mxu0 %v4685
        %6941 = vmatprep.subr.mxu0 0.0
        %6942 = vmatpush1.msra.mxu0 0.0
        %6943 = vmatprep.subr.mxu0 0.0
        %6944 = vmatpush1.msra.mxu0 0.0
        %6945 = vmatprep.subr.mxu0 0.0
        %6946 = vmatpush1.msra.mxu0 0.0
        %6947 = vmatprep.subr.mxu0 0.0
        %6948 = vmatpush1.msra.mxu0 0.0
        %6949 = vmatprep.subr.mxu0 0.0
        %6950 = vmatpush1.msra.mxu0 0.0
        %6951 = vmatprep.subr.mxu0 0.0
        %6952 = vmatpush1.msra.mxu0 0.0
        %6953 = vmatprep.subr.mxu0 0.0
        %6954 = vmatpush1.msra.mxu0 0.0
        %6955 = vmatprep.subr.mxu0 0.0
        %6956 = vmatpush1.msra.mxu0 0.0
        %6957 = vmatprep.subr.mxu0 0.0
        %6958 = vmatpush1.msra.mxu0 0.0
        %6959 = vmatprep.subr.mxu0 0.0
        %6960 = vmatpush1.msra.mxu0 0.0
        %6961 = vmatprep.subr.mxu0 0.0
        %6962 = vmatpush1.msra.mxu0 0.0
        %6963 = vmatprep.subr.mxu0 0.0
        %6964 = vmatpush1.msra.mxu0 0.0
        %6965 = vmatprep.subr.mxu0 0.0
        %6966 = vmatpush1.msra.mxu0 0.0
        %6967 = vmatprep.subr.mxu0 0.0
        %6968 = vmatpush1.msra.mxu0 0.0
        %6969 = vmatprep.subr.mxu0 0.0
        %6970 = vmatpush1.msra.mxu0 0.0
        %6971 = vmatprep.subr.mxu0 0.0
        %6972 = vmatpush1.msra.mxu0 0.0
        %6973 = vmatprep.subr.mxu0 0.0
        %6974 = vmatpush1.msra.mxu0 0.0
        %6975 = vmatprep.subr.mxu0 0.0
        %6976 = vmatpush1.msra.mxu0 0.0
        %6977 = vmatprep.subr.mxu0 0.0
        %6978 = vmatpush1.msra.mxu0 0.0
        %6979 = vmatprep.subr.mxu0 0.0
        %6980 = vmatpush1.msra.mxu0 0.0
        %6981 = vmatprep.subr.mxu0 0.0
        %6982 = vmatpush1.msra.mxu0 0.0
        %6983 = vmatprep.subr.mxu0 0.0
        %6984 = vmatpush1.msra.mxu0 0.0
        %6985 = vmatprep.subr.mxu0 0.0
        %6986 = vmatpush1.msra.mxu0 0.0
        %6987 = vmatprep.subr.mxu0 0.0
        %6988 = vmatpush1.msra.mxu0 0.0
        %6989 = vmatprep.subr.mxu0 0.0
        %6990 = vmatpush1.msra.mxu0 0.0
        %6991 = vmatprep.subr.mxu0 0.0
        %6992 = vmatpush1.msra.mxu0 0.0
        %6993 = vmatprep.subr.mxu0 0.0
        %6994 = vmatpush1.msra.mxu0 0.0
        %6995 = vmatprep.subr.mxu0 0.0
        %6996 = vmatpush1.msra.mxu0 0.0
        %6997 = vmatprep.mubr.f32.mxu0 0.0
        %6998 = vmatmul.mubr.f32.gmra.mrb[0].mxu0 %v2955
        %v6999 = vpop.f32.mrb[0].mxu0
        %v7000 = vadd.f32 %v5068, %v6999
        %v7001 = vpop.f32.mrb[0].mxu0
        %7002 = vdwg.mxu0
        %7003 = vmatprep.subr.mxu0 0.0
        %7004 = vmatpush1.msra.mxu0 %v4686
        %7005 = vmatprep.subr.mxu0 0.0
        %7006 = vmatpush1.msra.mxu0 %v4687
        %7007 = vmatprep.subr.mxu0 0.0
        %7008 = vmatpush1.msra.mxu0 %v4688
        %7009 = vmatprep.subr.mxu0 0.0
        %7010 = vmatpush1.msra.mxu0 %v4689
        %7011 = vmatprep.subr.mxu0 0.0
        %7012 = vmatpush1.msra.mxu0 0.0
        %7013 = vmatprep.subr.mxu0 0.0
        %7014 = vmatpush1.msra.mxu0 0.0
        %7015 = vmatprep.subr.mxu0 0.0
        %7016 = vmatpush1.msra.mxu0 0.0
        %7017 = vmatprep.subr.mxu0 0.0
        %7018 = vmatpush1.msra.mxu0 0.0
        %7019 = vmatprep.subr.mxu0 0.0
        %7020 = vmatpush1.msra.mxu0 0.0
        %7021 = vmatprep.subr.mxu0 0.0
        %7022 = vmatpush1.msra.mxu0 0.0
        %7023 = vmatprep.subr.mxu0 0.0
        %7024 = vmatpush1.msra.mxu0 0.0
        %7025 = vmatprep.subr.mxu0 0.0
        %7026 = vmatpush1.msra.mxu0 0.0
        %7027 = vmatprep.subr.mxu0 0.0
        %7028 = vmatpush1.msra.mxu0 0.0
        %7029 = vmatprep.subr.mxu0 0.0
        %7030 = vmatpush1.msra.mxu0 0.0
        %7031 = vmatprep.subr.mxu0 0.0
        %7032 = vmatpush1.msra.mxu0 0.0
        %7033 = vmatprep.subr.mxu0 0.0
        %7034 = vmatpush1.msra.mxu0 0.0
        %7035 = vmatprep.subr.mxu0 0.0
        %7036 = vmatpush1.msra.mxu0 0.0
        %7037 = vmatprep.subr.mxu0 0.0
        %7038 = vmatpush1.msra.mxu0 0.0
        %7039 = vmatprep.subr.mxu0 0.0
        %7040 = vmatpush1.msra.mxu0 0.0
        %7041 = vmatprep.subr.mxu0 0.0
        %7042 = vmatpush1.msra.mxu0 0.0
        %7043 = vmatprep.subr.mxu0 0.0
        %7044 = vmatpush1.msra.mxu0 0.0
        %7045 = vmatprep.subr.mxu0 0.0
        %7046 = vmatpush1.msra.mxu0 0.0
        %7047 = vmatprep.subr.mxu0 0.0
        %7048 = vmatpush1.msra.mxu0 0.0
        %7049 = vmatprep.subr.mxu0 0.0
        %7050 = vmatpush1.msra.mxu0 0.0
        %7051 = vmatprep.subr.mxu0 0.0
        %7052 = vmatpush1.msra.mxu0 0.0
        %7053 = vmatprep.subr.mxu0 0.0
        %7054 = vmatpush1.msra.mxu0 0.0
        %7055 = vmatprep.subr.mxu0 0.0
        %7056 = vmatpush1.msra.mxu0 0.0
        %7057 = vmatprep.subr.mxu0 0.0
        %7058 = vmatpush1.msra.mxu0 0.0
        %7059 = vmatprep.subr.mxu0 0.0
        %7060 = vmatpush1.msra.mxu0 0.0
        %7061 = vmatprep.subr.mxu0 0.0
        %7062 = vmatpush1.msra.mxu0 0.0
        %7063 = vmatprep.subr.mxu0 0.0
        %7064 = vmatpush1.msra.mxu0 0.0
        %7065 = vmatprep.subr.mxu0 0.0
        %7066 = vmatpush1.msra.mxu0 0.0
        %7067 = vmatprep.mubr.f32.mxu0 0.0
        %7068 = vmatmul.mubr.f32.gmra.mrb[0].mxu0 %v2955
        %v7069 = vpop.f32.mrb[0].mxu0
        %v7070 = vadd.f32 %v5072, %v7069
        %v7071 = vpop.f32.mrb[0].mxu0
        %7072 = vdwg.mxu0
        %7073 = vmatprep.subr.mxu0 0.0
        %7074 = vmatpush1.msra.mxu0 %v4690
        %7075 = vmatprep.subr.mxu0 0.0
        %7076 = vmatpush1.msra.mxu0 %v4691
        %7077 = vmatprep.subr.mxu0 0.0
        %7078 = vmatpush1.msra.mxu0 %v4692
        %7079 = vmatprep.subr.mxu0 0.0
        %7080 = vmatpush1.msra.mxu0 %v4693
        %7081 = vmatprep.subr.mxu0 0.0
        %7082 = vmatpush1.msra.mxu0 0.0
        %7083 = vmatprep.subr.mxu0 0.0
        %7084 = vmatpush1.msra.mxu0 0.0
        %7085 = vmatprep.subr.mxu0 0.0
        %7086 = vmatpush1.msra.mxu0 0.0
        %7087 = vmatprep.subr.mxu0 0.0
        %7088 = vmatpush1.msra.mxu0 0.0
        %7089 = vmatprep.subr.mxu0 0.0
        %7090 = vmatpush1.msra.mxu0 0.0
        %7091 = vmatprep.subr.mxu0 0.0
        %7092 = vmatpush1.msra.mxu0 0.0
        %7093 = vmatprep.subr.mxu0 0.0
        %7094 = vmatpush1.msra.mxu0 0.0
        %7095 = vmatprep.subr.mxu0 0.0
        %7096 = vmatpush1.msra.mxu0 0.0
        %7097 = vmatprep.subr.mxu0 0.0
        %7098 = vmatpush1.msra.mxu0 0.0
        %7099 = vmatprep.subr.mxu0 0.0
        %7100 = vmatpush1.msra.mxu0 0.0
        %7101 = vmatprep.subr.mxu0 0.0
        %7102 = vmatpush1.msra.mxu0 0.0
        %7103 = vmatprep.subr.mxu0 0.0
        %7104 = vmatpush1.msra.mxu0 0.0
        %7105 = vmatprep.subr.mxu0 0.0
        %7106 = vmatpush1.msra.mxu0 0.0
        %7107 = vmatprep.subr.mxu0 0.0
        %7108 = vmatpush1.msra.mxu0 0.0
        %7109 = vmatprep.subr.mxu0 0.0
        %7110 = vmatpush1.msra.mxu0 0.0
        %7111 = vmatprep.subr.mxu0 0.0
        %7112 = vmatpush1.msra.mxu0 0.0
        %7113 = vmatprep.subr.mxu0 0.0
        %7114 = vmatpush1.msra.mxu0 0.0
        %7115 = vmatprep.subr.mxu0 0.0
        %7116 = vmatpush1.msra.mxu0 0.0
        %7117 = vmatprep.subr.mxu0 0.0
        %7118 = vmatpush1.msra.mxu0 0.0
        %7119 = vmatprep.subr.mxu0 0.0
        %7120 = vmatpush1.msra.mxu0 0.0
        %7121 = vmatprep.subr.mxu0 0.0
        %7122 = vmatpush1.msra.mxu0 0.0
        %7123 = vmatprep.subr.mxu0 0.0
        %7124 = vmatpush1.msra.mxu0 0.0
        %7125 = vmatprep.subr.mxu0 0.0
        %7126 = vmatpush1.msra.mxu0 0.0
        %7127 = vmatprep.subr.mxu0 0.0
        %7128 = vmatpush1.msra.mxu0 0.0
        %7129 = vmatprep.subr.mxu0 0.0
        %7130 = vmatpush1.msra.mxu0 0.0
        %7131 = vmatprep.subr.mxu0 0.0
        %7132 = vmatpush1.msra.mxu0 0.0
        %7133 = vmatprep.subr.mxu0 0.0
        %7134 = vmatpush1.msra.mxu0 0.0
        %7135 = vmatprep.subr.mxu0 0.0
        %7136 = vmatpush1.msra.mxu0 0.0
        %7137 = vmatprep.mubr.f32.mxu0 0.0
        %7138 = vmatmul.mubr.f32.gmra.mrb[0].mxu0 %v2955
        %v7139 = vpop.f32.mrb[0].mxu0
        %v7140 = vadd.f32 %v5076, %v7139
        %v7141 = vpop.f32.mrb[0].mxu0
        %7142 = vdwg.mxu0
        %7143 = vmatprep.subr.mxu0 0.0
        %7144 = vmatpush1.msra.mxu0 %v4694
        %7145 = vmatprep.subr.mxu0 0.0
        %7146 = vmatpush1.msra.mxu0 %v4695
        %7147 = vmatprep.subr.mxu0 0.0
        %7148 = vmatpush1.msra.mxu0 %v4696
        %7149 = vmatprep.subr.mxu0 0.0
        %7150 = vmatpush1.msra.mxu0 %v4697
        %7151 = vmatprep.subr.mxu0 0.0
        %7152 = vmatpush1.msra.mxu0 0.0
        %7153 = vmatprep.subr.mxu0 0.0
        %7154 = vmatpush1.msra.mxu0 0.0
        %7155 = vmatprep.subr.mxu0 0.0
        %7156 = vmatpush1.msra.mxu0 0.0
        %7157 = vmatprep.subr.mxu0 0.0
        %7158 = vmatpush1.msra.mxu0 0.0
        %7159 = vmatprep.subr.mxu0 0.0
        %7160 = vmatpush1.msra.mxu0 0.0
        %7161 = vmatprep.subr.mxu0 0.0
        %7162 = vmatpush1.msra.mxu0 0.0
        %7163 = vmatprep.subr.mxu0 0.0
        %7164 = vmatpush1.msra.mxu0 0.0
        %7165 = vmatprep.subr.mxu0 0.0
        %7166 = vmatpush1.msra.mxu0 0.0
        %7167 = vmatprep.subr.mxu0 0.0
        %7168 = vmatpush1.msra.mxu0 0.0
        %7169 = vmatprep.subr.mxu0 0.0
        %7170 = vmatpush1.msra.mxu0 0.0
        %7171 = vmatprep.subr.mxu0 0.0
        %7172 = vmatpush1.msra.mxu0 0.0
        %7173 = vmatprep.subr.mxu0 0.0
        %7174 = vmatpush1.msra.mxu0 0.0
        %7175 = vmatprep.subr.mxu0 0.0
        %7176 = vmatpush1.msra.mxu0 0.0
        %7177 = vmatprep.subr.mxu0 0.0
        %7178 = vmatpush1.msra.mxu0 0.0
        %7179 = vmatprep.subr.mxu0 0.0
        %7180 = vmatpush1.msra.mxu0 0.0
        %7181 = vmatprep.subr.mxu0 0.0
        %7182 = vmatpush1.msra.mxu0 0.0
        %7183 = vmatprep.subr.mxu0 0.0
        %7184 = vmatpush1.msra.mxu0 0.0
        %7185 = vmatprep.subr.mxu0 0.0
        %7186 = vmatpush1.msra.mxu0 0.0
        %7187 = vmatprep.subr.mxu0 0.0
        %7188 = vmatpush1.msra.mxu0 0.0
        %7189 = vmatprep.subr.mxu0 0.0
        %7190 = vmatpush1.msra.mxu0 0.0
        %7191 = vmatprep.subr.mxu0 0.0
        %7192 = vmatpush1.msra.mxu0 0.0
        %7193 = vmatprep.subr.mxu0 0.0
        %7194 = vmatpush1.msra.mxu0 0.0
        %7195 = vmatprep.subr.mxu0 0.0
        %7196 = vmatpush1.msra.mxu0 0.0
        %7197 = vmatprep.subr.mxu0 0.0
        %7198 = vmatpush1.msra.mxu0 0.0
        %7199 = vmatprep.subr.mxu0 0.0
        %7200 = vmatpush1.msra.mxu0 0.0
        %7201 = vmatprep.subr.mxu0 0.0
        %7202 = vmatpush1.msra.mxu0 0.0
        %7203 = vmatprep.subr.mxu0 0.0
        %7204 = vmatpush1.msra.mxu0 0.0
        %7205 = vmatprep.subr.mxu0 0.0
        %7206 = vmatpush1.msra.mxu0 0.0
        %7207 = vmatprep.mubr.f32.mxu0 0.0
        %7208 = vmatmul.mubr.f32.gmra.mrb[0].mxu0 %v2955
        %v7209 = vpop.f32.mrb[0].mxu0
        %v7210 = vadd.f32 %v5080, %v7209
        %v7211 = vpop.f32.mrb[0].mxu0
        %7212 = vdwg.mxu0
        %7213 = vmatprep.subr.mxu0 0.0
        %7214 = vmatpush1.msra.mxu0 %v4704
        %7215 = vmatprep.subr.mxu0 0.0
        %7216 = vmatpush1.msra.mxu0 %v4705
        %7217 = vmatprep.subr.mxu0 0.0
        %7218 = vmatpush1.msra.mxu0 %v4706
        %7219 = vmatprep.subr.mxu0 0.0
        %7220 = vmatpush1.msra.mxu0 %v4707
        %7221 = vmatprep.subr.mxu0 0.0
        %7222 = vmatpush1.msra.mxu0 0.0
        %7223 = vmatprep.subr.mxu0 0.0
        %7224 = vmatpush1.msra.mxu0 0.0
        %7225 = vmatprep.subr.mxu0 0.0
        %7226 = vmatpush1.msra.mxu0 0.0
        %7227 = vmatprep.subr.mxu0 0.0
        %7228 = vmatpush1.msra.mxu0 0.0
        %7229 = vmatprep.subr.mxu0 0.0
        %7230 = vmatpush1.msra.mxu0 0.0
        %7231 = vmatprep.subr.mxu0 0.0
        %7232 = vmatpush1.msra.mxu0 0.0
        %7233 = vmatprep.subr.mxu0 0.0
        %7234 = vmatpush1.msra.mxu0 0.0
        %7235 = vmatprep.subr.mxu0 0.0
        %7236 = vmatpush1.msra.mxu0 0.0
        %7237 = vmatprep.subr.mxu0 0.0
        %7238 = vmatpush1.msra.mxu0 0.0
        %7239 = vmatprep.subr.mxu0 0.0
        %7240 = vmatpush1.msra.mxu0 0.0
        %7241 = vmatprep.subr.mxu0 0.0
        %7242 = vmatpush1.msra.mxu0 0.0
        %7243 = vmatprep.subr.mxu0 0.0
        %7244 = vmatpush1.msra.mxu0 0.0
        %7245 = vmatprep.subr.mxu0 0.0
        %7246 = vmatpush1.msra.mxu0 0.0
        %7247 = vmatprep.subr.mxu0 0.0
        %7248 = vmatpush1.msra.mxu0 0.0
        %7249 = vmatprep.subr.mxu0 0.0
        %7250 = vmatpush1.msra.mxu0 0.0
        %7251 = vmatprep.subr.mxu0 0.0
        %7252 = vmatpush1.msra.mxu0 0.0
        %7253 = vmatprep.subr.mxu0 0.0
        %7254 = vmatpush1.msra.mxu0 0.0
        %7255 = vmatprep.subr.mxu0 0.0
        %7256 = vmatpush1.msra.mxu0 0.0
        %7257 = vmatprep.subr.mxu0 0.0
        %7258 = vmatpush1.msra.mxu0 0.0
        %7259 = vmatprep.subr.mxu0 0.0
        %7260 = vmatpush1.msra.mxu0 0.0
        %7261 = vmatprep.subr.mxu0 0.0
        %7262 = vmatpush1.msra.mxu0 0.0
        %7263 = vmatprep.subr.mxu0 0.0
        %7264 = vmatpush1.msra.mxu0 0.0
        %7265 = vmatprep.subr.mxu0 0.0
        %7266 = vmatpush1.msra.mxu0 0.0
        %7267 = vmatprep.subr.mxu0 0.0
        %7268 = vmatpush1.msra.mxu0 0.0
        %7269 = vmatprep.subr.mxu0 0.0
        %7270 = vmatpush1.msra.mxu0 0.0
        %7271 = vmatprep.subr.mxu0 0.0
        %7272 = vmatpush1.msra.mxu0 0.0
        %7273 = vmatprep.subr.mxu0 0.0
        %7274 = vmatpush1.msra.mxu0 0.0
        %7275 = vmatprep.subr.mxu0 0.0
        %7276 = vmatpush1.msra.mxu0 0.0
        %7277 = vmatprep.mubr.f32.mxu0 0.0
        %7278 = vmatmul.mubr.f32.gmra.mrb[0].mxu0 %v2955
        %v7279 = vpop.f32.mrb[0].mxu0
        %v7280 = vadd.f32 %v5372, %v7279
        %v7281 = vpop.f32.mrb[0].mxu0
        %7282 = vdwg.mxu0
        %7283 = vmatprep.subr.mxu0 0.0
        %7284 = vmatpush1.msra.mxu0 %v4708
        %7285 = vmatprep.subr.mxu0 0.0
        %7286 = vmatpush1.msra.mxu0 %v4709
        %7287 = vmatprep.subr.mxu0 0.0
        %7288 = vmatpush1.msra.mxu0 %v4710
        %7289 = vmatprep.subr.mxu0 0.0
        %7290 = vmatpush1.msra.mxu0 %v4711
        %7291 = vmatprep.subr.mxu0 0.0
        %7292 = vmatpush1.msra.mxu0 0.0
        %7293 = vmatprep.subr.mxu0 0.0
        %7294 = vmatpush1.msra.mxu0 0.0
        %7295 = vmatprep.subr.mxu0 0.0
        %7296 = vmatpush1.msra.mxu0 0.0
        %7297 = vmatprep.subr.mxu0 0.0
        %7298 = vmatpush1.msra.mxu0 0.0
        %7299 = vmatprep.subr.mxu0 0.0
        %7300 = vmatpush1.msra.mxu0 0.0
        %7301 = vmatprep.subr.mxu0 0.0
        %7302 = vmatpush1.msra.mxu0 0.0
        %7303 = vmatprep.subr.mxu0 0.0
        %7304 = vmatpush1.msra.mxu0 0.0
        %7305 = vmatprep.subr.mxu0 0.0
        %7306 = vmatpush1.msra.mxu0 0.0
        %7307 = vmatprep.subr.mxu0 0.0
        %7308 = vmatpush1.msra.mxu0 0.0
        %7309 = vmatprep.subr.mxu0 0.0
        %7310 = vmatpush1.msra.mxu0 0.0
        %7311 = vmatprep.subr.mxu0 0.0
        %7312 = vmatpush1.msra.mxu0 0.0
        %7313 = vmatprep.subr.mxu0 0.0
        %7314 = vmatpush1.msra.mxu0 0.0
        %7315 = vmatprep.subr.mxu0 0.0
        %7316 = vmatpush1.msra.mxu0 0.0
        %7317 = vmatprep.subr.mxu0 0.0
        %7318 = vmatpush1.msra.mxu0 0.0
        %7319 = vmatprep.subr.mxu0 0.0
        %7320 = vmatpush1.msra.mxu0 0.0
        %7321 = vmatprep.subr.mxu0 0.0
        %7322 = vmatpush1.msra.mxu0 0.0
        %7323 = vmatprep.subr.mxu0 0.0
        %7324 = vmatpush1.msra.mxu0 0.0
        %7325 = vmatprep.subr.mxu0 0.0
        %7326 = vmatpush1.msra.mxu0 0.0
        %7327 = vmatprep.subr.mxu0 0.0
        %7328 = vmatpush1.msra.mxu0 0.0
        %7329 = vmatprep.subr.mxu0 0.0
        %7330 = vmatpush1.msra.mxu0 0.0
        %7331 = vmatprep.subr.mxu0 0.0
        %7332 = vmatpush1.msra.mxu0 0.0
        %7333 = vmatprep.subr.mxu0 0.0
        %7334 = vmatpush1.msra.mxu0 0.0
        %7335 = vmatprep.subr.mxu0 0.0
        %7336 = vmatpush1.msra.mxu0 0.0
        %7337 = vmatprep.subr.mxu0 0.0
        %7338 = vmatpush1.msra.mxu0 0.0
        %7339 = vmatprep.subr.mxu0 0.0
        %7340 = vmatpush1.msra.mxu0 0.0
        %7341 = vmatprep.subr.mxu0 0.0
        %7342 = vmatpush1.msra.mxu0 0.0
        %7343 = vmatprep.subr.mxu0 0.0
        %7344 = vmatpush1.msra.mxu0 0.0
        %7345 = vmatprep.subr.mxu0 0.0
        %7346 = vmatpush1.msra.mxu0 0.0
        %7347 = vmatprep.mubr.f32.mxu0 0.0
        %7348 = vmatmul.mubr.f32.gmra.mrb[0].mxu0 %v2955
        %v7349 = vpop.f32.mrb[0].mxu0
        %v7350 = vadd.f32 %v5376, %v7349
        %v7351 = vpop.f32.mrb[0].mxu0
        %7352 = vdwg.mxu0
        %7353 = vmatprep.subr.mxu0 0.0
        %7354 = vmatpush1.msra.mxu0 %v4712
        %7355 = vmatprep.subr.mxu0 0.0
        %7356 = vmatpush1.msra.mxu0 %v4713
        %7357 = vmatprep.subr.mxu0 0.0
        %7358 = vmatpush1.msra.mxu0 %v4714
        %7359 = vmatprep.subr.mxu0 0.0
        %7360 = vmatpush1.msra.mxu0 %v4715
        %7361 = vmatprep.subr.mxu0 0.0
        %7362 = vmatpush1.msra.mxu0 0.0
        %7363 = vmatprep.subr.mxu0 0.0
        %7364 = vmatpush1.msra.mxu0 0.0
        %7365 = vmatprep.subr.mxu0 0.0
        %7366 = vmatpush1.msra.mxu0 0.0
        %7367 = vmatprep.subr.mxu0 0.0
        %7368 = vmatpush1.msra.mxu0 0.0
        %7369 = vmatprep.subr.mxu0 0.0
        %7370 = vmatpush1.msra.mxu0 0.0
        %7371 = vmatprep.subr.mxu0 0.0
        %7372 = vmatpush1.msra.mxu0 0.0
        %7373 = vmatprep.subr.mxu0 0.0
        %7374 = vmatpush1.msra.mxu0 0.0
        %7375 = vmatprep.subr.mxu0 0.0
        %7376 = vmatpush1.msra.mxu0 0.0
        %7377 = vmatprep.subr.mxu0 0.0
        %7378 = vmatpush1.msra.mxu0 0.0
        %7379 = vmatprep.subr.mxu0 0.0
        %7380 = vmatpush1.msra.mxu0 0.0
        %7381 = vmatprep.subr.mxu0 0.0
        %7382 = vmatpush1.msra.mxu0 0.0
        %7383 = vmatprep.subr.mxu0 0.0
        %7384 = vmatpush1.msra.mxu0 0.0
        %7385 = vmatprep.subr.mxu0 0.0
        %7386 = vmatpush1.msra.mxu0 0.0
        %7387 = vmatprep.subr.mxu0 0.0
        %7388 = vmatpush1.msra.mxu0 0.0
        %7389 = vmatprep.subr.mxu0 0.0
        %7390 = vmatpush1.msra.mxu0 0.0
        %7391 = vmatprep.subr.mxu0 0.0
        %7392 = vmatpush1.msra.mxu0 0.0
        %7393 = vmatprep.subr.mxu0 0.0
        %7394 = vmatpush1.msra.mxu0 0.0
        %7395 = vmatprep.subr.mxu0 0.0
        %7396 = vmatpush1.msra.mxu0 0.0
        %7397 = vmatprep.subr.mxu0 0.0
        %7398 = vmatpush1.msra.mxu0 0.0
        %7399 = vmatprep.subr.mxu0 0.0
        %7400 = vmatpush1.msra.mxu0 0.0
        %7401 = vmatprep.subr.mxu0 0.0
        %7402 = vmatpush1.msra.mxu0 0.0
        %7403 = vmatprep.subr.mxu0 0.0
        %7404 = vmatpush1.msra.mxu0 0.0
        %7405 = vmatprep.subr.mxu0 0.0
        %7406 = vmatpush1.msra.mxu0 0.0
        %7407 = vmatprep.subr.mxu0 0.0
        %7408 = vmatpush1.msra.mxu0 0.0
        %7409 = vmatprep.subr.mxu0 0.0
        %7410 = vmatpush1.msra.mxu0 0.0
        %7411 = vmatprep.subr.mxu0 0.0
        %7412 = vmatpush1.msra.mxu0 0.0
        %7413 = vmatprep.subr.mxu0 0.0
        %7414 = vmatpush1.msra.mxu0 0.0
        %7415 = vmatprep.subr.mxu0 0.0
        %7416 = vmatpush1.msra.mxu0 0.0
        %7417 = vmatprep.mubr.f32.mxu0 0.0
        %7418 = vmatmul.mubr.f32.gmra.mrb[0].mxu0 %v2955
        %v7419 = vpop.f32.mrb[0].mxu0
        %v7420 = vadd.f32 %v5380, %v7419
        %v7421 = vpop.f32.mrb[0].mxu0
        %7422 = vdwg.mxu0
        %7423 = vmatprep.subr.mxu0 0.0
        %7424 = vmatpush1.msra.mxu0 %v4716
        %7425 = vmatprep.subr.mxu0 0.0
        %7426 = vmatpush1.msra.mxu0 %v4717
        %7427 = vmatprep.subr.mxu0 0.0
        %7428 = vmatpush1.msra.mxu0 %v4718
        %7429 = vmatprep.subr.mxu0 0.0
        %7430 = vmatpush1.msra.mxu0 %v4719
        %7431 = vmatprep.subr.mxu0 0.0
        %7432 = vmatpush1.msra.mxu0 0.0
        %7433 = vmatprep.subr.mxu0 0.0
        %7434 = vmatpush1.msra.mxu0 0.0
        %7435 = vmatprep.subr.mxu0 0.0
        %7436 = vmatpush1.msra.mxu0 0.0
        %7437 = vmatprep.subr.mxu0 0.0
        %7438 = vmatpush1.msra.mxu0 0.0
        %7439 = vmatprep.subr.mxu0 0.0
        %7440 = vmatpush1.msra.mxu0 0.0
        %7441 = vmatprep.subr.mxu0 0.0
        %7442 = vmatpush1.msra.mxu0 0.0
        %7443 = vmatprep.subr.mxu0 0.0
        %7444 = vmatpush1.msra.mxu0 0.0
        %7445 = vmatprep.subr.mxu0 0.0
        %7446 = vmatpush1.msra.mxu0 0.0
        %7447 = vmatprep.subr.mxu0 0.0
        %7448 = vmatpush1.msra.mxu0 0.0
        %7449 = vmatprep.subr.mxu0 0.0
        %7450 = vmatpush1.msra.mxu0 0.0
        %7451 = vmatprep.subr.mxu0 0.0
        %7452 = vmatpush1.msra.mxu0 0.0
        %7453 = vmatprep.subr.mxu0 0.0
        %7454 = vmatpush1.msra.mxu0 0.0
        %7455 = vmatprep.subr.mxu0 0.0
        %7456 = vmatpush1.msra.mxu0 0.0
        %7457 = vmatprep.subr.mxu0 0.0
        %7458 = vmatpush1.msra.mxu0 0.0
        %7459 = vmatprep.subr.mxu0 0.0
        %7460 = vmatpush1.msra.mxu0 0.0
        %7461 = vmatprep.subr.mxu0 0.0
        %7462 = vmatpush1.msra.mxu0 0.0
        %7463 = vmatprep.subr.mxu0 0.0
        %7464 = vmatpush1.msra.mxu0 0.0
        %7465 = vmatprep.subr.mxu0 0.0
        %7466 = vmatpush1.msra.mxu0 0.0
        %7467 = vmatprep.subr.mxu0 0.0
        %7468 = vmatpush1.msra.mxu0 0.0
        %7469 = vmatprep.subr.mxu0 0.0
        %7470 = vmatpush1.msra.mxu0 0.0
        %7471 = vmatprep.subr.mxu0 0.0
        %7472 = vmatpush1.msra.mxu0 0.0
        %7473 = vmatprep.subr.mxu0 0.0
        %7474 = vmatpush1.msra.mxu0 0.0
        %7475 = vmatprep.subr.mxu0 0.0
        %7476 = vmatpush1.msra.mxu0 0.0
        %7477 = vmatprep.subr.mxu0 0.0
        %7478 = vmatpush1.msra.mxu0 0.0
        %7479 = vmatprep.subr.mxu0 0.0
        %7480 = vmatpush1.msra.mxu0 0.0
        %7481 = vmatprep.subr.mxu0 0.0
        %7482 = vmatpush1.msra.mxu0 0.0
        %7483 = vmatprep.subr.mxu0 0.0
        %7484 = vmatpush1.msra.mxu0 0.0
        %7485 = vmatprep.subr.mxu0 0.0
        %7486 = vmatpush1.msra.mxu0 0.0
        %7487 = vmatprep.mubr.f32.mxu0 0.0
        %7488 = vmatmul.mubr.f32.gmra.mrb[0].mxu0 %v2955
        %v7489 = vpop.f32.mrb[0].mxu0
        %v7490 = vadd.f32 %v5384, %v7489
        %v7491 = vpop.f32.mrb[0].mxu0
        %7492 = vdwg.mxu0
        %v7494 = vsel %vm1686, %v6720, 0
        %v7497 = vsel %vm1686, %v7000, 0
        %7499 = vmatprep.subr.mxu0 0.0
        %7500 = vmatpush1.xpose.msra.mxu0 %v7497
        %7501 = vmatprep.subr.mxu0 0.0
        %7502 = vmatpush1.xpose.msra.mxu0 0.0
        %7503 = vmatprep.subr.mxu0 0.0
        %7504 = vmatpush1.xpose.msra.mxu0 0.0
        %7505 = vmatprep.subr.mxu0 0.0
        %7506 = vmatpush1.xpose.msra.mxu0 0.0
        %7507 = vmatprep.subr.mxu0 0.0
        %7508 = vmatpush1.xpose.msra.mxu0 0.0
        %7509 = vmatprep.subr.mxu0 0.0
        %7510 = vmatpush1.xpose.msra.mxu0 0.0
        %7511 = vmatprep.subr.mxu0 0.0
        %7512 = vmatpush1.xpose.msra.mxu0 0.0
        %7513 = vmatprep.subr.mxu0 0.0
        %7514 = vmatpush1.xpose.msra.mxu0 0.0
        %7515 = vmatprep.subr.mxu0 0.0
        %7516 = vmatpush1.xpose.msra.mxu0 0.0
        %7517 = vmatprep.subr.mxu0 0.0
        %7518 = vmatpush1.xpose.msra.mxu0 0.0
        %7519 = vmatprep.subr.mxu0 0.0
        %7520 = vmatpush1.xpose.msra.mxu0 0.0
        %7521 = vmatprep.subr.mxu0 0.0
        %7522 = vmatpush1.xpose.msra.mxu0 0.0
        %7523 = vmatprep.subr.mxu0 0.0
        %7524 = vmatpush1.xpose.msra.mxu0 0.0
        %7525 = vmatprep.subr.mxu0 0.0
        %7526 = vmatpush1.xpose.msra.mxu0 0.0
        %7527 = vmatprep.subr.mxu0 0.0
        %7528 = vmatpush1.xpose.msra.mxu0 0.0
        %7529 = vmatprep.subr.mxu0 0.0
        %7530 = vmatpush1.xpose.msra.mxu0 0.0
        %7531 = vmatprep.subr.mxu0 0.0
        %7532 = vmatpush1.xpose.msra.mxu0 0.0
        %7533 = vmatprep.subr.mxu0 0.0
        %7534 = vmatpush1.xpose.msra.mxu0 0.0
        %7535 = vmatprep.subr.mxu0 0.0
        %7536 = vmatpush1.xpose.msra.mxu0 0.0
        %7537 = vmatprep.subr.mxu0 0.0
        %7538 = vmatpush1.xpose.msra.mxu0 0.0
        %7539 = vmatprep.subr.mxu0 0.0
        %7540 = vmatpush1.xpose.msra.mxu0 0.0
        %7541 = vmatprep.subr.mxu0 0.0
        %7542 = vmatpush1.xpose.msra.mxu0 0.0
        %7543 = vmatprep.subr.mxu0 0.0
        %7544 = vmatpush1.xpose.msra.mxu0 0.0
        %7545 = vmatprep.subr.mxu0 0.0
        %7546 = vmatpush1.xpose.msra.mxu0 0.0
        %7547 = vmatprep.subr.mxu0 0.0
        %7548 = vmatpush1.xpose.msra.mxu0 0.0
        %7549 = vmatprep.subr.mxu0 0.0
        %7550 = vmatpush1.xpose.msra.mxu0 0.0
        %7551 = vmatprep.subr.mxu0 0.0
        %7552 = vmatpush1.xpose.msra.mxu0 0.0
        %7553 = vmatprep.subr.mxu0 0.0
        %7554 = vmatpush1.xpose.msra.mxu0 0.0
        %7555 = vmatprep.subr.mxu0 0.0
        %7556 = vmatpush1.xpose.msra.mxu0 0.0
        %7557 = vmatprep.subr.mxu0 0.0
        %7558 = vmatpush1.xpose.msra.mxu0 0.0
        %7559 = vmatprep.subr.mxu0 0.0
        %7560 = vmatpush1.xpose.msra.mxu0 0.0
        %7561 = vmatprep.subr.mxu0 0.0
        %7562 = vmatpush1.xpose.msra.mxu0 0.0
        %7563 = vmatprep.mubr.f32.mxu0 0.0
        %7564 = vmatmul.mubr.f32.gmra.mrb[0].mxu0 %v7494
        %v7565 = vpop.f32.mrb[0].mxu0
        %v7566 = vadd.f32 0.0, %v7565
        %v7567 = vpop.f32.mrb[0].mxu0
        %7568 = vdwg.mxu0
        %v7570 = vsel %vm1686, %v6790, 0
        %v7573 = vsel %vm1686, %v7070, 0
        %7575 = vmatprep.subr.mxu0 0.0
        %7576 = vmatpush1.xpose.msra.mxu0 %v7573
        %7577 = vmatprep.subr.mxu0 0.0
        %7578 = vmatpush1.xpose.msra.mxu0 0.0
        %7579 = vmatprep.subr.mxu0 0.0
        %7580 = vmatpush1.xpose.msra.mxu0 0.0
        %7581 = vmatprep.subr.mxu0 0.0
        %7582 = vmatpush1.xpose.msra.mxu0 0.0
        %7583 = vmatprep.subr.mxu0 0.0
        %7584 = vmatpush1.xpose.msra.mxu0 0.0
        %7585 = vmatprep.subr.mxu0 0.0
        %7586 = vmatpush1.xpose.msra.mxu0 0.0
        %7587 = vmatprep.subr.mxu0 0.0
        %7588 = vmatpush1.xpose.msra.mxu0 0.0
        %7589 = vmatprep.subr.mxu0 0.0
        %7590 = vmatpush1.xpose.msra.mxu0 0.0
        %7591 = vmatprep.subr.mxu0 0.0
        %7592 = vmatpush1.xpose.msra.mxu0 0.0
        %7593 = vmatprep.subr.mxu0 0.0
        %7594 = vmatpush1.xpose.msra.mxu0 0.0
        %7595 = vmatprep.subr.mxu0 0.0
        %7596 = vmatpush1.xpose.msra.mxu0 0.0
        %7597 = vmatprep.subr.mxu0 0.0
        %7598 = vmatpush1.xpose.msra.mxu0 0.0
        %7599 = vmatprep.subr.mxu0 0.0
        %7600 = vmatpush1.xpose.msra.mxu0 0.0
        %7601 = vmatprep.subr.mxu0 0.0
        %7602 = vmatpush1.xpose.msra.mxu0 0.0
        %7603 = vmatprep.subr.mxu0 0.0
        %7604 = vmatpush1.xpose.msra.mxu0 0.0
        %7605 = vmatprep.subr.mxu0 0.0
        %7606 = vmatpush1.xpose.msra.mxu0 0.0
        %7607 = vmatprep.subr.mxu0 0.0
        %7608 = vmatpush1.xpose.msra.mxu0 0.0
        %7609 = vmatprep.subr.mxu0 0.0
        %7610 = vmatpush1.xpose.msra.mxu0 0.0
        %7611 = vmatprep.subr.mxu0 0.0
        %7612 = vmatpush1.xpose.msra.mxu0 0.0
        %7613 = vmatprep.subr.mxu0 0.0
        %7614 = vmatpush1.xpose.msra.mxu0 0.0
        %7615 = vmatprep.subr.mxu0 0.0
        %7616 = vmatpush1.xpose.msra.mxu0 0.0
        %7617 = vmatprep.subr.mxu0 0.0
        %7618 = vmatpush1.xpose.msra.mxu0 0.0
        %7619 = vmatprep.subr.mxu0 0.0
        %7620 = vmatpush1.xpose.msra.mxu0 0.0
        %7621 = vmatprep.subr.mxu0 0.0
        %7622 = vmatpush1.xpose.msra.mxu0 0.0
        %7623 = vmatprep.subr.mxu0 0.0
        %7624 = vmatpush1.xpose.msra.mxu0 0.0
        %7625 = vmatprep.subr.mxu0 0.0
        %7626 = vmatpush1.xpose.msra.mxu0 0.0
        %7627 = vmatprep.subr.mxu0 0.0
        %7628 = vmatpush1.xpose.msra.mxu0 0.0
        %7629 = vmatprep.subr.mxu0 0.0
        %7630 = vmatpush1.xpose.msra.mxu0 0.0
        %7631 = vmatprep.subr.mxu0 0.0
        %7632 = vmatpush1.xpose.msra.mxu0 0.0
        %7633 = vmatprep.subr.mxu0 0.0
        %7634 = vmatpush1.xpose.msra.mxu0 0.0
        %7635 = vmatprep.subr.mxu0 0.0
        %7636 = vmatpush1.xpose.msra.mxu0 0.0
        %7637 = vmatprep.subr.mxu0 0.0
        %7638 = vmatpush1.xpose.msra.mxu0 0.0
        %7639 = vmatprep.mubr.f32.mxu0 0.0
        %7640 = vmatmul.mubr.f32.gmra.mrb[0].mxu0 %v7570
        %v7641 = vpop.f32.mrb[0].mxu0
        %v7642 = vadd.f32 0.0, %v7641
        %v7643 = vpop.f32.mrb[0].mxu0
        %7644 = vdwg.mxu0
        %v7646 = vsel %vm1686, %v6860, 0
        %v7649 = vsel %vm1686, %v7140, 0
        %7651 = vmatprep.subr.mxu0 0.0
        %7652 = vmatpush1.xpose.msra.mxu0 %v7649
        %7653 = vmatprep.subr.mxu0 0.0
        %7654 = vmatpush1.xpose.msra.mxu0 0.0
        %7655 = vmatprep.subr.mxu0 0.0
        %7656 = vmatpush1.xpose.msra.mxu0 0.0
        %7657 = vmatprep.subr.mxu0 0.0
        %7658 = vmatpush1.xpose.msra.mxu0 0.0
        %7659 = vmatprep.subr.mxu0 0.0
        %7660 = vmatpush1.xpose.msra.mxu0 0.0
        %7661 = vmatprep.subr.mxu0 0.0
        %7662 = vmatpush1.xpose.msra.mxu0 0.0
        %7663 = vmatprep.subr.mxu0 0.0
        %7664 = vmatpush1.xpose.msra.mxu0 0.0
        %7665 = vmatprep.subr.mxu0 0.0
        %7666 = vmatpush1.xpose.msra.mxu0 0.0
        %7667 = vmatprep.subr.mxu0 0.0
        %7668 = vmatpush1.xpose.msra.mxu0 0.0
        %7669 = vmatprep.subr.mxu0 0.0
        %7670 = vmatpush1.xpose.msra.mxu0 0.0
        %7671 = vmatprep.subr.mxu0 0.0
        %7672 = vmatpush1.xpose.msra.mxu0 0.0
        %7673 = vmatprep.subr.mxu0 0.0
        %7674 = vmatpush1.xpose.msra.mxu0 0.0
        %7675 = vmatprep.subr.mxu0 0.0
        %7676 = vmatpush1.xpose.msra.mxu0 0.0
        %7677 = vmatprep.subr.mxu0 0.0
        %7678 = vmatpush1.xpose.msra.mxu0 0.0
        %7679 = vmatprep.subr.mxu0 0.0
        %7680 = vmatpush1.xpose.msra.mxu0 0.0
        %7681 = vmatprep.subr.mxu0 0.0
        %7682 = vmatpush1.xpose.msra.mxu0 0.0
        %7683 = vmatprep.subr.mxu0 0.0
        %7684 = vmatpush1.xpose.msra.mxu0 0.0
        %7685 = vmatprep.subr.mxu0 0.0
        %7686 = vmatpush1.xpose.msra.mxu0 0.0
        %7687 = vmatprep.subr.mxu0 0.0
        %7688 = vmatpush1.xpose.msra.mxu0 0.0
        %7689 = vmatprep.subr.mxu0 0.0
        %7690 = vmatpush1.xpose.msra.mxu0 0.0
        %7691 = vmatprep.subr.mxu0 0.0
        %7692 = vmatpush1.xpose.msra.mxu0 0.0
        %7693 = vmatprep.subr.mxu0 0.0
        %7694 = vmatpush1.xpose.msra.mxu0 0.0
        %7695 = vmatprep.subr.mxu0 0.0
        %7696 = vmatpush1.xpose.msra.mxu0 0.0
        %7697 = vmatprep.subr.mxu0 0.0
        %7698 = vmatpush1.xpose.msra.mxu0 0.0
        %7699 = vmatprep.subr.mxu0 0.0
        %7700 = vmatpush1.xpose.msra.mxu0 0.0
        %7701 = vmatprep.subr.mxu0 0.0
        %7702 = vmatpush1.xpose.msra.mxu0 0.0
        %7703 = vmatprep.subr.mxu0 0.0
        %7704 = vmatpush1.xpose.msra.mxu0 0.0
        %7705 = vmatprep.subr.mxu0 0.0
        %7706 = vmatpush1.xpose.msra.mxu0 0.0
        %7707 = vmatprep.subr.mxu0 0.0
        %7708 = vmatpush1.xpose.msra.mxu0 0.0
        %7709 = vmatprep.subr.mxu0 0.0
        %7710 = vmatpush1.xpose.msra.mxu0 0.0
        %7711 = vmatprep.subr.mxu0 0.0
        %7712 = vmatpush1.xpose.msra.mxu0 0.0
        %7713 = vmatprep.subr.mxu0 0.0
        %7714 = vmatpush1.xpose.msra.mxu0 0.0
        %7715 = vmatprep.mubr.f32.mxu0 0.0
        %7716 = vmatmul.mubr.f32.gmra.mrb[0].mxu0 %v7646
        %v7717 = vpop.f32.mrb[0].mxu0
        %v7718 = vadd.f32 0.0, %v7717
        %v7719 = vpop.f32.mrb[0].mxu0
        %7720 = vdwg.mxu0
        %v7722 = vsel %vm1686, %v6930, 0
        %v7725 = vsel %vm1686, %v7210, 0
        %7727 = vmatprep.subr.mxu0 0.0
        %7728 = vmatpush1.xpose.msra.mxu0 %v7725
        %7729 = vmatprep.subr.mxu0 0.0
        %7730 = vmatpush1.xpose.msra.mxu0 0.0
        %7731 = vmatprep.subr.mxu0 0.0
        %7732 = vmatpush1.xpose.msra.mxu0 0.0
        %7733 = vmatprep.subr.mxu0 0.0
        %7734 = vmatpush1.xpose.msra.mxu0 0.0
        %7735 = vmatprep.subr.mxu0 0.0
        %7736 = vmatpush1.xpose.msra.mxu0 0.0
        %7737 = vmatprep.subr.mxu0 0.0
        %7738 = vmatpush1.xpose.msra.mxu0 0.0
        %7739 = vmatprep.subr.mxu0 0.0
        %7740 = vmatpush1.xpose.msra.mxu0 0.0
        %7741 = vmatprep.subr.mxu0 0.0
        %7742 = vmatpush1.xpose.msra.mxu0 0.0
        %7743 = vmatprep.subr.mxu0 0.0
        %7744 = vmatpush1.xpose.msra.mxu0 0.0
        %7745 = vmatprep.subr.mxu0 0.0
        %7746 = vmatpush1.xpose.msra.mxu0 0.0
        %7747 = vmatprep.subr.mxu0 0.0
        %7748 = vmatpush1.xpose.msra.mxu0 0.0
        %7749 = vmatprep.subr.mxu0 0.0
        %7750 = vmatpush1.xpose.msra.mxu0 0.0
        %7751 = vmatprep.subr.mxu0 0.0
        %7752 = vmatpush1.xpose.msra.mxu0 0.0
        %7753 = vmatprep.subr.mxu0 0.0
        %7754 = vmatpush1.xpose.msra.mxu0 0.0
        %7755 = vmatprep.subr.mxu0 0.0
        %7756 = vmatpush1.xpose.msra.mxu0 0.0
        %7757 = vmatprep.subr.mxu0 0.0
        %7758 = vmatpush1.xpose.msra.mxu0 0.0
        %7759 = vmatprep.subr.mxu0 0.0
        %7760 = vmatpush1.xpose.msra.mxu0 0.0
        %7761 = vmatprep.subr.mxu0 0.0
        %7762 = vmatpush1.xpose.msra.mxu0 0.0
        %7763 = vmatprep.subr.mxu0 0.0
        %7764 = vmatpush1.xpose.msra.mxu0 0.0
        %7765 = vmatprep.subr.mxu0 0.0
        %7766 = vmatpush1.xpose.msra.mxu0 0.0
        %7767 = vmatprep.subr.mxu0 0.0
        %7768 = vmatpush1.xpose.msra.mxu0 0.0
        %7769 = vmatprep.subr.mxu0 0.0
        %7770 = vmatpush1.xpose.msra.mxu0 0.0
        %7771 = vmatprep.subr.mxu0 0.0
        %7772 = vmatpush1.xpose.msra.mxu0 0.0
        %7773 = vmatprep.subr.mxu0 0.0
        %7774 = vmatpush1.xpose.msra.mxu0 0.0
        %7775 = vmatprep.subr.mxu0 0.0
        %7776 = vmatpush1.xpose.msra.mxu0 0.0
        %7777 = vmatprep.subr.mxu0 0.0
        %7778 = vmatpush1.xpose.msra.mxu0 0.0
        %7779 = vmatprep.subr.mxu0 0.0
        %7780 = vmatpush1.xpose.msra.mxu0 0.0
        %7781 = vmatprep.subr.mxu0 0.0
        %7782 = vmatpush1.xpose.msra.mxu0 0.0
        %7783 = vmatprep.subr.mxu0 0.0
        %7784 = vmatpush1.xpose.msra.mxu0 0.0
        %7785 = vmatprep.subr.mxu0 0.0
        %7786 = vmatpush1.xpose.msra.mxu0 0.0
        %7787 = vmatprep.subr.mxu0 0.0
        %7788 = vmatpush1.xpose.msra.mxu0 0.0
        %7789 = vmatprep.subr.mxu0 0.0
        %7790 = vmatpush1.xpose.msra.mxu0 0.0
        %7791 = vmatprep.mubr.f32.mxu0 0.0
        %7792 = vmatmul.mubr.f32.gmra.mrb[0].mxu0 %v7722
        %v7793 = vpop.f32.mrb[0].mxu0
        %v7794 = vadd.f32 0.0, %v7793
        %v7795 = vpop.f32.mrb[0].mxu0
        %7796 = vdwg.mxu0
        %v7797 = vsel %vm1992, -1e+09, %v7566
        %v7798 = vsel %vm1992, -1e+09, %v7642
        %v7799 = vsel %vm1992, -1e+09, %v7718
        %v7800 = vsel %vm1992, -1e+09, %v7794
        %v7801 = vsel %vm1686, %v7797, -inf
        %7802 = vmax.xlane.f32.xlu0 %v7801
        %v7803 = vpop.xlane.xlu0 %7802
        %v7804 = vsel %vm1686, %v7798, -inf
        %7805 = vmax.xlane.f32.xlu0 %v7804
        %v7806 = vpop.xlane.xlu0 %7805
        %v7807 = vsel %vm1686, %v7799, -inf
        %7808 = vmax.xlane.f32.xlu0 %v7807
        %v7809 = vpop.xlane.xlu0 %7808
        %v7810 = vsel %vm1686, %v7800, -inf
        %7811 = vmax.xlane.f32.xlu0 %v7810
        %v7812 = vpop.xlane.xlu0 %7811
        %v7813 = vsub.f32 %v7797, %v7803
        %v7814 = vsub.f32 %v7798, %v7806
        %v7815 = vsub.f32 %v7799, %v7809
        %v7816 = vsub.f32 %v7800, %v7812
        %v7817 = vmul.f32 %v7813, 1.442695
        %v7818 = vpow.pop %v7817
        %v7819 = vmul.f32 %v7814, 1.442695
        %v7820 = vpow.pop %v7819
        %v7821 = vmul.f32 %v7815, 1.442695
        %v7822 = vpow.pop %v7821
        %v7823 = vmul.f32 %v7816, 1.442695
        %v7824 = vpow.pop %v7823
        %v7825 = vsel %vm1686, %v7818, 0.0
        %7826 = vadd.xlane.f32.xlu0 %v7825
        %v7827 = vpop.xlane.xlu0 %7826
        %v7828 = vsel %vm1686, %v7820, 0.0
        %7829 = vadd.xlane.f32.xlu0 %v7828
        %v7830 = vpop.xlane.xlu0 %7829
        %v7831 = vsel %vm1686, %v7822, 0.0
        %7832 = vadd.xlane.f32.xlu0 %v7831
        %v7833 = vpop.xlane.xlu0 %7832
        %v7834 = vsel %vm1686, %v7824, 0.0
        %7835 = vadd.xlane.f32.xlu0 %v7834
        %v7836 = vpop.xlane.xlu0 %7835
        %v7837 = vrcp.pop %v7827
        %v7838 = vrcp.pop %v7830
        %v7839 = vrcp.pop %v7833
        %v7840 = vrcp.pop %v7836
        %v7841 = vmul.f32 %v7818, %v7837
        %v7842 = vmul.f32 %v7820, %v7838
        %v7843 = vmul.f32 %v7822, %v7839
        %v7844 = vmul.f32 %v7824, %v7840
        %v7846 = vsel %vm1686, %v7841, 0
        %7848 = vmatprep.subr.mxu0 0.0
        %7849 = vmatpush1.msra.mxu0 %v7280
        %7850 = vmatprep.subr.mxu0 0.0
        %7851 = vmatpush1.msra.mxu0 0.0
        %7852 = vmatprep.subr.mxu0 0.0
        %7853 = vmatpush1.msra.mxu0 0.0
        %7854 = vmatprep.subr.mxu0 0.0
        %7855 = vmatpush1.msra.mxu0 0.0
        %7856 = vmatprep.subr.mxu0 0.0
        %7857 = vmatpush1.msra.mxu0 0.0
        %7858 = vmatprep.subr.mxu0 0.0
        %7859 = vmatpush1.msra.mxu0 0.0
        %7860 = vmatprep.subr.mxu0 0.0
        %7861 = vmatpush1.msra.mxu0 0.0
        %7862 = vmatprep.subr.mxu0 0.0
        %7863 = vmatpush1.msra.mxu0 0.0
        %7864 = vmatprep.subr.mxu0 0.0
        %7865 = vmatpush1.msra.mxu0 0.0
        %7866 = vmatprep.subr.mxu0 0.0
        %7867 = vmatpush1.msra.mxu0 0.0
        %7868 = vmatprep.subr.mxu0 0.0
        %7869 = vmatpush1.msra.mxu0 0.0
        %7870 = vmatprep.subr.mxu0 0.0
        %7871 = vmatpush1.msra.mxu0 0.0
        %7872 = vmatprep.subr.mxu0 0.0
        %7873 = vmatpush1.msra.mxu0 0.0
        %7874 = vmatprep.subr.mxu0 0.0
        %7875 = vmatpush1.msra.mxu0 0.0
        %7876 = vmatprep.subr.mxu0 0.0
        %7877 = vmatpush1.msra.mxu0 0.0
        %7878 = vmatprep.subr.mxu0 0.0
        %7879 = vmatpush1.msra.mxu0 0.0
        %7880 = vmatprep.subr.mxu0 0.0
        %7881 = vmatpush1.msra.mxu0 0.0
        %7882 = vmatprep.subr.mxu0 0.0
        %7883 = vmatpush1.msra.mxu0 0.0
        %7884 = vmatprep.subr.mxu0 0.0
        %7885 = vmatpush1.msra.mxu0 0.0
        %7886 = vmatprep.subr.mxu0 0.0
        %7887 = vmatpush1.msra.mxu0 0.0
        %7888 = vmatprep.subr.mxu0 0.0
        %7889 = vmatpush1.msra.mxu0 0.0
        %7890 = vmatprep.subr.mxu0 0.0
        %7891 = vmatpush1.msra.mxu0 0.0
        %7892 = vmatprep.subr.mxu0 0.0
        %7893 = vmatpush1.msra.mxu0 0.0
        %7894 = vmatprep.subr.mxu0 0.0
        %7895 = vmatpush1.msra.mxu0 0.0
        %7896 = vmatprep.subr.mxu0 0.0
        %7897 = vmatpush1.msra.mxu0 0.0
        %7898 = vmatprep.subr.mxu0 0.0
        %7899 = vmatpush1.msra.mxu0 0.0
        %7900 = vmatprep.subr.mxu0 0.0
        %7901 = vmatpush1.msra.mxu0 0.0
        %7902 = vmatprep.subr.mxu0 0.0
        %7903 = vmatpush1.msra.mxu0 0.0
        %7904 = vmatprep.subr.mxu0 0.0
        %7905 = vmatpush1.msra.mxu0 0.0
        %7906 = vmatprep.subr.mxu0 0.0
        %7907 = vmatpush1.msra.mxu0 0.0
        %7908 = vmatprep.subr.mxu0 0.0
        %7909 = vmatpush1.msra.mxu0 0.0
        %7910 = vmatprep.subr.mxu0 0.0
        %7911 = vmatpush1.msra.mxu0 0.0
        %7912 = vmatprep.mubr.f32.mxu0 0.0
        %7913 = vmatmul.mubr.f32.gmra.mrb[0].mxu0 %v7846
        %v7914 = vpop.f32.mrb[0].mxu0
        %v7915 = vadd.f32 0.0, %v7914
        %v7916 = vpop.f32.mrb[0].mxu0
        %7917 = vdwg.mxu0
        %v7919 = vsel %vm1686, %v7842, 0
        %7921 = vmatprep.subr.mxu0 0.0
        %7922 = vmatpush1.msra.mxu0 %v7350
        %7923 = vmatprep.subr.mxu0 0.0
        %7924 = vmatpush1.msra.mxu0 0.0
        %7925 = vmatprep.subr.mxu0 0.0
        %7926 = vmatpush1.msra.mxu0 0.0
        %7927 = vmatprep.subr.mxu0 0.0
        %7928 = vmatpush1.msra.mxu0 0.0
        %7929 = vmatprep.subr.mxu0 0.0
        %7930 = vmatpush1.msra.mxu0 0.0
        %7931 = vmatprep.subr.mxu0 0.0
        %7932 = vmatpush1.msra.mxu0 0.0
        %7933 = vmatprep.subr.mxu0 0.0
        %7934 = vmatpush1.msra.mxu0 0.0
        %7935 = vmatprep.subr.mxu0 0.0
        %7936 = vmatpush1.msra.mxu0 0.0
        %7937 = vmatprep.subr.mxu0 0.0
        %7938 = vmatpush1.msra.mxu0 0.0
        %7939 = vmatprep.subr.mxu0 0.0
        %7940 = vmatpush1.msra.mxu0 0.0
        %7941 = vmatprep.subr.mxu0 0.0
        %7942 = vmatpush1.msra.mxu0 0.0
        %7943 = vmatprep.subr.mxu0 0.0
        %7944 = vmatpush1.msra.mxu0 0.0
        %7945 = vmatprep.subr.mxu0 0.0
        %7946 = vmatpush1.msra.mxu0 0.0
        %7947 = vmatprep.subr.mxu0 0.0
        %7948 = vmatpush1.msra.mxu0 0.0
        %7949 = vmatprep.subr.mxu0 0.0
        %7950 = vmatpush1.msra.mxu0 0.0
        %7951 = vmatprep.subr.mxu0 0.0
        %7952 = vmatpush1.msra.mxu0 0.0
        %7953 = vmatprep.subr.mxu0 0.0
        %7954 = vmatpush1.msra.mxu0 0.0
        %7955 = vmatprep.subr.mxu0 0.0
        %7956 = vmatpush1.msra.mxu0 0.0
        %7957 = vmatprep.subr.mxu0 0.0
        %7958 = vmatpush1.msra.mxu0 0.0
        %7959 = vmatprep.subr.mxu0 0.0
        %7960 = vmatpush1.msra.mxu0 0.0
        %7961 = vmatprep.subr.mxu0 0.0
        %7962 = vmatpush1.msra.mxu0 0.0
        %7963 = vmatprep.subr.mxu0 0.0
        %7964 = vmatpush1.msra.mxu0 0.0
        %7965 = vmatprep.subr.mxu0 0.0
        %7966 = vmatpush1.msra.mxu0 0.0
        %7967 = vmatprep.subr.mxu0 0.0
        %7968 = vmatpush1.msra.mxu0 0.0
        %7969 = vmatprep.subr.mxu0 0.0
        %7970 = vmatpush1.msra.mxu0 0.0
        %7971 = vmatprep.subr.mxu0 0.0
        %7972 = vmatpush1.msra.mxu0 0.0
        %7973 = vmatprep.subr.mxu0 0.0
        %7974 = vmatpush1.msra.mxu0 0.0
        %7975 = vmatprep.subr.mxu0 0.0
        %7976 = vmatpush1.msra.mxu0 0.0
        %7977 = vmatprep.subr.mxu0 0.0
        %7978 = vmatpush1.msra.mxu0 0.0
        %7979 = vmatprep.subr.mxu0 0.0
        %7980 = vmatpush1.msra.mxu0 0.0
        %7981 = vmatprep.subr.mxu0 0.0
        %7982 = vmatpush1.msra.mxu0 0.0
        %7983 = vmatprep.subr.mxu0 0.0
        %7984 = vmatpush1.msra.mxu0 0.0
        %7985 = vmatprep.mubr.f32.mxu0 0.0
        %7986 = vmatmul.mubr.f32.gmra.mrb[0].mxu0 %v7919
        %v7987 = vpop.f32.mrb[0].mxu0
        %v7988 = vadd.f32 0.0, %v7987
        %v7989 = vpop.f32.mrb[0].mxu0
        %7990 = vdwg.mxu0
        %v7992 = vsel %vm1686, %v7843, 0
        %7994 = vmatprep.subr.mxu0 0.0
        %7995 = vmatpush1.msra.mxu0 %v7420
        %7996 = vmatprep.subr.mxu0 0.0
        %7997 = vmatpush1.msra.mxu0 0.0
        %7998 = vmatprep.subr.mxu0 0.0
        %7999 = vmatpush1.msra.mxu0 0.0
        %8000 = vmatprep.subr.mxu0 0.0
        %8001 = vmatpush1.msra.mxu0 0.0
        %8002 = vmatprep.subr.mxu0 0.0
        %8003 = vmatpush1.msra.mxu0 0.0
        %8004 = vmatprep.subr.mxu0 0.0
        %8005 = vmatpush1.msra.mxu0 0.0
        %8006 = vmatprep.subr.mxu0 0.0
        %8007 = vmatpush1.msra.mxu0 0.0
        %8008 = vmatprep.subr.mxu0 0.0
        %8009 = vmatpush1.msra.mxu0 0.0
        %8010 = vmatprep.subr.mxu0 0.0
        %8011 = vmatpush1.msra.mxu0 0.0
        %8012 = vmatprep.subr.mxu0 0.0
        %8013 = vmatpush1.msra.mxu0 0.0
        %8014 = vmatprep.subr.mxu0 0.0
        %8015 = vmatpush1.msra.mxu0 0.0
        %8016 = vmatprep.subr.mxu0 0.0
        %8017 = vmatpush1.msra.mxu0 0.0
        %8018 = vmatprep.subr.mxu0 0.0
        %8019 = vmatpush1.msra.mxu0 0.0
        %8020 = vmatprep.subr.mxu0 0.0
        %8021 = vmatpush1.msra.mxu0 0.0
        %8022 = vmatprep.subr.mxu0 0.0
        %8023 = vmatpush1.msra.mxu0 0.0
        %8024 = vmatprep.subr.mxu0 0.0
        %8025 = vmatpush1.msra.mxu0 0.0
        %8026 = vmatprep.subr.mxu0 0.0
        %8027 = vmatpush1.msra.mxu0 0.0
        %8028 = vmatprep.subr.mxu0 0.0
        %8029 = vmatpush1.msra.mxu0 0.0
        %8030 = vmatprep.subr.mxu0 0.0
        %8031 = vmatpush1.msra.mxu0 0.0
        %8032 = vmatprep.subr.mxu0 0.0
        %8033 = vmatpush1.msra.mxu0 0.0
        %8034 = vmatprep.subr.mxu0 0.0
        %8035 = vmatpush1.msra.mxu0 0.0
        %8036 = vmatprep.subr.mxu0 0.0
        %8037 = vmatpush1.msra.mxu0 0.0
        %8038 = vmatprep.subr.mxu0 0.0
        %8039 = vmatpush1.msra.mxu0 0.0
        %8040 = vmatprep.subr.mxu0 0.0
        %8041 = vmatpush1.msra.mxu0 0.0
        %8042 = vmatprep.subr.mxu0 0.0
        %8043 = vmatpush1.msra.mxu0 0.0
        %8044 = vmatprep.subr.mxu0 0.0
        %8045 = vmatpush1.msra.mxu0 0.0
        %8046 = vmatprep.subr.mxu0 0.0
        %8047 = vmatpush1.msra.mxu0 0.0
        %8048 = vmatprep.subr.mxu0 0.0
        %8049 = vmatpush1.msra.mxu0 0.0
        %8050 = vmatprep.subr.mxu0 0.0
        %8051 = vmatpush1.msra.mxu0 0.0
        %8052 = vmatprep.subr.mxu0 0.0
        %8053 = vmatpush1.msra.mxu0 0.0
        %8054 = vmatprep.subr.mxu0 0.0
        %8055 = vmatpush1.msra.mxu0 0.0
        %8056 = vmatprep.subr.mxu0 0.0
        %8057 = vmatpush1.msra.mxu0 0.0
        %8058 = vmatprep.mubr.f32.mxu0 0.0
        %8059 = vmatmul.mubr.f32.gmra.mrb[0].mxu0 %v7992
        %v8060 = vpop.f32.mrb[0].mxu0
        %v8061 = vadd.f32 0.0, %v8060
        %v8062 = vpop.f32.mrb[0].mxu0
        %8063 = vdwg.mxu0
        %v8065 = vsel %vm1686, %v7844, 0
        %8067 = vmatprep.subr.mxu0 0.0
        %8068 = vmatpush1.msra.mxu0 %v7490
        %8069 = vmatprep.subr.mxu0 0.0
        %8070 = vmatpush1.msra.mxu0 0.0
        %8071 = vmatprep.subr.mxu0 0.0
        %8072 = vmatpush1.msra.mxu0 0.0
        %8073 = vmatprep.subr.mxu0 0.0
        %8074 = vmatpush1.msra.mxu0 0.0
        %8075 = vmatprep.subr.mxu0 0.0
        %8076 = vmatpush1.msra.mxu0 0.0
        %8077 = vmatprep.subr.mxu0 0.0
        %8078 = vmatpush1.msra.mxu0 0.0
        %8079 = vmatprep.subr.mxu0 0.0
        %8080 = vmatpush1.msra.mxu0 0.0
        %8081 = vmatprep.subr.mxu0 0.0
        %8082 = vmatpush1.msra.mxu0 0.0
        %8083 = vmatprep.subr.mxu0 0.0
        %8084 = vmatpush1.msra.mxu0 0.0
        %8085 = vmatprep.subr.mxu0 0.0
        %8086 = vmatpush1.msra.mxu0 0.0
        %8087 = vmatprep.subr.mxu0 0.0
        %8088 = vmatpush1.msra.mxu0 0.0
        %8089 = vmatprep.subr.mxu0 0.0
        %8090 = vmatpush1.msra.mxu0 0.0
        %8091 = vmatprep.subr.mxu0 0.0
        %8092 = vmatpush1.msra.mxu0 0.0
        %8093 = vmatprep.subr.mxu0 0.0
        %8094 = vmatpush1.msra.mxu0 0.0
        %8095 = vmatprep.subr.mxu0 0.0
        %8096 = vmatpush1.msra.mxu0 0.0
        %8097 = vmatprep.subr.mxu0 0.0
        %8098 = vmatpush1.msra.mxu0 0.0
        %8099 = vmatprep.subr.mxu0 0.0
        %8100 = vmatpush1.msra.mxu0 0.0
        %8101 = vmatprep.subr.mxu0 0.0
        %8102 = vmatpush1.msra.mxu0 0.0
        %8103 = vmatprep.subr.mxu0 0.0
        %8104 = vmatpush1.msra.mxu0 0.0
        %8105 = vmatprep.subr.mxu0 0.0
        %8106 = vmatpush1.msra.mxu0 0.0
        %8107 = vmatprep.subr.mxu0 0.0
        %8108 = vmatpush1.msra.mxu0 0.0
        %8109 = vmatprep.subr.mxu0 0.0
        %8110 = vmatpush1.msra.mxu0 0.0
        %8111 = vmatprep.subr.mxu0 0.0
        %8112 = vmatpush1.msra.mxu0 0.0
        %8113 = vmatprep.subr.mxu0 0.0
        %8114 = vmatpush1.msra.mxu0 0.0
        %8115 = vmatprep.subr.mxu0 0.0
        %8116 = vmatpush1.msra.mxu0 0.0
        %8117 = vmatprep.subr.mxu0 0.0
        %8118 = vmatpush1.msra.mxu0 0.0
        %8119 = vmatprep.subr.mxu0 0.0
        %8120 = vmatpush1.msra.mxu0 0.0
        %8121 = vmatprep.subr.mxu0 0.0
        %8122 = vmatpush1.msra.mxu0 0.0
        %8123 = vmatprep.subr.mxu0 0.0
        %8124 = vmatpush1.msra.mxu0 0.0
        %8125 = vmatprep.subr.mxu0 0.0
        %8126 = vmatpush1.msra.mxu0 0.0
        %8127 = vmatprep.subr.mxu0 0.0
        %8128 = vmatpush1.msra.mxu0 0.0
        %8129 = vmatprep.subr.mxu0 0.0
        %8130 = vmatpush1.msra.mxu0 0.0
        %8131 = vmatprep.mubr.f32.mxu0 0.0
        %8132 = vmatmul.mubr.f32.gmra.mrb[0].mxu0 %v8065
        %v8133 = vpop.f32.mrb[0].mxu0
        %v8134 = vadd.f32 0.0, %v8133
        %v8135 = vpop.f32.mrb[0].mxu0
        %8136 = vdwg.mxu0
        %v8138 = vsel %vm1686, %v7915, 0
        %8140 = vmatprep.subr.mxu0 0.0
        %8141 = vmatpush1.msra.mxu0 %v4726
        %8142 = vmatprep.subr.mxu0 0.0
        %8143 = vmatpush1.msra.mxu0 0.0
        %8144 = vmatprep.subr.mxu0 0.0
        %8145 = vmatpush1.msra.mxu0 0.0
        %8146 = vmatprep.subr.mxu0 0.0
        %8147 = vmatpush1.msra.mxu0 0.0
        %8148 = vmatprep.subr.mxu0 0.0
        %8149 = vmatpush1.msra.mxu0 0.0
        %8150 = vmatprep.subr.mxu0 0.0
        %8151 = vmatpush1.msra.mxu0 0.0
        %8152 = vmatprep.subr.mxu0 0.0
        %8153 = vmatpush1.msra.mxu0 0.0
        %8154 = vmatprep.subr.mxu0 0.0
        %8155 = vmatpush1.msra.mxu0 0.0
        %8156 = vmatprep.subr.mxu0 0.0
        %8157 = vmatpush1.msra.mxu0 0.0
        %8158 = vmatprep.subr.mxu0 0.0
        %8159 = vmatpush1.msra.mxu0 0.0
        %8160 = vmatprep.subr.mxu0 0.0
        %8161 = vmatpush1.msra.mxu0 0.0
        %8162 = vmatprep.subr.mxu0 0.0
        %8163 = vmatpush1.msra.mxu0 0.0
        %8164 = vmatprep.subr.mxu0 0.0
        %8165 = vmatpush1.msra.mxu0 0.0
        %8166 = vmatprep.subr.mxu0 0.0
        %8167 = vmatpush1.msra.mxu0 0.0
        %8168 = vmatprep.subr.mxu0 0.0
        %8169 = vmatpush1.msra.mxu0 0.0
        %8170 = vmatprep.subr.mxu0 0.0
        %8171 = vmatpush1.msra.mxu0 0.0
        %8172 = vmatprep.subr.mxu0 0.0
        %8173 = vmatpush1.msra.mxu0 0.0
        %8174 = vmatprep.subr.mxu0 0.0
        %8175 = vmatpush1.msra.mxu0 0.0
        %8176 = vmatprep.subr.mxu0 0.0
        %8177 = vmatpush1.msra.mxu0 0.0
        %8178 = vmatprep.subr.mxu0 0.0
        %8179 = vmatpush1.msra.mxu0 0.0
        %8180 = vmatprep.subr.mxu0 0.0
        %8181 = vmatpush1.msra.mxu0 0.0
        %8182 = vmatprep.subr.mxu0 0.0
        %8183 = vmatpush1.msra.mxu0 0.0
        %8184 = vmatprep.subr.mxu0 0.0
        %8185 = vmatpush1.msra.mxu0 0.0
        %8186 = vmatprep.subr.mxu0 0.0
        %8187 = vmatpush1.msra.mxu0 0.0
        %8188 = vmatprep.subr.mxu0 0.0
        %8189 = vmatpush1.msra.mxu0 0.0
        %8190 = vmatprep.subr.mxu0 0.0
        %8191 = vmatpush1.msra.mxu0 0.0
        %8192 = vmatprep.subr.mxu0 0.0
        %8193 = vmatpush1.msra.mxu0 0.0
        %8194 = vmatprep.subr.mxu0 0.0
        %8195 = vmatpush1.msra.mxu0 0.0
        %8196 = vmatprep.subr.mxu0 0.0
        %8197 = vmatpush1.msra.mxu0 0.0
        %8198 = vmatprep.subr.mxu0 0.0
        %8199 = vmatpush1.msra.mxu0 0.0
        %8200 = vmatprep.subr.mxu0 0.0
        %8201 = vmatpush1.msra.mxu0 0.0
        %8202 = vmatprep.subr.mxu0 0.0
        %8203 = vmatpush1.msra.mxu0 0.0
        %8204 = vmatprep.mubr.f32.mxu0 0.0
        %8205 = vmatmul.mubr.f32.gmra.mrb[0].mxu0 %v8138
        %v8206 = vpop.f32.mrb[0].mxu0
        %v8207 = vadd.f32 0.0, %v8206
        %v8208 = vpop.f32.mrb[0].mxu0
        %8209 = vdwg.mxu0
        %v8211 = vsel %vm1686, %v7988, 0
        %8213 = vmatprep.subr.mxu0 0.0
        %8214 = vmatpush1.msra.mxu0 %v4727
        %8215 = vmatprep.subr.mxu0 0.0
        %8216 = vmatpush1.msra.mxu0 0.0
        %8217 = vmatprep.subr.mxu0 0.0
        %8218 = vmatpush1.msra.mxu0 0.0
        %8219 = vmatprep.subr.mxu0 0.0
        %8220 = vmatpush1.msra.mxu0 0.0
        %8221 = vmatprep.subr.mxu0 0.0
        %8222 = vmatpush1.msra.mxu0 0.0
        %8223 = vmatprep.subr.mxu0 0.0
        %8224 = vmatpush1.msra.mxu0 0.0
        %8225 = vmatprep.subr.mxu0 0.0
        %8226 = vmatpush1.msra.mxu0 0.0
        %8227 = vmatprep.subr.mxu0 0.0
        %8228 = vmatpush1.msra.mxu0 0.0
        %8229 = vmatprep.subr.mxu0 0.0
        %8230 = vmatpush1.msra.mxu0 0.0
        %8231 = vmatprep.subr.mxu0 0.0
        %8232 = vmatpush1.msra.mxu0 0.0
        %8233 = vmatprep.subr.mxu0 0.0
        %8234 = vmatpush1.msra.mxu0 0.0
        %8235 = vmatprep.subr.mxu0 0.0
        %8236 = vmatpush1.msra.mxu0 0.0
        %8237 = vmatprep.subr.mxu0 0.0
        %8238 = vmatpush1.msra.mxu0 0.0
        %8239 = vmatprep.subr.mxu0 0.0
        %8240 = vmatpush1.msra.mxu0 0.0
        %8241 = vmatprep.subr.mxu0 0.0
        %8242 = vmatpush1.msra.mxu0 0.0
        %8243 = vmatprep.subr.mxu0 0.0
        %8244 = vmatpush1.msra.mxu0 0.0
        %8245 = vmatprep.subr.mxu0 0.0
        %8246 = vmatpush1.msra.mxu0 0.0
        %8247 = vmatprep.subr.mxu0 0.0
        %8248 = vmatpush1.msra.mxu0 0.0
        %8249 = vmatprep.subr.mxu0 0.0
        %8250 = vmatpush1.msra.mxu0 0.0
        %8251 = vmatprep.subr.mxu0 0.0
        %8252 = vmatpush1.msra.mxu0 0.0
        %8253 = vmatprep.subr.mxu0 0.0
        %8254 = vmatpush1.msra.mxu0 0.0
        %8255 = vmatprep.subr.mxu0 0.0
        %8256 = vmatpush1.msra.mxu0 0.0
        %8257 = vmatprep.subr.mxu0 0.0
        %8258 = vmatpush1.msra.mxu0 0.0
        %8259 = vmatprep.subr.mxu0 0.0
        %8260 = vmatpush1.msra.mxu0 0.0
        %8261 = vmatprep.subr.mxu0 0.0
        %8262 = vmatpush1.msra.mxu0 0.0
        %8263 = vmatprep.subr.mxu0 0.0
        %8264 = vmatpush1.msra.mxu0 0.0
        %8265 = vmatprep.subr.mxu0 0.0
        %8266 = vmatpush1.msra.mxu0 0.0
        %8267 = vmatprep.subr.mxu0 0.0
        %8268 = vmatpush1.msra.mxu0 0.0
        %8269 = vmatprep.subr.mxu0 0.0
        %8270 = vmatpush1.msra.mxu0 0.0
        %8271 = vmatprep.subr.mxu0 0.0
        %8272 = vmatpush1.msra.mxu0 0.0
        %8273 = vmatprep.subr.mxu0 0.0
        %8274 = vmatpush1.msra.mxu0 0.0
        %8275 = vmatprep.subr.mxu0 0.0
        %8276 = vmatpush1.msra.mxu0 0.0
        %8277 = vmatprep.mubr.f32.mxu0 0.0
        %8278 = vmatmul.mubr.f32.gmra.mrb[0].mxu0 %v8211
        %v8279 = vpop.f32.mrb[0].mxu0
        %v8280 = vadd.f32 0.0, %v8279
        %v8281 = vpop.f32.mrb[0].mxu0
        %8282 = vdwg.mxu0
        %v8284 = vsel %vm1686, %v8061, 0
        %8286 = vmatprep.subr.mxu0 0.0
        %8287 = vmatpush1.msra.mxu0 %v4728
        %8288 = vmatprep.subr.mxu0 0.0
        %8289 = vmatpush1.msra.mxu0 0.0
        %8290 = vmatprep.subr.mxu0 0.0
        %8291 = vmatpush1.msra.mxu0 0.0
        %8292 = vmatprep.subr.mxu0 0.0
        %8293 = vmatpush1.msra.mxu0 0.0
        %8294 = vmatprep.subr.mxu0 0.0
        %8295 = vmatpush1.msra.mxu0 0.0
        %8296 = vmatprep.subr.mxu0 0.0
        %8297 = vmatpush1.msra.mxu0 0.0
        %8298 = vmatprep.subr.mxu0 0.0
        %8299 = vmatpush1.msra.mxu0 0.0
        %8300 = vmatprep.subr.mxu0 0.0
        %8301 = vmatpush1.msra.mxu0 0.0
        %8302 = vmatprep.subr.mxu0 0.0
        %8303 = vmatpush1.msra.mxu0 0.0
        %8304 = vmatprep.subr.mxu0 0.0
        %8305 = vmatpush1.msra.mxu0 0.0
        %8306 = vmatprep.subr.mxu0 0.0
        %8307 = vmatpush1.msra.mxu0 0.0
        %8308 = vmatprep.subr.mxu0 0.0
        %8309 = vmatpush1.msra.mxu0 0.0
        %8310 = vmatprep.subr.mxu0 0.0
        %8311 = vmatpush1.msra.mxu0 0.0
        %8312 = vmatprep.subr.mxu0 0.0
        %8313 = vmatpush1.msra.mxu0 0.0
        %8314 = vmatprep.subr.mxu0 0.0
        %8315 = vmatpush1.msra.mxu0 0.0
        %8316 = vmatprep.subr.mxu0 0.0
        %8317 = vmatpush1.msra.mxu0 0.0
        %8318 = vmatprep.subr.mxu0 0.0
        %8319 = vmatpush1.msra.mxu0 0.0
        %8320 = vmatprep.subr.mxu0 0.0
        %8321 = vmatpush1.msra.mxu0 0.0
        %8322 = vmatprep.subr.mxu0 0.0
        %8323 = vmatpush1.msra.mxu0 0.0
        %8324 = vmatprep.subr.mxu0 0.0
        %8325 = vmatpush1.msra.mxu0 0.0
        %8326 = vmatprep.subr.mxu0 0.0
        %8327 = vmatpush1.msra.mxu0 0.0
        %8328 = vmatprep.subr.mxu0 0.0
        %8329 = vmatpush1.msra.mxu0 0.0
        %8330 = vmatprep.subr.mxu0 0.0
        %8331 = vmatpush1.msra.mxu0 0.0
        %8332 = vmatprep.subr.mxu0 0.0
        %8333 = vmatpush1.msra.mxu0 0.0
        %8334 = vmatprep.subr.mxu0 0.0
        %8335 = vmatpush1.msra.mxu0 0.0
        %8336 = vmatprep.subr.mxu0 0.0
        %8337 = vmatpush1.msra.mxu0 0.0
        %8338 = vmatprep.subr.mxu0 0.0
        %8339 = vmatpush1.msra.mxu0 0.0
        %8340 = vmatprep.subr.mxu0 0.0
        %8341 = vmatpush1.msra.mxu0 0.0
        %8342 = vmatprep.subr.mxu0 0.0
        %8343 = vmatpush1.msra.mxu0 0.0
        %8344 = vmatprep.subr.mxu0 0.0
        %8345 = vmatpush1.msra.mxu0 0.0
        %8346 = vmatprep.subr.mxu0 0.0
        %8347 = vmatpush1.msra.mxu0 0.0
        %8348 = vmatprep.subr.mxu0 0.0
        %8349 = vmatpush1.msra.mxu0 0.0
        %8350 = vmatprep.mubr.f32.mxu0 0.0
        %8351 = vmatmul.mubr.f32.gmra.mrb[0].mxu0 %v8284
        %v8352 = vpop.f32.mrb[0].mxu0
        %v8353 = vadd.f32 0.0, %v8352
        %v8354 = vpop.f32.mrb[0].mxu0
        %8355 = vdwg.mxu0
        %v8357 = vsel %vm1686, %v8134, 0
        %8359 = vmatprep.subr.mxu0 0.0
        %8360 = vmatpush1.msra.mxu0 %v4729
        %8361 = vmatprep.subr.mxu0 0.0
        %8362 = vmatpush1.msra.mxu0 0.0
        %8363 = vmatprep.subr.mxu0 0.0
        %8364 = vmatpush1.msra.mxu0 0.0
        %8365 = vmatprep.subr.mxu0 0.0
        %8366 = vmatpush1.msra.mxu0 0.0
        %8367 = vmatprep.subr.mxu0 0.0
        %8368 = vmatpush1.msra.mxu0 0.0
        %8369 = vmatprep.subr.mxu0 0.0
        %8370 = vmatpush1.msra.mxu0 0.0
        %8371 = vmatprep.subr.mxu0 0.0
        %8372 = vmatpush1.msra.mxu0 0.0
        %8373 = vmatprep.subr.mxu0 0.0
        %8374 = vmatpush1.msra.mxu0 0.0
        %8375 = vmatprep.subr.mxu0 0.0
        %8376 = vmatpush1.msra.mxu0 0.0
        %8377 = vmatprep.subr.mxu0 0.0
        %8378 = vmatpush1.msra.mxu0 0.0
        %8379 = vmatprep.subr.mxu0 0.0
        %8380 = vmatpush1.msra.mxu0 0.0
        %8381 = vmatprep.subr.mxu0 0.0
        %8382 = vmatpush1.msra.mxu0 0.0
        %8383 = vmatprep.subr.mxu0 0.0
        %8384 = vmatpush1.msra.mxu0 0.0
        %8385 = vmatprep.subr.mxu0 0.0
        %8386 = vmatpush1.msra.mxu0 0.0
        %8387 = vmatprep.subr.mxu0 0.0
        %8388 = vmatpush1.msra.mxu0 0.0
        %8389 = vmatprep.subr.mxu0 0.0
        %8390 = vmatpush1.msra.mxu0 0.0
        %8391 = vmatprep.subr.mxu0 0.0
        %8392 = vmatpush1.msra.mxu0 0.0
        %8393 = vmatprep.subr.mxu0 0.0
        %8394 = vmatpush1.msra.mxu0 0.0
        %8395 = vmatprep.subr.mxu0 0.0
        %8396 = vmatpush1.msra.mxu0 0.0
        %8397 = vmatprep.subr.mxu0 0.0
        %8398 = vmatpush1.msra.mxu0 0.0
        %8399 = vmatprep.subr.mxu0 0.0
        %8400 = vmatpush1.msra.mxu0 0.0
        %8401 = vmatprep.subr.mxu0 0.0
        %8402 = vmatpush1.msra.mxu0 0.0
        %8403 = vmatprep.subr.mxu0 0.0
        %8404 = vmatpush1.msra.mxu0 0.0
        %8405 = vmatprep.subr.mxu0 0.0
        %8406 = vmatpush1.msra.mxu0 0.0
        %8407 = vmatprep.subr.mxu0 0.0
        %8408 = vmatpush1.msra.mxu0 0.0
        %8409 = vmatprep.subr.mxu0 0.0
        %8410 = vmatpush1.msra.mxu0 0.0
        %8411 = vmatprep.subr.mxu0 0.0
        %8412 = vmatpush1.msra.mxu0 0.0
        %8413 = vmatprep.subr.mxu0 0.0
        %8414 = vmatpush1.msra.mxu0 0.0
        %8415 = vmatprep.subr.mxu0 0.0
        %8416 = vmatpush1.msra.mxu0 0.0
        %8417 = vmatprep.subr.mxu0 0.0
        %8418 = vmatpush1.msra.mxu0 0.0
        %8419 = vmatprep.subr.mxu0 0.0
        %8420 = vmatpush1.msra.mxu0 0.0
        %8421 = vmatprep.subr.mxu0 0.0
        %8422 = vmatpush1.msra.mxu0 0.0
        %8423 = vmatprep.mubr.f32.mxu0 0.0
        %8424 = vmatmul.mubr.f32.gmra.mrb[0].mxu0 %v8357
        %v8425 = vpop.f32.mrb[0].mxu0
        %v8426 = vadd.f32 0.0, %v8425
        %v8427 = vpop.f32.mrb[0].mxu0
        %8428 = vdwg.mxu0
        %v8429 = vsel %vm794, %v8207, 0.0
        %v8430 = vsel %vm794, %v8280, 0.0
        %v8431 = vadd.f32 %v8429, %v8430
        %v8432 = vsel %vm794, %v8353, 0.0
        %v8433 = vadd.f32 %v8431, %v8432
        %v8434 = vsel %vm794, %v8426, 0.0
        %v8435 = vadd.f32 %v8433, %v8434
        %v8436 = vadd.f32 %v8435, %v6616
        %v8437 = vadd.f32 %v6649, %v8436
        %v8438 = vsel %vm794, %v8437, 0.0
        %8439 = vadd.xlane.f32.xlu0 %v8438
        %v8440 = vpop.xlane.xlu0 %8439
        %v8441 = vmul.f32 %v8440, %v2643
        %v8442 = vmul.f32 %v8437, %v8437
        %v8443 = vsel %vm794, %v8442, 0.0
        %8444 = vadd.xlane.f32.xlu0 %v8443
        %v8445 = vpop.xlane.xlu0 %8444
        %v8446 = vmul.f32 %v8445, %v2643
        %v8447 = vmul.f32 %v8441, %v8441
        %v8448 = vsub.f32 %v8446, %v8447
        %v8449 = vmax.f32 %v8448, 0.0
        %v8450 = vsub.f32 %v8437, %v8441
        %v8451 = vmul.f32 %v6637, %v8450
        %v8452 = vadd.f32 %v8449, 1e-06
        %v8453 = vrsqrt.pop %v8452
        %v8454 = vmul.f32 %v8451, %v8453
        %v8455 = vadd.f32 %v8454, %v6647
        %v8457 = vlaneseq
        %v8458 = vshrl.u32 %v8457, 7
        %v8459 = vsub.s32 0, %v8458
        %v8460 = vrot.slane %v4738, %v8459
        %v8463 = vsel %vm794, %v8455, 0
        %8465 = vmatprep.subr.mxu0 0.0
        %8466 = vmatpush1.msra.mxu0 %v4733
        %8467 = vmatprep.subr.mxu0 0.0
        %8468 = vmatpush1.msra.mxu0 %v4734
        %8469 = vmatprep.subr.mxu0 0.0
        %8470 = vmatpush1.msra.mxu0 %v4735
        %8471 = vmatprep.subr.mxu0 0.0
        %8472 = vmatpush1.msra.mxu0 %v4736
        %8473 = vmatprep.subr.mxu0 0.0
        %8474 = vmatpush1.msra.mxu0 0.0
        %8475 = vmatprep.subr.mxu0 0.0
        %8476 = vmatpush1.msra.mxu0 0.0
        %8477 = vmatprep.subr.mxu0 0.0
        %8478 = vmatpush1.msra.mxu0 0.0
        %8479 = vmatprep.subr.mxu0 0.0
        %8480 = vmatpush1.msra.mxu0 0.0
        %8481 = vmatprep.subr.mxu0 0.0
        %8482 = vmatpush1.msra.mxu0 0.0
        %8483 = vmatprep.subr.mxu0 0.0
        %8484 = vmatpush1.msra.mxu0 0.0
        %8485 = vmatprep.subr.mxu0 0.0
        %8486 = vmatpush1.msra.mxu0 0.0
        %8487 = vmatprep.subr.mxu0 0.0
        %8488 = vmatpush1.msra.mxu0 0.0
        %8489 = vmatprep.subr.mxu0 0.0
        %8490 = vmatpush1.msra.mxu0 0.0
        %8491 = vmatprep.subr.mxu0 0.0
        %8492 = vmatpush1.msra.mxu0 0.0
        %8493 = vmatprep.subr.mxu0 0.0
        %8494 = vmatpush1.msra.mxu0 0.0
        %8495 = vmatprep.subr.mxu0 0.0
        %8496 = vmatpush1.msra.mxu0 0.0
        %8497 = vmatprep.subr.mxu0 0.0
        %8498 = vmatpush1.msra.mxu0 0.0
        %8499 = vmatprep.subr.mxu0 0.0
        %8500 = vmatpush1.msra.mxu0 0.0
        %8501 = vmatprep.subr.mxu0 0.0
        %8502 = vmatpush1.msra.mxu0 0.0
        %8503 = vmatprep.subr.mxu0 0.0
        %8504 = vmatpush1.msra.mxu0 0.0
        %8505 = vmatprep.subr.mxu0 0.0
        %8506 = vmatpush1.msra.mxu0 0.0
        %8507 = vmatprep.subr.mxu0 0.0
        %8508 = vmatpush1.msra.mxu0 0.0
        %8509 = vmatprep.subr.mxu0 0.0
        %8510 = vmatpush1.msra.mxu0 0.0
        %8511 = vmatprep.subr.mxu0 0.0
        %8512 = vmatpush1.msra.mxu0 0.0
        %8513 = vmatprep.subr.mxu0 0.0
        %8514 = vmatpush1.msra.mxu0 0.0
        %8515 = vmatprep.subr.mxu0 0.0
        %8516 = vmatpush1.msra.mxu0 0.0
        %8517 = vmatprep.subr.mxu0 0.0
        %8518 = vmatpush1.msra.mxu0 0.0
        %8519 = vmatprep.subr.mxu0 0.0
        %8520 = vmatpush1.msra.mxu0 0.0
        %8521 = vmatprep.subr.mxu0 0.0
        %8522 = vmatpush1.msra.mxu0 0.0
        %8523 = vmatprep.subr.mxu0 0.0
        %8524 = vmatpush1.msra.mxu0 0.0
        %8525 = vmatprep.subr.mxu0 0.0
        %8526 = vmatpush1.msra.mxu0 0.0
        %8527 = vmatprep.subr.mxu0 0.0
        %8528 = vmatpush1.msra.mxu0 0.0
        %8529 = vmatprep.mubr.f32.mxu0 0.0
        %8530 = vmatmul.mubr.f32.gmra.mrb[0].mxu0 %v8463
        %v8531 = vpop.f32.mrb[0].mxu0
        %v8532 = vadd.f32 %v8460, %v8531
        %v8533 = vpop.f32.mrb[0].mxu0
        %8534 = vdwg.mxu0
        %v8535 = vmax.f32 %v8532, 0.0
        %v8537 = vlaneseq
        %v8538 = vshrl.u32 %v8537, 7
        %v8539 = vsub.s32 0, %v8538
        %v8540 = vrot.slane %v4749, %v8539
        %v8543 = vsel %vm4566, %v8535, 0
        %8545 = vmatprep.subr.mxu0 0.0
        %8546 = vmatpush1.msra.mxu0 %v4740
        %8547 = vmatprep.subr.mxu0 0.0
        %8548 = vmatpush1.msra.mxu0 %v4741
        %8549 = vmatprep.subr.mxu0 0.0
        %8550 = vmatpush1.msra.mxu0 %v4742
        %8551 = vmatprep.subr.mxu0 0.0
        %8552 = vmatpush1.msra.mxu0 %v4743
        %8553 = vmatprep.subr.mxu0 0.0
        %8554 = vmatpush1.msra.mxu0 %v4744
        %8555 = vmatprep.subr.mxu0 0.0
        %8556 = vmatpush1.msra.mxu0 %v4745
        %8557 = vmatprep.subr.mxu0 0.0
        %8558 = vmatpush1.msra.mxu0 %v4746
        %8559 = vmatprep.subr.mxu0 0.0
        %8560 = vmatpush1.msra.mxu0 %v4747
        %8561 = vmatprep.subr.mxu0 0.0
        %8562 = vmatpush1.msra.mxu0 0.0
        %8563 = vmatprep.subr.mxu0 0.0
        %8564 = vmatpush1.msra.mxu0 0.0
        %8565 = vmatprep.subr.mxu0 0.0
        %8566 = vmatpush1.msra.mxu0 0.0
        %8567 = vmatprep.subr.mxu0 0.0
        %8568 = vmatpush1.msra.mxu0 0.0
        %8569 = vmatprep.subr.mxu0 0.0
        %8570 = vmatpush1.msra.mxu0 0.0
        %8571 = vmatprep.subr.mxu0 0.0
        %8572 = vmatpush1.msra.mxu0 0.0
        %8573 = vmatprep.subr.mxu0 0.0
        %8574 = vmatpush1.msra.mxu0 0.0
        %8575 = vmatprep.subr.mxu0 0.0
        %8576 = vmatpush1.msra.mxu0 0.0
        %8577 = vmatprep.subr.mxu0 0.0
        %8578 = vmatpush1.msra.mxu0 0.0
        %8579 = vmatprep.subr.mxu0 0.0
        %8580 = vmatpush1.msra.mxu0 0.0
        %8581 = vmatprep.subr.mxu0 0.0
        %8582 = vmatpush1.msra.mxu0 0.0
        %8583 = vmatprep.subr.mxu0 0.0
        %8584 = vmatpush1.msra.mxu0 0.0
        %8585 = vmatprep.subr.mxu0 0.0
        %8586 = vmatpush1.msra.mxu0 0.0
        %8587 = vmatprep.subr.mxu0 0.0
        %8588 = vmatpush1.msra.mxu0 0.0
        %8589 = vmatprep.subr.mxu0 0.0
        %8590 = vmatpush1.msra.mxu0 0.0
        %8591 = vmatprep.subr.mxu0 0.0
        %8592 = vmatpush1.msra.mxu0 0.0
        %8593 = vmatprep.subr.mxu0 0.0
        %8594 = vmatpush1.msra.mxu0 0.0
        %8595 = vmatprep.subr.mxu0 0.0
        %8596 = vmatpush1.msra.mxu0 0.0
        %8597 = vmatprep.subr.mxu0 0.0
        %8598 = vmatpush1.msra.mxu0 0.0
        %8599 = vmatprep.subr.mxu0 0.0
        %8600 = vmatpush1.msra.mxu0 0.0
        %8601 = vmatprep.subr.mxu0 0.0
        %8602 = vmatpush1.msra.mxu0 0.0
        %8603 = vmatprep.subr.mxu0 0.0
        %8604 = vmatpush1.msra.mxu0 0.0
        %8605 = vmatprep.subr.mxu0 0.0
        %8606 = vmatpush1.msra.mxu0 0.0
        %8607 = vmatprep.subr.mxu0 0.0
        %8608 = vmatpush1.msra.mxu0 0.0
        %8609 = vmatprep.mubr.f32.mxu0 0.0
        %8610 = vmatmul.mubr.f32.gmra.mrb[0].mxu0 %v8543
        %v8611 = vpop.f32.mrb[0].mxu0
        %v8612 = vadd.f32 %v8540, %v8611
        %v8613 = vpop.f32.mrb[0].mxu0
        %8614 = vdwg.mxu0
        %v8615 = vadd.f32 %v8455, %v8612
        %v8616 = vsel %vm794, %v8615, 0.0
        %8617 = vadd.xlane.f32.xlu0 %v8616
        %v8618 = vpop.xlane.xlu0 %8617
        %v8619 = vmul.f32 %v8618, %v2643
        %v8620 = vmul.f32 %v8615, %v8615
        %v8621 = vsel %vm794, %v8620, 0.0
        %8622 = vadd.xlane.f32.xlu0 %v8621
        %v8623 = vpop.xlane.xlu0 %8622
        %v8624 = vmul.f32 %v8623, %v2643
        %v8625 = vmul.f32 %v8619, %v8619
        %v8626 = vsub.f32 %v8624, %v8625
        %v8627 = vmax.f32 %v8626, 0.0
        %v8628 = vsub.f32 %v8615, %v8619
        %v8629 = vmul.f32 %v6637, %v8628
        %v8630 = vadd.f32 %v8627, 1e-06
        %v8631 = vrsqrt.pop %v8630
        %v8632 = vmul.f32 %v8629, %v8631
        %v8633 = vadd.f32 %v8632, %v6647
        %8634 = vst.msk [vmem:[%s676] sm:$0xff] %vm794, %v8633
        %s8635 = sand.u32 %s417, 1
        %s8636 = scalar_lea.sflag [#allocation4], %s8635
        %s8637 = sand.u32 %s417, 1
        %s8638 = smul.addr %s8637, 8
        %s8639 = scalar_lea.vmem [#allocation14], %s8638
        // Predicated region
        $region117: #{decoder_forward.1} parent=87 // pred_check
          %p8640 = pneg %p427
        $region118: #{decoder_forward.1} parent=87 // pred_check_branch
          %8642 = sbr.rel (%p8640) target = $region120
        $region119: #{decoder_forward.1} parent=87 // pred_region
          %s8644 = ssub.s32 128, 128
          %8645 = vsyncadd %s8636, %s8644
          %s8646 = smul.addr %s37, 128
          %s8647 = scalar_lea.hbm %s17, %s8646
          %s8649 = sshll.u32 %s8639, 4
          %s8650 = int_to_ptr.vmem [resolvable:$true] %s8649
          %8652 = dma.vmem_to_hbm [thread:$0]  %s8650, 128, %s8647, %s8636
        $region120: #{decoder_forward.1} parent=87 // pred_fallthru
          _
      $region88: #{decoder_forward.1} parent=5 // pred_fallthru
        _
      %p8653 = scmp.le.s32.totalorder 2, %s32
      // Predicated region
      $region121: #{decoder_forward.1} parent=5 // pred_check
        %p8654 = pneg %p8653
      $region122: #{decoder_forward.1} parent=5 // pred_check_branch
        %8656 = sbr.rel (%p8654) target = $region124
      $region123: #{decoder_forward.1} parent=5 // pred_region
        %s8657 = ssub.s32 %s32, 2
        // Predicated region
        $region125: #{decoder_forward.1} parent=123 // pred_check
          %p8658 = pneg %p433
        $region126: #{decoder_forward.1} parent=123 // pred_check_branch
          %8660 = sbr.rel (%p8658) target = $region128
        $region127: #{decoder_forward.1} parent=123 // pred_region
          %s8661 = sand.u32 %s418, 1
          %s8662 = scalar_lea.sflag [#allocation4], %s8661
          %s8663 = sand.u32 %s418, 1
          %s8664 = smul.addr %s8663, 8
          %s8665 = scalar_lea.vmem [#allocation14], %s8664
          %8666 = dma.done %s8662, 128
        $region128: #{decoder_forward.1} parent=123 // pred_fallthru
          _
      $region124: #{decoder_forward.1} parent=5 // pred_fallthru
        _
    $region6: #{decoder_forward.1} parent=1 // loop_footer
      %s36 = sadd.s32 1, %s32
    $region7: #{decoder_forward.1} parent=1 // loop_footer_branch
      %31 = sbr.rel target = $region3
    $region8: #{decoder_forward.1} parent=1 // loop_exit
      _
    %8667 = vsyncpa [#allocation3], 1
    %s8668 = scalar_lea.sflag [#allocation3], 1
    %8669 = vsyncpa %s8668, 1
    %8670 = vsyncpa [#allocation6], 1
    %8671 = vsyncpa [#allocation9], 1
    %8672 = vsyncpa [#allocation12], 1
    %8673 = vsyncpa [#allocation4], 1
    %s8674 = scalar_lea.sflag [#allocation4], 1
    %8675 = vsyncpa %s8674, 1

</llo_original>
